<compile_context>
chip_gen: v7x
topology: tpu7x:2x2x1
jax: 0.10.0
libtpu: 0.0.40
codegen_flags: <defaults>
</compile_context>

<pallas_src>
import functools

import jax
import jax.numpy as jnp
from jax.experimental import pallas as pl
from jax.experimental.pallas import tpu as pltpu


# ----------------------------- Pallas kernel --------------------------------
def _convlstm_kernel(x_ref, h_ref, wx_ref, wh_ref, b_ref, c_ref, wc_ref,
                     ch_ref, cc_ref, *, k, H, W):
    """One batch image of the fused ConvLSTM cell update.

    x_ref : (1, H+2p, W+2p, Cin)   bf16  zero-padded input image (NHWC)
    h_ref : (1, H+2p, W+2p, Chid)  bf16  zero-padded hidden image (NHWC)
    wx_ref: (k*k, Cin,  4*Chid)    bf16  per-tap x gate weights, order (i,f,c,o)
    wh_ref: (k*k, Chid, 4*Chid)    bf16  per-tap h gate weights, order (i,f,c,o)
    b_ref : (1, 4*Chid)            f32   gate biases, order (i,f,c,o)
    c_ref : (1, H*W, Chid)         f32   previous cell state
    wc_ref: (H*W, 3*Chid)          f32   peephole weights [Wci | Wcf | Wco]
    ch_ref: (1, H*W, Chid)         f32   new hidden state
    cc_ref: (1, H*W, Chid)         f32   new cell state
    """
    chid = c_ref.shape[-1]
    hw = H * W

    # Shifted-tap "same" convolution: k*k small matmuls per path, all
    # accumulated into one f32 accumulator.  Bias folded in via the init.
    acc = jnp.broadcast_to(b_ref[...], (hw, 4 * chid)).astype(jnp.float32)
    for ky in range(k):
        for kx in range(k):
            tap = ky * k + kx
            x_win = x_ref[0, ky:ky + H, kx:kx + W, :].reshape(hw, -1)
            acc = acc + jnp.dot(x_win, wx_ref[tap],
                                preferred_element_type=jnp.float32)
            h_win = h_ref[0, ky:ky + H, kx:kx + W, :].reshape(hw, -1)
            acc = acc + jnp.dot(h_win, wh_ref[tap],
                                preferred_element_type=jnp.float32)

    g_i = acc[:, 0 * chid:1 * chid]
    g_f = acc[:, 1 * chid:2 * chid]
    g_c = acc[:, 2 * chid:3 * chid]
    g_o = acc[:, 3 * chid:4 * chid]

    c = c_ref[0]
    wc = wc_ref[...]
    wci = wc[:, 0 * chid:1 * chid]
    wcf = wc[:, 1 * chid:2 * chid]
    wco = wc[:, 2 * chid:3 * chid]

    ci = jax.nn.sigmoid(g_i + c * wci)
    cf = jax.nn.sigmoid(g_f + c * wcf)
    cc = cf * c + ci * jnp.tanh(g_c)
    co = jax.nn.sigmoid(g_o + cc * wco)
    ch = co * jnp.tanh(cc)

    ch_ref[0] = ch
    cc_ref[0] = cc


# ------------------------------- glue (JAX) ----------------------------------
def _oihw_to_taps(w_oihw):
    """(Cout, Cin, K, K) conv weight -> (K*K, Cin, Cout), tap order (ky, kx)."""
    cout, cin, k, _ = w_oihw.shape
    return jnp.transpose(w_oihw, (2, 3, 1, 0)).reshape(k * k, cin, cout)


def conv_lstm_cell_forward(params, x_nchw, h_nchw, c_nchw, *, kernel_size):
    """Forward of Conv3DLSTMCell. Inputs in NCHW (PyTorch convention).

    Returns (ch, cc) in NCHW, float32.
    """
    k = kernel_size
    pad = (k - 1) // 2
    B, Cin, H, W = x_nchw.shape
    Chid = h_nchw.shape[1]
    HW = H * W
    Hp, Wp = H + 2 * pad, W + 2 * pad

    # NCHW -> zero-padded NHWC, bf16 (MXU-native operand dtype).
    def pad_nhwc(a):
        a = jnp.transpose(a, (0, 2, 3, 1))
        a = jnp.pad(a, ((0, 0), (pad, pad), (pad, pad), (0, 0)))
        return a.astype(jnp.bfloat16)

    xp = pad_nhwc(x_nchw)                                           # (B,Hp,Wp,Cin)
    hp = pad_nhwc(h_nchw)                                           # (B,Hp,Wp,Chid)
    c = jnp.transpose(c_nchw, (0, 2, 3, 1)
                      ).reshape(B, HW, Chid).astype(jnp.float32)    # (B,HW,Chid)

    # Per-tap gate weights, gate order (i, f, c, o) stacked along Cout.
    wx = jnp.concatenate([_oihw_to_taps(params[n]) for n in
                          ("Wxi", "Wxf", "Wxc", "Wxo")],
                         axis=-1).astype(jnp.bfloat16)              # (k*k,Cin,4*Chid)
    wh = jnp.concatenate([_oihw_to_taps(params[n]) for n in
                          ("Whi", "Whf", "Whc", "Who")],
                         axis=-1).astype(jnp.bfloat16)              # (k*k,Chid,4*Chid)
    bias = jnp.concatenate([params[n] for n in ("bxi", "bxf", "bxc", "bxo")],
                           axis=0)[None, :].astype(jnp.float32)     # (1, 4*Chid)

    # Peephole weights: (1, Chid, H, W) -> (HW, Chid); NO batch broadcast.
    def peephole(name):
        return jnp.transpose(params[name], (0, 2, 3, 1)
                             ).reshape(HW, Chid).astype(jnp.float32)

    wc = jnp.concatenate([peephole("Wci"), peephole("Wcf"), peephole("Wco")],
                         axis=-1)                                   # (HW, 3*Chid)

    # Per-generation VMEM budget: use the real capacity (128 MiB on v5e/v6e,
    # 64 MiB per TC on v7x) instead of a blanket cap; leave 10% headroom.
    try:
        vmem_cap = int(pltpu.get_tpu_info().vmem_capacity_bytes)
    except Exception:  # conservative fallback if the query is unavailable
        vmem_cap = 64 << 20
    est = 2 * (Hp * Wp * (Cin + Chid) * 2              # bf16 x/h image tiles
               + 3 * HW * Chid * 4                     # f32 c, ch, cc tiles
               + k * k * (Cin + Chid) * 4 * Chid * 2   # bf16 tap weights
               + HW * 3 * Chid * 4                     # f32 peephole table
               + 4 * Chid * 4)                         # f32 bias
    est += 4 * HW * 4 * Chid * 4                       # live f32 accumulator/temps
    vmem_limit = int(min(max(est + (16 << 20), 32 << 20), int(vmem_cap * 0.9)))

    kernel = functools.partial(_convlstm_kernel, k=k, H=H, W=W)

    ch_flat, cc_flat = pl.pallas_call(
        kernel,
        out_shape=(jax.ShapeDtypeStruct((B, HW, Chid), jnp.float32),
                   jax.ShapeDtypeStruct((B, HW, Chid), jnp.float32)),
        grid_spec=pltpu.PrefetchScalarGridSpec(
            num_scalar_prefetch=0,
            grid=(B,),
            in_specs=[
                pl.BlockSpec((1, Hp, Wp, Cin), lambda b: (b, 0, 0, 0)),     # x image
                pl.BlockSpec((1, Hp, Wp, Chid), lambda b: (b, 0, 0, 0)),    # h image
                pl.BlockSpec((k * k, Cin, 4 * Chid), lambda b: (0, 0, 0)),  # Wx taps
                pl.BlockSpec((k * k, Chid, 4 * Chid), lambda b: (0, 0, 0)), # Wh taps
                pl.BlockSpec((1, 4 * Chid), lambda b: (0, 0)),              # bias
                pl.BlockSpec((1, HW, Chid), lambda b: (b, 0, 0)),           # c
                pl.BlockSpec((HW, 3 * Chid), lambda b: (0, 0)),             # peepholes
            ],
            out_specs=[pl.BlockSpec((1, HW, Chid), lambda b: (b, 0, 0)),    # ch
                       pl.BlockSpec((1, HW, Chid), lambda b: (b, 0, 0))],   # cc
        ),
        compiler_params=pltpu.CompilerParams(
            dimension_semantics=("parallel",),
            vmem_limit_bytes=vmem_limit),
    )(xp, hp, wx, wh, bias, c, wc)

    ch = jnp.transpose(ch_flat.reshape(B, H, W, Chid), (0, 3, 1, 2))
    cc = jnp.transpose(cc_flat.reshape(B, H, W, Chid), (0, 3, 1, 2))
    return ch, cc


# --------------------------- reference (plain JAX) ---------------------------
def _conv_same_nchw(x, w, b=None):
    k = w.shape[-1]
    pad = (k - 1) // 2
    out = jax.lax.conv_general_dilated(
        x, w, window_strides=(1, 1), padding=[(pad, pad), (pad, pad)],
        dimension_numbers=("NCHW", "OIHW", "NCHW"))
    if b is not None:
        out = out + b[None, :, None, None]
    return out


def reference_forward(params, x, h, c):
    ci = jax.nn.sigmoid(_conv_same_nchw(x, params["Wxi"], params["bxi"]) +
                        _conv_same_nchw(h, params["Whi"]) + c * params["Wci"])
    cf = jax.nn.sigmoid(_conv_same_nchw(x, params["Wxf"], params["bxf"]) +
                        _conv_same_nchw(h, params["Whf"]) + c * params["Wcf"])
    cc = cf * c + ci * jnp.tanh(_conv_same_nchw(x, params["Wxc"], params["bxc"]) +
                                _conv_same_nchw(h, params["Whc"]))
    co = jax.nn.sigmoid(_conv_same_nchw(x, params["Wxo"], params["bxo"]) +
                        _conv_same_nchw(h, params["Who"]) + cc * params["Wco"])
    ch = co * jnp.tanh(cc)
    return ch, cc


# ----------------------------------- main ------------------------------------
if __name__ == "__main__":
    B, Cin, Chid, H, W, K = 2, 4, 32, 16, 16, 3
    key = jax.random.PRNGKey(0)
    keys = jax.random.split(key, 20)

    def normal(k_, shape, scale=0.1):
        return (scale * jax.random.normal(k_, shape)).astype(jnp.float32)

    params = {
        "Wxi": normal(keys[0], (Chid, Cin, K, K)),
        "Whi": normal(keys[1], (Chid, Chid, K, K)),
        "Wxf": normal(keys[2], (Chid, Cin, K, K)),
        "Whf": normal(keys[3], (Chid, Chid, K, K)),
        "Wxc": normal(keys[4], (Chid, Cin, K, K)),
        "Whc": normal(keys[5], (Chid, Chid, K, K)),
        "Wxo": normal(keys[6], (Chid, Cin, K, K)),
        "Who": normal(keys[7], (Chid, Chid, K, K)),
        "bxi": normal(keys[8], (Chid,)),
        "bxf": normal(keys[9], (Chid,)),
        "bxc": normal(keys[10], (Chid,)),
        "bxo": normal(keys[11], (Chid,)),
        # init_hidden makes the peepholes zeros; small random values here so
        # the peephole path is actually exercised.
        "Wci": normal(keys[12], (1, Chid, H, W)),
        "Wcf": normal(keys[13], (1, Chid, H, W)),
        "Wco": normal(keys[14], (1, Chid, H, W)),
    }

    x = normal(keys[15], (B, Cin, H, W), 1.0)
    h = normal(keys[16], (B, Chid, H, W), 1.0)
    c = normal(keys[17], (B, Chid, H, W), 1.0)

    fwd = jax.jit(functools.partial(conv_lstm_cell_forward, kernel_size=K))
    ch, cc = fwd(params, x, h, c)
    jax.block_until_ready((ch, cc))
    assert ch.shape == (B, Chid, H, W) and cc.shape == (B, Chid, H, W)

    # Tight check: reference with the same bf16 rounding applied to the gate
    # conv inputs/weights (isolates kernel-structure errors from bf16 quant).
    def bf16_round(a):
        return a.astype(jnp.bfloat16).astype(jnp.float32)

    params_q = dict(params)
    for name in ("Wxi", "Whi", "Wxf", "Whf", "Wxc", "Whc", "Wxo", "Who"):
        params_q[name] = bf16_round(params[name])
    ch_ref_q, cc_ref_q = reference_forward(params_q, bf16_round(x), bf16_round(h), c)
    assert jnp.allclose(ch, ch_ref_q, atol=5e-3, rtol=5e-3)
    assert jnp.allclose(cc, cc_ref_q, atol=5e-3, rtol=5e-3)

    # Loose check vs. the exact f32 reference (bf16 gate-matmul tolerance).
    # Note: bf16 quantization of the h-path recurrence input accumulates drift
    # over long unrolled sequences vs. a pure-f32 reference.
    ch_ref, cc_ref = reference_forward(params, x, h, c)
    assert jnp.allclose(ch, ch_ref, atol=1e-1, rtol=1e-1)
    assert jnp.allclose(cc, cc_ref, atol=1e-1, rtol=1e-1)

    print("KERNEL_OK")
</pallas_src>

<mosaic_0001>
module attributes {stable_mosaic.version = 11 : i64} {
  func.func @_convlstm_kernel(%arg0: i32, %arg1: memref<1x18x18x4xbf16, #tpu.memory_space<vmem>>, %arg2: memref<1x18x18x32xbf16, #tpu.memory_space<vmem>>, %arg3: memref<9x4x128xbf16, #tpu.memory_space<vmem>>, %arg4: memref<9x32x128xbf16, #tpu.memory_space<vmem>>, %arg5: memref<1x128xf32, #tpu.memory_space<vmem>>, %arg6: memref<1x256x32xf32, #tpu.memory_space<vmem>>, %arg7: memref<256x96xf32, #tpu.memory_space<vmem>>, %arg8: memref<1x256x32xf32, #tpu.memory_space<vmem>>, %arg9: memref<1x256x32xf32, #tpu.memory_space<vmem>>) attributes {dimension_semantics = [#tpu.dimension_semantics<parallel>], iteration_bounds = array<i64: 2>, scalar_prefetch = 0 : i64, scratch_operands = 0 : i64, tpu.core_type = #tpu.core_type<tc>, window_params = [{transform_indices = @transform_0, window_bounds = array<i64: 1, 18, 18, 4>}, {transform_indices = @transform_1, window_bounds = array<i64: 1, 18, 18, 32>}, {pipeline_mode = #tpu.pipeline_mode<synchronous>, transform_indices = @transform_2, window_bounds = array<i64: 9, 4, 128>}, {pipeline_mode = #tpu.pipeline_mode<synchronous>, transform_indices = @transform_3, window_bounds = array<i64: 9, 32, 128>}, {pipeline_mode = #tpu.pipeline_mode<synchronous>, transform_indices = @transform_4, window_bounds = array<i64: 1, 128>}, {transform_indices = @transform_5, window_bounds = array<i64: 1, 256, 32>}, {pipeline_mode = #tpu.pipeline_mode<synchronous>, transform_indices = @transform_6, window_bounds = array<i64: 256, 96>}, {transform_indices = @transform_7, window_bounds = array<i64: 1, 256, 32>}, {transform_indices = @transform_8, window_bounds = array<i64: 1, 256, 32>}]} {
    %c0 = arith.constant 0 : index
    %c0_0 = arith.constant 0 : index
    %0 = vector.load %arg5[%c0, %c0_0] : memref<1x128xf32, #tpu.memory_space<vmem>>, vector<1x128xf32>
    %1 = vector.shape_cast %0 : vector<1x128xf32> to vector<1x128xf32>
    %2 = vector.broadcast %1 : vector<1x128xf32> to vector<256x128xf32>
    %c0_1 = arith.constant 0 : index
    %c0_2 = arith.constant 0 : index
    %c0_3 = arith.constant 0 : index
    %c0_4 = arith.constant 0 : index
    %3 = vector.load %arg1[%c0_1, %c0_2, %c0_3, %c0_4] : memref<1x18x18x4xbf16, #tpu.memory_space<vmem>>, vector<1x16x16x4xbf16>
    %4 = vector.shape_cast %3 : vector<1x16x16x4xbf16> to vector<16x16x4xbf16>
    %5 = vector.shape_cast %4 : vector<16x16x4xbf16> to vector<256x4xbf16>
    %c0_5 = arith.constant 0 : index
    %c0_6 = arith.constant 0 : index
    %c0_7 = arith.constant 0 : index
    %6 = vector.load %arg3[%c0_5, %c0_6, %c0_7] : memref<9x4x128xbf16, #tpu.memory_space<vmem>>, vector<1x4x128xbf16>
    %7 = vector.shape_cast %6 : vector<1x4x128xbf16> to vector<4x128xbf16>
    %cst = arith.constant dense<0.000000e+00> : vector<256x128xf32>
    %8 = tpu.matmul %5, %7, %cst {dimension_numbers = #tpu.dot_dimension_numbers<[1], [0], [0], [1], [0, 0, 1, 1], [], []>} : vector<256x4xbf16>, vector<4x128xbf16>, vector<256x128xf32> -> vector<256x128xf32>
    %9 = arith.addf %2, %8 : vector<256x128xf32>
    %c0_8 = arith.constant 0 : index
    %c0_9 = arith.constant 0 : index
    %c0_10 = arith.constant 0 : index
    %c0_11 = arith.constant 0 : index
    %10 = vector.load %arg2[%c0_8, %c0_9, %c0_10, %c0_11] : memref<1x18x18x32xbf16, #tpu.memory_space<vmem>>, vector<1x16x16x32xbf16>
    %11 = vector.shape_cast %10 : vector<1x16x16x32xbf16> to vector<16x16x32xbf16>
    %12 = vector.shape_cast %11 : vector<16x16x32xbf16> to vector<256x32xbf16>
    %c0_12 = arith.constant 0 : index
    %c0_13 = arith.constant 0 : index
    %c0_14 = arith.constant 0 : index
    %13 = vector.load %arg4[%c0_12, %c0_13, %c0_14] : memref<9x32x128xbf16, #tpu.memory_space<vmem>>, vector<1x32x128xbf16>
    %14 = vector.shape_cast %13 : vector<1x32x128xbf16> to vector<32x128xbf16>
    %cst_15 = arith.constant dense<0.000000e+00> : vector<256x128xf32>
    %15 = tpu.matmul %12, %14, %cst_15 {dimension_numbers = #tpu.dot_dimension_numbers<[1], [0], [0], [1], [0, 0, 1, 1], [], []>} : vector<256x32xbf16>, vector<32x128xbf16>, vector<256x128xf32> -> vector<256x128xf32>
    %16 = arith.addf %9, %15 : vector<256x128xf32>
    %c0_16 = arith.constant 0 : index
    %c0_17 = arith.constant 0 : index
    %c1 = arith.constant 1 : index
    %c0_18 = arith.constant 0 : index
    %17 = vector.load %arg1[%c0_16, %c0_17, %c1, %c0_18] : memref<1x18x18x4xbf16, #tpu.memory_space<vmem>>, vector<1x16x16x4xbf16>
    %18 = vector.shape_cast %17 : vector<1x16x16x4xbf16> to vector<16x16x4xbf16>
    %19 = vector.shape_cast %18 : vector<16x16x4xbf16> to vector<256x4xbf16>
    %c1_19 = arith.constant 1 : index
    %c0_20 = arith.constant 0 : index
    %c0_21 = arith.constant 0 : index
    %20 = vector.load %arg3[%c1_19, %c0_20, %c0_21] : memref<9x4x128xbf16, #tpu.memory_space<vmem>>, vector<1x4x128xbf16>
    %21 = vector.shape_cast %20 : vector<1x4x128xbf16> to vector<4x128xbf16>
    %cst_22 = arith.constant dense<0.000000e+00> : vector<256x128xf32>
    %22 = tpu.matmul %19, %21, %cst_22 {dimension_numbers = #tpu.dot_dimension_numbers<[1], [0], [0], [1], [0, 0, 1, 1], [], []>} : vector<256x4xbf16>, vector<4x128xbf16>, vector<256x128xf32> -> vector<256x128xf32>
    %23 = arith.addf %16, %22 : vector<256x128xf32>
    %c0_23 = arith.constant 0 : index
    %c0_24 = arith.constant 0 : index
    %c1_25 = arith.constant 1 : index
    %c0_26 = arith.constant 0 : index
    %24 = vector.load %arg2[%c0_23, %c0_24, %c1_25, %c0_26] : memref<1x18x18x32xbf16, #tpu.memory_space<vmem>>, vector<1x16x16x32xbf16>
    %25 = vector.shape_cast %24 : vector<1x16x16x32xbf16> to vector<16x16x32xbf16>
    %26 = vector.shape_cast %25 : vector<16x16x32xbf16> to vector<256x32xbf16>
    %c1_27 = arith.constant 1 : index
    %c0_28 = arith.constant 0 : index
    %c0_29 = arith.constant 0 : index
    %27 = vector.load %arg4[%c1_27, %c0_28, %c0_29] : memref<9x32x128xbf16, #tpu.memory_space<vmem>>, vector<1x32x128xbf16>
    %28 = vector.shape_cast %27 : vector<1x32x128xbf16> to vector<32x128xbf16>
    %cst_30 = arith.constant dense<0.000000e+00> : vector<256x128xf32>
    %29 = tpu.matmul %26, %28, %cst_30 {dimension_numbers = #tpu.dot_dimension_numbers<[1], [0], [0], [1], [0, 0, 1, 1], [], []>} : vector<256x32xbf16>, vector<32x128xbf16>, vector<256x128xf32> -> vector<256x128xf32>
    %30 = arith.addf %23, %29 : vector<256x128xf32>
    %c0_31 = arith.constant 0 : index
    %c0_32 = arith.constant 0 : index
    %c2 = arith.constant 2 : index
    %c0_33 = arith.constant 0 : index
    %31 = vector.load %arg1[%c0_31, %c0_32, %c2, %c0_33] : memref<1x18x18x4xbf16, #tpu.memory_space<vmem>>, vector<1x16x16x4xbf16>
    %32 = vector.shape_cast %31 : vector<1x16x16x4xbf16> to vector<16x16x4xbf16>
    %33 = vector.shape_cast %32 : vector<16x16x4xbf16> to vector<256x4xbf16>
    %c2_34 = arith.constant 2 : index
    %c0_35 = arith.constant 0 : index
    %c0_36 = arith.constant 0 : index
    %34 = vector.load %arg3[%c2_34, %c0_35, %c0_36] : memref<9x4x128xbf16, #tpu.memory_space<vmem>>, vector<1x4x128xbf16>
    %35 = vector.shape_cast %34 : vector<1x4x128xbf16> to vector<4x128xbf16>
    %cst_37 = arith.constant dense<0.000000e+00> : vector<256x128xf32>
    %36 = tpu.matmul %33, %35, %cst_37 {dimension_numbers = #tpu.dot_dimension_numbers<[1], [0], [0], [1], [0, 0, 1, 1], [], []>} : vector<256x4xbf16>, vector<4x128xbf16>, vector<256x128xf32> -> vector<256x128xf32>
    %37 = arith.addf %30, %36 : vector<256x128xf32>
    %c0_38 = arith.constant 0 : index
    %c0_39 = arith.constant 0 : index
    %c2_40 = arith.constant 2 : index
    %c0_41 = arith.constant 0 : index
    %38 = vector.load %arg2[%c0_38, %c0_39, %c2_40, %c0_41] : memref<1x18x18x32xbf16, #tpu.memory_space<vmem>>, vector<1x16x16x32xbf16>
    %39 = vector.shape_cast %38 : vector<1x16x16x32xbf16> to vector<16x16x32xbf16>
    %40 = vector.shape_cast %39 : vector<16x16x32xbf16> to vector<256x32xbf16>
    %c2_42 = arith.constant 2 : index
    %c0_43 = arith.constant 0 : index
    %c0_44 = arith.constant 0 : index
    %41 = vector.load %arg4[%c2_42, %c0_43, %c0_44] : memref<9x32x128xbf16, #tpu.memory_space<vmem>>, vector<1x32x128xbf16>
    %42 = vector.shape_cast %41 : vector<1x32x128xbf16> to vector<32x128xbf16>
    %cst_45 = arith.constant dense<0.000000e+00> : vector<256x128xf32>
    %43 = tpu.matmul %40, %42, %cst_45 {dimension_numbers = #tpu.dot_dimension_numbers<[1], [0], [0], [1], [0, 0, 1, 1], [], []>} : vector<256x32xbf16>, vector<32x128xbf16>, vector<256x128xf32> -> vector<256x128xf32>
    %44 = arith.addf %37, %43 : vector<256x128xf32>
    %c0_46 = arith.constant 0 : index
    %c1_47 = arith.constant 1 : index
    %c0_48 = arith.constant 0 : index
    %c0_49 = arith.constant 0 : index
    %45 = vector.load %arg1[%c0_46, %c1_47, %c0_48, %c0_49] : memref<1x18x18x4xbf16, #tpu.memory_space<vmem>>, vector<1x16x16x4xbf16>
    %46 = vector.shape_cast %45 : vector<1x16x16x4xbf16> to vector<16x16x4xbf16>
    %47 = vector.shape_cast %46 : vector<16x16x4xbf16> to vector<256x4xbf16>
    %c3 = arith.constant 3 : index
    %c0_50 = arith.constant 0 : index
    %c0_51 = arith.constant 0 : index
    %48 = vector.load %arg3[%c3, %c0_50, %c0_51] : memref<9x4x128xbf16, #tpu.memory_space<vmem>>, vector<1x4x128xbf16>
    %49 = vector.shape_cast %48 : vector<1x4x128xbf16> to vector<4x128xbf16>
    %cst_52 = arith.constant dense<0.000000e+00> : vector<256x128xf32>
    %50 = tpu.matmul %47, %49, %cst_52 {dimension_numbers = #tpu.dot_dimension_numbers<[1], [0], [0], [1], [0, 0, 1, 1], [], []>} : vector<256x4xbf16>, vector<4x128xbf16>, vector<256x128xf32> -> vector<256x128xf32>
    %51 = arith.addf %44, %50 : vector<256x128xf32>
    %c0_53 = arith.constant 0 : index
    %c1_54 = arith.constant 1 : index
    %c0_55 = arith.constant 0 : index
    %c0_56 = arith.constant 0 : index
    %52 = vector.load %arg2[%c0_53, %c1_54, %c0_55, %c0_56] : memref<1x18x18x32xbf16, #tpu.memory_space<vmem>>, vector<1x16x16x32xbf16>
    %53 = vector.shape_cast %52 : vector<1x16x16x32xbf16> to vector<16x16x32xbf16>
    %54 = vector.shape_cast %53 : vector<16x16x32xbf16> to vector<256x32xbf16>
    %c3_57 = arith.constant 3 : index
    %c0_58 = arith.constant 0 : index
    %c0_59 = arith.constant 0 : index
    %55 = vector.load %arg4[%c3_57, %c0_58, %c0_59] : memref<9x32x128xbf16, #tpu.memory_space<vmem>>, vector<1x32x128xbf16>
    %56 = vector.shape_cast %55 : vector<1x32x128xbf16> to vector<32x128xbf16>
    %cst_60 = arith.constant dense<0.000000e+00> : vector<256x128xf32>
    %57 = tpu.matmul %54, %56, %cst_60 {dimension_numbers = #tpu.dot_dimension_numbers<[1], [0], [0], [1], [0, 0, 1, 1], [], []>} : vector<256x32xbf16>, vector<32x128xbf16>, vector<256x128xf32> -> vector<256x128xf32>
    %58 = arith.addf %51, %57 : vector<256x128xf32>
    %c0_61 = arith.constant 0 : index
    %c1_62 = arith.constant 1 : index
    %c1_63 = arith.constant 1 : index
    %c0_64 = arith.constant 0 : index
    %59 = vector.load %arg1[%c0_61, %c1_62, %c1_63, %c0_64] : memref<1x18x18x4xbf16, #tpu.memory_space<vmem>>, vector<1x16x16x4xbf16>
    %60 = vector.shape_cast %59 : vector<1x16x16x4xbf16> to vector<16x16x4xbf16>
    %61 = vector.shape_cast %60 : vector<16x16x4xbf16> to vector<256x4xbf16>
    %c4 = arith.constant 4 : index
    %c0_65 = arith.constant 0 : index
    %c0_66 = arith.constant 0 : index
    %62 = vector.load %arg3[%c4, %c0_65, %c0_66] : memref<9x4x128xbf16, #tpu.memory_space<vmem>>, vector<1x4x128xbf16>
    %63 = vector.shape_cast %62 : vector<1x4x128xbf16> to vector<4x128xbf16>
    %cst_67 = arith.constant dense<0.000000e+00> : vector<256x128xf32>
    %64 = tpu.matmul %61, %63, %cst_67 {dimension_numbers = #tpu.dot_dimension_numbers<[1], [0], [0], [1], [0, 0, 1, 1], [], []>} : vector<256x4xbf16>, vector<4x128xbf16>, vector<256x128xf32> -> vector<256x128xf32>
    %65 = arith.addf %58, %64 : vector<256x128xf32>
    %c0_68 = arith.constant 0 : index
    %c1_69 = arith.constant 1 : index
    %c1_70 = arith.constant 1 : index
    %c0_71 = arith.constant 0 : index
    %66 = vector.load %arg2[%c0_68, %c1_69, %c1_70, %c0_71] : memref<1x18x18x32xbf16, #tpu.memory_space<vmem>>, vector<1x16x16x32xbf16>
    %67 = vector.shape_cast %66 : vector<1x16x16x32xbf16> to vector<16x16x32xbf16>
    %68 = vector.shape_cast %67 : vector<16x16x32xbf16> to vector<256x32xbf16>
    %c4_72 = arith.constant 4 : index
    %c0_73 = arith.constant 0 : index
    %c0_74 = arith.constant 0 : index
    %69 = vector.load %arg4[%c4_72, %c0_73, %c0_74] : memref<9x32x128xbf16, #tpu.memory_space<vmem>>, vector<1x32x128xbf16>
    %70 = vector.shape_cast %69 : vector<1x32x128xbf16> to vector<32x128xbf16>
    %cst_75 = arith.constant dense<0.000000e+00> : vector<256x128xf32>
    %71 = tpu.matmul %68, %70, %cst_75 {dimension_numbers = #tpu.dot_dimension_numbers<[1], [0], [0], [1], [0, 0, 1, 1], [], []>} : vector<256x32xbf16>, vector<32x128xbf16>, vector<256x128xf32> -> vector<256x128xf32>
    %72 = arith.addf %65, %71 : vector<256x128xf32>
    %c0_76 = arith.constant 0 : index
    %c1_77 = arith.constant 1 : index
    %c2_78 = arith.constant 2 : index
    %c0_79 = arith.constant 0 : index
    %73 = vector.load %arg1[%c0_76, %c1_77, %c2_78, %c0_79] : memref<1x18x18x4xbf16, #tpu.memory_space<vmem>>, vector<1x16x16x4xbf16>
    %74 = vector.shape_cast %73 : vector<1x16x16x4xbf16> to vector<16x16x4xbf16>
    %75 = vector.shape_cast %74 : vector<16x16x4xbf16> to vector<256x4xbf16>
    %c5 = arith.constant 5 : index
    %c0_80 = arith.constant 0 : index
    %c0_81 = arith.constant 0 : index
    %76 = vector.load %arg3[%c5, %c0_80, %c0_81] : memref<9x4x128xbf16, #tpu.memory_space<vmem>>, vector<1x4x128xbf16>
    %77 = vector.shape_cast %76 : vector<1x4x128xbf16> to vector<4x128xbf16>
    %cst_82 = arith.constant dense<0.000000e+00> : vector<256x128xf32>
    %78 = tpu.matmul %75, %77, %cst_82 {dimension_numbers = #tpu.dot_dimension_numbers<[1], [0], [0], [1], [0, 0, 1, 1], [], []>} : vector<256x4xbf16>, vector<4x128xbf16>, vector<256x128xf32> -> vector<256x128xf32>
    %79 = arith.addf %72, %78 : vector<256x128xf32>
    %c0_83 = arith.constant 0 : index
    %c1_84 = arith.constant 1 : index
    %c2_85 = arith.constant 2 : index
    %c0_86 = arith.constant 0 : index
    %80 = vector.load %arg2[%c0_83, %c1_84, %c2_85, %c0_86] : memref<1x18x18x32xbf16, #tpu.memory_space<vmem>>, vector<1x16x16x32xbf16>
    %81 = vector.shape_cast %80 : vector<1x16x16x32xbf16> to vector<16x16x32xbf16>
    %82 = vector.shape_cast %81 : vector<16x16x32xbf16> to vector<256x32xbf16>
    %c5_87 = arith.constant 5 : index
    %c0_88 = arith.constant 0 : index
    %c0_89 = arith.constant 0 : index
    %83 = vector.load %arg4[%c5_87, %c0_88, %c0_89] : memref<9x32x128xbf16, #tpu.memory_space<vmem>>, vector<1x32x128xbf16>
    %84 = vector.shape_cast %83 : vector<1x32x128xbf16> to vector<32x128xbf16>
    %cst_90 = arith.constant dense<0.000000e+00> : vector<256x128xf32>
    %85 = tpu.matmul %82, %84, %cst_90 {dimension_numbers = #tpu.dot_dimension_numbers<[1], [0], [0], [1], [0, 0, 1, 1], [], []>} : vector<256x32xbf16>, vector<32x128xbf16>, vector<256x128xf32> -> vector<256x128xf32>
    %86 = arith.addf %79, %85 : vector<256x128xf32>
    %c0_91 = arith.constant 0 : index
    %c2_92 = arith.constant 2 : index
    %c0_93 = arith.constant 0 : index
    %c0_94 = arith.constant 0 : index
    %87 = vector.load %arg1[%c0_91, %c2_92, %c0_93, %c0_94] : memref<1x18x18x4xbf16, #tpu.memory_space<vmem>>, vector<1x16x16x4xbf16>
    %88 = vector.shape_cast %87 : vector<1x16x16x4xbf16> to vector<16x16x4xbf16>
    %89 = vector.shape_cast %88 : vector<16x16x4xbf16> to vector<256x4xbf16>
    %c6 = arith.constant 6 : index
    %c0_95 = arith.constant 0 : index
    %c0_96 = arith.constant 0 : index
    %90 = vector.load %arg3[%c6, %c0_95, %c0_96] : memref<9x4x128xbf16, #tpu.memory_space<vmem>>, vector<1x4x128xbf16>
    %91 = vector.shape_cast %90 : vector<1x4x128xbf16> to vector<4x128xbf16>
    %cst_97 = arith.constant dense<0.000000e+00> : vector<256x128xf32>
    %92 = tpu.matmul %89, %91, %cst_97 {dimension_numbers = #tpu.dot_dimension_numbers<[1], [0], [0], [1], [0, 0, 1, 1], [], []>} : vector<256x4xbf16>, vector<4x128xbf16>, vector<256x128xf32> -> vector<256x128xf32>
    %93 = arith.addf %86, %92 : vector<256x128xf32>
    %c0_98 = arith.constant 0 : index
    %c2_99 = arith.constant 2 : index
    %c0_100 = arith.constant 0 : index
    %c0_101 = arith.constant 0 : index
    %94 = vector.load %arg2[%c0_98, %c2_99, %c0_100, %c0_101] : memref<1x18x18x32xbf16, #tpu.memory_space<vmem>>, vector<1x16x16x32xbf16>
    %95 = vector.shape_cast %94 : vector<1x16x16x32xbf16> to vector<16x16x32xbf16>
    %96 = vector.shape_cast %95 : vector<16x16x32xbf16> to vector<256x32xbf16>
    %c6_102 = arith.constant 6 : index
    %c0_103 = arith.constant 0 : index
    %c0_104 = arith.constant 0 : index
    %97 = vector.load %arg4[%c6_102, %c0_103, %c0_104] : memref<9x32x128xbf16, #tpu.memory_space<vmem>>, vector<1x32x128xbf16>
    %98 = vector.shape_cast %97 : vector<1x32x128xbf16> to vector<32x128xbf16>
    %cst_105 = arith.constant dense<0.000000e+00> : vector<256x128xf32>
    %99 = tpu.matmul %96, %98, %cst_105 {dimension_numbers = #tpu.dot_dimension_numbers<[1], [0], [0], [1], [0, 0, 1, 1], [], []>} : vector<256x32xbf16>, vector<32x128xbf16>, vector<256x128xf32> -> vector<256x128xf32>
    %100 = arith.addf %93, %99 : vector<256x128xf32>
    %c0_106 = arith.constant 0 : index
    %c2_107 = arith.constant 2 : index
    %c1_108 = arith.constant 1 : index
    %c0_109 = arith.constant 0 : index
    %101 = vector.load %arg1[%c0_106, %c2_107, %c1_108, %c0_109] : memref<1x18x18x4xbf16, #tpu.memory_space<vmem>>, vector<1x16x16x4xbf16>
    %102 = vector.shape_cast %101 : vector<1x16x16x4xbf16> to vector<16x16x4xbf16>
    %103 = vector.shape_cast %102 : vector<16x16x4xbf16> to vector<256x4xbf16>
    %c7 = arith.constant 7 : index
    %c0_110 = arith.constant 0 : index
    %c0_111 = arith.constant 0 : index
    %104 = vector.load %arg3[%c7, %c0_110, %c0_111] : memref<9x4x128xbf16, #tpu.memory_space<vmem>>, vector<1x4x128xbf16>
    %105 = vector.shape_cast %104 : vector<1x4x128xbf16> to vector<4x128xbf16>
    %cst_112 = arith.constant dense<0.000000e+00> : vector<256x128xf32>
    %106 = tpu.matmul %103, %105, %cst_112 {dimension_numbers = #tpu.dot_dimension_numbers<[1], [0], [0], [1], [0, 0, 1, 1], [], []>} : vector<256x4xbf16>, vector<4x128xbf16>, vector<256x128xf32> -> vector<256x128xf32>
    %107 = arith.addf %100, %106 : vector<256x128xf32>
    %c0_113 = arith.constant 0 : index
    %c2_114 = arith.constant 2 : index
    %c1_115 = arith.constant 1 : index
    %c0_116 = arith.constant 0 : index
    %108 = vector.load %arg2[%c0_113, %c2_114, %c1_115, %c0_116] : memref<1x18x18x32xbf16, #tpu.memory_space<vmem>>, vector<1x16x16x32xbf16>
    %109 = vector.shape_cast %108 : vector<1x16x16x32xbf16> to vector<16x16x32xbf16>
    %110 = vector.shape_cast %109 : vector<16x16x32xbf16> to vector<256x32xbf16>
    %c7_117 = arith.constant 7 : index
    %c0_118 = arith.constant 0 : index
    %c0_119 = arith.constant 0 : index
    %111 = vector.load %arg4[%c7_117, %c0_118, %c0_119] : memref<9x32x128xbf16, #tpu.memory_space<vmem>>, vector<1x32x128xbf16>
    %112 = vector.shape_cast %111 : vector<1x32x128xbf16> to vector<32x128xbf16>
    %cst_120 = arith.constant dense<0.000000e+00> : vector<256x128xf32>
    %113 = tpu.matmul %110, %112, %cst_120 {dimension_numbers = #tpu.dot_dimension_numbers<[1], [0], [0], [1], [0, 0, 1, 1], [], []>} : vector<256x32xbf16>, vector<32x128xbf16>, vector<256x128xf32> -> vector<256x128xf32>
    %114 = arith.addf %107, %113 : vector<256x128xf32>
    %c0_121 = arith.constant 0 : index
    %c2_122 = arith.constant 2 : index
    %c2_123 = arith.constant 2 : index
    %c0_124 = arith.constant 0 : index
    %115 = vector.load %arg1[%c0_121, %c2_122, %c2_123, %c0_124] : memref<1x18x18x4xbf16, #tpu.memory_space<vmem>>, vector<1x16x16x4xbf16>
    %116 = vector.shape_cast %115 : vector<1x16x16x4xbf16> to vector<16x16x4xbf16>
    %117 = vector.shape_cast %116 : vector<16x16x4xbf16> to vector<256x4xbf16>
    %c8 = arith.constant 8 : index
    %c0_125 = arith.constant 0 : index
    %c0_126 = arith.constant 0 : index
    %118 = vector.load %arg3[%c8, %c0_125, %c0_126] : memref<9x4x128xbf16, #tpu.memory_space<vmem>>, vector<1x4x128xbf16>
    %119 = vector.shape_cast %118 : vector<1x4x128xbf16> to vector<4x128xbf16>
    %cst_127 = arith.constant dense<0.000000e+00> : vector<256x128xf32>
    %120 = tpu.matmul %117, %119, %cst_127 {dimension_numbers = #tpu.dot_dimension_numbers<[1], [0], [0], [1], [0, 0, 1, 1], [], []>} : vector<256x4xbf16>, vector<4x128xbf16>, vector<256x128xf32> -> vector<256x128xf32>
    %121 = arith.addf %114, %120 : vector<256x128xf32>
    %c0_128 = arith.constant 0 : index
    %c2_129 = arith.constant 2 : index
    %c2_130 = arith.constant 2 : index
    %c0_131 = arith.constant 0 : index
    %122 = vector.load %arg2[%c0_128, %c2_129, %c2_130, %c0_131] : memref<1x18x18x32xbf16, #tpu.memory_space<vmem>>, vector<1x16x16x32xbf16>
    %123 = vector.shape_cast %122 : vector<1x16x16x32xbf16> to vector<16x16x32xbf16>
    %124 = vector.shape_cast %123 : vector<16x16x32xbf16> to vector<256x32xbf16>
    %c8_132 = arith.constant 8 : index
    %c0_133 = arith.constant 0 : index
    %c0_134 = arith.constant 0 : index
    %125 = vector.load %arg4[%c8_132, %c0_133, %c0_134] : memref<9x32x128xbf16, #tpu.memory_space<vmem>>, vector<1x32x128xbf16>
    %126 = vector.shape_cast %125 : vector<1x32x128xbf16> to vector<32x128xbf16>
    %cst_135 = arith.constant dense<0.000000e+00> : vector<256x128xf32>
    %127 = tpu.matmul %124, %126, %cst_135 {dimension_numbers = #tpu.dot_dimension_numbers<[1], [0], [0], [1], [0, 0, 1, 1], [], []>} : vector<256x32xbf16>, vector<32x128xbf16>, vector<256x128xf32> -> vector<256x128xf32>
    %128 = arith.addf %121, %127 : vector<256x128xf32>
    %129 = vector.extract_strided_slice %128 {offsets = [0, 0], sizes = [256, 32], strides = [1, 1]} : vector<256x128xf32> to vector<256x32xf32>
    %130 = vector.extract_strided_slice %128 {offsets = [0, 32], sizes = [256, 32], strides = [1, 1]} : vector<256x128xf32> to vector<256x32xf32>
    %131 = vector.extract_strided_slice %128 {offsets = [0, 64], sizes = [256, 32], strides = [1, 1]} : vector<256x128xf32> to vector<256x32xf32>
    %132 = vector.extract_strided_slice %128 {offsets = [0, 96], sizes = [256, 32], strides = [1, 1]} : vector<256x128xf32> to vector<256x32xf32>
    %c0_136 = arith.constant 0 : index
    %c0_137 = arith.constant 0 : index
    %c0_138 = arith.constant 0 : index
    %133 = vector.load %arg6[%c0_136, %c0_137, %c0_138] : memref<1x256x32xf32, #tpu.memory_space<vmem>>, vector<1x256x32xf32>
    %134 = vector.shape_cast %133 : vector<1x256x32xf32> to vector<256x32xf32>
    %c0_139 = arith.constant 0 : index
    %c0_140 = arith.constant 0 : index
    %135 = vector.load %arg7[%c0_139, %c0_140] : memref<256x96xf32, #tpu.memory_space<vmem>>, vector<256x96xf32>
    %136 = vector.extract_strided_slice %135 {offsets = [0, 0], sizes = [256, 32], strides = [1, 1]} : vector<256x96xf32> to vector<256x32xf32>
    %137 = vector.extract_strided_slice %135 {offsets = [0, 32], sizes = [256, 32], strides = [1, 1]} : vector<256x96xf32> to vector<256x32xf32>
    %138 = vector.extract_strided_slice %135 {offsets = [0, 64], sizes = [256, 32], strides = [1, 1]} : vector<256x96xf32> to vector<256x32xf32>
    %139 = arith.mulf %134, %136 : vector<256x32xf32>
    %140 = arith.addf %129, %139 : vector<256x32xf32>
    %141 = arith.negf %140 : vector<256x32xf32>
    %142 = math.exp %141 : vector<256x32xf32>
    %cst_141 = arith.constant 1.000000e+00 : f32
    %143 = vector.broadcast %cst_141 : f32 to vector<256x32xf32>
    %144 = arith.addf %143, %142 : vector<256x32xf32>
    %145 = arith.divf %143, %144 : vector<256x32xf32>
    %146 = arith.mulf %134, %137 : vector<256x32xf32>
    %147 = arith.addf %130, %146 : vector<256x32xf32>
    %148 = arith.negf %147 : vector<256x32xf32>
    %149 = math.exp %148 : vector<256x32xf32>
    %cst_142 = arith.constant 1.000000e+00 : f32
    %150 = vector.broadcast %cst_142 : f32 to vector<256x32xf32>
    %151 = arith.addf %150, %149 : vector<256x32xf32>
    %152 = arith.divf %150, %151 : vector<256x32xf32>
    %153 = arith.mulf %152, %134 : vector<256x32xf32>
    %154 = math.tanh %131 : vector<256x32xf32>
    %155 = arith.mulf %145, %154 : vector<256x32xf32>
    %156 = arith.addf %153, %155 : vector<256x32xf32>
    %157 = arith.mulf %156, %138 : vector<256x32xf32>
    %158 = arith.addf %132, %157 : vector<256x32xf32>
    %159 = arith.negf %158 : vector<256x32xf32>
    %160 = math.exp %159 : vector<256x32xf32>
    %cst_143 = arith.constant 1.000000e+00 : f32
    %161 = vector.broadcast %cst_143 : f32 to vector<256x32xf32>
    %162 = arith.addf %161, %160 : vector<256x32xf32>
    %163 = arith.divf %161, %162 : vector<256x32xf32>
    %164 = math.tanh %156 : vector<256x32xf32>
    %165 = arith.mulf %163, %164 : vector<256x32xf32>
    %c0_144 = arith.constant 0 : index
    %c0_145 = arith.constant 0 : index
    %c0_146 = arith.constant 0 : index
    %166 = vector.load %arg8[%c0_144, %c0_145, %c0_146] : memref<1x256x32xf32, #tpu.memory_space<vmem>>, vector<1x256x32xf32>
    %167 = vector.shape_cast %166 : vector<1x256x32xf32> to vector<256x32xf32>
    %168 = vector.shape_cast %165 : vector<256x32xf32> to vector<1x256x32xf32>
    tpu.vector_store %arg8[%c0_144, %c0_145, %c0_146], %168 {strides = array<i32>} : memref<1x256x32xf32, #tpu.memory_space<vmem>>, vector<1x256x32xf32>,
    %c0_147 = arith.constant 0 : index
    %c0_148 = arith.constant 0 : index
    %c0_149 = arith.constant 0 : index
    %169 = vector.load %arg9[%c0_147, %c0_148, %c0_149] : memref<1x256x32xf32, #tpu.memory_space<vmem>>, vector<1x256x32xf32>
    %170 = vector.shape_cast %169 : vector<1x256x32xf32> to vector<256x32xf32>
    %171 = vector.shape_cast %156 : vector<256x32xf32> to vector<1x256x32xf32>
    tpu.vector_store %arg9[%c0_147, %c0_148, %c0_149], %171 {strides = array<i32>} : memref<1x256x32xf32, #tpu.memory_space<vmem>>, vector<1x256x32xf32>,
    return
  }
  func.func @transform_0(%arg0: i32) -> (i32, i32, i32, i32) {
    %c0_i32 = arith.constant 0 : i32
    %c0_i32_0 = arith.constant 0 : i32
    %c0_i32_1 = arith.constant 0 : i32
    %c0_i32_2 = arith.constant 0 : i32
    return %arg0, %c0_i32, %c0_i32_0, %c0_i32_1 : i32, i32, i32, i32
  }
  func.func @transform_1(%arg0: i32) -> (i32, i32, i32, i32) {
    %c0_i32 = arith.constant 0 : i32
    %c0_i32_0 = arith.constant 0 : i32
    %c0_i32_1 = arith.constant 0 : i32
    %c0_i32_2 = arith.constant 0 : i32
    return %arg0, %c0_i32, %c0_i32_0, %c0_i32_1 : i32, i32, i32, i32
  }
  func.func @transform_2(%arg0: i32) -> (i32, i32, i32) {
    %c0_i32 = arith.constant 0 : i32
    %c0_i32_0 = arith.constant 0 : i32
    %c0_i32_1 = arith.constant 0 : i32
    %c0_i32_2 = arith.constant 0 : i32
    return %c0_i32, %c0_i32_0, %c0_i32_1 : i32, i32, i32
  }
  func.func @transform_3(%arg0: i32) -> (i32, i32, i32) {
    %c0_i32 = arith.constant 0 : i32
    %c0_i32_0 = arith.constant 0 : i32
    %c0_i32_1 = arith.constant 0 : i32
    %c0_i32_2 = arith.constant 0 : i32
    return %c0_i32, %c0_i32_0, %c0_i32_1 : i32, i32, i32
  }
  func.func @transform_4(%arg0: i32) -> (i32, i32) {
    %c0_i32 = arith.constant 0 : i32
    %c0_i32_0 = arith.constant 0 : i32
    %c0_i32_1 = arith.constant 0 : i32
    return %c0_i32, %c0_i32_0 : i32, i32
  }
  func.func @transform_5(%arg0: i32) -> (i32, i32, i32) {
    %c0_i32 = arith.constant 0 : i32
    %c0_i32_0 = arith.constant 0 : i32
    %c0_i32_1 = arith.constant 0 : i32
    return %arg0, %c0_i32, %c0_i32_0 : i32, i32, i32
  }
  func.func @transform_6(%arg0: i32) -> (i32, i32) {
    %c0_i32 = arith.constant 0 : i32
    %c0_i32_0 = arith.constant 0 : i32
    %c0_i32_1 = arith.constant 0 : i32
    return %c0_i32, %c0_i32_0 : i32, i32
  }
  func.func @transform_7(%arg0: i32) -> (i32, i32, i32) {
    %c0_i32 = arith.constant 0 : i32
    %c0_i32_0 = arith.constant 0 : i32
    %c0_i32_1 = arith.constant 0 : i32
    return %arg0, %c0_i32, %c0_i32_0 : i32, i32, i32
  }
  func.func @transform_8(%arg0: i32) -> (i32, i32, i32) {
    %c0_i32 = arith.constant 0 : i32
    %c0_i32_0 = arith.constant 0 : i32
    %c0_i32_1 = arith.constant 0 : i32
    return %arg0, %c0_i32, %c0_i32_0 : i32, i32, i32
  }
}

</mosaic_0001>

<llo_original>
// kernel: conv_lstm_cell_forward.1
$region0: #{conv_lstm_cell_forward.1}
  #allocation0 [shape = 'u32[]', space=smem, size = 0x4, offset = 0x4, fixed_abs, tag = 'smem constant byte address 0x4 - core index']
  #allocation1 [shape = 'u32[144,128]{1,0:T(1,128)}', space=vmem, size = 0x12000, scoped, tag = 'internal scratch']
  %s0 = inlined_call_operand.vmem [shape: bf16[2,18,18,4], index: 0, kind: input, shape index: {}]
  %s1 = inlined_call_operand.vmem [shape: bf16[2,18,18,32], index: 1, kind: input, shape index: {}]
  %s2 = inlined_call_operand.vmem [shape: bf16[9,4,128], index: 2, kind: input, shape index: {}]
  %s3 = inlined_call_operand.vmem [shape: bf16[9,32,128], index: 3, kind: input, shape index: {}]
  %s4 = inlined_call_operand.vmem [shape: f32[1,128], index: 4, kind: input, shape index: {}]
  %s5 = inlined_call_operand.vmem [shape: f32[2,256,32], index: 5, kind: input, shape index: {}]
  %s6 = inlined_call_operand.vmem [shape: f32[256,96], index: 6, kind: input, shape index: {}]
  %s7 = inlined_call_operand.hbm [shape: f32[2,256,32], index: 7, kind: output, shape index: {0}]
  %s8 = inlined_call_operand.hbm [shape: f32[2,256,32], index: 8, kind: output, shape index: {1}]
  %9 = xla_tuple %s7, %s8
  %s10 = sld [smem:[#allocation0]]
  $region69: #{conv_lstm_cell_forward.1} parent=0
    _
  %s12 = ssub.s32 1, %s10
  %s13 = scalar_select 0, %s12, %s10
  $region1: #{conv_lstm_cell_forward.1} parent=0
    #allocation2 [shape = 'u8[262144]{0}', space=vmem, size = 0x40000, scoped, tag = 'output window, operand 0']
    #allocation3 [shape = 's32[2]{0}', space=sflag, size = 0x8, scoped, tag = 'scoped memory for conv_lstm_cell_forward.1']
    #allocation4 [shape = 'u8[262144]{0}', space=vmem, size = 0x40000, scoped, tag = 'output window, operand 1']
    #allocation5 [shape = 's32[2]{0}', space=sflag, size = 0x8, scoped, tag = 'scoped memory for conv_lstm_cell_forward.1']
    %14 = vsyncpa [#allocation3], 0
    %s15 = scalar_lea.sflag [#allocation3], 1
    %16 = vsyncpa %s15, 0
    %17 = vsyncpa [#allocation5], 0
    %s18 = scalar_lea.sflag [#allocation5], 1
    %19 = vsyncpa %s18, 0
    loop: start=0, step=1, limit=4
    $region2: #{conv_lstm_cell_forward.1} parent=1 // loop_pre_header
      _
    $region3: #{conv_lstm_cell_forward.1} parent=1 // loop_header
      %s21 = sphi 0, %s25
      %p22 = scmp.ge.s32.totalorder %s21, 4
      %s31 = sphi 0, %s33
      %s34 = sphi 0, %s31
      %s35 = sphi 0, %s34
      %s51 = sphi 0, %s35
      %s57 = sphi 0, %s59
      %s60 = sphi 0, %s57
      %s61 = sphi 0, %s60
      %s77 = sphi 0, %s61
      %s81 = sphi 0, %s81
      %s83 = sphi 0, %s81
      %s84 = sphi 0, %s83
      %s98 = sphi 0, %s84
      %s102 = sphi 0, %s102
      %s104 = sphi 0, %s102
      %s105 = sphi 0, %s104
      %s119 = sphi 0, %s105
      %s123 = sphi 0, %s123
      %s125 = sphi 0, %s123
      %s126 = sphi 0, %s125
      %s140 = sphi 0, %s126
      %s146 = sphi 0, %s148
      %s149 = sphi 0, %s146
      %s150 = sphi 0, %s149
      %s166 = sphi 0, %s150
      %s170 = sphi 0, %s170
      %s172 = sphi 0, %s170
      %s173 = sphi 0, %s172
      %s187 = sphi 0, %s173
      %s193 = sphi 0, %s195
      %s196 = sphi 0, %s193
      %s197 = sphi 0, %s196
      %s213 = sphi 0, %s197
      %s219 = sphi 0, %s221
      %s222 = sphi 0, %s219
      %s223 = sphi 0, %s222
      %s239 = sphi 0, %s223
    $region4: #{conv_lstm_cell_forward.1} parent=1 // loop_header_branch
      %24 = sbr.rel (%p22) target = $region8
    $region5: #{conv_lstm_cell_forward.1} parent=1 // loop_body
      %s26 = ssub.s32 %s21, 1
      %s27 = ssub.s32 %s21, 2
      %s28 = sadd.s32 %s21, 1
      %s29 = ssub.s32 %s21, %s28
      %p30 = scmp.eq.s32.totalorder %s29, 0
      %s32 = sadd.s32 %s31, 1
      %s33 = scalar_select %p30, %s31, %s32
      %p36 = pneg %p30
      %p37 = scmp.eq.s32.totalorder %s21, 1
      %p38 = por %p36, %p37
      %p39 = scmp.ne.s32.totalorder %s31, %s34
      %p40 = scmp.eq.s32.totalorder %s21, 0
      %p41 = por %p39, %p40
      %p42 = scmp.ne.s32.totalorder %s31, %s34
      %p43 = scmp.eq.s32.totalorder %s26, 1
      %p44 = por %p42, %p43
      %p45 = scmp.ne.s32.totalorder %s34, %s35
      %p46 = scmp.eq.s32.totalorder %s26, 0
      %p47 = por %p45, %p46
      %p48 = scmp.ne.s32.totalorder %s34, %s35
      %p49 = scmp.eq.s32.totalorder %s27, 1
      %p50 = por %p48, %p49
      %p52 = scmp.ne.s32.totalorder %s35, %s51
      %p53 = scmp.eq.s32.totalorder %s27, 0
      %p54 = por %p52, %p53
      %s55 = ssub.s32 %s21, %s28
      %p56 = scmp.eq.s32.totalorder %s55, 0
      %s58 = sadd.s32 %s57, 1
      %s59 = scalar_select %p56, %s57, %s58
      %p62 = pneg %p56
      %p63 = scmp.eq.s32.totalorder %s21, 1
      %p64 = por %p62, %p63
      %p65 = scmp.ne.s32.totalorder %s57, %s60
      %p66 = scmp.eq.s32.totalorder %s21, 0
      %p67 = por %p65, %p66
      %p68 = scmp.ne.s32.totalorder %s57, %s60
      %p69 = scmp.eq.s32.totalorder %s26, 1
      %p70 = por %p68, %p69
      %p71 = scmp.ne.s32.totalorder %s60, %s61
      %p72 = scmp.eq.s32.totalorder %s26, 0
      %p73 = por %p71, %p72
      %p74 = scmp.ne.s32.totalorder %s60, %s61
      %p75 = scmp.eq.s32.totalorder %s27, 1
      %p76 = por %p74, %p75
      %p78 = scmp.ne.s32.totalorder %s61, %s77
      %p79 = scmp.eq.s32.totalorder %s27, 0
      %p80 = por %p78, %p79
      %s82 = sadd.s32 %s81, 1
      %p85 = scmp.eq.s32.totalorder %s21, 1
      %p86 = scmp.ne.s32.totalorder %s81, %s83
      %p87 = scmp.eq.s32.totalorder %s21, 0
      %p88 = por %p86, %p87
      %p89 = scmp.ne.s32.totalorder %s81, %s83
      %p90 = scmp.eq.s32.totalorder %s26, 1
      %p91 = por %p89, %p90
      %p92 = scmp.ne.s32.totalorder %s83, %s84
      %p93 = scmp.eq.s32.totalorder %s26, 0
      %p94 = por %p92, %p93
      %p95 = scmp.ne.s32.totalorder %s83, %s84
      %p96 = scmp.eq.s32.totalorder %s27, 1
      %p97 = por %p95, %p96
      %p99 = scmp.ne.s32.totalorder %s84, %s98
      %p100 = scmp.eq.s32.totalorder %s27, 0
      %p101 = por %p99, %p100
      %s103 = sadd.s32 %s102, 1
      %p106 = scmp.eq.s32.totalorder %s21, 1
      %p107 = scmp.ne.s32.totalorder %s102, %s104
      %p108 = scmp.eq.s32.totalorder %s21, 0
      %p109 = por %p107, %p108
      %p110 = scmp.ne.s32.totalorder %s102, %s104
      %p111 = scmp.eq.s32.totalorder %s26, 1
      %p112 = por %p110, %p111
      %p113 = scmp.ne.s32.totalorder %s104, %s105
      %p114 = scmp.eq.s32.totalorder %s26, 0
      %p115 = por %p113, %p114
      %p116 = scmp.ne.s32.totalorder %s104, %s105
      %p117 = scmp.eq.s32.totalorder %s27, 1
      %p118 = por %p116, %p117
      %p120 = scmp.ne.s32.totalorder %s105, %s119
      %p121 = scmp.eq.s32.totalorder %s27, 0
      %p122 = por %p120, %p121
      %s124 = sadd.s32 %s123, 1
      %p127 = scmp.eq.s32.totalorder %s21, 1
      %p128 = scmp.ne.s32.totalorder %s123, %s125
      %p129 = scmp.eq.s32.totalorder %s21, 0
      %p130 = por %p128, %p129
      %p131 = scmp.ne.s32.totalorder %s123, %s125
      %p132 = scmp.eq.s32.totalorder %s26, 1
      %p133 = por %p131, %p132
      %p134 = scmp.ne.s32.totalorder %s125, %s126
      %p135 = scmp.eq.s32.totalorder %s26, 0
      %p136 = por %p134, %p135
      %p137 = scmp.ne.s32.totalorder %s125, %s126
      %p138 = scmp.eq.s32.totalorder %s27, 1
      %p139 = por %p137, %p138
      %p141 = scmp.ne.s32.totalorder %s126, %s140
      %p142 = scmp.eq.s32.totalorder %s27, 0
      %p143 = por %p141, %p142
      %s144 = ssub.s32 %s21, %s28
      %p145 = scmp.eq.s32.totalorder %s144, 0
      %s147 = sadd.s32 %s146, 1
      %s148 = scalar_select %p145, %s146, %s147
      %p151 = pneg %p145
      %p152 = scmp.eq.s32.totalorder %s21, 1
      %p153 = por %p151, %p152
      %p154 = scmp.ne.s32.totalorder %s146, %s149
      %p155 = scmp.eq.s32.totalorder %s21, 0
      %p156 = por %p154, %p155
      %p157 = scmp.ne.s32.totalorder %s146, %s149
      %p158 = scmp.eq.s32.totalorder %s26, 1
      %p159 = por %p157, %p158
      %p160 = scmp.ne.s32.totalorder %s149, %s150
      %p161 = scmp.eq.s32.totalorder %s26, 0
      %p162 = por %p160, %p161
      %p163 = scmp.ne.s32.totalorder %s149, %s150
      %p164 = scmp.eq.s32.totalorder %s27, 1
      %p165 = por %p163, %p164
      %p167 = scmp.ne.s32.totalorder %s150, %s166
      %p168 = scmp.eq.s32.totalorder %s27, 0
      %p169 = por %p167, %p168
      %s171 = sadd.s32 %s170, 1
      %p174 = scmp.eq.s32.totalorder %s21, 1
      %p175 = scmp.ne.s32.totalorder %s170, %s172
      %p176 = scmp.eq.s32.totalorder %s21, 0
      %p177 = por %p175, %p176
      %p178 = scmp.ne.s32.totalorder %s170, %s172
      %p179 = scmp.eq.s32.totalorder %s26, 1
      %p180 = por %p178, %p179
      %p181 = scmp.ne.s32.totalorder %s172, %s173
      %p182 = scmp.eq.s32.totalorder %s26, 0
      %p183 = por %p181, %p182
      %p184 = scmp.ne.s32.totalorder %s172, %s173
      %p185 = scmp.eq.s32.totalorder %s27, 1
      %p186 = por %p184, %p185
      %p188 = scmp.ne.s32.totalorder %s173, %s187
      %p189 = scmp.eq.s32.totalorder %s27, 0
      %p190 = por %p188, %p189
      %s191 = ssub.s32 %s21, %s28
      %p192 = scmp.eq.s32.totalorder %s191, 0
      %s194 = sadd.s32 %s193, 1
      %s195 = scalar_select %p192, %s193, %s194
      %p198 = pneg %p192
      %p199 = scmp.eq.s32.totalorder %s21, 1
      %p200 = por %p198, %p199
      %p201 = scmp.ne.s32.totalorder %s193, %s196
      %p202 = scmp.eq.s32.totalorder %s21, 0
      %p203 = por %p201, %p202
      %p204 = scmp.ne.s32.totalorder %s193, %s196
      %p205 = scmp.eq.s32.totalorder %s26, 1
      %p206 = por %p204, %p205
      %p207 = scmp.ne.s32.totalorder %s196, %s197
      %p208 = scmp.eq.s32.totalorder %s26, 0
      %p209 = por %p207, %p208
      %p210 = scmp.ne.s32.totalorder %s196, %s197
      %p211 = scmp.eq.s32.totalorder %s27, 1
      %p212 = por %p210, %p211
      %p214 = scmp.ne.s32.totalorder %s197, %s213
      %p215 = scmp.eq.s32.totalorder %s27, 0
      %p216 = por %p214, %p215
      %s217 = ssub.s32 %s21, %s28
      %p218 = scmp.eq.s32.totalorder %s217, 0
      %s220 = sadd.s32 %s219, 1
      %s221 = scalar_select %p218, %s219, %s220
      %p224 = pneg %p218
      %p225 = scmp.eq.s32.totalorder %s21, 1
      %p226 = por %p224, %p225
      %p227 = scmp.ne.s32.totalorder %s219, %s222
      %p228 = scmp.eq.s32.totalorder %s21, 0
      %p229 = por %p227, %p228
      %p230 = scmp.ne.s32.totalorder %s219, %s222
      %p231 = scmp.eq.s32.totalorder %s26, 1
      %p232 = por %p230, %p231
      %p233 = scmp.ne.s32.totalorder %s222, %s223
      %p234 = scmp.eq.s32.totalorder %s26, 0
      %p235 = por %p233, %p234
      %p236 = scmp.ne.s32.totalorder %s222, %s223
      %p237 = scmp.eq.s32.totalorder %s27, 1
      %p238 = por %p236, %p237
      %p240 = scmp.ne.s32.totalorder %s223, %s239
      %p241 = scmp.eq.s32.totalorder %s27, 0
      %p242 = por %p240, %p241
      %p243 = scmp.le.s32.totalorder 1, %s21
      %p244 = scmp.lt.s32.totalorder %s21, 3
      %p245 = pnand %p243, %p244
      %p246 = pneg %p245
      // Predicated region
      $region9: #{conv_lstm_cell_forward.1} parent=5 // pred_check
        _
      $region10: #{conv_lstm_cell_forward.1} parent=5 // pred_check_branch
        %248 = sbr.rel (%p245) target = $region12
      $region11: #{conv_lstm_cell_forward.1} parent=5 // pred_region
        %s249 = ssub.s32 %s21, 1
        // Predicated region
        $region13: #{conv_lstm_cell_forward.1} parent=11 // pred_check
          %p250 = pneg %p94
        $region14: #{conv_lstm_cell_forward.1} parent=11 // pred_check_branch
          %252 = sbr.rel (%p250) target = $region16
        $region15: #{conv_lstm_cell_forward.1} parent=11 // pred_region
          _
        $region16: #{conv_lstm_cell_forward.1} parent=11 // pred_fallthru
          _
        // Predicated region
        $region17: #{conv_lstm_cell_forward.1} parent=11 // pred_check
          %p253 = pneg %p115
        $region18: #{conv_lstm_cell_forward.1} parent=11 // pred_check_branch
          %255 = sbr.rel (%p253) target = $region20
        $region19: #{conv_lstm_cell_forward.1} parent=11 // pred_region
          _
        $region20: #{conv_lstm_cell_forward.1} parent=11 // pred_fallthru
          _
        // Predicated region
        $region21: #{conv_lstm_cell_forward.1} parent=11 // pred_check
          %p256 = pneg %p136
        $region22: #{conv_lstm_cell_forward.1} parent=11 // pred_check_branch
          %258 = sbr.rel (%p256) target = $region24
        $region23: #{conv_lstm_cell_forward.1} parent=11 // pred_region
          _
        $region24: #{conv_lstm_cell_forward.1} parent=11 // pred_fallthru
          _
        // Predicated region
        $region25: #{conv_lstm_cell_forward.1} parent=11 // pred_check
          %p259 = pneg %p183
        $region26: #{conv_lstm_cell_forward.1} parent=11 // pred_check_branch
          %261 = sbr.rel (%p259) target = $region28
        $region27: #{conv_lstm_cell_forward.1} parent=11 // pred_region
          _
        $region28: #{conv_lstm_cell_forward.1} parent=11 // pred_fallthru
          _
      $region12: #{conv_lstm_cell_forward.1} parent=5 // pred_fallthru
        _
      %p262 = scmp.lt.s32.totalorder %s21, 2
      // Predicated region
      $region29: #{conv_lstm_cell_forward.1} parent=5 // pred_check
        %p263 = pneg %p262
      $region30: #{conv_lstm_cell_forward.1} parent=5 // pred_check_branch
        %265 = sbr.rel (%p263) target = $region32
      $region31: #{conv_lstm_cell_forward.1} parent=5 // pred_region
        // Predicated region
        $region33: #{conv_lstm_cell_forward.1} parent=31 // pred_check
          %p266 = pneg %p41
        $region34: #{conv_lstm_cell_forward.1} parent=31 // pred_check_branch
          %268 = sbr.rel (%p266) target = $region36
        $region35: #{conv_lstm_cell_forward.1} parent=31 // pred_region
          %p269 = scmp.lt.s32.totalorder %s21, 1
          %s270 = scalar_select %p269, %s21, 1
          %s271 = smul.addr %s270, 54
          %s272 = smul.addr %s271, 4
          %s273 = scalar_lea.vmem %s0, %s272
        $region36: #{conv_lstm_cell_forward.1} parent=31 // pred_fallthru
          _
        // Predicated region
        $region37: #{conv_lstm_cell_forward.1} parent=31 // pred_check
          %p274 = pneg %p67
        $region38: #{conv_lstm_cell_forward.1} parent=31 // pred_check_branch
          %276 = sbr.rel (%p274) target = $region40
        $region39: #{conv_lstm_cell_forward.1} parent=31 // pred_region
          %p277 = scmp.lt.s32.totalorder %s21, 1
          %s278 = scalar_select %p277, %s21, 1
          %s279 = smul.addr %s278, 54
          %s280 = smul.addr %s279, 4
          %s281 = scalar_lea.vmem %s1, %s280
        $region40: #{conv_lstm_cell_forward.1} parent=31 // pred_fallthru
          _
        // Predicated region
        $region41: #{conv_lstm_cell_forward.1} parent=31 // pred_check
          %p282 = pneg %p156
        $region42: #{conv_lstm_cell_forward.1} parent=31 // pred_check_branch
          %284 = sbr.rel (%p282) target = $region44
        $region43: #{conv_lstm_cell_forward.1} parent=31 // pred_region
          %p285 = scmp.lt.s32.totalorder %s21, 1
          %s286 = scalar_select %p285, %s21, 1
          %s287 = smul.addr %s286, 32
          %s288 = smul.addr %s287, 8
          %s289 = scalar_lea.vmem %s5, %s288
        $region44: #{conv_lstm_cell_forward.1} parent=31 // pred_fallthru
          _
      $region32: #{conv_lstm_cell_forward.1} parent=5 // pred_fallthru
        _
      %p290 = scmp.le.s32.totalorder 1, %s21
      %p291 = scmp.lt.s32.totalorder %s21, 3
      %p292 = pnand %p290, %p291
      %p293 = pneg %p292
      // Predicated region
      $region45: #{conv_lstm_cell_forward.1} parent=5 // pred_check
        _
      $region46: #{conv_lstm_cell_forward.1} parent=5 // pred_check_branch
        %295 = sbr.rel (%p292) target = $region48
      $region47: #{conv_lstm_cell_forward.1} parent=5 // pred_region
        %s296 = ssub.s32 %s21, 1
        %p297 = scmp.lt.s32.totalorder %s26, 1
        %s298 = scalar_select %p297, %s26, 1
        %s299 = smul.addr %s298, 54
        %s300 = smul.addr %s299, 4
        %s301 = scalar_lea.vmem %s0, %s300
        %p302 = pneg %p47
        %p303 = pneg %p44
        %p304 = scmp.lt.s32.totalorder %s26, 1
        %s305 = scalar_select %p304, %s26, 1
        %s306 = smul.addr %s305, 54
        %s307 = smul.addr %s306, 4
        %s308 = scalar_lea.vmem %s1, %s307
        %p309 = pneg %p73
        %p310 = pneg %p70
        %p311 = pneg %p94
        %p312 = pneg %p91
        %p313 = pneg %p115
        %p314 = pneg %p112
        %p315 = pneg %p136
        %p316 = pneg %p133
        %p317 = scmp.lt.s32.totalorder %s26, 1
        %s318 = scalar_select %p317, %s26, 1
        %s319 = smul.addr %s318, 32
        %s320 = smul.addr %s319, 8
        %s321 = scalar_lea.vmem %s5, %s320
        %p322 = pneg %p162
        %p323 = pneg %p159
        %p324 = pneg %p183
        %p325 = pneg %p180
        %p326 = pneg %p209
        %p327 = pneg %p206
        %s328 = sand.u32 %s196, 1
        %s329 = scalar_lea.sflag [#allocation3], %s328
        %s330 = sand.u32 %s196, 1
        %s331 = smul.addr %s330, 256
        %s332 = scalar_lea.vmem [#allocation2], %s331
        %p333 = pneg %p235
        %p334 = pneg %p232
        %s335 = sand.u32 %s222, 1
        %s336 = scalar_lea.sflag [#allocation5], %s335
        %s337 = sand.u32 %s222, 1
        %s338 = smul.addr %s337, 256
        %s339 = scalar_lea.vmem [#allocation4], %s338
        %p340 = scmp.lt.s32.totalorder %s26, 1
        %s341 = scalar_select %p340, %s26, 1
        %s342 = smul.addr %s341, 54
        %s343 = smul.addr %s342, 4
        %s344 = scalar_lea.vmem %s0, %s343
        %p345 = scmp.lt.s32.totalorder %s26, 1
        %s346 = scalar_select %p345, %s26, 1
        %s347 = smul.addr %s346, 54
        %s348 = smul.addr %s347, 4
        %s349 = scalar_lea.vmem %s1, %s348
        %p350 = scmp.lt.s32.totalorder %s26, 1
        %s351 = scalar_select %p350, %s26, 1
        %s352 = smul.addr %s351, 32
        %s353 = smul.addr %s352, 8
        %s354 = scalar_lea.vmem %s5, %s353
        %v356 = vld [vmem:[%s4] sm:$0x1]
        %v358 = vlaneseq
        %v359 = vshrl.u32 %v358, 7
        %v360 = vsub.s32 0, %v359
        %v361 = vrot.slane %v356, %v360
        %v363 = vld [vmem:[%s344] sm:$0xf]
        %v364 = vld [vmem:[%s344 + $0x4] sm:$0xf]
        %v365 = vld [vmem:[%s344 + $0xc] sm:$0xf]
        %v366 = vld [vmem:[%s344 + $0x10] sm:$0xf]
        %v367 = vld [vmem:[%s344 + $0x18] sm:$0xf]
        %v368 = vld [vmem:[%s344 + $0x1c] sm:$0xf]
        %v369 = vld [vmem:[%s344 + $0x24] sm:$0xf]
        %v370 = vld [vmem:[%s344 + $0x28] sm:$0xf]
        %v371 = vld [vmem:[%s344 + $0x30] sm:$0xf]
        %v372 = vld [vmem:[%s344 + $0x34] sm:$0xf]
        %v373 = vld [vmem:[%s344 + $0x3c] sm:$0xf]
        %v374 = vld [vmem:[%s344 + $0x40] sm:$0xf]
        %v375 = vld [vmem:[%s344 + $0x48] sm:$0xf]
        %v376 = vld [vmem:[%s344 + $0x4c] sm:$0xf]
        %v377 = vld [vmem:[%s344 + $0x54] sm:$0xf]
        %v378 = vld [vmem:[%s344 + $0x58] sm:$0xf]
        %v379 = vld [vmem:[%s344 + $0x60] sm:$0xf]
        %v380 = vld [vmem:[%s344 + $0x64] sm:$0xf]
        %v381 = vld [vmem:[%s344 + $0x6c] sm:$0xf]
        %v382 = vld [vmem:[%s344 + $0x70] sm:$0xf]
        %v383 = vld [vmem:[%s344 + $0x78] sm:$0xf]
        %v384 = vld [vmem:[%s344 + $0x7c] sm:$0xf]
        %v385 = vld [vmem:[%s344 + $0x84] sm:$0xf]
        %v386 = vld [vmem:[%s344 + $0x88] sm:$0xf]
        %v387 = vld [vmem:[%s344 + $0x90] sm:$0xf]
        %v388 = vld [vmem:[%s344 + $0x94] sm:$0xf]
        %v389 = vld [vmem:[%s344 + $0x9c] sm:$0xf]
        %v390 = vld [vmem:[%s344 + $0xa0] sm:$0xf]
        %v391 = vld [vmem:[%s344 + $0xa8] sm:$0xf]
        %v392 = vld [vmem:[%s344 + $0xac] sm:$0xf]
        %v393 = vld [vmem:[%s344 + $0xb4] sm:$0xf]
        %v394 = vld [vmem:[%s344 + $0xb8] sm:$0xf]
        %v395 = vld [vmem:[%s2] sm:$0x3]
        %v428 = vunpack.c.l.b16 %v363
        %v429 = vunpack.c.l.b16 %v364
        %v430 = vunpack.c.l.b16 %v365
        %v431 = vunpack.c.l.b16 %v366
        %v432 = vunpack.c.l.b16 %v367
        %v433 = vunpack.c.l.b16 %v368
        %v434 = vunpack.c.l.b16 %v369
        %v435 = vunpack.c.l.b16 %v370
        %v436 = vunpack.c.l.b16 %v371
        %v437 = vunpack.c.l.b16 %v372
        %v438 = vunpack.c.l.b16 %v373
        %v439 = vunpack.c.l.b16 %v374
        %v440 = vunpack.c.l.b16 %v375
        %v441 = vunpack.c.l.b16 %v376
        %v442 = vunpack.c.l.b16 %v377
        %v443 = vunpack.c.l.b16 %v378
        %v444 = vunpack.c.l.b16 %v379
        %v445 = vunpack.c.l.b16 %v380
        %v446 = vunpack.c.l.b16 %v381
        %v447 = vunpack.c.l.b16 %v382
        %v448 = vunpack.c.l.b16 %v383
        %v449 = vunpack.c.l.b16 %v384
        %v450 = vunpack.c.l.b16 %v385
        %v451 = vunpack.c.l.b16 %v386
        %v452 = vunpack.c.l.b16 %v387
        %v453 = vunpack.c.l.b16 %v388
        %v454 = vunpack.c.l.b16 %v389
        %v455 = vunpack.c.l.b16 %v390
        %v456 = vunpack.c.l.b16 %v391
        %v457 = vunpack.c.l.b16 %v392
        %v458 = vunpack.c.l.b16 %v393
        %v459 = vunpack.c.l.b16 %v394
        %v460 = vpack.c.b16 %v429, %v428
        %v461 = vpack.c.b16 %v431, %v430
        %v462 = vpack.c.b16 %v433, %v432
        %v463 = vpack.c.b16 %v435, %v434
        %v464 = vpack.c.b16 %v437, %v436
        %v465 = vpack.c.b16 %v439, %v438
        %v466 = vpack.c.b16 %v441, %v440
        %v467 = vpack.c.b16 %v443, %v442
        %v468 = vpack.c.b16 %v445, %v444
        %v469 = vpack.c.b16 %v447, %v446
        %v470 = vpack.c.b16 %v449, %v448
        %v471 = vpack.c.b16 %v451, %v450
        %v472 = vpack.c.b16 %v453, %v452
        %v473 = vpack.c.b16 %v455, %v454
        %v474 = vpack.c.b16 %v457, %v456
        %v475 = vpack.c.b16 %v459, %v458
        %vm476 = vcmask 31744
        %v478 = vsel %vm476, %v460, 0
        %v481 = vsel %vm476, %v461, 0
        %v484 = vsel %vm476, %v462, 0
        %v487 = vsel %vm476, %v463, 0
        %v490 = vsel %vm476, %v464, 0
        %v493 = vsel %vm476, %v465, 0
        %v496 = vsel %vm476, %v466, 0
        %v499 = vsel %vm476, %v467, 0
        %v502 = vsel %vm476, %v468, 0
        %v505 = vsel %vm476, %v469, 0
        %v508 = vsel %vm476, %v470, 0
        %v511 = vsel %vm476, %v471, 0
        %v514 = vsel %vm476, %v472, 0
        %v517 = vsel %vm476, %v473, 0
        %v520 = vsel %vm476, %v474, 0
        %v523 = vsel %vm476, %v475, 0
        %vm525 = vcmask 1041408
        %v527 = vsel %vm525, %v395, 0
        %529 = vmatprep.subr.bf16.mxu0 0
        %530 = vmatpush1.bf16.msra.mxu0 %v527
        %531 = vmatprep.subr.bf16.mxu0 0
        %532 = vmatpush1.bf16.msra.mxu0 0
        %533 = vmatprep.subr.bf16.mxu0 0
        %534 = vmatpush1.bf16.msra.mxu0 0
        %535 = vmatprep.subr.bf16.mxu0 0
        %536 = vmatpush1.bf16.msra.mxu0 0
        %537 = vmatprep.subr.bf16.mxu0 0
        %538 = vmatpush1.bf16.msra.mxu0 0
        %539 = vmatprep.subr.bf16.mxu0 0
        %540 = vmatpush1.bf16.msra.mxu0 0
        %541 = vmatprep.subr.bf16.mxu0 0
        %542 = vmatpush1.bf16.msra.mxu0 0
        %543 = vmatprep.subr.bf16.mxu0 0
        %544 = vmatpush1.bf16.msra.mxu0 0
        %545 = vmatprep.subr.bf16.mxu0 0
        %546 = vmatpush1.bf16.msra.mxu0 0
        %547 = vmatprep.subr.bf16.mxu0 0
        %548 = vmatpush1.bf16.msra.mxu0 0
        %549 = vmatprep.subr.bf16.mxu0 0
        %550 = vmatpush1.bf16.msra.mxu0 0
        %551 = vmatprep.subr.bf16.mxu0 0
        %552 = vmatpush1.bf16.msra.mxu0 0
        %553 = vmatprep.subr.bf16.mxu0 0
        %554 = vmatpush1.bf16.msra.mxu0 0
        %555 = vmatprep.subr.bf16.mxu0 0
        %556 = vmatpush1.bf16.msra.mxu0 0
        %557 = vmatprep.subr.bf16.mxu0 0
        %558 = vmatpush1.bf16.msra.mxu0 0
        %559 = vmatprep.subr.bf16.mxu0 0
        %560 = vmatpush1.bf16.msra.mxu0 0
        %561 = vmatprep.mubr.bf16.mxu0 0
        %562 = vmatmul.mubr.bf16.gmra.mrb[0].mxu0 %v478
        %v563 = vpop.f32.mrb[0].mxu0
        %v564 = vadd.f32 0.0, %v563
        %v565 = vpop.f32.mrb[0].mxu0
        %v566 = vpop.f32.mrb[0].mxu0
        %v567 = vadd.f32 0.0, %v566
        %v568 = vpop.f32.mrb[0].mxu0
        %569 = vmatprep.mubr.bf16.mxu0 0
        %570 = vmatmul.mubr.bf16.gmra.mrb[0].mxu0 %v481
        %v571 = vpop.f32.mrb[0].mxu0
        %v572 = vadd.f32 0.0, %v571
        %v573 = vpop.f32.mrb[0].mxu0
        %v574 = vpop.f32.mrb[0].mxu0
        %v575 = vadd.f32 0.0, %v574
        %v576 = vpop.f32.mrb[0].mxu0
        %577 = vmatprep.mubr.bf16.mxu0 0
        %578 = vmatmul.mubr.bf16.gmra.mrb[0].mxu0 %v484
        %v579 = vpop.f32.mrb[0].mxu0
        %v580 = vadd.f32 0.0, %v579
        %v581 = vpop.f32.mrb[0].mxu0
        %v582 = vpop.f32.mrb[0].mxu0
        %v583 = vadd.f32 0.0, %v582
        %v584 = vpop.f32.mrb[0].mxu0
        %585 = vmatprep.mubr.bf16.mxu0 0
        %586 = vmatmul.mubr.bf16.gmra.mrb[0].mxu0 %v487
        %v587 = vpop.f32.mrb[0].mxu0
        %v588 = vadd.f32 0.0, %v587
        %v589 = vpop.f32.mrb[0].mxu0
        %v590 = vpop.f32.mrb[0].mxu0
        %v591 = vadd.f32 0.0, %v590
        %v592 = vpop.f32.mrb[0].mxu0
        %593 = vmatprep.mubr.bf16.mxu0 0
        %594 = vmatmul.mubr.bf16.gmra.mrb[0].mxu0 %v490
        %v595 = vpop.f32.mrb[0].mxu0
        %v596 = vadd.f32 0.0, %v595
        %v597 = vpop.f32.mrb[0].mxu0
        %v598 = vpop.f32.mrb[0].mxu0
        %v599 = vadd.f32 0.0, %v598
        %v600 = vpop.f32.mrb[0].mxu0
        %601 = vmatprep.mubr.bf16.mxu0 0
        %602 = vmatmul.mubr.bf16.gmra.mrb[0].mxu0 %v493
        %v603 = vpop.f32.mrb[0].mxu0
        %v604 = vadd.f32 0.0, %v603
        %v605 = vpop.f32.mrb[0].mxu0
        %v606 = vpop.f32.mrb[0].mxu0
        %v607 = vadd.f32 0.0, %v606
        %v608 = vpop.f32.mrb[0].mxu0
        %609 = vmatprep.mubr.bf16.mxu0 0
        %610 = vmatmul.mubr.bf16.gmra.mrb[0].mxu0 %v496
        %v611 = vpop.f32.mrb[0].mxu0
        %v612 = vadd.f32 0.0, %v611
        %v613 = vpop.f32.mrb[0].mxu0
        %v614 = vpop.f32.mrb[0].mxu0
        %v615 = vadd.f32 0.0, %v614
        %v616 = vpop.f32.mrb[0].mxu0
        %617 = vmatprep.mubr.bf16.mxu0 0
        %618 = vmatmul.mubr.bf16.gmra.mrb[0].mxu0 %v499
        %v619 = vpop.f32.mrb[0].mxu0
        %v620 = vadd.f32 0.0, %v619
        %v621 = vpop.f32.mrb[0].mxu0
        %v622 = vpop.f32.mrb[0].mxu0
        %v623 = vadd.f32 0.0, %v622
        %v624 = vpop.f32.mrb[0].mxu0
        %625 = vmatprep.mubr.bf16.mxu0 0
        %626 = vmatmul.mubr.bf16.gmra.mrb[0].mxu0 %v502
        %v627 = vpop.f32.mrb[0].mxu0
        %v628 = vadd.f32 0.0, %v627
        %v629 = vpop.f32.mrb[0].mxu0
        %v630 = vpop.f32.mrb[0].mxu0
        %v631 = vadd.f32 0.0, %v630
        %v632 = vpop.f32.mrb[0].mxu0
        %633 = vmatprep.mubr.bf16.mxu0 0
        %634 = vmatmul.mubr.bf16.gmra.mrb[0].mxu0 %v505
        %v635 = vpop.f32.mrb[0].mxu0
        %v636 = vadd.f32 0.0, %v635
        %v637 = vpop.f32.mrb[0].mxu0
        %v638 = vpop.f32.mrb[0].mxu0
        %v639 = vadd.f32 0.0, %v638
        %v640 = vpop.f32.mrb[0].mxu0
        %641 = vmatprep.mubr.bf16.mxu0 0
        %642 = vmatmul.mubr.bf16.gmra.mrb[0].mxu0 %v508
        %v643 = vpop.f32.mrb[0].mxu0
        %v644 = vadd.f32 0.0, %v643
        %v645 = vpop.f32.mrb[0].mxu0
        %v646 = vpop.f32.mrb[0].mxu0
        %v647 = vadd.f32 0.0, %v646
        %v648 = vpop.f32.mrb[0].mxu0
        %649 = vmatprep.mubr.bf16.mxu0 0
        %650 = vmatmul.mubr.bf16.gmra.mrb[0].mxu0 %v511
        %v651 = vpop.f32.mrb[0].mxu0
        %v652 = vadd.f32 0.0, %v651
        %v653 = vpop.f32.mrb[0].mxu0
        %v654 = vpop.f32.mrb[0].mxu0
        %v655 = vadd.f32 0.0, %v654
        %v656 = vpop.f32.mrb[0].mxu0
        %657 = vmatprep.mubr.bf16.mxu0 0
        %658 = vmatmul.mubr.bf16.gmra.mrb[0].mxu0 %v514
        %v659 = vpop.f32.mrb[0].mxu0
        %v660 = vadd.f32 0.0, %v659
        %v661 = vpop.f32.mrb[0].mxu0
        %v662 = vpop.f32.mrb[0].mxu0
        %v663 = vadd.f32 0.0, %v662
        %v664 = vpop.f32.mrb[0].mxu0
        %665 = vmatprep.mubr.bf16.mxu0 0
        %666 = vmatmul.mubr.bf16.gmra.mrb[0].mxu0 %v517
        %v667 = vpop.f32.mrb[0].mxu0
        %v668 = vadd.f32 0.0, %v667
        %v669 = vpop.f32.mrb[0].mxu0
        %v670 = vpop.f32.mrb[0].mxu0
        %v671 = vadd.f32 0.0, %v670
        %v672 = vpop.f32.mrb[0].mxu0
        %673 = vmatprep.mubr.bf16.mxu0 0
        %674 = vmatmul.mubr.bf16.gmra.mrb[0].mxu0 %v520
        %v675 = vpop.f32.mrb[0].mxu0
        %v676 = vadd.f32 0.0, %v675
        %v677 = vpop.f32.mrb[0].mxu0
        %v678 = vpop.f32.mrb[0].mxu0
        %v679 = vadd.f32 0.0, %v678
        %v680 = vpop.f32.mrb[0].mxu0
        %681 = vmatprep.mubr.bf16.mxu0 0
        %682 = vmatmul.mubr.bf16.gmra.mrb[0].mxu0 %v523
        %v683 = vpop.f32.mrb[0].mxu0
        %v684 = vadd.f32 0.0, %v683
        %v685 = vpop.f32.mrb[0].mxu0
        %v686 = vpop.f32.mrb[0].mxu0
        %v687 = vadd.f32 0.0, %v686
        %v688 = vpop.f32.mrb[0].mxu0
        %689 = vdwg.mxu0
        %v690 = vadd.f32 %v361, %v564
        %v691 = vadd.f32 %v361, %v567
        %v692 = vadd.f32 %v361, %v572
        %v693 = vadd.f32 %v361, %v575
        %v694 = vadd.f32 %v361, %v580
        %v695 = vadd.f32 %v361, %v583
        %v696 = vadd.f32 %v361, %v588
        %v697 = vadd.f32 %v361, %v591
        %v698 = vadd.f32 %v361, %v596
        %v699 = vadd.f32 %v361, %v599
        %v700 = vadd.f32 %v361, %v604
        %v701 = vadd.f32 %v361, %v607
        %v702 = vadd.f32 %v361, %v612
        %v703 = vadd.f32 %v361, %v615
        %v704 = vadd.f32 %v361, %v620
        %v705 = vadd.f32 %v361, %v623
        %v706 = vadd.f32 %v361, %v628
        %v707 = vadd.f32 %v361, %v631
        %v708 = vadd.f32 %v361, %v636
        %v709 = vadd.f32 %v361, %v639
        %v710 = vadd.f32 %v361, %v644
        %v711 = vadd.f32 %v361, %v647
        %v712 = vadd.f32 %v361, %v652
        %v713 = vadd.f32 %v361, %v655
        %v714 = vadd.f32 %v361, %v660
        %v715 = vadd.f32 %v361, %v663
        %v716 = vadd.f32 %v361, %v668
        %v717 = vadd.f32 %v361, %v671
        %v718 = vadd.f32 %v361, %v676
        %v719 = vadd.f32 %v361, %v679
        %v720 = vadd.f32 %v361, %v684
        %v721 = vadd.f32 %v361, %v687
        %v722 = vld [vmem:[%s349] sm:$0xf]
        %v723 = vld [vmem:[%s349 + $0x4] sm:$0xf]
        %v724 = vld [vmem:[%s349 + $0xc] sm:$0xf]
        %v725 = vld [vmem:[%s349 + $0x10] sm:$0xf]
        %v726 = vld [vmem:[%s349 + $0x18] sm:$0xf]
        %v727 = vld [vmem:[%s349 + $0x1c] sm:$0xf]
        %v728 = vld [vmem:[%s349 + $0x24] sm:$0xf]
        %v729 = vld [vmem:[%s349 + $0x28] sm:$0xf]
        %v730 = vld [vmem:[%s349 + $0x30] sm:$0xf]
        %v731 = vld [vmem:[%s349 + $0x34] sm:$0xf]
        %v732 = vld [vmem:[%s349 + $0x3c] sm:$0xf]
        %v733 = vld [vmem:[%s349 + $0x40] sm:$0xf]
        %v734 = vld [vmem:[%s349 + $0x48] sm:$0xf]
        %v735 = vld [vmem:[%s349 + $0x4c] sm:$0xf]
        %v736 = vld [vmem:[%s349 + $0x54] sm:$0xf]
        %v737 = vld [vmem:[%s349 + $0x58] sm:$0xf]
        %v738 = vld [vmem:[%s349 + $0x60] sm:$0xf]
        %v739 = vld [vmem:[%s349 + $0x64] sm:$0xf]
        %v740 = vld [vmem:[%s349 + $0x6c] sm:$0xf]
        %v741 = vld [vmem:[%s349 + $0x70] sm:$0xf]
        %v742 = vld [vmem:[%s349 + $0x78] sm:$0xf]
        %v743 = vld [vmem:[%s349 + $0x7c] sm:$0xf]
        %v744 = vld [vmem:[%s349 + $0x84] sm:$0xf]
        %v745 = vld [vmem:[%s349 + $0x88] sm:$0xf]
        %v746 = vld [vmem:[%s349 + $0x90] sm:$0xf]
        %v747 = vld [vmem:[%s349 + $0x94] sm:$0xf]
        %v748 = vld [vmem:[%s349 + $0x9c] sm:$0xf]
        %v749 = vld [vmem:[%s349 + $0xa0] sm:$0xf]
        %v750 = vld [vmem:[%s349 + $0xa8] sm:$0xf]
        %v751 = vld [vmem:[%s349 + $0xac] sm:$0xf]
        %v752 = vld [vmem:[%s349 + $0xb4] sm:$0xf]
        %v753 = vld [vmem:[%s349 + $0xb8] sm:$0xf]
        %v754 = vld [vmem:[%s3] sm:$0xf]
        %v755 = vld [vmem:[%s3 + $0x4] sm:$0xf]
        %v756 = vld [vmem:[%s3 + $0x8] sm:$0xf]
        %v757 = vld [vmem:[%s3 + $0xc] sm:$0xf]
        %v790 = vunpack.c.l.b16 %v722
        %v791 = vunpack.c.l.b16 %v723
        %v792 = vunpack.c.l.b16 %v724
        %v793 = vunpack.c.l.b16 %v725
        %v794 = vunpack.c.l.b16 %v726
        %v795 = vunpack.c.l.b16 %v727
        %v796 = vunpack.c.l.b16 %v728
        %v797 = vunpack.c.l.b16 %v729
        %v798 = vunpack.c.l.b16 %v730
        %v799 = vunpack.c.l.b16 %v731
        %v800 = vunpack.c.l.b16 %v732
        %v801 = vunpack.c.l.b16 %v733
        %v802 = vunpack.c.l.b16 %v734
        %v803 = vunpack.c.l.b16 %v735
        %v804 = vunpack.c.l.b16 %v736
        %v805 = vunpack.c.l.b16 %v737
        %v806 = vunpack.c.l.b16 %v738
        %v807 = vunpack.c.l.b16 %v739
        %v808 = vunpack.c.l.b16 %v740
        %v809 = vunpack.c.l.b16 %v741
        %v810 = vunpack.c.l.b16 %v742
        %v811 = vunpack.c.l.b16 %v743
        %v812 = vunpack.c.l.b16 %v744
        %v813 = vunpack.c.l.b16 %v745
        %v814 = vunpack.c.l.b16 %v746
        %v815 = vunpack.c.l.b16 %v747
        %v816 = vunpack.c.l.b16 %v748
        %v817 = vunpack.c.l.b16 %v749
        %v818 = vunpack.c.l.b16 %v750
        %v819 = vunpack.c.l.b16 %v751
        %v820 = vunpack.c.l.b16 %v752
        %v821 = vunpack.c.l.b16 %v753
        %v822 = vpack.c.b16 %v791, %v790
        %v823 = vpack.c.b16 %v793, %v792
        %v824 = vpack.c.b16 %v795, %v794
        %v825 = vpack.c.b16 %v797, %v796
        %v826 = vpack.c.b16 %v799, %v798
        %v827 = vpack.c.b16 %v801, %v800
        %v828 = vpack.c.b16 %v803, %v802
        %v829 = vpack.c.b16 %v805, %v804
        %v830 = vpack.c.b16 %v807, %v806
        %v831 = vpack.c.b16 %v809, %v808
        %v832 = vpack.c.b16 %v811, %v810
        %v833 = vpack.c.b16 %v813, %v812
        %v834 = vpack.c.b16 %v815, %v814
        %v835 = vpack.c.b16 %v817, %v816
        %v836 = vpack.c.b16 %v819, %v818
        %v837 = vpack.c.b16 %v821, %v820
        %v842 = vunpack.c.l.b16 %v754
        %v843 = vunpack.c.l.b16 %v755
        %v844 = vunpack.c.l.b16 %v756
        %v845 = vunpack.c.l.b16 %v757
        %v846 = vpack.c.b16 %v843, %v842
        %v847 = vpack.c.b16 %v845, %v844
        %vm850 = vcmask 261120
        %v852 = vsel %vm850, %v822, 0
        %v855 = vsel %vm850, %v823, 0
        %v858 = vsel %vm850, %v824, 0
        %v861 = vsel %vm850, %v825, 0
        %v864 = vsel %vm850, %v826, 0
        %v867 = vsel %vm850, %v827, 0
        %v870 = vsel %vm850, %v828, 0
        %v873 = vsel %vm850, %v829, 0
        %v876 = vsel %vm850, %v830, 0
        %v879 = vsel %vm850, %v831, 0
        %v882 = vsel %vm850, %v832, 0
        %v885 = vsel %vm850, %v833, 0
        %v888 = vsel %vm850, %v834, 0
        %v891 = vsel %vm850, %v835, 0
        %v894 = vsel %vm850, %v836, 0
        %v897 = vsel %vm850, %v837, 0
        %899 = vmatprep.subr.bf16.mxu0 0
        %900 = vmatpush1.bf16.msra.mxu0 %v846
        %901 = vmatprep.subr.bf16.mxu0 0
        %902 = vmatpush1.bf16.msra.mxu0 %v847
        %903 = vmatprep.subr.bf16.mxu0 0
        %904 = vmatpush1.bf16.msra.mxu0 0
        %905 = vmatprep.subr.bf16.mxu0 0
        %906 = vmatpush1.bf16.msra.mxu0 0
        %907 = vmatprep.subr.bf16.mxu0 0
        %908 = vmatpush1.bf16.msra.mxu0 0
        %909 = vmatprep.subr.bf16.mxu0 0
        %910 = vmatpush1.bf16.msra.mxu0 0
        %911 = vmatprep.subr.bf16.mxu0 0
        %912 = vmatpush1.bf16.msra.mxu0 0
        %913 = vmatprep.subr.bf16.mxu0 0
        %914 = vmatpush1.bf16.msra.mxu0 0
        %915 = vmatprep.subr.bf16.mxu0 0
        %916 = vmatpush1.bf16.msra.mxu0 0
        %917 = vmatprep.subr.bf16.mxu0 0
        %918 = vmatpush1.bf16.msra.mxu0 0
        %919 = vmatprep.subr.bf16.mxu0 0
        %920 = vmatpush1.bf16.msra.mxu0 0
        %921 = vmatprep.subr.bf16.mxu0 0
        %922 = vmatpush1.bf16.msra.mxu0 0
        %923 = vmatprep.subr.bf16.mxu0 0
        %924 = vmatpush1.bf16.msra.mxu0 0
        %925 = vmatprep.subr.bf16.mxu0 0
        %926 = vmatpush1.bf16.msra.mxu0 0
        %927 = vmatprep.subr.bf16.mxu0 0
        %928 = vmatpush1.bf16.msra.mxu0 0
        %929 = vmatprep.subr.bf16.mxu0 0
        %930 = vmatpush1.bf16.msra.mxu0 0
        %931 = vmatprep.mubr.bf16.mxu0 0
        %932 = vmatmul.mubr.bf16.gmra.mrb[0].mxu0 %v852
        %v933 = vpop.f32.mrb[0].mxu0
        %v934 = vadd.f32 0.0, %v933
        %v935 = vpop.f32.mrb[0].mxu0
        %v936 = vpop.f32.mrb[0].mxu0
        %v937 = vadd.f32 0.0, %v936
        %v938 = vpop.f32.mrb[0].mxu0
        %939 = vmatprep.mubr.bf16.mxu0 0
        %940 = vmatmul.mubr.bf16.gmra.mrb[0].mxu0 %v855
        %v941 = vpop.f32.mrb[0].mxu0
        %v942 = vadd.f32 0.0, %v941
        %v943 = vpop.f32.mrb[0].mxu0
        %v944 = vpop.f32.mrb[0].mxu0
        %v945 = vadd.f32 0.0, %v944
        %v946 = vpop.f32.mrb[0].mxu0
        %947 = vmatprep.mubr.bf16.mxu0 0
        %948 = vmatmul.mubr.bf16.gmra.mrb[0].mxu0 %v858
        %v949 = vpop.f32.mrb[0].mxu0
        %v950 = vadd.f32 0.0, %v949
        %v951 = vpop.f32.mrb[0].mxu0
        %v952 = vpop.f32.mrb[0].mxu0
        %v953 = vadd.f32 0.0, %v952
        %v954 = vpop.f32.mrb[0].mxu0
        %955 = vmatprep.mubr.bf16.mxu0 0
        %956 = vmatmul.mubr.bf16.gmra.mrb[0].mxu0 %v861
        %v957 = vpop.f32.mrb[0].mxu0
        %v958 = vadd.f32 0.0, %v957
        %v959 = vpop.f32.mrb[0].mxu0
        %v960 = vpop.f32.mrb[0].mxu0
        %v961 = vadd.f32 0.0, %v960
        %v962 = vpop.f32.mrb[0].mxu0
        %963 = vmatprep.mubr.bf16.mxu0 0
        %964 = vmatmul.mubr.bf16.gmra.mrb[0].mxu0 %v864
        %v965 = vpop.f32.mrb[0].mxu0
        %v966 = vadd.f32 0.0, %v965
        %v967 = vpop.f32.mrb[0].mxu0
        %v968 = vpop.f32.mrb[0].mxu0
        %v969 = vadd.f32 0.0, %v968
        %v970 = vpop.f32.mrb[0].mxu0
        %971 = vmatprep.mubr.bf16.mxu0 0
        %972 = vmatmul.mubr.bf16.gmra.mrb[0].mxu0 %v867
        %v973 = vpop.f32.mrb[0].mxu0
        %v974 = vadd.f32 0.0, %v973
        %v975 = vpop.f32.mrb[0].mxu0
        %v976 = vpop.f32.mrb[0].mxu0
        %v977 = vadd.f32 0.0, %v976
        %v978 = vpop.f32.mrb[0].mxu0
        %979 = vmatprep.mubr.bf16.mxu0 0
        %980 = vmatmul.mubr.bf16.gmra.mrb[0].mxu0 %v870
        %v981 = vpop.f32.mrb[0].mxu0
        %v982 = vadd.f32 0.0, %v981
        %v983 = vpop.f32.mrb[0].mxu0
        %v984 = vpop.f32.mrb[0].mxu0
        %v985 = vadd.f32 0.0, %v984
        %v986 = vpop.f32.mrb[0].mxu0
        %987 = vmatprep.mubr.bf16.mxu0 0
        %988 = vmatmul.mubr.bf16.gmra.mrb[0].mxu0 %v873
        %v989 = vpop.f32.mrb[0].mxu0
        %v990 = vadd.f32 0.0, %v989
        %v991 = vpop.f32.mrb[0].mxu0
        %v992 = vpop.f32.mrb[0].mxu0
        %v993 = vadd.f32 0.0, %v992
        %v994 = vpop.f32.mrb[0].mxu0
        %995 = vmatprep.mubr.bf16.mxu0 0
        %996 = vmatmul.mubr.bf16.gmra.mrb[0].mxu0 %v876
        %v997 = vpop.f32.mrb[0].mxu0
        %v998 = vadd.f32 0.0, %v997
        %v999 = vpop.f32.mrb[0].mxu0
        %v1000 = vpop.f32.mrb[0].mxu0
        %v1001 = vadd.f32 0.0, %v1000
        %v1002 = vpop.f32.mrb[0].mxu0
        %1003 = vmatprep.mubr.bf16.mxu0 0
        %1004 = vmatmul.mubr.bf16.gmra.mrb[0].mxu0 %v879
        %v1005 = vpop.f32.mrb[0].mxu0
        %v1006 = vadd.f32 0.0, %v1005
        %v1007 = vpop.f32.mrb[0].mxu0
        %v1008 = vpop.f32.mrb[0].mxu0
        %v1009 = vadd.f32 0.0, %v1008
        %v1010 = vpop.f32.mrb[0].mxu0
        %1011 = vmatprep.mubr.bf16.mxu0 0
        %1012 = vmatmul.mubr.bf16.gmra.mrb[0].mxu0 %v882
        %v1013 = vpop.f32.mrb[0].mxu0
        %v1014 = vadd.f32 0.0, %v1013
        %v1015 = vpop.f32.mrb[0].mxu0
        %v1016 = vpop.f32.mrb[0].mxu0
        %v1017 = vadd.f32 0.0, %v1016
        %v1018 = vpop.f32.mrb[0].mxu0
        %1019 = vmatprep.mubr.bf16.mxu0 0
        %1020 = vmatmul.mubr.bf16.gmra.mrb[0].mxu0 %v885
        %v1021 = vpop.f32.mrb[0].mxu0
        %v1022 = vadd.f32 0.0, %v1021
        %v1023 = vpop.f32.mrb[0].mxu0
        %v1024 = vpop.f32.mrb[0].mxu0
        %v1025 = vadd.f32 0.0, %v1024
        %v1026 = vpop.f32.mrb[0].mxu0
        %1027 = vmatprep.mubr.bf16.mxu0 0
        %1028 = vmatmul.mubr.bf16.gmra.mrb[0].mxu0 %v888
        %v1029 = vpop.f32.mrb[0].mxu0
        %v1030 = vadd.f32 0.0, %v1029
        %v1031 = vpop.f32.mrb[0].mxu0
        %v1032 = vpop.f32.mrb[0].mxu0
        %v1033 = vadd.f32 0.0, %v1032
        %v1034 = vpop.f32.mrb[0].mxu0
        %1035 = vmatprep.mubr.bf16.mxu0 0
        %1036 = vmatmul.mubr.bf16.gmra.mrb[0].mxu0 %v891
        %v1037 = vpop.f32.mrb[0].mxu0
        %v1038 = vadd.f32 0.0, %v1037
        %v1039 = vpop.f32.mrb[0].mxu0
        %v1040 = vpop.f32.mrb[0].mxu0
        %v1041 = vadd.f32 0.0, %v1040
        %v1042 = vpop.f32.mrb[0].mxu0
        %1043 = vmatprep.mubr.bf16.mxu0 0
        %1044 = vmatmul.mubr.bf16.gmra.mrb[0].mxu0 %v894
        %v1045 = vpop.f32.mrb[0].mxu0
        %v1046 = vadd.f32 0.0, %v1045
        %v1047 = vpop.f32.mrb[0].mxu0
        %v1048 = vpop.f32.mrb[0].mxu0
        %v1049 = vadd.f32 0.0, %v1048
        %v1050 = vpop.f32.mrb[0].mxu0
        %1051 = vmatprep.mubr.bf16.mxu0 0
        %1052 = vmatmul.mubr.bf16.gmra.mrb[0].mxu0 %v897
        %v1053 = vpop.f32.mrb[0].mxu0
        %v1054 = vadd.f32 0.0, %v1053
        %v1055 = vpop.f32.mrb[0].mxu0
        %v1056 = vpop.f32.mrb[0].mxu0
        %v1057 = vadd.f32 0.0, %v1056
        %v1058 = vpop.f32.mrb[0].mxu0
        %1059 = vdwg.mxu0
        %v1060 = vadd.f32 %v690, %v934
        %v1061 = vadd.f32 %v691, %v937
        %v1062 = vadd.f32 %v692, %v942
        %v1063 = vadd.f32 %v693, %v945
        %v1064 = vadd.f32 %v694, %v950
        %v1065 = vadd.f32 %v695, %v953
        %v1066 = vadd.f32 %v696, %v958
        %v1067 = vadd.f32 %v697, %v961
        %v1068 = vadd.f32 %v698, %v966
        %v1069 = vadd.f32 %v699, %v969
        %v1070 = vadd.f32 %v700, %v974
        %v1071 = vadd.f32 %v701, %v977
        %v1072 = vadd.f32 %v702, %v982
        %v1073 = vadd.f32 %v703, %v985
        %v1074 = vadd.f32 %v704, %v990
        %v1075 = vadd.f32 %v705, %v993
        %v1076 = vadd.f32 %v706, %v998
        %v1077 = vadd.f32 %v707, %v1001
        %v1078 = vadd.f32 %v708, %v1006
        %v1079 = vadd.f32 %v709, %v1009
        %v1080 = vadd.f32 %v710, %v1014
        %v1081 = vadd.f32 %v711, %v1017
        %v1082 = vadd.f32 %v712, %v1022
        %v1083 = vadd.f32 %v713, %v1025
        %v1084 = vadd.f32 %v714, %v1030
        %v1085 = vadd.f32 %v715, %v1033
        %v1086 = vadd.f32 %v716, %v1038
        %v1087 = vadd.f32 %v717, %v1041
        %v1088 = vadd.f32 %v718, %v1046
        %v1089 = vadd.f32 %v719, %v1049
        %v1090 = vadd.f32 %v720, %v1054
        %v1091 = vadd.f32 %v721, %v1057
        %v1092 = vld [vmem:[%s344] sm:$0xf]
        %v1093 = vld [vmem:[%s344 + $0x4] sm:$0xf]
        %v1094 = vld [vmem:[%s344 + $0x8] sm:$0x1]
        %v1095 = vld [vmem:[%s344 + $0xc] sm:$0xf]
        %v1096 = vld [vmem:[%s344 + $0x10] sm:$0xf]
        %v1097 = vld [vmem:[%s344 + $0x14] sm:$0x1]
        %v1098 = vld [vmem:[%s344 + $0x18] sm:$0xf]
        %v1099 = vld [vmem:[%s344 + $0x1c] sm:$0xf]
        %v1100 = vld [vmem:[%s344 + $0x20] sm:$0x1]
        %v1101 = vld [vmem:[%s344 + $0x24] sm:$0xf]
        %v1102 = vld [vmem:[%s344 + $0x28] sm:$0xf]
        %v1103 = vld [vmem:[%s344 + $0x2c] sm:$0x1]
        %v1104 = vld [vmem:[%s344 + $0x30] sm:$0xf]
        %v1105 = vld [vmem:[%s344 + $0x34] sm:$0xf]
        %v1106 = vld [vmem:[%s344 + $0x38] sm:$0x1]
        %v1107 = vld [vmem:[%s344 + $0x3c] sm:$0xf]
        %v1108 = vld [vmem:[%s344 + $0x40] sm:$0xf]
        %v1109 = vld [vmem:[%s344 + $0x44] sm:$0x1]
        %v1110 = vld [vmem:[%s344 + $0x48] sm:$0xf]
        %v1111 = vld [vmem:[%s344 + $0x4c] sm:$0xf]
        %v1112 = vld [vmem:[%s344 + $0x50] sm:$0x1]
        %v1113 = vld [vmem:[%s344 + $0x54] sm:$0xf]
        %v1114 = vld [vmem:[%s344 + $0x58] sm:$0xf]
        %v1115 = vld [vmem:[%s344 + $0x5c] sm:$0x1]
        %v1116 = vld [vmem:[%s344 + $0x60] sm:$0xf]
        %v1117 = vld [vmem:[%s344 + $0x64] sm:$0xf]
        %v1118 = vld [vmem:[%s344 + $0x68] sm:$0x1]
        %v1119 = vld [vmem:[%s344 + $0x6c] sm:$0xf]
        %v1120 = vld [vmem:[%s344 + $0x70] sm:$0xf]
        %v1121 = vld [vmem:[%s344 + $0x74] sm:$0x1]
        %v1122 = vld [vmem:[%s344 + $0x78] sm:$0xf]
        %v1123 = vld [vmem:[%s344 + $0x7c] sm:$0xf]
        %v1124 = vld [vmem:[%s344 + $0x80] sm:$0x1]
        %v1125 = vld [vmem:[%s344 + $0x84] sm:$0xf]
        %v1126 = vld [vmem:[%s344 + $0x88] sm:$0xf]
        %v1127 = vld [vmem:[%s344 + $0x8c] sm:$0x1]
        %v1128 = vld [vmem:[%s344 + $0x90] sm:$0xf]
        %v1129 = vld [vmem:[%s344 + $0x94] sm:$0xf]
        %v1130 = vld [vmem:[%s344 + $0x98] sm:$0x1]
        %v1131 = vld [vmem:[%s344 + $0x9c] sm:$0xf]
        %v1132 = vld [vmem:[%s344 + $0xa0] sm:$0xf]
        %v1133 = vld [vmem:[%s344 + $0xa4] sm:$0x1]
        %v1134 = vld [vmem:[%s344 + $0xa8] sm:$0xf]
        %v1135 = vld [vmem:[%s344 + $0xac] sm:$0xf]
        %v1136 = vld [vmem:[%s344 + $0xb0] sm:$0x1]
        %v1137 = vld [vmem:[%s344 + $0xb4] sm:$0xf]
        %v1138 = vld [vmem:[%s344 + $0xb8] sm:$0xf]
        %v1139 = vld [vmem:[%s344 + $0xbc] sm:$0x1]
        %vm1140 = vsmask.f32 3328
        %vm1141 = vsmask.f32 7440
        %vm1142 = vmor %vm1140, %vm1141
        %v1144 = vshrl.u32 %v1092, 16
        %v1146 = vrot.slane %v1144, 4
        %v1147 = vshll.u32 %v1092, 16
        %v1149 = vrot.slane %v1147, 5
        %v1150 = vor.u32 %v1146, %v1149
        %v1151 = vrot.slane %v1150, 4
        %v1153 = vshll.u32 %v1093, 16
        %v1155 = vrot.slane %v1153, 5
        %v1156 = vsel %vm1142, %v1151, %v1155
        %v1157 = vshrl.u32 %v1093, 16
        %v1159 = vrot.slane %v1157, 4
        %v1160 = vor.u32 %v1159, %v1155
        %v1161 = vrot.slane %v1160, 4
        %v1163 = vshll.u32 %v1094, 16
        %v1165 = vrot.slane %v1163, 5
        %v1166 = vsel %vm1142, %v1161, %v1165
        %v1168 = vshrl.u32 %v1095, 16
        %v1170 = vrot.slane %v1168, 4
        %v1171 = vshll.u32 %v1095, 16
        %v1173 = vrot.slane %v1171, 5
        %v1174 = vor.u32 %v1170, %v1173
        %v1175 = vrot.slane %v1174, 4
        %v1177 = vshll.u32 %v1096, 16
        %v1179 = vrot.slane %v1177, 5
        %v1180 = vsel %vm1142, %v1175, %v1179
        %v1181 = vshrl.u32 %v1096, 16
        %v1183 = vrot.slane %v1181, 4
        %v1184 = vor.u32 %v1183, %v1179
        %v1185 = vrot.slane %v1184, 4
        %v1187 = vshll.u32 %v1097, 16
        %v1189 = vrot.slane %v1187, 5
        %v1190 = vsel %vm1142, %v1185, %v1189
        %v1192 = vshrl.u32 %v1098, 16
        %v1194 = vrot.slane %v1192, 4
        %v1195 = vshll.u32 %v1098, 16
        %v1197 = vrot.slane %v1195, 5
        %v1198 = vor.u32 %v1194, %v1197
        %v1199 = vrot.slane %v1198, 4
        %v1201 = vshll.u32 %v1099, 16
        %v1203 = vrot.slane %v1201, 5
        %v1204 = vsel %vm1142, %v1199, %v1203
        %v1205 = vshrl.u32 %v1099, 16
        %v1207 = vrot.slane %v1205, 4
        %v1208 = vor.u32 %v1207, %v1203
        %v1209 = vrot.slane %v1208, 4
        %v1211 = vshll.u32 %v1100, 16
        %v1213 = vrot.slane %v1211, 5
        %v1214 = vsel %vm1142, %v1209, %v1213
        %v1216 = vshrl.u32 %v1101, 16
        %v1218 = vrot.slane %v1216, 4
        %v1219 = vshll.u32 %v1101, 16
        %v1221 = vrot.slane %v1219, 5
        %v1222 = vor.u32 %v1218, %v1221
        %v1223 = vrot.slane %v1222, 4
        %v1225 = vshll.u32 %v1102, 16
        %v1227 = vrot.slane %v1225, 5
        %v1228 = vsel %vm1142, %v1223, %v1227
        %v1229 = vshrl.u32 %v1102, 16
        %v1231 = vrot.slane %v1229, 4
        %v1232 = vor.u32 %v1231, %v1227
        %v1233 = vrot.slane %v1232, 4
        %v1235 = vshll.u32 %v1103, 16
        %v1237 = vrot.slane %v1235, 5
        %v1238 = vsel %vm1142, %v1233, %v1237
        %v1240 = vshrl.u32 %v1104, 16
        %v1242 = vrot.slane %v1240, 4
        %v1243 = vshll.u32 %v1104, 16
        %v1245 = vrot.slane %v1243, 5
        %v1246 = vor.u32 %v1242, %v1245
        %v1247 = vrot.slane %v1246, 4
        %v1249 = vshll.u32 %v1105, 16
        %v1251 = vrot.slane %v1249, 5
        %v1252 = vsel %vm1142, %v1247, %v1251
        %v1253 = vshrl.u32 %v1105, 16
        %v1255 = vrot.slane %v1253, 4
        %v1256 = vor.u32 %v1255, %v1251
        %v1257 = vrot.slane %v1256, 4
        %v1259 = vshll.u32 %v1106, 16
        %v1261 = vrot.slane %v1259, 5
        %v1262 = vsel %vm1142, %v1257, %v1261
        %v1264 = vshrl.u32 %v1107, 16
        %v1266 = vrot.slane %v1264, 4
        %v1267 = vshll.u32 %v1107, 16
        %v1269 = vrot.slane %v1267, 5
        %v1270 = vor.u32 %v1266, %v1269
        %v1271 = vrot.slane %v1270, 4
        %v1273 = vshll.u32 %v1108, 16
        %v1275 = vrot.slane %v1273, 5
        %v1276 = vsel %vm1142, %v1271, %v1275
        %v1277 = vshrl.u32 %v1108, 16
        %v1279 = vrot.slane %v1277, 4
        %v1280 = vor.u32 %v1279, %v1275
        %v1281 = vrot.slane %v1280, 4
        %v1283 = vshll.u32 %v1109, 16
        %v1285 = vrot.slane %v1283, 5
        %v1286 = vsel %vm1142, %v1281, %v1285
        %v1288 = vshrl.u32 %v1110, 16
        %v1290 = vrot.slane %v1288, 4
        %v1291 = vshll.u32 %v1110, 16
        %v1293 = vrot.slane %v1291, 5
        %v1294 = vor.u32 %v1290, %v1293
        %v1295 = vrot.slane %v1294, 4
        %v1297 = vshll.u32 %v1111, 16
        %v1299 = vrot.slane %v1297, 5
        %v1300 = vsel %vm1142, %v1295, %v1299
        %v1301 = vshrl.u32 %v1111, 16
        %v1303 = vrot.slane %v1301, 4
        %v1304 = vor.u32 %v1303, %v1299
        %v1305 = vrot.slane %v1304, 4
        %v1307 = vshll.u32 %v1112, 16
        %v1309 = vrot.slane %v1307, 5
        %v1310 = vsel %vm1142, %v1305, %v1309
        %v1312 = vshrl.u32 %v1113, 16
        %v1314 = vrot.slane %v1312, 4
        %v1315 = vshll.u32 %v1113, 16
        %v1317 = vrot.slane %v1315, 5
        %v1318 = vor.u32 %v1314, %v1317
        %v1319 = vrot.slane %v1318, 4
        %v1321 = vshll.u32 %v1114, 16
        %v1323 = vrot.slane %v1321, 5
        %v1324 = vsel %vm1142, %v1319, %v1323
        %v1325 = vshrl.u32 %v1114, 16
        %v1327 = vrot.slane %v1325, 4
        %v1328 = vor.u32 %v1327, %v1323
        %v1329 = vrot.slane %v1328, 4
        %v1331 = vshll.u32 %v1115, 16
        %v1333 = vrot.slane %v1331, 5
        %v1334 = vsel %vm1142, %v1329, %v1333
        %v1336 = vshrl.u32 %v1116, 16
        %v1338 = vrot.slane %v1336, 4
        %v1339 = vshll.u32 %v1116, 16
        %v1341 = vrot.slane %v1339, 5
        %v1342 = vor.u32 %v1338, %v1341
        %v1343 = vrot.slane %v1342, 4
        %v1345 = vshll.u32 %v1117, 16
        %v1347 = vrot.slane %v1345, 5
        %v1348 = vsel %vm1142, %v1343, %v1347
        %v1349 = vshrl.u32 %v1117, 16
        %v1351 = vrot.slane %v1349, 4
        %v1352 = vor.u32 %v1351, %v1347
        %v1353 = vrot.slane %v1352, 4
        %v1355 = vshll.u32 %v1118, 16
        %v1357 = vrot.slane %v1355, 5
        %v1358 = vsel %vm1142, %v1353, %v1357
        %v1360 = vshrl.u32 %v1119, 16
        %v1362 = vrot.slane %v1360, 4
        %v1363 = vshll.u32 %v1119, 16
        %v1365 = vrot.slane %v1363, 5
        %v1366 = vor.u32 %v1362, %v1365
        %v1367 = vrot.slane %v1366, 4
        %v1369 = vshll.u32 %v1120, 16
        %v1371 = vrot.slane %v1369, 5
        %v1372 = vsel %vm1142, %v1367, %v1371
        %v1373 = vshrl.u32 %v1120, 16
        %v1375 = vrot.slane %v1373, 4
        %v1376 = vor.u32 %v1375, %v1371
        %v1377 = vrot.slane %v1376, 4
        %v1379 = vshll.u32 %v1121, 16
        %v1381 = vrot.slane %v1379, 5
        %v1382 = vsel %vm1142, %v1377, %v1381
        %v1384 = vshrl.u32 %v1122, 16
        %v1386 = vrot.slane %v1384, 4
        %v1387 = vshll.u32 %v1122, 16
        %v1389 = vrot.slane %v1387, 5
        %v1390 = vor.u32 %v1386, %v1389
        %v1391 = vrot.slane %v1390, 4
        %v1393 = vshll.u32 %v1123, 16
        %v1395 = vrot.slane %v1393, 5
        %v1396 = vsel %vm1142, %v1391, %v1395
        %v1397 = vshrl.u32 %v1123, 16
        %v1399 = vrot.slane %v1397, 4
        %v1400 = vor.u32 %v1399, %v1395
        %v1401 = vrot.slane %v1400, 4
        %v1403 = vshll.u32 %v1124, 16
        %v1405 = vrot.slane %v1403, 5
        %v1406 = vsel %vm1142, %v1401, %v1405
        %v1408 = vshrl.u32 %v1125, 16
        %v1410 = vrot.slane %v1408, 4
        %v1411 = vshll.u32 %v1125, 16
        %v1413 = vrot.slane %v1411, 5
        %v1414 = vor.u32 %v1410, %v1413
        %v1415 = vrot.slane %v1414, 4
        %v1417 = vshll.u32 %v1126, 16
        %v1419 = vrot.slane %v1417, 5
        %v1420 = vsel %vm1142, %v1415, %v1419
        %v1421 = vshrl.u32 %v1126, 16
        %v1423 = vrot.slane %v1421, 4
        %v1424 = vor.u32 %v1423, %v1419
        %v1425 = vrot.slane %v1424, 4
        %v1427 = vshll.u32 %v1127, 16
        %v1429 = vrot.slane %v1427, 5
        %v1430 = vsel %vm1142, %v1425, %v1429
        %v1432 = vshrl.u32 %v1128, 16
        %v1434 = vrot.slane %v1432, 4
        %v1435 = vshll.u32 %v1128, 16
        %v1437 = vrot.slane %v1435, 5
        %v1438 = vor.u32 %v1434, %v1437
        %v1439 = vrot.slane %v1438, 4
        %v1441 = vshll.u32 %v1129, 16
        %v1443 = vrot.slane %v1441, 5
        %v1444 = vsel %vm1142, %v1439, %v1443
        %v1445 = vshrl.u32 %v1129, 16
        %v1447 = vrot.slane %v1445, 4
        %v1448 = vor.u32 %v1447, %v1443
        %v1449 = vrot.slane %v1448, 4
        %v1451 = vshll.u32 %v1130, 16
        %v1453 = vrot.slane %v1451, 5
        %v1454 = vsel %vm1142, %v1449, %v1453
        %v1456 = vshrl.u32 %v1131, 16
        %v1458 = vrot.slane %v1456, 4
        %v1459 = vshll.u32 %v1131, 16
        %v1461 = vrot.slane %v1459, 5
        %v1462 = vor.u32 %v1458, %v1461
        %v1463 = vrot.slane %v1462, 4
        %v1465 = vshll.u32 %v1132, 16
        %v1467 = vrot.slane %v1465, 5
        %v1468 = vsel %vm1142, %v1463, %v1467
        %v1469 = vshrl.u32 %v1132, 16
        %v1471 = vrot.slane %v1469, 4
        %v1472 = vor.u32 %v1471, %v1467
        %v1473 = vrot.slane %v1472, 4
        %v1475 = vshll.u32 %v1133, 16
        %v1477 = vrot.slane %v1475, 5
        %v1478 = vsel %vm1142, %v1473, %v1477
        %v1480 = vshrl.u32 %v1134, 16
        %v1482 = vrot.slane %v1480, 4
        %v1483 = vshll.u32 %v1134, 16
        %v1485 = vrot.slane %v1483, 5
        %v1486 = vor.u32 %v1482, %v1485
        %v1487 = vrot.slane %v1486, 4
        %v1489 = vshll.u32 %v1135, 16
        %v1491 = vrot.slane %v1489, 5
        %v1492 = vsel %vm1142, %v1487, %v1491
        %v1493 = vshrl.u32 %v1135, 16
        %v1495 = vrot.slane %v1493, 4
        %v1496 = vor.u32 %v1495, %v1491
        %v1497 = vrot.slane %v1496, 4
        %v1499 = vshll.u32 %v1136, 16
        %v1501 = vrot.slane %v1499, 5
        %v1502 = vsel %vm1142, %v1497, %v1501
        %v1504 = vshrl.u32 %v1137, 16
        %v1506 = vrot.slane %v1504, 4
        %v1507 = vshll.u32 %v1137, 16
        %v1509 = vrot.slane %v1507, 5
        %v1510 = vor.u32 %v1506, %v1509
        %v1511 = vrot.slane %v1510, 4
        %v1513 = vshll.u32 %v1138, 16
        %v1515 = vrot.slane %v1513, 5
        %v1516 = vsel %vm1142, %v1511, %v1515
        %v1517 = vshrl.u32 %v1138, 16
        %v1519 = vrot.slane %v1517, 4
        %v1520 = vor.u32 %v1519, %v1515
        %v1521 = vrot.slane %v1520, 4
        %v1523 = vshll.u32 %v1139, 16
        %v1525 = vrot.slane %v1523, 5
        %v1526 = vsel %vm1142, %v1521, %v1525
        %s1527 = scalar_lea.vmem %s2, 2
        %v1528 = vld [vmem:[%s1527] sm:$0x3]
        %v1529 = vunpack.c.l.b16 %v1156
        %v1530 = vunpack.c.l.b16 %v1166
        %v1531 = vunpack.c.l.b16 %v1180
        %v1532 = vunpack.c.l.b16 %v1190
        %v1533 = vunpack.c.l.b16 %v1204
        %v1534 = vunpack.c.l.b16 %v1214
        %v1535 = vunpack.c.l.b16 %v1228
        %v1536 = vunpack.c.l.b16 %v1238
        %v1537 = vunpack.c.l.b16 %v1252
        %v1538 = vunpack.c.l.b16 %v1262
        %v1539 = vunpack.c.l.b16 %v1276
        %v1540 = vunpack.c.l.b16 %v1286
        %v1541 = vunpack.c.l.b16 %v1300
        %v1542 = vunpack.c.l.b16 %v1310
        %v1543 = vunpack.c.l.b16 %v1324
        %v1544 = vunpack.c.l.b16 %v1334
        %v1545 = vunpack.c.l.b16 %v1348
        %v1546 = vunpack.c.l.b16 %v1358
        %v1547 = vunpack.c.l.b16 %v1372
        %v1548 = vunpack.c.l.b16 %v1382
        %v1549 = vunpack.c.l.b16 %v1396
        %v1550 = vunpack.c.l.b16 %v1406
        %v1551 = vunpack.c.l.b16 %v1420
        %v1552 = vunpack.c.l.b16 %v1430
        %v1553 = vunpack.c.l.b16 %v1444
        %v1554 = vunpack.c.l.b16 %v1454
        %v1555 = vunpack.c.l.b16 %v1468
        %v1556 = vunpack.c.l.b16 %v1478
        %v1557 = vunpack.c.l.b16 %v1492
        %v1558 = vunpack.c.l.b16 %v1502
        %v1559 = vunpack.c.l.b16 %v1516
        %v1560 = vunpack.c.l.b16 %v1526
        %v1561 = vpack.c.b16 %v1530, %v1529
        %v1562 = vpack.c.b16 %v1532, %v1531
        %v1563 = vpack.c.b16 %v1534, %v1533
        %v1564 = vpack.c.b16 %v1536, %v1535
        %v1565 = vpack.c.b16 %v1538, %v1537
        %v1566 = vpack.c.b16 %v1540, %v1539
        %v1567 = vpack.c.b16 %v1542, %v1541
        %v1568 = vpack.c.b16 %v1544, %v1543
        %v1569 = vpack.c.b16 %v1546, %v1545
        %v1570 = vpack.c.b16 %v1548, %v1547
        %v1571 = vpack.c.b16 %v1550, %v1549
        %v1572 = vpack.c.b16 %v1552, %v1551
        %v1573 = vpack.c.b16 %v1554, %v1553
        %v1574 = vpack.c.b16 %v1556, %v1555
        %v1575 = vpack.c.b16 %v1558, %v1557
        %v1576 = vpack.c.b16 %v1560, %v1559
        %v1578 = vsel %vm476, %v1561, 0
        %v1581 = vsel %vm476, %v1562, 0
        %v1584 = vsel %vm476, %v1563, 0
        %v1587 = vsel %vm476, %v1564, 0
        %v1590 = vsel %vm476, %v1565, 0
        %v1593 = vsel %vm476, %v1566, 0
        %v1596 = vsel %vm476, %v1567, 0
        %v1599 = vsel %vm476, %v1568, 0
        %v1602 = vsel %vm476, %v1569, 0
        %v1605 = vsel %vm476, %v1570, 0
        %v1608 = vsel %vm476, %v1571, 0
        %v1611 = vsel %vm476, %v1572, 0
        %v1614 = vsel %vm476, %v1573, 0
        %v1617 = vsel %vm476, %v1574, 0
        %v1620 = vsel %vm476, %v1575, 0
        %v1623 = vsel %vm476, %v1576, 0
        %v1626 = vsel %vm525, %v1528, 0
        %1628 = vmatprep.subr.bf16.mxu0 0
        %1629 = vmatpush1.bf16.msra.mxu0 %v1626
        %1630 = vmatprep.subr.bf16.mxu0 0
        %1631 = vmatpush1.bf16.msra.mxu0 0
        %1632 = vmatprep.subr.bf16.mxu0 0
        %1633 = vmatpush1.bf16.msra.mxu0 0
        %1634 = vmatprep.subr.bf16.mxu0 0
        %1635 = vmatpush1.bf16.msra.mxu0 0
        %1636 = vmatprep.subr.bf16.mxu0 0
        %1637 = vmatpush1.bf16.msra.mxu0 0
        %1638 = vmatprep.subr.bf16.mxu0 0
        %1639 = vmatpush1.bf16.msra.mxu0 0
        %1640 = vmatprep.subr.bf16.mxu0 0
        %1641 = vmatpush1.bf16.msra.mxu0 0
        %1642 = vmatprep.subr.bf16.mxu0 0
        %1643 = vmatpush1.bf16.msra.mxu0 0
        %1644 = vmatprep.subr.bf16.mxu0 0
        %1645 = vmatpush1.bf16.msra.mxu0 0
        %1646 = vmatprep.subr.bf16.mxu0 0
        %1647 = vmatpush1.bf16.msra.mxu0 0
        %1648 = vmatprep.subr.bf16.mxu0 0
        %1649 = vmatpush1.bf16.msra.mxu0 0
        %1650 = vmatprep.subr.bf16.mxu0 0
        %1651 = vmatpush1.bf16.msra.mxu0 0
        %1652 = vmatprep.subr.bf16.mxu0 0
        %1653 = vmatpush1.bf16.msra.mxu0 0
        %1654 = vmatprep.subr.bf16.mxu0 0
        %1655 = vmatpush1.bf16.msra.mxu0 0
        %1656 = vmatprep.subr.bf16.mxu0 0
        %1657 = vmatpush1.bf16.msra.mxu0 0
        %1658 = vmatprep.subr.bf16.mxu0 0
        %1659 = vmatpush1.bf16.msra.mxu0 0
        %1660 = vmatprep.mubr.bf16.mxu0 0
        %1661 = vmatmul.mubr.bf16.gmra.mrb[0].mxu0 %v1578
        %v1662 = vpop.f32.mrb[0].mxu0
        %v1663 = vadd.f32 0.0, %v1662
        %v1664 = vpop.f32.mrb[0].mxu0
        %v1665 = vpop.f32.mrb[0].mxu0
        %v1666 = vadd.f32 0.0, %v1665
        %v1667 = vpop.f32.mrb[0].mxu0
        %1668 = vmatprep.mubr.bf16.mxu0 0
        %1669 = vmatmul.mubr.bf16.gmra.mrb[0].mxu0 %v1581
        %v1670 = vpop.f32.mrb[0].mxu0
        %v1671 = vadd.f32 0.0, %v1670
        %v1672 = vpop.f32.mrb[0].mxu0
        %v1673 = vpop.f32.mrb[0].mxu0
        %v1674 = vadd.f32 0.0, %v1673
        %v1675 = vpop.f32.mrb[0].mxu0
        %1676 = vmatprep.mubr.bf16.mxu0 0
        %1677 = vmatmul.mubr.bf16.gmra.mrb[0].mxu0 %v1584
        %v1678 = vpop.f32.mrb[0].mxu0
        %v1679 = vadd.f32 0.0, %v1678
        %v1680 = vpop.f32.mrb[0].mxu0
        %v1681 = vpop.f32.mrb[0].mxu0
        %v1682 = vadd.f32 0.0, %v1681
        %v1683 = vpop.f32.mrb[0].mxu0
        %1684 = vmatprep.mubr.bf16.mxu0 0
        %1685 = vmatmul.mubr.bf16.gmra.mrb[0].mxu0 %v1587
        %v1686 = vpop.f32.mrb[0].mxu0
        %v1687 = vadd.f32 0.0, %v1686
        %v1688 = vpop.f32.mrb[0].mxu0
        %v1689 = vpop.f32.mrb[0].mxu0
        %v1690 = vadd.f32 0.0, %v1689
        %v1691 = vpop.f32.mrb[0].mxu0
        %1692 = vmatprep.mubr.bf16.mxu0 0
        %1693 = vmatmul.mubr.bf16.gmra.mrb[0].mxu0 %v1590
        %v1694 = vpop.f32.mrb[0].mxu0
        %v1695 = vadd.f32 0.0, %v1694
        %v1696 = vpop.f32.mrb[0].mxu0
        %v1697 = vpop.f32.mrb[0].mxu0
        %v1698 = vadd.f32 0.0, %v1697
        %v1699 = vpop.f32.mrb[0].mxu0
        %1700 = vmatprep.mubr.bf16.mxu0 0
        %1701 = vmatmul.mubr.bf16.gmra.mrb[0].mxu0 %v1593
        %v1702 = vpop.f32.mrb[0].mxu0
        %v1703 = vadd.f32 0.0, %v1702
        %v1704 = vpop.f32.mrb[0].mxu0
        %v1705 = vpop.f32.mrb[0].mxu0
        %v1706 = vadd.f32 0.0, %v1705
        %v1707 = vpop.f32.mrb[0].mxu0
        %1708 = vmatprep.mubr.bf16.mxu0 0
        %1709 = vmatmul.mubr.bf16.gmra.mrb[0].mxu0 %v1596
        %v1710 = vpop.f32.mrb[0].mxu0
        %v1711 = vadd.f32 0.0, %v1710
        %v1712 = vpop.f32.mrb[0].mxu0
        %v1713 = vpop.f32.mrb[0].mxu0
        %v1714 = vadd.f32 0.0, %v1713
        %v1715 = vpop.f32.mrb[0].mxu0
        %1716 = vmatprep.mubr.bf16.mxu0 0
        %1717 = vmatmul.mubr.bf16.gmra.mrb[0].mxu0 %v1599
        %v1718 = vpop.f32.mrb[0].mxu0
        %v1719 = vadd.f32 0.0, %v1718
        %v1720 = vpop.f32.mrb[0].mxu0
        %v1721 = vpop.f32.mrb[0].mxu0
        %v1722 = vadd.f32 0.0, %v1721
        %v1723 = vpop.f32.mrb[0].mxu0
        %1724 = vmatprep.mubr.bf16.mxu0 0
        %1725 = vmatmul.mubr.bf16.gmra.mrb[0].mxu0 %v1602
        %v1726 = vpop.f32.mrb[0].mxu0
        %v1727 = vadd.f32 0.0, %v1726
        %v1728 = vpop.f32.mrb[0].mxu0
        %v1729 = vpop.f32.mrb[0].mxu0
        %v1730 = vadd.f32 0.0, %v1729
        %v1731 = vpop.f32.mrb[0].mxu0
        %1732 = vmatprep.mubr.bf16.mxu0 0
        %1733 = vmatmul.mubr.bf16.gmra.mrb[0].mxu0 %v1605
        %v1734 = vpop.f32.mrb[0].mxu0
        %v1735 = vadd.f32 0.0, %v1734
        %v1736 = vpop.f32.mrb[0].mxu0
        %v1737 = vpop.f32.mrb[0].mxu0
        %v1738 = vadd.f32 0.0, %v1737
        %v1739 = vpop.f32.mrb[0].mxu0
        %1740 = vmatprep.mubr.bf16.mxu0 0
        %1741 = vmatmul.mubr.bf16.gmra.mrb[0].mxu0 %v1608
        %v1742 = vpop.f32.mrb[0].mxu0
        %v1743 = vadd.f32 0.0, %v1742
        %v1744 = vpop.f32.mrb[0].mxu0
        %v1745 = vpop.f32.mrb[0].mxu0
        %v1746 = vadd.f32 0.0, %v1745
        %v1747 = vpop.f32.mrb[0].mxu0
        %1748 = vmatprep.mubr.bf16.mxu0 0
        %1749 = vmatmul.mubr.bf16.gmra.mrb[0].mxu0 %v1611
        %v1750 = vpop.f32.mrb[0].mxu0
        %v1751 = vadd.f32 0.0, %v1750
        %v1752 = vpop.f32.mrb[0].mxu0
        %v1753 = vpop.f32.mrb[0].mxu0
        %v1754 = vadd.f32 0.0, %v1753
        %v1755 = vpop.f32.mrb[0].mxu0
        %1756 = vmatprep.mubr.bf16.mxu0 0
        %1757 = vmatmul.mubr.bf16.gmra.mrb[0].mxu0 %v1614
        %v1758 = vpop.f32.mrb[0].mxu0
        %v1759 = vadd.f32 0.0, %v1758
        %v1760 = vpop.f32.mrb[0].mxu0
        %v1761 = vpop.f32.mrb[0].mxu0
        %v1762 = vadd.f32 0.0, %v1761
        %v1763 = vpop.f32.mrb[0].mxu0
        %1764 = vmatprep.mubr.bf16.mxu0 0
        %1765 = vmatmul.mubr.bf16.gmra.mrb[0].mxu0 %v1617
        %v1766 = vpop.f32.mrb[0].mxu0
        %v1767 = vadd.f32 0.0, %v1766
        %v1768 = vpop.f32.mrb[0].mxu0
        %v1769 = vpop.f32.mrb[0].mxu0
        %v1770 = vadd.f32 0.0, %v1769
        %v1771 = vpop.f32.mrb[0].mxu0
        %1772 = vmatprep.mubr.bf16.mxu0 0
        %1773 = vmatmul.mubr.bf16.gmra.mrb[0].mxu0 %v1620
        %v1774 = vpop.f32.mrb[0].mxu0
        %v1775 = vadd.f32 0.0, %v1774
        %v1776 = vpop.f32.mrb[0].mxu0
        %v1777 = vpop.f32.mrb[0].mxu0
        %v1778 = vadd.f32 0.0, %v1777
        %v1779 = vpop.f32.mrb[0].mxu0
        %1780 = vmatprep.mubr.bf16.mxu0 0
        %1781 = vmatmul.mubr.bf16.gmra.mrb[0].mxu0 %v1623
        %v1782 = vpop.f32.mrb[0].mxu0
        %v1783 = vadd.f32 0.0, %v1782
        %v1784 = vpop.f32.mrb[0].mxu0
        %v1785 = vpop.f32.mrb[0].mxu0
        %v1786 = vadd.f32 0.0, %v1785
        %v1787 = vpop.f32.mrb[0].mxu0
        %1788 = vdwg.mxu0
        %v1789 = vadd.f32 %v1060, %v1663
        %v1790 = vadd.f32 %v1061, %v1666
        %v1791 = vadd.f32 %v1062, %v1671
        %v1792 = vadd.f32 %v1063, %v1674
        %v1793 = vadd.f32 %v1064, %v1679
        %v1794 = vadd.f32 %v1065, %v1682
        %v1795 = vadd.f32 %v1066, %v1687
        %v1796 = vadd.f32 %v1067, %v1690
        %v1797 = vadd.f32 %v1068, %v1695
        %v1798 = vadd.f32 %v1069, %v1698
        %v1799 = vadd.f32 %v1070, %v1703
        %v1800 = vadd.f32 %v1071, %v1706
        %v1801 = vadd.f32 %v1072, %v1711
        %v1802 = vadd.f32 %v1073, %v1714
        %v1803 = vadd.f32 %v1074, %v1719
        %v1804 = vadd.f32 %v1075, %v1722
        %v1805 = vadd.f32 %v1076, %v1727
        %v1806 = vadd.f32 %v1077, %v1730
        %v1807 = vadd.f32 %v1078, %v1735
        %v1808 = vadd.f32 %v1079, %v1738
        %v1809 = vadd.f32 %v1080, %v1743
        %v1810 = vadd.f32 %v1081, %v1746
        %v1811 = vadd.f32 %v1082, %v1751
        %v1812 = vadd.f32 %v1083, %v1754
        %v1813 = vadd.f32 %v1084, %v1759
        %v1814 = vadd.f32 %v1085, %v1762
        %v1815 = vadd.f32 %v1086, %v1767
        %v1816 = vadd.f32 %v1087, %v1770
        %v1817 = vadd.f32 %v1088, %v1775
        %v1818 = vadd.f32 %v1089, %v1778
        %v1819 = vadd.f32 %v1090, %v1783
        %v1820 = vadd.f32 %v1091, %v1786
        %v1821 = vld [vmem:[%s349] sm:$0xf]
        %v1822 = vld [vmem:[%s349 + $0x4] sm:$0xf]
        %v1823 = vld [vmem:[%s349 + $0x8] sm:$0x1]
        %v1824 = vld [vmem:[%s349 + $0xc] sm:$0xf]
        %v1825 = vld [vmem:[%s349 + $0x10] sm:$0xf]
        %v1826 = vld [vmem:[%s349 + $0x14] sm:$0x1]
        %v1827 = vld [vmem:[%s349 + $0x18] sm:$0xf]
        %v1828 = vld [vmem:[%s349 + $0x1c] sm:$0xf]
        %v1829 = vld [vmem:[%s349 + $0x20] sm:$0x1]
        %v1830 = vld [vmem:[%s349 + $0x24] sm:$0xf]
        %v1831 = vld [vmem:[%s349 + $0x28] sm:$0xf]
        %v1832 = vld [vmem:[%s349 + $0x2c] sm:$0x1]
        %v1833 = vld [vmem:[%s349 + $0x30] sm:$0xf]
        %v1834 = vld [vmem:[%s349 + $0x34] sm:$0xf]
        %v1835 = vld [vmem:[%s349 + $0x38] sm:$0x1]
        %v1836 = vld [vmem:[%s349 + $0x3c] sm:$0xf]
        %v1837 = vld [vmem:[%s349 + $0x40] sm:$0xf]
        %v1838 = vld [vmem:[%s349 + $0x44] sm:$0x1]
        %v1839 = vld [vmem:[%s349 + $0x48] sm:$0xf]
        %v1840 = vld [vmem:[%s349 + $0x4c] sm:$0xf]
        %v1841 = vld [vmem:[%s349 + $0x50] sm:$0x1]
        %v1842 = vld [vmem:[%s349 + $0x54] sm:$0xf]
        %v1843 = vld [vmem:[%s349 + $0x58] sm:$0xf]
        %v1844 = vld [vmem:[%s349 + $0x5c] sm:$0x1]
        %v1845 = vld [vmem:[%s349 + $0x60] sm:$0xf]
        %v1846 = vld [vmem:[%s349 + $0x64] sm:$0xf]
        %v1847 = vld [vmem:[%s349 + $0x68] sm:$0x1]
        %v1848 = vld [vmem:[%s349 + $0x6c] sm:$0xf]
        %v1849 = vld [vmem:[%s349 + $0x70] sm:$0xf]
        %v1850 = vld [vmem:[%s349 + $0x74] sm:$0x1]
        %v1851 = vld [vmem:[%s349 + $0x78] sm:$0xf]
        %v1852 = vld [vmem:[%s349 + $0x7c] sm:$0xf]
        %v1853 = vld [vmem:[%s349 + $0x80] sm:$0x1]
        %v1854 = vld [vmem:[%s349 + $0x84] sm:$0xf]
        %v1855 = vld [vmem:[%s349 + $0x88] sm:$0xf]
        %v1856 = vld [vmem:[%s349 + $0x8c] sm:$0x1]
        %v1857 = vld [vmem:[%s349 + $0x90] sm:$0xf]
        %v1858 = vld [vmem:[%s349 + $0x94] sm:$0xf]
        %v1859 = vld [vmem:[%s349 + $0x98] sm:$0x1]
        %v1860 = vld [vmem:[%s349 + $0x9c] sm:$0xf]
        %v1861 = vld [vmem:[%s349 + $0xa0] sm:$0xf]
        %v1862 = vld [vmem:[%s349 + $0xa4] sm:$0x1]
        %v1863 = vld [vmem:[%s349 + $0xa8] sm:$0xf]
        %v1864 = vld [vmem:[%s349 + $0xac] sm:$0xf]
        %v1865 = vld [vmem:[%s349 + $0xb0] sm:$0x1]
        %v1866 = vld [vmem:[%s349 + $0xb4] sm:$0xf]
        %v1867 = vld [vmem:[%s349 + $0xb8] sm:$0xf]
        %v1868 = vld [vmem:[%s349 + $0xbc] sm:$0x1]
        %v1870 = vshrl.u32 %v1821, 16
        %v1872 = vrot.slane %v1870, 4
        %v1873 = vshll.u32 %v1821, 16
        %v1875 = vrot.slane %v1873, 5
        %v1876 = vor.u32 %v1872, %v1875
        %v1877 = vrot.slane %v1876, 4
        %v1879 = vshll.u32 %v1822, 16
        %v1881 = vrot.slane %v1879, 5
        %v1882 = vsel %vm1142, %v1877, %v1881
        %v1883 = vshrl.u32 %v1822, 16
        %v1885 = vrot.slane %v1883, 4
        %v1886 = vor.u32 %v1885, %v1881
        %v1887 = vrot.slane %v1886, 4
        %v1889 = vshll.u32 %v1823, 16
        %v1891 = vrot.slane %v1889, 5
        %v1892 = vsel %vm1142, %v1887, %v1891
        %v1894 = vshrl.u32 %v1824, 16
        %v1896 = vrot.slane %v1894, 4
        %v1897 = vshll.u32 %v1824, 16
        %v1899 = vrot.slane %v1897, 5
        %v1900 = vor.u32 %v1896, %v1899
        %v1901 = vrot.slane %v1900, 4
        %v1903 = vshll.u32 %v1825, 16
        %v1905 = vrot.slane %v1903, 5
        %v1906 = vsel %vm1142, %v1901, %v1905
        %v1907 = vshrl.u32 %v1825, 16
        %v1909 = vrot.slane %v1907, 4
        %v1910 = vor.u32 %v1909, %v1905
        %v1911 = vrot.slane %v1910, 4
        %v1913 = vshll.u32 %v1826, 16
        %v1915 = vrot.slane %v1913, 5
        %v1916 = vsel %vm1142, %v1911, %v1915
        %v1918 = vshrl.u32 %v1827, 16
        %v1920 = vrot.slane %v1918, 4
        %v1921 = vshll.u32 %v1827, 16
        %v1923 = vrot.slane %v1921, 5
        %v1924 = vor.u32 %v1920, %v1923
        %v1925 = vrot.slane %v1924, 4
        %v1927 = vshll.u32 %v1828, 16
        %v1929 = vrot.slane %v1927, 5
        %v1930 = vsel %vm1142, %v1925, %v1929
        %v1931 = vshrl.u32 %v1828, 16
        %v1933 = vrot.slane %v1931, 4
        %v1934 = vor.u32 %v1933, %v1929
        %v1935 = vrot.slane %v1934, 4
        %v1937 = vshll.u32 %v1829, 16
        %v1939 = vrot.slane %v1937, 5
        %v1940 = vsel %vm1142, %v1935, %v1939
        %v1942 = vshrl.u32 %v1830, 16
        %v1944 = vrot.slane %v1942, 4
        %v1945 = vshll.u32 %v1830, 16
        %v1947 = vrot.slane %v1945, 5
        %v1948 = vor.u32 %v1944, %v1947
        %v1949 = vrot.slane %v1948, 4
        %v1951 = vshll.u32 %v1831, 16
        %v1953 = vrot.slane %v1951, 5
        %v1954 = vsel %vm1142, %v1949, %v1953
        %v1955 = vshrl.u32 %v1831, 16
        %v1957 = vrot.slane %v1955, 4
        %v1958 = vor.u32 %v1957, %v1953
        %v1959 = vrot.slane %v1958, 4
        %v1961 = vshll.u32 %v1832, 16
        %v1963 = vrot.slane %v1961, 5
        %v1964 = vsel %vm1142, %v1959, %v1963
        %v1966 = vshrl.u32 %v1833, 16
        %v1968 = vrot.slane %v1966, 4
        %v1969 = vshll.u32 %v1833, 16
        %v1971 = vrot.slane %v1969, 5
        %v1972 = vor.u32 %v1968, %v1971
        %v1973 = vrot.slane %v1972, 4
        %v1975 = vshll.u32 %v1834, 16
        %v1977 = vrot.slane %v1975, 5
        %v1978 = vsel %vm1142, %v1973, %v1977
        %v1979 = vshrl.u32 %v1834, 16
        %v1981 = vrot.slane %v1979, 4
        %v1982 = vor.u32 %v1981, %v1977
        %v1983 = vrot.slane %v1982, 4
        %v1985 = vshll.u32 %v1835, 16
        %v1987 = vrot.slane %v1985, 5
        %v1988 = vsel %vm1142, %v1983, %v1987
        %v1990 = vshrl.u32 %v1836, 16
        %v1992 = vrot.slane %v1990, 4
        %v1993 = vshll.u32 %v1836, 16
        %v1995 = vrot.slane %v1993, 5
        %v1996 = vor.u32 %v1992, %v1995
        %v1997 = vrot.slane %v1996, 4
        %v1999 = vshll.u32 %v1837, 16
        %v2001 = vrot.slane %v1999, 5
        %v2002 = vsel %vm1142, %v1997, %v2001
        %v2003 = vshrl.u32 %v1837, 16
        %v2005 = vrot.slane %v2003, 4
        %v2006 = vor.u32 %v2005, %v2001
        %v2007 = vrot.slane %v2006, 4
        %v2009 = vshll.u32 %v1838, 16
        %v2011 = vrot.slane %v2009, 5
        %v2012 = vsel %vm1142, %v2007, %v2011
        %v2014 = vshrl.u32 %v1839, 16
        %v2016 = vrot.slane %v2014, 4
        %v2017 = vshll.u32 %v1839, 16
        %v2019 = vrot.slane %v2017, 5
        %v2020 = vor.u32 %v2016, %v2019
        %v2021 = vrot.slane %v2020, 4
        %v2023 = vshll.u32 %v1840, 16
        %v2025 = vrot.slane %v2023, 5
        %v2026 = vsel %vm1142, %v2021, %v2025
        %v2027 = vshrl.u32 %v1840, 16
        %v2029 = vrot.slane %v2027, 4
        %v2030 = vor.u32 %v2029, %v2025
        %v2031 = vrot.slane %v2030, 4
        %v2033 = vshll.u32 %v1841, 16
        %v2035 = vrot.slane %v2033, 5
        %v2036 = vsel %vm1142, %v2031, %v2035
        %v2038 = vshrl.u32 %v1842, 16
        %v2040 = vrot.slane %v2038, 4
        %v2041 = vshll.u32 %v1842, 16
        %v2043 = vrot.slane %v2041, 5
        %v2044 = vor.u32 %v2040, %v2043
        %v2045 = vrot.slane %v2044, 4
        %v2047 = vshll.u32 %v1843, 16
        %v2049 = vrot.slane %v2047, 5
        %v2050 = vsel %vm1142, %v2045, %v2049
        %v2051 = vshrl.u32 %v1843, 16
        %v2053 = vrot.slane %v2051, 4
        %v2054 = vor.u32 %v2053, %v2049
        %v2055 = vrot.slane %v2054, 4
        %v2057 = vshll.u32 %v1844, 16
        %v2059 = vrot.slane %v2057, 5
        %v2060 = vsel %vm1142, %v2055, %v2059
        %v2062 = vshrl.u32 %v1845, 16
        %v2064 = vrot.slane %v2062, 4
        %v2065 = vshll.u32 %v1845, 16
        %v2067 = vrot.slane %v2065, 5
        %v2068 = vor.u32 %v2064, %v2067
        %v2069 = vrot.slane %v2068, 4
        %v2071 = vshll.u32 %v1846, 16
        %v2073 = vrot.slane %v2071, 5
        %v2074 = vsel %vm1142, %v2069, %v2073
        %v2075 = vshrl.u32 %v1846, 16
        %v2077 = vrot.slane %v2075, 4
        %v2078 = vor.u32 %v2077, %v2073
        %v2079 = vrot.slane %v2078, 4
        %v2081 = vshll.u32 %v1847, 16
        %v2083 = vrot.slane %v2081, 5
        %v2084 = vsel %vm1142, %v2079, %v2083
        %v2086 = vshrl.u32 %v1848, 16
        %v2088 = vrot.slane %v2086, 4
        %v2089 = vshll.u32 %v1848, 16
        %v2091 = vrot.slane %v2089, 5
        %v2092 = vor.u32 %v2088, %v2091
        %v2093 = vrot.slane %v2092, 4
        %v2095 = vshll.u32 %v1849, 16
        %v2097 = vrot.slane %v2095, 5
        %v2098 = vsel %vm1142, %v2093, %v2097
        %v2099 = vshrl.u32 %v1849, 16
        %v2101 = vrot.slane %v2099, 4
        %v2102 = vor.u32 %v2101, %v2097
        %v2103 = vrot.slane %v2102, 4
        %v2105 = vshll.u32 %v1850, 16
        %v2107 = vrot.slane %v2105, 5
        %v2108 = vsel %vm1142, %v2103, %v2107
        %v2110 = vshrl.u32 %v1851, 16
        %v2112 = vrot.slane %v2110, 4
        %v2113 = vshll.u32 %v1851, 16
        %v2115 = vrot.slane %v2113, 5
        %v2116 = vor.u32 %v2112, %v2115
        %v2117 = vrot.slane %v2116, 4
        %v2119 = vshll.u32 %v1852, 16
        %v2121 = vrot.slane %v2119, 5
        %v2122 = vsel %vm1142, %v2117, %v2121
        %v2123 = vshrl.u32 %v1852, 16
        %v2125 = vrot.slane %v2123, 4
        %v2126 = vor.u32 %v2125, %v2121
        %v2127 = vrot.slane %v2126, 4
        %v2129 = vshll.u32 %v1853, 16
        %v2131 = vrot.slane %v2129, 5
        %v2132 = vsel %vm1142, %v2127, %v2131
        %v2134 = vshrl.u32 %v1854, 16
        %v2136 = vrot.slane %v2134, 4
        %v2137 = vshll.u32 %v1854, 16
        %v2139 = vrot.slane %v2137, 5
        %v2140 = vor.u32 %v2136, %v2139
        %v2141 = vrot.slane %v2140, 4
        %v2143 = vshll.u32 %v1855, 16
        %v2145 = vrot.slane %v2143, 5
        %v2146 = vsel %vm1142, %v2141, %v2145
        %v2147 = vshrl.u32 %v1855, 16
        %v2149 = vrot.slane %v2147, 4
        %v2150 = vor.u32 %v2149, %v2145
        %v2151 = vrot.slane %v2150, 4
        %v2153 = vshll.u32 %v1856, 16
        %v2155 = vrot.slane %v2153, 5
        %v2156 = vsel %vm1142, %v2151, %v2155
        %v2158 = vshrl.u32 %v1857, 16
        %v2160 = vrot.slane %v2158, 4
        %v2161 = vshll.u32 %v1857, 16
        %v2163 = vrot.slane %v2161, 5
        %v2164 = vor.u32 %v2160, %v2163
        %v2165 = vrot.slane %v2164, 4
        %v2167 = vshll.u32 %v1858, 16
        %v2169 = vrot.slane %v2167, 5
        %v2170 = vsel %vm1142, %v2165, %v2169
        %v2171 = vshrl.u32 %v1858, 16
        %v2173 = vrot.slane %v2171, 4
        %v2174 = vor.u32 %v2173, %v2169
        %v2175 = vrot.slane %v2174, 4
        %v2177 = vshll.u32 %v1859, 16
        %v2179 = vrot.slane %v2177, 5
        %v2180 = vsel %vm1142, %v2175, %v2179
        %v2182 = vshrl.u32 %v1860, 16
        %v2184 = vrot.slane %v2182, 4
        %v2185 = vshll.u32 %v1860, 16
        %v2187 = vrot.slane %v2185, 5
        %v2188 = vor.u32 %v2184, %v2187
        %v2189 = vrot.slane %v2188, 4
        %v2191 = vshll.u32 %v1861, 16
        %v2193 = vrot.slane %v2191, 5
        %v2194 = vsel %vm1142, %v2189, %v2193
        %v2195 = vshrl.u32 %v1861, 16
        %v2197 = vrot.slane %v2195, 4
        %v2198 = vor.u32 %v2197, %v2193
        %v2199 = vrot.slane %v2198, 4
        %v2201 = vshll.u32 %v1862, 16
        %v2203 = vrot.slane %v2201, 5
        %v2204 = vsel %vm1142, %v2199, %v2203
        %v2206 = vshrl.u32 %v1863, 16
        %v2208 = vrot.slane %v2206, 4
        %v2209 = vshll.u32 %v1863, 16
        %v2211 = vrot.slane %v2209, 5
        %v2212 = vor.u32 %v2208, %v2211
        %v2213 = vrot.slane %v2212, 4
        %v2215 = vshll.u32 %v1864, 16
        %v2217 = vrot.slane %v2215, 5
        %v2218 = vsel %vm1142, %v2213, %v2217
        %v2219 = vshrl.u32 %v1864, 16
        %v2221 = vrot.slane %v2219, 4
        %v2222 = vor.u32 %v2221, %v2217
        %v2223 = vrot.slane %v2222, 4
        %v2225 = vshll.u32 %v1865, 16
        %v2227 = vrot.slane %v2225, 5
        %v2228 = vsel %vm1142, %v2223, %v2227
        %v2230 = vshrl.u32 %v1866, 16
        %v2232 = vrot.slane %v2230, 4
        %v2233 = vshll.u32 %v1866, 16
        %v2235 = vrot.slane %v2233, 5
        %v2236 = vor.u32 %v2232, %v2235
        %v2237 = vrot.slane %v2236, 4
        %v2239 = vshll.u32 %v1867, 16
        %v2241 = vrot.slane %v2239, 5
        %v2242 = vsel %vm1142, %v2237, %v2241
        %v2243 = vshrl.u32 %v1867, 16
        %v2245 = vrot.slane %v2243, 4
        %v2246 = vor.u32 %v2245, %v2241
        %v2247 = vrot.slane %v2246, 4
        %v2249 = vshll.u32 %v1868, 16
        %v2251 = vrot.slane %v2249, 5
        %v2252 = vsel %vm1142, %v2247, %v2251
        %s2253 = scalar_lea.vmem %s3, 16
        %v2254 = vld [vmem:[%s2253] sm:$0xf]
        %v2255 = vld [vmem:[%s2253 + $0x4] sm:$0xf]
        %v2256 = vld [vmem:[%s2253 + $0x8] sm:$0xf]
        %v2257 = vld [vmem:[%s2253 + $0xc] sm:$0xf]
        %v2258 = vunpack.c.l.b16 %v1882
        %v2259 = vunpack.c.l.b16 %v1892
        %v2260 = vunpack.c.l.b16 %v1906
        %v2261 = vunpack.c.l.b16 %v1916
        %v2262 = vunpack.c.l.b16 %v1930
        %v2263 = vunpack.c.l.b16 %v1940
        %v2264 = vunpack.c.l.b16 %v1954
        %v2265 = vunpack.c.l.b16 %v1964
        %v2266 = vunpack.c.l.b16 %v1978
        %v2267 = vunpack.c.l.b16 %v1988
        %v2268 = vunpack.c.l.b16 %v2002
        %v2269 = vunpack.c.l.b16 %v2012
        %v2270 = vunpack.c.l.b16 %v2026
        %v2271 = vunpack.c.l.b16 %v2036
        %v2272 = vunpack.c.l.b16 %v2050
        %v2273 = vunpack.c.l.b16 %v2060
        %v2274 = vunpack.c.l.b16 %v2074
        %v2275 = vunpack.c.l.b16 %v2084
        %v2276 = vunpack.c.l.b16 %v2098
        %v2277 = vunpack.c.l.b16 %v2108
        %v2278 = vunpack.c.l.b16 %v2122
        %v2279 = vunpack.c.l.b16 %v2132
        %v2280 = vunpack.c.l.b16 %v2146
        %v2281 = vunpack.c.l.b16 %v2156
        %v2282 = vunpack.c.l.b16 %v2170
        %v2283 = vunpack.c.l.b16 %v2180
        %v2284 = vunpack.c.l.b16 %v2194
        %v2285 = vunpack.c.l.b16 %v2204
        %v2286 = vunpack.c.l.b16 %v2218
        %v2287 = vunpack.c.l.b16 %v2228
        %v2288 = vunpack.c.l.b16 %v2242
        %v2289 = vunpack.c.l.b16 %v2252
        %v2290 = vpack.c.b16 %v2259, %v2258
        %v2291 = vpack.c.b16 %v2261, %v2260
        %v2292 = vpack.c.b16 %v2263, %v2262
        %v2293 = vpack.c.b16 %v2265, %v2264
        %v2294 = vpack.c.b16 %v2267, %v2266
        %v2295 = vpack.c.b16 %v2269, %v2268
        %v2296 = vpack.c.b16 %v2271, %v2270
        %v2297 = vpack.c.b16 %v2273, %v2272
        %v2298 = vpack.c.b16 %v2275, %v2274
        %v2299 = vpack.c.b16 %v2277, %v2276
        %v2300 = vpack.c.b16 %v2279, %v2278
        %v2301 = vpack.c.b16 %v2281, %v2280
        %v2302 = vpack.c.b16 %v2283, %v2282
        %v2303 = vpack.c.b16 %v2285, %v2284
        %v2304 = vpack.c.b16 %v2287, %v2286
        %v2305 = vpack.c.b16 %v2289, %v2288
        %v2310 = vunpack.c.l.b16 %v2254
        %v2311 = vunpack.c.l.b16 %v2255
        %v2312 = vunpack.c.l.b16 %v2256
        %v2313 = vunpack.c.l.b16 %v2257
        %v2314 = vpack.c.b16 %v2311, %v2310
        %v2315 = vpack.c.b16 %v2313, %v2312
        %v2319 = vsel %vm850, %v2290, 0
        %v2322 = vsel %vm850, %v2291, 0
        %v2325 = vsel %vm850, %v2292, 0
        %v2328 = vsel %vm850, %v2293, 0
        %v2331 = vsel %vm850, %v2294, 0
        %v2334 = vsel %vm850, %v2295, 0
        %v2337 = vsel %vm850, %v2296, 0
        %v2340 = vsel %vm850, %v2297, 0
        %v2343 = vsel %vm850, %v2298, 0
        %v2346 = vsel %vm850, %v2299, 0
        %v2349 = vsel %vm850, %v2300, 0
        %v2352 = vsel %vm850, %v2301, 0
        %v2355 = vsel %vm850, %v2302, 0
        %v2358 = vsel %vm850, %v2303, 0
        %v2361 = vsel %vm850, %v2304, 0
        %v2364 = vsel %vm850, %v2305, 0
        %2366 = vmatprep.subr.bf16.mxu0 0
        %2367 = vmatpush1.bf16.msra.mxu0 %v2314
        %2368 = vmatprep.subr.bf16.mxu0 0
        %2369 = vmatpush1.bf16.msra.mxu0 %v2315
        %2370 = vmatprep.subr.bf16.mxu0 0
        %2371 = vmatpush1.bf16.msra.mxu0 0
        %2372 = vmatprep.subr.bf16.mxu0 0
        %2373 = vmatpush1.bf16.msra.mxu0 0
        %2374 = vmatprep.subr.bf16.mxu0 0
        %2375 = vmatpush1.bf16.msra.mxu0 0
        %2376 = vmatprep.subr.bf16.mxu0 0
        %2377 = vmatpush1.bf16.msra.mxu0 0
        %2378 = vmatprep.subr.bf16.mxu0 0
        %2379 = vmatpush1.bf16.msra.mxu0 0
        %2380 = vmatprep.subr.bf16.mxu0 0
        %2381 = vmatpush1.bf16.msra.mxu0 0
        %2382 = vmatprep.subr.bf16.mxu0 0
        %2383 = vmatpush1.bf16.msra.mxu0 0
        %2384 = vmatprep.subr.bf16.mxu0 0
        %2385 = vmatpush1.bf16.msra.mxu0 0
        %2386 = vmatprep.subr.bf16.mxu0 0
        %2387 = vmatpush1.bf16.msra.mxu0 0
        %2388 = vmatprep.subr.bf16.mxu0 0
        %2389 = vmatpush1.bf16.msra.mxu0 0
        %2390 = vmatprep.subr.bf16.mxu0 0
        %2391 = vmatpush1.bf16.msra.mxu0 0
        %2392 = vmatprep.subr.bf16.mxu0 0
        %2393 = vmatpush1.bf16.msra.mxu0 0
        %2394 = vmatprep.subr.bf16.mxu0 0
        %2395 = vmatpush1.bf16.msra.mxu0 0
        %2396 = vmatprep.subr.bf16.mxu0 0
        %2397 = vmatpush1.bf16.msra.mxu0 0
        %2398 = vmatprep.mubr.bf16.mxu0 0
        %2399 = vmatmul.mubr.bf16.gmra.mrb[0].mxu0 %v2319
        %v2400 = vpop.f32.mrb[0].mxu0
        %v2401 = vadd.f32 0.0, %v2400
        %v2402 = vpop.f32.mrb[0].mxu0
        %v2403 = vpop.f32.mrb[0].mxu0
        %v2404 = vadd.f32 0.0, %v2403
        %v2405 = vpop.f32.mrb[0].mxu0
        %2406 = vmatprep.mubr.bf16.mxu0 0
        %2407 = vmatmul.mubr.bf16.gmra.mrb[0].mxu0 %v2322
        %v2408 = vpop.f32.mrb[0].mxu0
        %v2409 = vadd.f32 0.0, %v2408
        %v2410 = vpop.f32.mrb[0].mxu0
        %v2411 = vpop.f32.mrb[0].mxu0
        %v2412 = vadd.f32 0.0, %v2411
        %v2413 = vpop.f32.mrb[0].mxu0
        %2414 = vmatprep.mubr.bf16.mxu0 0
        %2415 = vmatmul.mubr.bf16.gmra.mrb[0].mxu0 %v2325
        %v2416 = vpop.f32.mrb[0].mxu0
        %v2417 = vadd.f32 0.0, %v2416
        %v2418 = vpop.f32.mrb[0].mxu0
        %v2419 = vpop.f32.mrb[0].mxu0
        %v2420 = vadd.f32 0.0, %v2419
        %v2421 = vpop.f32.mrb[0].mxu0
        %2422 = vmatprep.mubr.bf16.mxu0 0
        %2423 = vmatmul.mubr.bf16.gmra.mrb[0].mxu0 %v2328
        %v2424 = vpop.f32.mrb[0].mxu0
        %v2425 = vadd.f32 0.0, %v2424
        %v2426 = vpop.f32.mrb[0].mxu0
        %v2427 = vpop.f32.mrb[0].mxu0
        %v2428 = vadd.f32 0.0, %v2427
        %v2429 = vpop.f32.mrb[0].mxu0
        %2430 = vmatprep.mubr.bf16.mxu0 0
        %2431 = vmatmul.mubr.bf16.gmra.mrb[0].mxu0 %v2331
        %v2432 = vpop.f32.mrb[0].mxu0
        %v2433 = vadd.f32 0.0, %v2432
        %v2434 = vpop.f32.mrb[0].mxu0
        %v2435 = vpop.f32.mrb[0].mxu0
        %v2436 = vadd.f32 0.0, %v2435
        %v2437 = vpop.f32.mrb[0].mxu0
        %2438 = vmatprep.mubr.bf16.mxu0 0
        %2439 = vmatmul.mubr.bf16.gmra.mrb[0].mxu0 %v2334
        %v2440 = vpop.f32.mrb[0].mxu0
        %v2441 = vadd.f32 0.0, %v2440
        %v2442 = vpop.f32.mrb[0].mxu0
        %v2443 = vpop.f32.mrb[0].mxu0
        %v2444 = vadd.f32 0.0, %v2443
        %v2445 = vpop.f32.mrb[0].mxu0
        %2446 = vmatprep.mubr.bf16.mxu0 0
        %2447 = vmatmul.mubr.bf16.gmra.mrb[0].mxu0 %v2337
        %v2448 = vpop.f32.mrb[0].mxu0
        %v2449 = vadd.f32 0.0, %v2448
        %v2450 = vpop.f32.mrb[0].mxu0
        %v2451 = vpop.f32.mrb[0].mxu0
        %v2452 = vadd.f32 0.0, %v2451
        %v2453 = vpop.f32.mrb[0].mxu0
        %2454 = vmatprep.mubr.bf16.mxu0 0
        %2455 = vmatmul.mubr.bf16.gmra.mrb[0].mxu0 %v2340
        %v2456 = vpop.f32.mrb[0].mxu0
        %v2457 = vadd.f32 0.0, %v2456
        %v2458 = vpop.f32.mrb[0].mxu0
        %v2459 = vpop.f32.mrb[0].mxu0
        %v2460 = vadd.f32 0.0, %v2459
        %v2461 = vpop.f32.mrb[0].mxu0
        %2462 = vmatprep.mubr.bf16.mxu0 0
        %2463 = vmatmul.mubr.bf16.gmra.mrb[0].mxu0 %v2343
        %v2464 = vpop.f32.mrb[0].mxu0
        %v2465 = vadd.f32 0.0, %v2464
        %v2466 = vpop.f32.mrb[0].mxu0
        %v2467 = vpop.f32.mrb[0].mxu0
        %v2468 = vadd.f32 0.0, %v2467
        %v2469 = vpop.f32.mrb[0].mxu0
        %2470 = vmatprep.mubr.bf16.mxu0 0
        %2471 = vmatmul.mubr.bf16.gmra.mrb[0].mxu0 %v2346
        %v2472 = vpop.f32.mrb[0].mxu0
        %v2473 = vadd.f32 0.0, %v2472
        %v2474 = vpop.f32.mrb[0].mxu0
        %v2475 = vpop.f32.mrb[0].mxu0
        %v2476 = vadd.f32 0.0, %v2475
        %v2477 = vpop.f32.mrb[0].mxu0
        %2478 = vmatprep.mubr.bf16.mxu0 0
        %2479 = vmatmul.mubr.bf16.gmra.mrb[0].mxu0 %v2349
        %v2480 = vpop.f32.mrb[0].mxu0
        %v2481 = vadd.f32 0.0, %v2480
        %v2482 = vpop.f32.mrb[0].mxu0
        %v2483 = vpop.f32.mrb[0].mxu0
        %v2484 = vadd.f32 0.0, %v2483
        %v2485 = vpop.f32.mrb[0].mxu0
        %2486 = vmatprep.mubr.bf16.mxu0 0
        %2487 = vmatmul.mubr.bf16.gmra.mrb[0].mxu0 %v2352
        %v2488 = vpop.f32.mrb[0].mxu0
        %v2489 = vadd.f32 0.0, %v2488
        %v2490 = vpop.f32.mrb[0].mxu0
        %v2491 = vpop.f32.mrb[0].mxu0
        %v2492 = vadd.f32 0.0, %v2491
        %v2493 = vpop.f32.mrb[0].mxu0
        %2494 = vmatprep.mubr.bf16.mxu0 0
        %2495 = vmatmul.mubr.bf16.gmra.mrb[0].mxu0 %v2355
        %v2496 = vpop.f32.mrb[0].mxu0
        %v2497 = vadd.f32 0.0, %v2496
        %v2498 = vpop.f32.mrb[0].mxu0
        %v2499 = vpop.f32.mrb[0].mxu0
        %v2500 = vadd.f32 0.0, %v2499
        %v2501 = vpop.f32.mrb[0].mxu0
        %2502 = vmatprep.mubr.bf16.mxu0 0
        %2503 = vmatmul.mubr.bf16.gmra.mrb[0].mxu0 %v2358
        %v2504 = vpop.f32.mrb[0].mxu0
        %v2505 = vadd.f32 0.0, %v2504
        %v2506 = vpop.f32.mrb[0].mxu0
        %v2507 = vpop.f32.mrb[0].mxu0
        %v2508 = vadd.f32 0.0, %v2507
        %v2509 = vpop.f32.mrb[0].mxu0
        %2510 = vmatprep.mubr.bf16.mxu0 0
        %2511 = vmatmul.mubr.bf16.gmra.mrb[0].mxu0 %v2361
        %v2512 = vpop.f32.mrb[0].mxu0
        %v2513 = vadd.f32 0.0, %v2512
        %v2514 = vpop.f32.mrb[0].mxu0
        %v2515 = vpop.f32.mrb[0].mxu0
        %v2516 = vadd.f32 0.0, %v2515
        %v2517 = vpop.f32.mrb[0].mxu0
        %2518 = vmatprep.mubr.bf16.mxu0 0
        %2519 = vmatmul.mubr.bf16.gmra.mrb[0].mxu0 %v2364
        %v2520 = vpop.f32.mrb[0].mxu0
        %v2521 = vadd.f32 0.0, %v2520
        %v2522 = vpop.f32.mrb[0].mxu0
        %v2523 = vpop.f32.mrb[0].mxu0
        %v2524 = vadd.f32 0.0, %v2523
        %v2525 = vpop.f32.mrb[0].mxu0
        %2526 = vdwg.mxu0
        %v2527 = vadd.f32 %v1789, %v2401
        %v2528 = vadd.f32 %v1790, %v2404
        %v2529 = vadd.f32 %v1791, %v2409
        %v2530 = vadd.f32 %v1792, %v2412
        %v2531 = vadd.f32 %v1793, %v2417
        %v2532 = vadd.f32 %v1794, %v2420
        %v2533 = vadd.f32 %v1795, %v2425
        %v2534 = vadd.f32 %v1796, %v2428
        %v2535 = vadd.f32 %v1797, %v2433
        %v2536 = vadd.f32 %v1798, %v2436
        %v2537 = vadd.f32 %v1799, %v2441
        %v2538 = vadd.f32 %v1800, %v2444
        %v2539 = vadd.f32 %v1801, %v2449
        %v2540 = vadd.f32 %v1802, %v2452
        %v2541 = vadd.f32 %v1803, %v2457
        %v2542 = vadd.f32 %v1804, %v2460
        %v2543 = vadd.f32 %v1805, %v2465
        %v2544 = vadd.f32 %v1806, %v2468
        %v2545 = vadd.f32 %v1807, %v2473
        %v2546 = vadd.f32 %v1808, %v2476
        %v2547 = vadd.f32 %v1809, %v2481
        %v2548 = vadd.f32 %v1810, %v2484
        %v2549 = vadd.f32 %v1811, %v2489
        %v2550 = vadd.f32 %v1812, %v2492
        %v2551 = vadd.f32 %v1813, %v2497
        %v2552 = vadd.f32 %v1814, %v2500
        %v2553 = vadd.f32 %v1815, %v2505
        %v2554 = vadd.f32 %v1816, %v2508
        %v2555 = vadd.f32 %v1817, %v2513
        %v2556 = vadd.f32 %v1818, %v2516
        %v2557 = vadd.f32 %v1819, %v2521
        %v2558 = vadd.f32 %v1820, %v2524
        %v2559 = vld [vmem:[%s344] sm:$0xe]
        %v2560 = vld [vmem:[%s344 + $0xc] sm:$0xe]
        %v2561 = vld [vmem:[%s344 + $0x18] sm:$0xe]
        %v2562 = vld [vmem:[%s344 + $0x24] sm:$0xe]
        %v2563 = vld [vmem:[%s344 + $0x30] sm:$0xe]
        %v2564 = vld [vmem:[%s344 + $0x3c] sm:$0xe]
        %v2565 = vld [vmem:[%s344 + $0x48] sm:$0xe]
        %v2566 = vld [vmem:[%s344 + $0x54] sm:$0xe]
        %v2567 = vld [vmem:[%s344 + $0x60] sm:$0xe]
        %v2568 = vld [vmem:[%s344 + $0x6c] sm:$0xe]
        %v2569 = vld [vmem:[%s344 + $0x78] sm:$0xe]
        %v2570 = vld [vmem:[%s344 + $0x84] sm:$0xe]
        %v2571 = vld [vmem:[%s344 + $0x90] sm:$0xe]
        %v2572 = vld [vmem:[%s344 + $0x9c] sm:$0xe]
        %v2573 = vld [vmem:[%s344 + $0xa8] sm:$0xe]
        %v2574 = vld [vmem:[%s344 + $0xb4] sm:$0xe]
        %vm2623 = vcmask 1042432
        %vm2624 = vcmask 1046532
        %vm2625 = vmor %vm2623, %vm2624
        %v2626 = vrot.slane %v2559, 5
        %v2627 = vrot.slane %v2626, 4
        %v2628 = vrot.slane %v1093, 5
        %v2629 = vsel %vm2625, %v2627, %v2628
        %v2630 = vrot.slane %v2628, 4
        %v2631 = vrot.slane %v1094, 5
        %v2632 = vsel %vm2625, %v2630, %v2631
        %v2633 = vrot.slane %v2560, 5
        %v2634 = vrot.slane %v2633, 4
        %v2635 = vrot.slane %v1096, 5
        %v2636 = vsel %vm2625, %v2634, %v2635
        %v2637 = vrot.slane %v2635, 4
        %v2638 = vrot.slane %v1097, 5
        %v2639 = vsel %vm2625, %v2637, %v2638
        %v2640 = vrot.slane %v2561, 5
        %v2641 = vrot.slane %v2640, 4
        %v2642 = vrot.slane %v1099, 5
        %v2643 = vsel %vm2625, %v2641, %v2642
        %v2644 = vrot.slane %v2642, 4
        %v2645 = vrot.slane %v1100, 5
        %v2646 = vsel %vm2625, %v2644, %v2645
        %v2647 = vrot.slane %v2562, 5
        %v2648 = vrot.slane %v2647, 4
        %v2649 = vrot.slane %v1102, 5
        %v2650 = vsel %vm2625, %v2648, %v2649
        %v2651 = vrot.slane %v2649, 4
        %v2652 = vrot.slane %v1103, 5
        %v2653 = vsel %vm2625, %v2651, %v2652
        %v2654 = vrot.slane %v2563, 5
        %v2655 = vrot.slane %v2654, 4
        %v2656 = vrot.slane %v1105, 5
        %v2657 = vsel %vm2625, %v2655, %v2656
        %v2658 = vrot.slane %v2656, 4
        %v2659 = vrot.slane %v1106, 5
        %v2660 = vsel %vm2625, %v2658, %v2659
        %v2661 = vrot.slane %v2564, 5
        %v2662 = vrot.slane %v2661, 4
        %v2663 = vrot.slane %v1108, 5
        %v2664 = vsel %vm2625, %v2662, %v2663
        %v2665 = vrot.slane %v2663, 4
        %v2666 = vrot.slane %v1109, 5
        %v2667 = vsel %vm2625, %v2665, %v2666
        %v2668 = vrot.slane %v2565, 5
        %v2669 = vrot.slane %v2668, 4
        %v2670 = vrot.slane %v1111, 5
        %v2671 = vsel %vm2625, %v2669, %v2670
        %v2672 = vrot.slane %v2670, 4
        %v2673 = vrot.slane %v1112, 5
        %v2674 = vsel %vm2625, %v2672, %v2673
        %v2675 = vrot.slane %v2566, 5
        %v2676 = vrot.slane %v2675, 4
        %v2677 = vrot.slane %v1114, 5
        %v2678 = vsel %vm2625, %v2676, %v2677
        %v2679 = vrot.slane %v2677, 4
        %v2680 = vrot.slane %v1115, 5
        %v2681 = vsel %vm2625, %v2679, %v2680
        %v2682 = vrot.slane %v2567, 5
        %v2683 = vrot.slane %v2682, 4
        %v2684 = vrot.slane %v1117, 5
        %v2685 = vsel %vm2625, %v2683, %v2684
        %v2686 = vrot.slane %v2684, 4
        %v2687 = vrot.slane %v1118, 5
        %v2688 = vsel %vm2625, %v2686, %v2687
        %v2689 = vrot.slane %v2568, 5
        %v2690 = vrot.slane %v2689, 4
        %v2691 = vrot.slane %v1120, 5
        %v2692 = vsel %vm2625, %v2690, %v2691
        %v2693 = vrot.slane %v2691, 4
        %v2694 = vrot.slane %v1121, 5
        %v2695 = vsel %vm2625, %v2693, %v2694
        %v2696 = vrot.slane %v2569, 5
        %v2697 = vrot.slane %v2696, 4
        %v2698 = vrot.slane %v1123, 5
        %v2699 = vsel %vm2625, %v2697, %v2698
        %v2700 = vrot.slane %v2698, 4
        %v2701 = vrot.slane %v1124, 5
        %v2702 = vsel %vm2625, %v2700, %v2701
        %v2703 = vrot.slane %v2570, 5
        %v2704 = vrot.slane %v2703, 4
        %v2705 = vrot.slane %v1126, 5
        %v2706 = vsel %vm2625, %v2704, %v2705
        %v2707 = vrot.slane %v2705, 4
        %v2708 = vrot.slane %v1127, 5
        %v2709 = vsel %vm2625, %v2707, %v2708
        %v2710 = vrot.slane %v2571, 5
        %v2711 = vrot.slane %v2710, 4
        %v2712 = vrot.slane %v1129, 5
        %v2713 = vsel %vm2625, %v2711, %v2712
        %v2714 = vrot.slane %v2712, 4
        %v2715 = vrot.slane %v1130, 5
        %v2716 = vsel %vm2625, %v2714, %v2715
        %v2717 = vrot.slane %v2572, 5
        %v2718 = vrot.slane %v2717, 4
        %v2719 = vrot.slane %v1132, 5
        %v2720 = vsel %vm2625, %v2718, %v2719
        %v2721 = vrot.slane %v2719, 4
        %v2722 = vrot.slane %v1133, 5
        %v2723 = vsel %vm2625, %v2721, %v2722
        %v2724 = vrot.slane %v2573, 5
        %v2725 = vrot.slane %v2724, 4
        %v2726 = vrot.slane %v1135, 5
        %v2727 = vsel %vm2625, %v2725, %v2726
        %v2728 = vrot.slane %v2726, 4
        %v2729 = vrot.slane %v1136, 5
        %v2730 = vsel %vm2625, %v2728, %v2729
        %v2731 = vrot.slane %v2574, 5
        %v2732 = vrot.slane %v2731, 4
        %v2733 = vrot.slane %v1138, 5
        %v2734 = vsel %vm2625, %v2732, %v2733
        %v2735 = vrot.slane %v2733, 4
        %v2736 = vrot.slane %v1139, 5
        %v2737 = vsel %vm2625, %v2735, %v2736
        %s2738 = scalar_lea.vmem %s2, 4
        %v2739 = vld [vmem:[%s2738] sm:$0x3]
        %v2740 = vunpack.c.l.b16 %v2629
        %v2741 = vunpack.c.l.b16 %v2632
        %v2742 = vunpack.c.l.b16 %v2636
        %v2743 = vunpack.c.l.b16 %v2639
        %v2744 = vunpack.c.l.b16 %v2643
        %v2745 = vunpack.c.l.b16 %v2646
        %v2746 = vunpack.c.l.b16 %v2650
        %v2747 = vunpack.c.l.b16 %v2653
        %v2748 = vunpack.c.l.b16 %v2657
        %v2749 = vunpack.c.l.b16 %v2660
        %v2750 = vunpack.c.l.b16 %v2664
        %v2751 = vunpack.c.l.b16 %v2667
        %v2752 = vunpack.c.l.b16 %v2671
        %v2753 = vunpack.c.l.b16 %v2674
        %v2754 = vunpack.c.l.b16 %v2678
        %v2755 = vunpack.c.l.b16 %v2681
        %v2756 = vunpack.c.l.b16 %v2685
        %v2757 = vunpack.c.l.b16 %v2688
        %v2758 = vunpack.c.l.b16 %v2692
        %v2759 = vunpack.c.l.b16 %v2695
        %v2760 = vunpack.c.l.b16 %v2699
        %v2761 = vunpack.c.l.b16 %v2702
        %v2762 = vunpack.c.l.b16 %v2706
        %v2763 = vunpack.c.l.b16 %v2709
        %v2764 = vunpack.c.l.b16 %v2713
        %v2765 = vunpack.c.l.b16 %v2716
        %v2766 = vunpack.c.l.b16 %v2720
        %v2767 = vunpack.c.l.b16 %v2723
        %v2768 = vunpack.c.l.b16 %v2727
        %v2769 = vunpack.c.l.b16 %v2730
        %v2770 = vunpack.c.l.b16 %v2734
        %v2771 = vunpack.c.l.b16 %v2737
        %v2772 = vpack.c.b16 %v2741, %v2740
        %v2773 = vpack.c.b16 %v2743, %v2742
        %v2774 = vpack.c.b16 %v2745, %v2744
        %v2775 = vpack.c.b16 %v2747, %v2746
        %v2776 = vpack.c.b16 %v2749, %v2748
        %v2777 = vpack.c.b16 %v2751, %v2750
        %v2778 = vpack.c.b16 %v2753, %v2752
        %v2779 = vpack.c.b16 %v2755, %v2754
        %v2780 = vpack.c.b16 %v2757, %v2756
        %v2781 = vpack.c.b16 %v2759, %v2758
        %v2782 = vpack.c.b16 %v2761, %v2760
        %v2783 = vpack.c.b16 %v2763, %v2762
        %v2784 = vpack.c.b16 %v2765, %v2764
        %v2785 = vpack.c.b16 %v2767, %v2766
        %v2786 = vpack.c.b16 %v2769, %v2768
        %v2787 = vpack.c.b16 %v2771, %v2770
        %v2789 = vsel %vm476, %v2772, 0
        %v2792 = vsel %vm476, %v2773, 0
        %v2795 = vsel %vm476, %v2774, 0
        %v2798 = vsel %vm476, %v2775, 0
        %v2801 = vsel %vm476, %v2776, 0
        %v2804 = vsel %vm476, %v2777, 0
        %v2807 = vsel %vm476, %v2778, 0
        %v2810 = vsel %vm476, %v2779, 0
        %v2813 = vsel %vm476, %v2780, 0
        %v2816 = vsel %vm476, %v2781, 0
        %v2819 = vsel %vm476, %v2782, 0
        %v2822 = vsel %vm476, %v2783, 0
        %v2825 = vsel %vm476, %v2784, 0
        %v2828 = vsel %vm476, %v2785, 0
        %v2831 = vsel %vm476, %v2786, 0
        %v2834 = vsel %vm476, %v2787, 0
        %v2837 = vsel %vm525, %v2739, 0
        %2839 = vmatprep.subr.bf16.mxu0 0
        %2840 = vmatpush1.bf16.msra.mxu0 %v2837
        %2841 = vmatprep.subr.bf16.mxu0 0
        %2842 = vmatpush1.bf16.msra.mxu0 0
        %2843 = vmatprep.subr.bf16.mxu0 0
        %2844 = vmatpush1.bf16.msra.mxu0 0
        %2845 = vmatprep.subr.bf16.mxu0 0
        %2846 = vmatpush1.bf16.msra.mxu0 0
        %2847 = vmatprep.subr.bf16.mxu0 0
        %2848 = vmatpush1.bf16.msra.mxu0 0
        %2849 = vmatprep.subr.bf16.mxu0 0
        %2850 = vmatpush1.bf16.msra.mxu0 0
        %2851 = vmatprep.subr.bf16.mxu0 0
        %2852 = vmatpush1.bf16.msra.mxu0 0
        %2853 = vmatprep.subr.bf16.mxu0 0
        %2854 = vmatpush1.bf16.msra.mxu0 0
        %2855 = vmatprep.subr.bf16.mxu0 0
        %2856 = vmatpush1.bf16.msra.mxu0 0
        %2857 = vmatprep.subr.bf16.mxu0 0
        %2858 = vmatpush1.bf16.msra.mxu0 0
        %2859 = vmatprep.subr.bf16.mxu0 0
        %2860 = vmatpush1.bf16.msra.mxu0 0
        %2861 = vmatprep.subr.bf16.mxu0 0
        %2862 = vmatpush1.bf16.msra.mxu0 0
        %2863 = vmatprep.subr.bf16.mxu0 0
        %2864 = vmatpush1.bf16.msra.mxu0 0
        %2865 = vmatprep.subr.bf16.mxu0 0
        %2866 = vmatpush1.bf16.msra.mxu0 0
        %2867 = vmatprep.subr.bf16.mxu0 0
        %2868 = vmatpush1.bf16.msra.mxu0 0
        %2869 = vmatprep.subr.bf16.mxu0 0
        %2870 = vmatpush1.bf16.msra.mxu0 0
        %2871 = vmatprep.mubr.bf16.mxu0 0
        %2872 = vmatmul.mubr.bf16.gmra.mrb[0].mxu0 %v2789
        %v2873 = vpop.f32.mrb[0].mxu0
        %v2874 = vadd.f32 0.0, %v2873
        %v2875 = vpop.f32.mrb[0].mxu0
        %v2876 = vpop.f32.mrb[0].mxu0
        %v2877 = vadd.f32 0.0, %v2876
        %v2878 = vpop.f32.mrb[0].mxu0
        %2879 = vmatprep.mubr.bf16.mxu0 0
        %2880 = vmatmul.mubr.bf16.gmra.mrb[0].mxu0 %v2792
        %v2881 = vpop.f32.mrb[0].mxu0
        %v2882 = vadd.f32 0.0, %v2881
        %v2883 = vpop.f32.mrb[0].mxu0
        %v2884 = vpop.f32.mrb[0].mxu0
        %v2885 = vadd.f32 0.0, %v2884
        %v2886 = vpop.f32.mrb[0].mxu0
        %2887 = vmatprep.mubr.bf16.mxu0 0
        %2888 = vmatmul.mubr.bf16.gmra.mrb[0].mxu0 %v2795
        %v2889 = vpop.f32.mrb[0].mxu0
        %v2890 = vadd.f32 0.0, %v2889
        %v2891 = vpop.f32.mrb[0].mxu0
        %v2892 = vpop.f32.mrb[0].mxu0
        %v2893 = vadd.f32 0.0, %v2892
        %v2894 = vpop.f32.mrb[0].mxu0
        %2895 = vmatprep.mubr.bf16.mxu0 0
        %2896 = vmatmul.mubr.bf16.gmra.mrb[0].mxu0 %v2798
        %v2897 = vpop.f32.mrb[0].mxu0
        %v2898 = vadd.f32 0.0, %v2897
        %v2899 = vpop.f32.mrb[0].mxu0
        %v2900 = vpop.f32.mrb[0].mxu0
        %v2901 = vadd.f32 0.0, %v2900
        %v2902 = vpop.f32.mrb[0].mxu0
        %2903 = vmatprep.mubr.bf16.mxu0 0
        %2904 = vmatmul.mubr.bf16.gmra.mrb[0].mxu0 %v2801
        %v2905 = vpop.f32.mrb[0].mxu0
        %v2906 = vadd.f32 0.0, %v2905
        %v2907 = vpop.f32.mrb[0].mxu0
        %v2908 = vpop.f32.mrb[0].mxu0
        %v2909 = vadd.f32 0.0, %v2908
        %v2910 = vpop.f32.mrb[0].mxu0
        %2911 = vmatprep.mubr.bf16.mxu0 0
        %2912 = vmatmul.mubr.bf16.gmra.mrb[0].mxu0 %v2804
        %v2913 = vpop.f32.mrb[0].mxu0
        %v2914 = vadd.f32 0.0, %v2913
        %v2915 = vpop.f32.mrb[0].mxu0
        %v2916 = vpop.f32.mrb[0].mxu0
        %v2917 = vadd.f32 0.0, %v2916
        %v2918 = vpop.f32.mrb[0].mxu0
        %2919 = vmatprep.mubr.bf16.mxu0 0
        %2920 = vmatmul.mubr.bf16.gmra.mrb[0].mxu0 %v2807
        %v2921 = vpop.f32.mrb[0].mxu0
        %v2922 = vadd.f32 0.0, %v2921
        %v2923 = vpop.f32.mrb[0].mxu0
        %v2924 = vpop.f32.mrb[0].mxu0
        %v2925 = vadd.f32 0.0, %v2924
        %v2926 = vpop.f32.mrb[0].mxu0
        %2927 = vmatprep.mubr.bf16.mxu0 0
        %2928 = vmatmul.mubr.bf16.gmra.mrb[0].mxu0 %v2810
        %v2929 = vpop.f32.mrb[0].mxu0
        %v2930 = vadd.f32 0.0, %v2929
        %v2931 = vpop.f32.mrb[0].mxu0
        %v2932 = vpop.f32.mrb[0].mxu0
        %v2933 = vadd.f32 0.0, %v2932
        %v2934 = vpop.f32.mrb[0].mxu0
        %2935 = vmatprep.mubr.bf16.mxu0 0
        %2936 = vmatmul.mubr.bf16.gmra.mrb[0].mxu0 %v2813
        %v2937 = vpop.f32.mrb[0].mxu0
        %v2938 = vadd.f32 0.0, %v2937
        %v2939 = vpop.f32.mrb[0].mxu0
        %v2940 = vpop.f32.mrb[0].mxu0
        %v2941 = vadd.f32 0.0, %v2940
        %v2942 = vpop.f32.mrb[0].mxu0
        %2943 = vmatprep.mubr.bf16.mxu0 0
        %2944 = vmatmul.mubr.bf16.gmra.mrb[0].mxu0 %v2816
        %v2945 = vpop.f32.mrb[0].mxu0
        %v2946 = vadd.f32 0.0, %v2945
        %v2947 = vpop.f32.mrb[0].mxu0
        %v2948 = vpop.f32.mrb[0].mxu0
        %v2949 = vadd.f32 0.0, %v2948
        %v2950 = vpop.f32.mrb[0].mxu0
        %2951 = vmatprep.mubr.bf16.mxu0 0
        %2952 = vmatmul.mubr.bf16.gmra.mrb[0].mxu0 %v2819
        %v2953 = vpop.f32.mrb[0].mxu0
        %v2954 = vadd.f32 0.0, %v2953
        %v2955 = vpop.f32.mrb[0].mxu0
        %v2956 = vpop.f32.mrb[0].mxu0
        %v2957 = vadd.f32 0.0, %v2956
        %v2958 = vpop.f32.mrb[0].mxu0
        %2959 = vmatprep.mubr.bf16.mxu0 0
        %2960 = vmatmul.mubr.bf16.gmra.mrb[0].mxu0 %v2822
        %v2961 = vpop.f32.mrb[0].mxu0
        %v2962 = vadd.f32 0.0, %v2961
        %v2963 = vpop.f32.mrb[0].mxu0
        %v2964 = vpop.f32.mrb[0].mxu0
        %v2965 = vadd.f32 0.0, %v2964
        %v2966 = vpop.f32.mrb[0].mxu0
        %2967 = vmatprep.mubr.bf16.mxu0 0
        %2968 = vmatmul.mubr.bf16.gmra.mrb[0].mxu0 %v2825
        %v2969 = vpop.f32.mrb[0].mxu0
        %v2970 = vadd.f32 0.0, %v2969
        %v2971 = vpop.f32.mrb[0].mxu0
        %v2972 = vpop.f32.mrb[0].mxu0
        %v2973 = vadd.f32 0.0, %v2972
        %v2974 = vpop.f32.mrb[0].mxu0
        %2975 = vmatprep.mubr.bf16.mxu0 0
        %2976 = vmatmul.mubr.bf16.gmra.mrb[0].mxu0 %v2828
        %v2977 = vpop.f32.mrb[0].mxu0
        %v2978 = vadd.f32 0.0, %v2977
        %v2979 = vpop.f32.mrb[0].mxu0
        %v2980 = vpop.f32.mrb[0].mxu0
        %v2981 = vadd.f32 0.0, %v2980
        %v2982 = vpop.f32.mrb[0].mxu0
        %2983 = vmatprep.mubr.bf16.mxu0 0
        %2984 = vmatmul.mubr.bf16.gmra.mrb[0].mxu0 %v2831
        %v2985 = vpop.f32.mrb[0].mxu0
        %v2986 = vadd.f32 0.0, %v2985
        %v2987 = vpop.f32.mrb[0].mxu0
        %v2988 = vpop.f32.mrb[0].mxu0
        %v2989 = vadd.f32 0.0, %v2988
        %v2990 = vpop.f32.mrb[0].mxu0
        %2991 = vmatprep.mubr.bf16.mxu0 0
        %2992 = vmatmul.mubr.bf16.gmra.mrb[0].mxu0 %v2834
        %v2993 = vpop.f32.mrb[0].mxu0
        %v2994 = vadd.f32 0.0, %v2993
        %v2995 = vpop.f32.mrb[0].mxu0
        %v2996 = vpop.f32.mrb[0].mxu0
        %v2997 = vadd.f32 0.0, %v2996
        %v2998 = vpop.f32.mrb[0].mxu0
        %2999 = vdwg.mxu0
        %v3000 = vadd.f32 %v2527, %v2874
        %v3001 = vadd.f32 %v2528, %v2877
        %v3002 = vadd.f32 %v2529, %v2882
        %v3003 = vadd.f32 %v2530, %v2885
        %v3004 = vadd.f32 %v2531, %v2890
        %v3005 = vadd.f32 %v2532, %v2893
        %v3006 = vadd.f32 %v2533, %v2898
        %v3007 = vadd.f32 %v2534, %v2901
        %v3008 = vadd.f32 %v2535, %v2906
        %v3009 = vadd.f32 %v2536, %v2909
        %v3010 = vadd.f32 %v2537, %v2914
        %v3011 = vadd.f32 %v2538, %v2917
        %v3012 = vadd.f32 %v2539, %v2922
        %v3013 = vadd.f32 %v2540, %v2925
        %v3014 = vadd.f32 %v2541, %v2930
        %v3015 = vadd.f32 %v2542, %v2933
        %v3016 = vadd.f32 %v2543, %v2938
        %v3017 = vadd.f32 %v2544, %v2941
        %v3018 = vadd.f32 %v2545, %v2946
        %v3019 = vadd.f32 %v2546, %v2949
        %v3020 = vadd.f32 %v2547, %v2954
        %v3021 = vadd.f32 %v2548, %v2957
        %v3022 = vadd.f32 %v2549, %v2962
        %v3023 = vadd.f32 %v2550, %v2965
        %v3024 = vadd.f32 %v2551, %v2970
        %v3025 = vadd.f32 %v2552, %v2973
        %v3026 = vadd.f32 %v2553, %v2978
        %v3027 = vadd.f32 %v2554, %v2981
        %v3028 = vadd.f32 %v2555, %v2986
        %v3029 = vadd.f32 %v2556, %v2989
        %v3030 = vadd.f32 %v2557, %v2994
        %v3031 = vadd.f32 %v2558, %v2997
        %v3032 = vld [vmem:[%s349] sm:$0xe]
        %v3033 = vld [vmem:[%s349 + $0xc] sm:$0xe]
        %v3034 = vld [vmem:[%s349 + $0x18] sm:$0xe]
        %v3035 = vld [vmem:[%s349 + $0x24] sm:$0xe]
        %v3036 = vld [vmem:[%s349 + $0x30] sm:$0xe]
        %v3037 = vld [vmem:[%s349 + $0x3c] sm:$0xe]
        %v3038 = vld [vmem:[%s349 + $0x48] sm:$0xe]
        %v3039 = vld [vmem:[%s349 + $0x54] sm:$0xe]
        %v3040 = vld [vmem:[%s349 + $0x60] sm:$0xe]
        %v3041 = vld [vmem:[%s349 + $0x6c] sm:$0xe]
        %v3042 = vld [vmem:[%s349 + $0x78] sm:$0xe]
        %v3043 = vld [vmem:[%s349 + $0x84] sm:$0xe]
        %v3044 = vld [vmem:[%s349 + $0x90] sm:$0xe]
        %v3045 = vld [vmem:[%s349 + $0x9c] sm:$0xe]
        %v3046 = vld [vmem:[%s349 + $0xa8] sm:$0xe]
        %v3047 = vld [vmem:[%s349 + $0xb4] sm:$0xe]
        %v3096 = vrot.slane %v3032, 5
        %v3097 = vrot.slane %v3096, 4
        %v3098 = vrot.slane %v1822, 5
        %v3099 = vsel %vm2625, %v3097, %v3098
        %v3100 = vrot.slane %v3098, 4
        %v3101 = vrot.slane %v1823, 5
        %v3102 = vsel %vm2625, %v3100, %v3101
        %v3103 = vrot.slane %v3033, 5
        %v3104 = vrot.slane %v3103, 4
        %v3105 = vrot.slane %v1825, 5
        %v3106 = vsel %vm2625, %v3104, %v3105
        %v3107 = vrot.slane %v3105, 4
        %v3108 = vrot.slane %v1826, 5
        %v3109 = vsel %vm2625, %v3107, %v3108
        %v3110 = vrot.slane %v3034, 5
        %v3111 = vrot.slane %v3110, 4
        %v3112 = vrot.slane %v1828, 5
        %v3113 = vsel %vm2625, %v3111, %v3112
        %v3114 = vrot.slane %v3112, 4
        %v3115 = vrot.slane %v1829, 5
        %v3116 = vsel %vm2625, %v3114, %v3115
        %v3117 = vrot.slane %v3035, 5
        %v3118 = vrot.slane %v3117, 4
        %v3119 = vrot.slane %v1831, 5
        %v3120 = vsel %vm2625, %v3118, %v3119
        %v3121 = vrot.slane %v3119, 4
        %v3122 = vrot.slane %v1832, 5
        %v3123 = vsel %vm2625, %v3121, %v3122
        %v3124 = vrot.slane %v3036, 5
        %v3125 = vrot.slane %v3124, 4
        %v3126 = vrot.slane %v1834, 5
        %v3127 = vsel %vm2625, %v3125, %v3126
        %v3128 = vrot.slane %v3126, 4
        %v3129 = vrot.slane %v1835, 5
        %v3130 = vsel %vm2625, %v3128, %v3129
        %v3131 = vrot.slane %v3037, 5
        %v3132 = vrot.slane %v3131, 4
        %v3133 = vrot.slane %v1837, 5
        %v3134 = vsel %vm2625, %v3132, %v3133
        %v3135 = vrot.slane %v3133, 4
        %v3136 = vrot.slane %v1838, 5
        %v3137 = vsel %vm2625, %v3135, %v3136
        %v3138 = vrot.slane %v3038, 5
        %v3139 = vrot.slane %v3138, 4
        %v3140 = vrot.slane %v1840, 5
        %v3141 = vsel %vm2625, %v3139, %v3140
        %v3142 = vrot.slane %v3140, 4
        %v3143 = vrot.slane %v1841, 5
        %v3144 = vsel %vm2625, %v3142, %v3143
        %v3145 = vrot.slane %v3039, 5
        %v3146 = vrot.slane %v3145, 4
        %v3147 = vrot.slane %v1843, 5
        %v3148 = vsel %vm2625, %v3146, %v3147
        %v3149 = vrot.slane %v3147, 4
        %v3150 = vrot.slane %v1844, 5
        %v3151 = vsel %vm2625, %v3149, %v3150
        %v3152 = vrot.slane %v3040, 5
        %v3153 = vrot.slane %v3152, 4
        %v3154 = vrot.slane %v1846, 5
        %v3155 = vsel %vm2625, %v3153, %v3154
        %v3156 = vrot.slane %v3154, 4
        %v3157 = vrot.slane %v1847, 5
        %v3158 = vsel %vm2625, %v3156, %v3157
        %v3159 = vrot.slane %v3041, 5
        %v3160 = vrot.slane %v3159, 4
        %v3161 = vrot.slane %v1849, 5
        %v3162 = vsel %vm2625, %v3160, %v3161
        %v3163 = vrot.slane %v3161, 4
        %v3164 = vrot.slane %v1850, 5
        %v3165 = vsel %vm2625, %v3163, %v3164
        %v3166 = vrot.slane %v3042, 5
        %v3167 = vrot.slane %v3166, 4
        %v3168 = vrot.slane %v1852, 5
        %v3169 = vsel %vm2625, %v3167, %v3168
        %v3170 = vrot.slane %v3168, 4
        %v3171 = vrot.slane %v1853, 5
        %v3172 = vsel %vm2625, %v3170, %v3171
        %v3173 = vrot.slane %v3043, 5
        %v3174 = vrot.slane %v3173, 4
        %v3175 = vrot.slane %v1855, 5
        %v3176 = vsel %vm2625, %v3174, %v3175
        %v3177 = vrot.slane %v3175, 4
        %v3178 = vrot.slane %v1856, 5
        %v3179 = vsel %vm2625, %v3177, %v3178
        %v3180 = vrot.slane %v3044, 5
        %v3181 = vrot.slane %v3180, 4
        %v3182 = vrot.slane %v1858, 5
        %v3183 = vsel %vm2625, %v3181, %v3182
        %v3184 = vrot.slane %v3182, 4
        %v3185 = vrot.slane %v1859, 5
        %v3186 = vsel %vm2625, %v3184, %v3185
        %v3187 = vrot.slane %v3045, 5
        %v3188 = vrot.slane %v3187, 4
        %v3189 = vrot.slane %v1861, 5
        %v3190 = vsel %vm2625, %v3188, %v3189
        %v3191 = vrot.slane %v3189, 4
        %v3192 = vrot.slane %v1862, 5
        %v3193 = vsel %vm2625, %v3191, %v3192
        %v3194 = vrot.slane %v3046, 5
        %v3195 = vrot.slane %v3194, 4
        %v3196 = vrot.slane %v1864, 5
        %v3197 = vsel %vm2625, %v3195, %v3196
        %v3198 = vrot.slane %v3196, 4
        %v3199 = vrot.slane %v1865, 5
        %v3200 = vsel %vm2625, %v3198, %v3199
        %v3201 = vrot.slane %v3047, 5
        %v3202 = vrot.slane %v3201, 4
        %v3203 = vrot.slane %v1867, 5
        %v3204 = vsel %vm2625, %v3202, %v3203
        %v3205 = vrot.slane %v3203, 4
        %v3206 = vrot.slane %v1868, 5
        %v3207 = vsel %vm2625, %v3205, %v3206
        %s3208 = scalar_lea.vmem %s3, 32
        %v3209 = vld [vmem:[%s3208] sm:$0xf]
        %v3210 = vld [vmem:[%s3208 + $0x4] sm:$0xf]
        %v3211 = vld [vmem:[%s3208 + $0x8] sm:$0xf]
        %v3212 = vld [vmem:[%s3208 + $0xc] sm:$0xf]
        %v3213 = vunpack.c.l.b16 %v3099
        %v3214 = vunpack.c.l.b16 %v3102
        %v3215 = vunpack.c.l.b16 %v3106
        %v3216 = vunpack.c.l.b16 %v3109
        %v3217 = vunpack.c.l.b16 %v3113
        %v3218 = vunpack.c.l.b16 %v3116
        %v3219 = vunpack.c.l.b16 %v3120
        %v3220 = vunpack.c.l.b16 %v3123
        %v3221 = vunpack.c.l.b16 %v3127
        %v3222 = vunpack.c.l.b16 %v3130
        %v3223 = vunpack.c.l.b16 %v3134
        %v3224 = vunpack.c.l.b16 %v3137
        %v3225 = vunpack.c.l.b16 %v3141
        %v3226 = vunpack.c.l.b16 %v3144
        %v3227 = vunpack.c.l.b16 %v3148
        %v3228 = vunpack.c.l.b16 %v3151
        %v3229 = vunpack.c.l.b16 %v3155
        %v3230 = vunpack.c.l.b16 %v3158
        %v3231 = vunpack.c.l.b16 %v3162
        %v3232 = vunpack.c.l.b16 %v3165
        %v3233 = vunpack.c.l.b16 %v3169
        %v3234 = vunpack.c.l.b16 %v3172
        %v3235 = vunpack.c.l.b16 %v3176
        %v3236 = vunpack.c.l.b16 %v3179
        %v3237 = vunpack.c.l.b16 %v3183
        %v3238 = vunpack.c.l.b16 %v3186
        %v3239 = vunpack.c.l.b16 %v3190
        %v3240 = vunpack.c.l.b16 %v3193
        %v3241 = vunpack.c.l.b16 %v3197
        %v3242 = vunpack.c.l.b16 %v3200
        %v3243 = vunpack.c.l.b16 %v3204
        %v3244 = vunpack.c.l.b16 %v3207
        %v3245 = vpack.c.b16 %v3214, %v3213
        %v3246 = vpack.c.b16 %v3216, %v3215
        %v3247 = vpack.c.b16 %v3218, %v3217
        %v3248 = vpack.c.b16 %v3220, %v3219
        %v3249 = vpack.c.b16 %v3222, %v3221
        %v3250 = vpack.c.b16 %v3224, %v3223
        %v3251 = vpack.c.b16 %v3226, %v3225
        %v3252 = vpack.c.b16 %v3228, %v3227
        %v3253 = vpack.c.b16 %v3230, %v3229
        %v3254 = vpack.c.b16 %v3232, %v3231
        %v3255 = vpack.c.b16 %v3234, %v3233
        %v3256 = vpack.c.b16 %v3236, %v3235
        %v3257 = vpack.c.b16 %v3238, %v3237
        %v3258 = vpack.c.b16 %v3240, %v3239
        %v3259 = vpack.c.b16 %v3242, %v3241
        %v3260 = vpack.c.b16 %v3244, %v3243
        %v3265 = vunpack.c.l.b16 %v3209
        %v3266 = vunpack.c.l.b16 %v3210
        %v3267 = vunpack.c.l.b16 %v3211
        %v3268 = vunpack.c.l.b16 %v3212
        %v3269 = vpack.c.b16 %v3266, %v3265
        %v3270 = vpack.c.b16 %v3268, %v3267
        %v3274 = vsel %vm850, %v3245, 0
        %v3277 = vsel %vm850, %v3246, 0
        %v3280 = vsel %vm850, %v3247, 0
        %v3283 = vsel %vm850, %v3248, 0
        %v3286 = vsel %vm850, %v3249, 0
        %v3289 = vsel %vm850, %v3250, 0
        %v3292 = vsel %vm850, %v3251, 0
        %v3295 = vsel %vm850, %v3252, 0
        %v3298 = vsel %vm850, %v3253, 0
        %v3301 = vsel %vm850, %v3254, 0
        %v3304 = vsel %vm850, %v3255, 0
        %v3307 = vsel %vm850, %v3256, 0
        %v3310 = vsel %vm850, %v3257, 0
        %v3313 = vsel %vm850, %v3258, 0
        %v3316 = vsel %vm850, %v3259, 0
        %v3319 = vsel %vm850, %v3260, 0
        %3321 = vmatprep.subr.bf16.mxu0 0
        %3322 = vmatpush1.bf16.msra.mxu0 %v3269
        %3323 = vmatprep.subr.bf16.mxu0 0
        %3324 = vmatpush1.bf16.msra.mxu0 %v3270
        %3325 = vmatprep.subr.bf16.mxu0 0
        %3326 = vmatpush1.bf16.msra.mxu0 0
        %3327 = vmatprep.subr.bf16.mxu0 0
        %3328 = vmatpush1.bf16.msra.mxu0 0
        %3329 = vmatprep.subr.bf16.mxu0 0
        %3330 = vmatpush1.bf16.msra.mxu0 0
        %3331 = vmatprep.subr.bf16.mxu0 0
        %3332 = vmatpush1.bf16.msra.mxu0 0
        %3333 = vmatprep.subr.bf16.mxu0 0
        %3334 = vmatpush1.bf16.msra.mxu0 0
        %3335 = vmatprep.subr.bf16.mxu0 0
        %3336 = vmatpush1.bf16.msra.mxu0 0
        %3337 = vmatprep.subr.bf16.mxu0 0
        %3338 = vmatpush1.bf16.msra.mxu0 0
        %3339 = vmatprep.subr.bf16.mxu0 0
        %3340 = vmatpush1.bf16.msra.mxu0 0
        %3341 = vmatprep.subr.bf16.mxu0 0
        %3342 = vmatpush1.bf16.msra.mxu0 0
        %3343 = vmatprep.subr.bf16.mxu0 0
        %3344 = vmatpush1.bf16.msra.mxu0 0
        %3345 = vmatprep.subr.bf16.mxu0 0
        %3346 = vmatpush1.bf16.msra.mxu0 0
        %3347 = vmatprep.subr.bf16.mxu0 0
        %3348 = vmatpush1.bf16.msra.mxu0 0
        %3349 = vmatprep.subr.bf16.mxu0 0
        %3350 = vmatpush1.bf16.msra.mxu0 0
        %3351 = vmatprep.subr.bf16.mxu0 0
        %3352 = vmatpush1.bf16.msra.mxu0 0
        %3353 = vmatprep.mubr.bf16.mxu0 0
        %3354 = vmatmul.mubr.bf16.gmra.mrb[0].mxu0 %v3274
        %v3355 = vpop.f32.mrb[0].mxu0
        %v3356 = vadd.f32 0.0, %v3355
        %v3357 = vpop.f32.mrb[0].mxu0
        %v3358 = vpop.f32.mrb[0].mxu0
        %v3359 = vadd.f32 0.0, %v3358
        %v3360 = vpop.f32.mrb[0].mxu0
        %3361 = vmatprep.mubr.bf16.mxu0 0
        %3362 = vmatmul.mubr.bf16.gmra.mrb[0].mxu0 %v3277
        %v3363 = vpop.f32.mrb[0].mxu0
        %v3364 = vadd.f32 0.0, %v3363
        %v3365 = vpop.f32.mrb[0].mxu0
        %v3366 = vpop.f32.mrb[0].mxu0
        %v3367 = vadd.f32 0.0, %v3366
        %v3368 = vpop.f32.mrb[0].mxu0
        %3369 = vmatprep.mubr.bf16.mxu0 0
        %3370 = vmatmul.mubr.bf16.gmra.mrb[0].mxu0 %v3280
        %v3371 = vpop.f32.mrb[0].mxu0
        %v3372 = vadd.f32 0.0, %v3371
        %v3373 = vpop.f32.mrb[0].mxu0
        %v3374 = vpop.f32.mrb[0].mxu0
        %v3375 = vadd.f32 0.0, %v3374
        %v3376 = vpop.f32.mrb[0].mxu0
        %3377 = vmatprep.mubr.bf16.mxu0 0
        %3378 = vmatmul.mubr.bf16.gmra.mrb[0].mxu0 %v3283
        %v3379 = vpop.f32.mrb[0].mxu0
        %v3380 = vadd.f32 0.0, %v3379
        %v3381 = vpop.f32.mrb[0].mxu0
        %v3382 = vpop.f32.mrb[0].mxu0
        %v3383 = vadd.f32 0.0, %v3382
        %v3384 = vpop.f32.mrb[0].mxu0
        %3385 = vmatprep.mubr.bf16.mxu0 0
        %3386 = vmatmul.mubr.bf16.gmra.mrb[0].mxu0 %v3286
        %v3387 = vpop.f32.mrb[0].mxu0
        %v3388 = vadd.f32 0.0, %v3387
        %v3389 = vpop.f32.mrb[0].mxu0
        %v3390 = vpop.f32.mrb[0].mxu0
        %v3391 = vadd.f32 0.0, %v3390
        %v3392 = vpop.f32.mrb[0].mxu0
        %3393 = vmatprep.mubr.bf16.mxu0 0
        %3394 = vmatmul.mubr.bf16.gmra.mrb[0].mxu0 %v3289
        %v3395 = vpop.f32.mrb[0].mxu0
        %v3396 = vadd.f32 0.0, %v3395
        %v3397 = vpop.f32.mrb[0].mxu0
        %v3398 = vpop.f32.mrb[0].mxu0
        %v3399 = vadd.f32 0.0, %v3398
        %v3400 = vpop.f32.mrb[0].mxu0
        %3401 = vmatprep.mubr.bf16.mxu0 0
        %3402 = vmatmul.mubr.bf16.gmra.mrb[0].mxu0 %v3292
        %v3403 = vpop.f32.mrb[0].mxu0
        %v3404 = vadd.f32 0.0, %v3403
        %v3405 = vpop.f32.mrb[0].mxu0
        %v3406 = vpop.f32.mrb[0].mxu0
        %v3407 = vadd.f32 0.0, %v3406
        %v3408 = vpop.f32.mrb[0].mxu0
        %3409 = vmatprep.mubr.bf16.mxu0 0
        %3410 = vmatmul.mubr.bf16.gmra.mrb[0].mxu0 %v3295
        %v3411 = vpop.f32.mrb[0].mxu0
        %v3412 = vadd.f32 0.0, %v3411
        %v3413 = vpop.f32.mrb[0].mxu0
        %v3414 = vpop.f32.mrb[0].mxu0
        %v3415 = vadd.f32 0.0, %v3414
        %v3416 = vpop.f32.mrb[0].mxu0
        %3417 = vmatprep.mubr.bf16.mxu0 0
        %3418 = vmatmul.mubr.bf16.gmra.mrb[0].mxu0 %v3298
        %v3419 = vpop.f32.mrb[0].mxu0
        %v3420 = vadd.f32 0.0, %v3419
        %v3421 = vpop.f32.mrb[0].mxu0
        %v3422 = vpop.f32.mrb[0].mxu0
        %v3423 = vadd.f32 0.0, %v3422
        %v3424 = vpop.f32.mrb[0].mxu0
        %3425 = vmatprep.mubr.bf16.mxu0 0
        %3426 = vmatmul.mubr.bf16.gmra.mrb[0].mxu0 %v3301
        %v3427 = vpop.f32.mrb[0].mxu0
        %v3428 = vadd.f32 0.0, %v3427
        %v3429 = vpop.f32.mrb[0].mxu0
        %v3430 = vpop.f32.mrb[0].mxu0
        %v3431 = vadd.f32 0.0, %v3430
        %v3432 = vpop.f32.mrb[0].mxu0
        %3433 = vmatprep.mubr.bf16.mxu0 0
        %3434 = vmatmul.mubr.bf16.gmra.mrb[0].mxu0 %v3304
        %v3435 = vpop.f32.mrb[0].mxu0
        %v3436 = vadd.f32 0.0, %v3435
        %v3437 = vpop.f32.mrb[0].mxu0
        %v3438 = vpop.f32.mrb[0].mxu0
        %v3439 = vadd.f32 0.0, %v3438
        %v3440 = vpop.f32.mrb[0].mxu0
        %3441 = vmatprep.mubr.bf16.mxu0 0
        %3442 = vmatmul.mubr.bf16.gmra.mrb[0].mxu0 %v3307
        %v3443 = vpop.f32.mrb[0].mxu0
        %v3444 = vadd.f32 0.0, %v3443
        %v3445 = vpop.f32.mrb[0].mxu0
        %v3446 = vpop.f32.mrb[0].mxu0
        %v3447 = vadd.f32 0.0, %v3446
        %v3448 = vpop.f32.mrb[0].mxu0
        %3449 = vmatprep.mubr.bf16.mxu0 0
        %3450 = vmatmul.mubr.bf16.gmra.mrb[0].mxu0 %v3310
        %v3451 = vpop.f32.mrb[0].mxu0
        %v3452 = vadd.f32 0.0, %v3451
        %v3453 = vpop.f32.mrb[0].mxu0
        %v3454 = vpop.f32.mrb[0].mxu0
        %v3455 = vadd.f32 0.0, %v3454
        %v3456 = vpop.f32.mrb[0].mxu0
        %3457 = vmatprep.mubr.bf16.mxu0 0
        %3458 = vmatmul.mubr.bf16.gmra.mrb[0].mxu0 %v3313
        %v3459 = vpop.f32.mrb[0].mxu0
        %v3460 = vadd.f32 0.0, %v3459
        %v3461 = vpop.f32.mrb[0].mxu0
        %v3462 = vpop.f32.mrb[0].mxu0
        %v3463 = vadd.f32 0.0, %v3462
        %v3464 = vpop.f32.mrb[0].mxu0
        %3465 = vmatprep.mubr.bf16.mxu0 0
        %3466 = vmatmul.mubr.bf16.gmra.mrb[0].mxu0 %v3316
        %v3467 = vpop.f32.mrb[0].mxu0
        %v3468 = vadd.f32 0.0, %v3467
        %v3469 = vpop.f32.mrb[0].mxu0
        %v3470 = vpop.f32.mrb[0].mxu0
        %v3471 = vadd.f32 0.0, %v3470
        %v3472 = vpop.f32.mrb[0].mxu0
        %3473 = vmatprep.mubr.bf16.mxu0 0
        %3474 = vmatmul.mubr.bf16.gmra.mrb[0].mxu0 %v3319
        %v3475 = vpop.f32.mrb[0].mxu0
        %v3476 = vadd.f32 0.0, %v3475
        %v3477 = vpop.f32.mrb[0].mxu0
        %v3478 = vpop.f32.mrb[0].mxu0
        %v3479 = vadd.f32 0.0, %v3478
        %v3480 = vpop.f32.mrb[0].mxu0
        %3481 = vdwg.mxu0
        %v3482 = vadd.f32 %v3000, %v3356
        %v3483 = vadd.f32 %v3001, %v3359
        %v3484 = vadd.f32 %v3002, %v3364
        %v3485 = vadd.f32 %v3003, %v3367
        %v3486 = vadd.f32 %v3004, %v3372
        %v3487 = vadd.f32 %v3005, %v3375
        %v3488 = vadd.f32 %v3006, %v3380
        %v3489 = vadd.f32 %v3007, %v3383
        %v3490 = vadd.f32 %v3008, %v3388
        %v3491 = vadd.f32 %v3009, %v3391
        %v3492 = vadd.f32 %v3010, %v3396
        %v3493 = vadd.f32 %v3011, %v3399
        %v3494 = vadd.f32 %v3012, %v3404
        %v3495 = vadd.f32 %v3013, %v3407
        %v3496 = vadd.f32 %v3014, %v3412
        %v3497 = vadd.f32 %v3015, %v3415
        %v3498 = vadd.f32 %v3016, %v3420
        %v3499 = vadd.f32 %v3017, %v3423
        %v3500 = vadd.f32 %v3018, %v3428
        %v3501 = vadd.f32 %v3019, %v3431
        %v3502 = vadd.f32 %v3020, %v3436
        %v3503 = vadd.f32 %v3021, %v3439
        %v3504 = vadd.f32 %v3022, %v3444
        %v3505 = vadd.f32 %v3023, %v3447
        %v3506 = vadd.f32 %v3024, %v3452
        %v3507 = vadd.f32 %v3025, %v3455
        %v3508 = vadd.f32 %v3026, %v3460
        %v3509 = vadd.f32 %v3027, %v3463
        %v3510 = vadd.f32 %v3028, %v3468
        %v3511 = vadd.f32 %v3029, %v3471
        %v3512 = vadd.f32 %v3030, %v3476
        %v3513 = vadd.f32 %v3031, %v3479
        %s3514 = scalar_lea.vmem %s344, 12
        %v3515 = vld [vmem:[%s3514] sm:$0xf]
        %v3516 = vld [vmem:[%s3514 + $0x4] sm:$0xf]
        %v3517 = vld [vmem:[%s3514 + $0xc] sm:$0xf]
        %v3518 = vld [vmem:[%s3514 + $0x10] sm:$0xf]
        %v3519 = vld [vmem:[%s3514 + $0x18] sm:$0xf]
        %v3520 = vld [vmem:[%s3514 + $0x1c] sm:$0xf]
        %v3521 = vld [vmem:[%s3514 + $0x24] sm:$0xf]
        %v3522 = vld [vmem:[%s3514 + $0x28] sm:$0xf]
        %v3523 = vld [vmem:[%s3514 + $0x30] sm:$0xf]
        %v3524 = vld [vmem:[%s3514 + $0x34] sm:$0xf]
        %v3525 = vld [vmem:[%s3514 + $0x3c] sm:$0xf]
        %v3526 = vld [vmem:[%s3514 + $0x40] sm:$0xf]
        %v3527 = vld [vmem:[%s3514 + $0x48] sm:$0xf]
        %v3528 = vld [vmem:[%s3514 + $0x4c] sm:$0xf]
        %v3529 = vld [vmem:[%s3514 + $0x54] sm:$0xf]
        %v3530 = vld [vmem:[%s3514 + $0x58] sm:$0xf]
        %v3531 = vld [vmem:[%s3514 + $0x60] sm:$0xf]
        %v3532 = vld [vmem:[%s3514 + $0x64] sm:$0xf]
        %v3533 = vld [vmem:[%s3514 + $0x6c] sm:$0xf]
        %v3534 = vld [vmem:[%s3514 + $0x70] sm:$0xf]
        %v3535 = vld [vmem:[%s3514 + $0x78] sm:$0xf]
        %v3536 = vld [vmem:[%s3514 + $0x7c] sm:$0xf]
        %v3537 = vld [vmem:[%s3514 + $0x84] sm:$0xf]
        %v3538 = vld [vmem:[%s3514 + $0x88] sm:$0xf]
        %v3539 = vld [vmem:[%s3514 + $0x90] sm:$0xf]
        %v3540 = vld [vmem:[%s3514 + $0x94] sm:$0xf]
        %v3541 = vld [vmem:[%s3514 + $0x9c] sm:$0xf]
        %v3542 = vld [vmem:[%s3514 + $0xa0] sm:$0xf]
        %v3543 = vld [vmem:[%s3514 + $0xa8] sm:$0xf]
        %v3544 = vld [vmem:[%s3514 + $0xac] sm:$0xf]
        %v3545 = vld [vmem:[%s3514 + $0xb4] sm:$0xf]
        %v3546 = vld [vmem:[%s3514 + $0xb8] sm:$0xf]
        %s3547 = scalar_lea.vmem %s2, 6
        %v3548 = vld [vmem:[%s3547] sm:$0x3]
        %v3581 = vunpack.c.l.b16 %v3515
        %v3582 = vunpack.c.l.b16 %v3516
        %v3583 = vunpack.c.l.b16 %v3517
        %v3584 = vunpack.c.l.b16 %v3518
        %v3585 = vunpack.c.l.b16 %v3519
        %v3586 = vunpack.c.l.b16 %v3520
        %v3587 = vunpack.c.l.b16 %v3521
        %v3588 = vunpack.c.l.b16 %v3522
        %v3589 = vunpack.c.l.b16 %v3523
        %v3590 = vunpack.c.l.b16 %v3524
        %v3591 = vunpack.c.l.b16 %v3525
        %v3592 = vunpack.c.l.b16 %v3526
        %v3593 = vunpack.c.l.b16 %v3527
        %v3594 = vunpack.c.l.b16 %v3528
        %v3595 = vunpack.c.l.b16 %v3529
        %v3596 = vunpack.c.l.b16 %v3530
        %v3597 = vunpack.c.l.b16 %v3531
        %v3598 = vunpack.c.l.b16 %v3532
        %v3599 = vunpack.c.l.b16 %v3533
        %v3600 = vunpack.c.l.b16 %v3534
        %v3601 = vunpack.c.l.b16 %v3535
        %v3602 = vunpack.c.l.b16 %v3536
        %v3603 = vunpack.c.l.b16 %v3537
        %v3604 = vunpack.c.l.b16 %v3538
        %v3605 = vunpack.c.l.b16 %v3539
        %v3606 = vunpack.c.l.b16 %v3540
        %v3607 = vunpack.c.l.b16 %v3541
        %v3608 = vunpack.c.l.b16 %v3542
        %v3609 = vunpack.c.l.b16 %v3543
        %v3610 = vunpack.c.l.b16 %v3544
        %v3611 = vunpack.c.l.b16 %v3545
        %v3612 = vunpack.c.l.b16 %v3546
        %v3613 = vpack.c.b16 %v3582, %v3581
        %v3614 = vpack.c.b16 %v3584, %v3583
        %v3615 = vpack.c.b16 %v3586, %v3585
        %v3616 = vpack.c.b16 %v3588, %v3587
        %v3617 = vpack.c.b16 %v3590, %v3589
        %v3618 = vpack.c.b16 %v3592, %v3591
        %v3619 = vpack.c.b16 %v3594, %v3593
        %v3620 = vpack.c.b16 %v3596, %v3595
        %v3621 = vpack.c.b16 %v3598, %v3597
        %v3622 = vpack.c.b16 %v3600, %v3599
        %v3623 = vpack.c.b16 %v3602, %v3601
        %v3624 = vpack.c.b16 %v3604, %v3603
        %v3625 = vpack.c.b16 %v3606, %v3605
        %v3626 = vpack.c.b16 %v3608, %v3607
        %v3627 = vpack.c.b16 %v3610, %v3609
        %v3628 = vpack.c.b16 %v3612, %v3611
        %v3630 = vsel %vm476, %v3613, 0
        %v3633 = vsel %vm476, %v3614, 0
        %v3636 = vsel %vm476, %v3615, 0
        %v3639 = vsel %vm476, %v3616, 0
        %v3642 = vsel %vm476, %v3617, 0
        %v3645 = vsel %vm476, %v3618, 0
        %v3648 = vsel %vm476, %v3619, 0
        %v3651 = vsel %vm476, %v3620, 0
        %v3654 = vsel %vm476, %v3621, 0
        %v3657 = vsel %vm476, %v3622, 0
        %v3660 = vsel %vm476, %v3623, 0
        %v3663 = vsel %vm476, %v3624, 0
        %v3666 = vsel %vm476, %v3625, 0
        %v3669 = vsel %vm476, %v3626, 0
        %v3672 = vsel %vm476, %v3627, 0
        %v3675 = vsel %vm476, %v3628, 0
        %v3678 = vsel %vm525, %v3548, 0
        %3680 = vmatprep.subr.bf16.mxu0 0
        %3681 = vmatpush1.bf16.msra.mxu0 %v3678
        %3682 = vmatprep.subr.bf16.mxu0 0
        %3683 = vmatpush1.bf16.msra.mxu0 0
        %3684 = vmatprep.subr.bf16.mxu0 0
        %3685 = vmatpush1.bf16.msra.mxu0 0
        %3686 = vmatprep.subr.bf16.mxu0 0
        %3687 = vmatpush1.bf16.msra.mxu0 0
        %3688 = vmatprep.subr.bf16.mxu0 0
        %3689 = vmatpush1.bf16.msra.mxu0 0
        %3690 = vmatprep.subr.bf16.mxu0 0
        %3691 = vmatpush1.bf16.msra.mxu0 0
        %3692 = vmatprep.subr.bf16.mxu0 0
        %3693 = vmatpush1.bf16.msra.mxu0 0
        %3694 = vmatprep.subr.bf16.mxu0 0
        %3695 = vmatpush1.bf16.msra.mxu0 0
        %3696 = vmatprep.subr.bf16.mxu0 0
        %3697 = vmatpush1.bf16.msra.mxu0 0
        %3698 = vmatprep.subr.bf16.mxu0 0
        %3699 = vmatpush1.bf16.msra.mxu0 0
        %3700 = vmatprep.subr.bf16.mxu0 0
        %3701 = vmatpush1.bf16.msra.mxu0 0
        %3702 = vmatprep.subr.bf16.mxu0 0
        %3703 = vmatpush1.bf16.msra.mxu0 0
        %3704 = vmatprep.subr.bf16.mxu0 0
        %3705 = vmatpush1.bf16.msra.mxu0 0
        %3706 = vmatprep.subr.bf16.mxu0 0
        %3707 = vmatpush1.bf16.msra.mxu0 0
        %3708 = vmatprep.subr.bf16.mxu0 0
        %3709 = vmatpush1.bf16.msra.mxu0 0
        %3710 = vmatprep.subr.bf16.mxu0 0
        %3711 = vmatpush1.bf16.msra.mxu0 0
        %3712 = vmatprep.mubr.bf16.mxu0 0
        %3713 = vmatmul.mubr.bf16.gmra.mrb[0].mxu0 %v3630
        %v3714 = vpop.f32.mrb[0].mxu0
        %v3715 = vadd.f32 0.0, %v3714
        %v3716 = vpop.f32.mrb[0].mxu0
        %v3717 = vpop.f32.mrb[0].mxu0
        %v3718 = vadd.f32 0.0, %v3717
        %v3719 = vpop.f32.mrb[0].mxu0
        %3720 = vmatprep.mubr.bf16.mxu0 0
        %3721 = vmatmul.mubr.bf16.gmra.mrb[0].mxu0 %v3633
        %v3722 = vpop.f32.mrb[0].mxu0
        %v3723 = vadd.f32 0.0, %v3722
        %v3724 = vpop.f32.mrb[0].mxu0
        %v3725 = vpop.f32.mrb[0].mxu0
        %v3726 = vadd.f32 0.0, %v3725
        %v3727 = vpop.f32.mrb[0].mxu0
        %3728 = vmatprep.mubr.bf16.mxu0 0
        %3729 = vmatmul.mubr.bf16.gmra.mrb[0].mxu0 %v3636
        %v3730 = vpop.f32.mrb[0].mxu0
        %v3731 = vadd.f32 0.0, %v3730
        %v3732 = vpop.f32.mrb[0].mxu0
        %v3733 = vpop.f32.mrb[0].mxu0
        %v3734 = vadd.f32 0.0, %v3733
        %v3735 = vpop.f32.mrb[0].mxu0
        %3736 = vmatprep.mubr.bf16.mxu0 0
        %3737 = vmatmul.mubr.bf16.gmra.mrb[0].mxu0 %v3639
        %v3738 = vpop.f32.mrb[0].mxu0
        %v3739 = vadd.f32 0.0, %v3738
        %v3740 = vpop.f32.mrb[0].mxu0
        %v3741 = vpop.f32.mrb[0].mxu0
        %v3742 = vadd.f32 0.0, %v3741
        %v3743 = vpop.f32.mrb[0].mxu0
        %3744 = vmatprep.mubr.bf16.mxu0 0
        %3745 = vmatmul.mubr.bf16.gmra.mrb[0].mxu0 %v3642
        %v3746 = vpop.f32.mrb[0].mxu0
        %v3747 = vadd.f32 0.0, %v3746
        %v3748 = vpop.f32.mrb[0].mxu0
        %v3749 = vpop.f32.mrb[0].mxu0
        %v3750 = vadd.f32 0.0, %v3749
        %v3751 = vpop.f32.mrb[0].mxu0
        %3752 = vmatprep.mubr.bf16.mxu0 0
        %3753 = vmatmul.mubr.bf16.gmra.mrb[0].mxu0 %v3645
        %v3754 = vpop.f32.mrb[0].mxu0
        %v3755 = vadd.f32 0.0, %v3754
        %v3756 = vpop.f32.mrb[0].mxu0
        %v3757 = vpop.f32.mrb[0].mxu0
        %v3758 = vadd.f32 0.0, %v3757
        %v3759 = vpop.f32.mrb[0].mxu0
        %3760 = vmatprep.mubr.bf16.mxu0 0
        %3761 = vmatmul.mubr.bf16.gmra.mrb[0].mxu0 %v3648
        %v3762 = vpop.f32.mrb[0].mxu0
        %v3763 = vadd.f32 0.0, %v3762
        %v3764 = vpop.f32.mrb[0].mxu0
        %v3765 = vpop.f32.mrb[0].mxu0
        %v3766 = vadd.f32 0.0, %v3765
        %v3767 = vpop.f32.mrb[0].mxu0
        %3768 = vmatprep.mubr.bf16.mxu0 0
        %3769 = vmatmul.mubr.bf16.gmra.mrb[0].mxu0 %v3651
        %v3770 = vpop.f32.mrb[0].mxu0
        %v3771 = vadd.f32 0.0, %v3770
        %v3772 = vpop.f32.mrb[0].mxu0
        %v3773 = vpop.f32.mrb[0].mxu0
        %v3774 = vadd.f32 0.0, %v3773
        %v3775 = vpop.f32.mrb[0].mxu0
        %3776 = vmatprep.mubr.bf16.mxu0 0
        %3777 = vmatmul.mubr.bf16.gmra.mrb[0].mxu0 %v3654
        %v3778 = vpop.f32.mrb[0].mxu0
        %v3779 = vadd.f32 0.0, %v3778
        %v3780 = vpop.f32.mrb[0].mxu0
        %v3781 = vpop.f32.mrb[0].mxu0
        %v3782 = vadd.f32 0.0, %v3781
        %v3783 = vpop.f32.mrb[0].mxu0
        %3784 = vmatprep.mubr.bf16.mxu0 0
        %3785 = vmatmul.mubr.bf16.gmra.mrb[0].mxu0 %v3657
        %v3786 = vpop.f32.mrb[0].mxu0
        %v3787 = vadd.f32 0.0, %v3786
        %v3788 = vpop.f32.mrb[0].mxu0
        %v3789 = vpop.f32.mrb[0].mxu0
        %v3790 = vadd.f32 0.0, %v3789
        %v3791 = vpop.f32.mrb[0].mxu0
        %3792 = vmatprep.mubr.bf16.mxu0 0
        %3793 = vmatmul.mubr.bf16.gmra.mrb[0].mxu0 %v3660
        %v3794 = vpop.f32.mrb[0].mxu0
        %v3795 = vadd.f32 0.0, %v3794
        %v3796 = vpop.f32.mrb[0].mxu0
        %v3797 = vpop.f32.mrb[0].mxu0
        %v3798 = vadd.f32 0.0, %v3797
        %v3799 = vpop.f32.mrb[0].mxu0
        %3800 = vmatprep.mubr.bf16.mxu0 0
        %3801 = vmatmul.mubr.bf16.gmra.mrb[0].mxu0 %v3663
        %v3802 = vpop.f32.mrb[0].mxu0
        %v3803 = vadd.f32 0.0, %v3802
        %v3804 = vpop.f32.mrb[0].mxu0
        %v3805 = vpop.f32.mrb[0].mxu0
        %v3806 = vadd.f32 0.0, %v3805
        %v3807 = vpop.f32.mrb[0].mxu0
        %3808 = vmatprep.mubr.bf16.mxu0 0
        %3809 = vmatmul.mubr.bf16.gmra.mrb[0].mxu0 %v3666
        %v3810 = vpop.f32.mrb[0].mxu0
        %v3811 = vadd.f32 0.0, %v3810
        %v3812 = vpop.f32.mrb[0].mxu0
        %v3813 = vpop.f32.mrb[0].mxu0
        %v3814 = vadd.f32 0.0, %v3813
        %v3815 = vpop.f32.mrb[0].mxu0
        %3816 = vmatprep.mubr.bf16.mxu0 0
        %3817 = vmatmul.mubr.bf16.gmra.mrb[0].mxu0 %v3669
        %v3818 = vpop.f32.mrb[0].mxu0
        %v3819 = vadd.f32 0.0, %v3818
        %v3820 = vpop.f32.mrb[0].mxu0
        %v3821 = vpop.f32.mrb[0].mxu0
        %v3822 = vadd.f32 0.0, %v3821
        %v3823 = vpop.f32.mrb[0].mxu0
        %3824 = vmatprep.mubr.bf16.mxu0 0
        %3825 = vmatmul.mubr.bf16.gmra.mrb[0].mxu0 %v3672
        %v3826 = vpop.f32.mrb[0].mxu0
        %v3827 = vadd.f32 0.0, %v3826
        %v3828 = vpop.f32.mrb[0].mxu0
        %v3829 = vpop.f32.mrb[0].mxu0
        %v3830 = vadd.f32 0.0, %v3829
        %v3831 = vpop.f32.mrb[0].mxu0
        %3832 = vmatprep.mubr.bf16.mxu0 0
        %3833 = vmatmul.mubr.bf16.gmra.mrb[0].mxu0 %v3675
        %v3834 = vpop.f32.mrb[0].mxu0
        %v3835 = vadd.f32 0.0, %v3834
        %v3836 = vpop.f32.mrb[0].mxu0
        %v3837 = vpop.f32.mrb[0].mxu0
        %v3838 = vadd.f32 0.0, %v3837
        %v3839 = vpop.f32.mrb[0].mxu0
        %3840 = vdwg.mxu0
        %v3841 = vadd.f32 %v3482, %v3715
        %v3842 = vadd.f32 %v3483, %v3718
        %v3843 = vadd.f32 %v3484, %v3723
        %v3844 = vadd.f32 %v3485, %v3726
        %v3845 = vadd.f32 %v3486, %v3731
        %v3846 = vadd.f32 %v3487, %v3734
        %v3847 = vadd.f32 %v3488, %v3739
        %v3848 = vadd.f32 %v3489, %v3742
        %v3849 = vadd.f32 %v3490, %v3747
        %v3850 = vadd.f32 %v3491, %v3750
        %v3851 = vadd.f32 %v3492, %v3755
        %v3852 = vadd.f32 %v3493, %v3758
        %v3853 = vadd.f32 %v3494, %v3763
        %v3854 = vadd.f32 %v3495, %v3766
        %v3855 = vadd.f32 %v3496, %v3771
        %v3856 = vadd.f32 %v3497, %v3774
        %v3857 = vadd.f32 %v3498, %v3779
        %v3858 = vadd.f32 %v3499, %v3782
        %v3859 = vadd.f32 %v3500, %v3787
        %v3860 = vadd.f32 %v3501, %v3790
        %v3861 = vadd.f32 %v3502, %v3795
        %v3862 = vadd.f32 %v3503, %v3798
        %v3863 = vadd.f32 %v3504, %v3803
        %v3864 = vadd.f32 %v3505, %v3806
        %v3865 = vadd.f32 %v3506, %v3811
        %v3866 = vadd.f32 %v3507, %v3814
        %v3867 = vadd.f32 %v3508, %v3819
        %v3868 = vadd.f32 %v3509, %v3822
        %v3869 = vadd.f32 %v3510, %v3827
        %v3870 = vadd.f32 %v3511, %v3830
        %v3871 = vadd.f32 %v3512, %v3835
        %v3872 = vadd.f32 %v3513, %v3838
        %s3873 = scalar_lea.vmem %s349, 12
        %v3874 = vld [vmem:[%s3873] sm:$0xf]
        %v3875 = vld [vmem:[%s3873 + $0x4] sm:$0xf]
        %v3876 = vld [vmem:[%s3873 + $0xc] sm:$0xf]
        %v3877 = vld [vmem:[%s3873 + $0x10] sm:$0xf]
        %v3878 = vld [vmem:[%s3873 + $0x18] sm:$0xf]
        %v3879 = vld [vmem:[%s3873 + $0x1c] sm:$0xf]
        %v3880 = vld [vmem:[%s3873 + $0x24] sm:$0xf]
        %v3881 = vld [vmem:[%s3873 + $0x28] sm:$0xf]
        %v3882 = vld [vmem:[%s3873 + $0x30] sm:$0xf]
        %v3883 = vld [vmem:[%s3873 + $0x34] sm:$0xf]
        %v3884 = vld [vmem:[%s3873 + $0x3c] sm:$0xf]
        %v3885 = vld [vmem:[%s3873 + $0x40] sm:$0xf]
        %v3886 = vld [vmem:[%s3873 + $0x48] sm:$0xf]
        %v3887 = vld [vmem:[%s3873 + $0x4c] sm:$0xf]
        %v3888 = vld [vmem:[%s3873 + $0x54] sm:$0xf]
        %v3889 = vld [vmem:[%s3873 + $0x58] sm:$0xf]
        %v3890 = vld [vmem:[%s3873 + $0x60] sm:$0xf]
        %v3891 = vld [vmem:[%s3873 + $0x64] sm:$0xf]
        %v3892 = vld [vmem:[%s3873 + $0x6c] sm:$0xf]
        %v3893 = vld [vmem:[%s3873 + $0x70] sm:$0xf]
        %v3894 = vld [vmem:[%s3873 + $0x78] sm:$0xf]
        %v3895 = vld [vmem:[%s3873 + $0x7c] sm:$0xf]
        %v3896 = vld [vmem:[%s3873 + $0x84] sm:$0xf]
        %v3897 = vld [vmem:[%s3873 + $0x88] sm:$0xf]
        %v3898 = vld [vmem:[%s3873 + $0x90] sm:$0xf]
        %v3899 = vld [vmem:[%s3873 + $0x94] sm:$0xf]
        %v3900 = vld [vmem:[%s3873 + $0x9c] sm:$0xf]
        %v3901 = vld [vmem:[%s3873 + $0xa0] sm:$0xf]
        %v3902 = vld [vmem:[%s3873 + $0xa8] sm:$0xf]
        %v3903 = vld [vmem:[%s3873 + $0xac] sm:$0xf]
        %v3904 = vld [vmem:[%s3873 + $0xb4] sm:$0xf]
        %v3905 = vld [vmem:[%s3873 + $0xb8] sm:$0xf]
        %s3906 = scalar_lea.vmem %s3, 48
        %v3907 = vld [vmem:[%s3906] sm:$0xf]
        %v3908 = vld [vmem:[%s3906 + $0x4] sm:$0xf]
        %v3909 = vld [vmem:[%s3906 + $0x8] sm:$0xf]
        %v3910 = vld [vmem:[%s3906 + $0xc] sm:$0xf]
        %v3943 = vunpack.c.l.b16 %v3874
        %v3944 = vunpack.c.l.b16 %v3875
        %v3945 = vunpack.c.l.b16 %v3876
        %v3946 = vunpack.c.l.b16 %v3877
        %v3947 = vunpack.c.l.b16 %v3878
        %v3948 = vunpack.c.l.b16 %v3879
        %v3949 = vunpack.c.l.b16 %v3880
        %v3950 = vunpack.c.l.b16 %v3881
        %v3951 = vunpack.c.l.b16 %v3882
        %v3952 = vunpack.c.l.b16 %v3883
        %v3953 = vunpack.c.l.b16 %v3884
        %v3954 = vunpack.c.l.b16 %v3885
        %v3955 = vunpack.c.l.b16 %v3886
        %v3956 = vunpack.c.l.b16 %v3887
        %v3957 = vunpack.c.l.b16 %v3888
        %v3958 = vunpack.c.l.b16 %v3889
        %v3959 = vunpack.c.l.b16 %v3890
        %v3960 = vunpack.c.l.b16 %v3891
        %v3961 = vunpack.c.l.b16 %v3892
        %v3962 = vunpack.c.l.b16 %v3893
        %v3963 = vunpack.c.l.b16 %v3894
        %v3964 = vunpack.c.l.b16 %v3895
        %v3965 = vunpack.c.l.b16 %v3896
        %v3966 = vunpack.c.l.b16 %v3897
        %v3967 = vunpack.c.l.b16 %v3898
        %v3968 = vunpack.c.l.b16 %v3899
        %v3969 = vunpack.c.l.b16 %v3900
        %v3970 = vunpack.c.l.b16 %v3901
        %v3971 = vunpack.c.l.b16 %v3902
        %v3972 = vunpack.c.l.b16 %v3903
        %v3973 = vunpack.c.l.b16 %v3904
        %v3974 = vunpack.c.l.b16 %v3905
        %v3975 = vpack.c.b16 %v3944, %v3943
        %v3976 = vpack.c.b16 %v3946, %v3945
        %v3977 = vpack.c.b16 %v3948, %v3947
        %v3978 = vpack.c.b16 %v3950, %v3949
        %v3979 = vpack.c.b16 %v3952, %v3951
        %v3980 = vpack.c.b16 %v3954, %v3953
        %v3981 = vpack.c.b16 %v3956, %v3955
        %v3982 = vpack.c.b16 %v3958, %v3957
        %v3983 = vpack.c.b16 %v3960, %v3959
        %v3984 = vpack.c.b16 %v3962, %v3961
        %v3985 = vpack.c.b16 %v3964, %v3963
        %v3986 = vpack.c.b16 %v3966, %v3965
        %v3987 = vpack.c.b16 %v3968, %v3967
        %v3988 = vpack.c.b16 %v3970, %v3969
        %v3989 = vpack.c.b16 %v3972, %v3971
        %v3990 = vpack.c.b16 %v3974, %v3973
        %v3995 = vunpack.c.l.b16 %v3907
        %v3996 = vunpack.c.l.b16 %v3908
        %v3997 = vunpack.c.l.b16 %v3909
        %v3998 = vunpack.c.l.b16 %v3910
        %v3999 = vpack.c.b16 %v3996, %v3995
        %v4000 = vpack.c.b16 %v3998, %v3997
        %v4004 = vsel %vm850, %v3975, 0
        %v4007 = vsel %vm850, %v3976, 0
        %v4010 = vsel %vm850, %v3977, 0
        %v4013 = vsel %vm850, %v3978, 0
        %v4016 = vsel %vm850, %v3979, 0
        %v4019 = vsel %vm850, %v3980, 0
        %v4022 = vsel %vm850, %v3981, 0
        %v4025 = vsel %vm850, %v3982, 0
        %v4028 = vsel %vm850, %v3983, 0
        %v4031 = vsel %vm850, %v3984, 0
        %v4034 = vsel %vm850, %v3985, 0
        %v4037 = vsel %vm850, %v3986, 0
        %v4040 = vsel %vm850, %v3987, 0
        %v4043 = vsel %vm850, %v3988, 0
        %v4046 = vsel %vm850, %v3989, 0
        %v4049 = vsel %vm850, %v3990, 0
        %4051 = vmatprep.subr.bf16.mxu0 0
        %4052 = vmatpush1.bf16.msra.mxu0 %v3999
        %4053 = vmatprep.subr.bf16.mxu0 0
        %4054 = vmatpush1.bf16.msra.mxu0 %v4000
        %4055 = vmatprep.subr.bf16.mxu0 0
        %4056 = vmatpush1.bf16.msra.mxu0 0
        %4057 = vmatprep.subr.bf16.mxu0 0
        %4058 = vmatpush1.bf16.msra.mxu0 0
        %4059 = vmatprep.subr.bf16.mxu0 0
        %4060 = vmatpush1.bf16.msra.mxu0 0
        %4061 = vmatprep.subr.bf16.mxu0 0
        %4062 = vmatpush1.bf16.msra.mxu0 0
        %4063 = vmatprep.subr.bf16.mxu0 0
        %4064 = vmatpush1.bf16.msra.mxu0 0
        %4065 = vmatprep.subr.bf16.mxu0 0
        %4066 = vmatpush1.bf16.msra.mxu0 0
        %4067 = vmatprep.subr.bf16.mxu0 0
        %4068 = vmatpush1.bf16.msra.mxu0 0
        %4069 = vmatprep.subr.bf16.mxu0 0
        %4070 = vmatpush1.bf16.msra.mxu0 0
        %4071 = vmatprep.subr.bf16.mxu0 0
        %4072 = vmatpush1.bf16.msra.mxu0 0
        %4073 = vmatprep.subr.bf16.mxu0 0
        %4074 = vmatpush1.bf16.msra.mxu0 0
        %4075 = vmatprep.subr.bf16.mxu0 0
        %4076 = vmatpush1.bf16.msra.mxu0 0
        %4077 = vmatprep.subr.bf16.mxu0 0
        %4078 = vmatpush1.bf16.msra.mxu0 0
        %4079 = vmatprep.subr.bf16.mxu0 0
        %4080 = vmatpush1.bf16.msra.mxu0 0
        %4081 = vmatprep.subr.bf16.mxu0 0
        %4082 = vmatpush1.bf16.msra.mxu0 0
        %4083 = vmatprep.mubr.bf16.mxu0 0
        %4084 = vmatmul.mubr.bf16.gmra.mrb[0].mxu0 %v4004
        %v4085 = vpop.f32.mrb[0].mxu0
        %v4086 = vadd.f32 0.0, %v4085
        %v4087 = vpop.f32.mrb[0].mxu0
        %v4088 = vpop.f32.mrb[0].mxu0
        %v4089 = vadd.f32 0.0, %v4088
        %v4090 = vpop.f32.mrb[0].mxu0
        %4091 = vmatprep.mubr.bf16.mxu0 0
        %4092 = vmatmul.mubr.bf16.gmra.mrb[0].mxu0 %v4007
        %v4093 = vpop.f32.mrb[0].mxu0
        %v4094 = vadd.f32 0.0, %v4093
        %v4095 = vpop.f32.mrb[0].mxu0
        %v4096 = vpop.f32.mrb[0].mxu0
        %v4097 = vadd.f32 0.0, %v4096
        %v4098 = vpop.f32.mrb[0].mxu0
        %4099 = vmatprep.mubr.bf16.mxu0 0
        %4100 = vmatmul.mubr.bf16.gmra.mrb[0].mxu0 %v4010
        %v4101 = vpop.f32.mrb[0].mxu0
        %v4102 = vadd.f32 0.0, %v4101
        %v4103 = vpop.f32.mrb[0].mxu0
        %v4104 = vpop.f32.mrb[0].mxu0
        %v4105 = vadd.f32 0.0, %v4104
        %v4106 = vpop.f32.mrb[0].mxu0
        %4107 = vmatprep.mubr.bf16.mxu0 0
        %4108 = vmatmul.mubr.bf16.gmra.mrb[0].mxu0 %v4013
        %v4109 = vpop.f32.mrb[0].mxu0
        %v4110 = vadd.f32 0.0, %v4109
        %v4111 = vpop.f32.mrb[0].mxu0
        %v4112 = vpop.f32.mrb[0].mxu0
        %v4113 = vadd.f32 0.0, %v4112
        %v4114 = vpop.f32.mrb[0].mxu0
        %4115 = vmatprep.mubr.bf16.mxu0 0
        %4116 = vmatmul.mubr.bf16.gmra.mrb[0].mxu0 %v4016
        %v4117 = vpop.f32.mrb[0].mxu0
        %v4118 = vadd.f32 0.0, %v4117
        %v4119 = vpop.f32.mrb[0].mxu0
        %v4120 = vpop.f32.mrb[0].mxu0
        %v4121 = vadd.f32 0.0, %v4120
        %v4122 = vpop.f32.mrb[0].mxu0
        %4123 = vmatprep.mubr.bf16.mxu0 0
        %4124 = vmatmul.mubr.bf16.gmra.mrb[0].mxu0 %v4019
        %v4125 = vpop.f32.mrb[0].mxu0
        %v4126 = vadd.f32 0.0, %v4125
        %v4127 = vpop.f32.mrb[0].mxu0
        %v4128 = vpop.f32.mrb[0].mxu0
        %v4129 = vadd.f32 0.0, %v4128
        %v4130 = vpop.f32.mrb[0].mxu0
        %4131 = vmatprep.mubr.bf16.mxu0 0
        %4132 = vmatmul.mubr.bf16.gmra.mrb[0].mxu0 %v4022
        %v4133 = vpop.f32.mrb[0].mxu0
        %v4134 = vadd.f32 0.0, %v4133
        %v4135 = vpop.f32.mrb[0].mxu0
        %v4136 = vpop.f32.mrb[0].mxu0
        %v4137 = vadd.f32 0.0, %v4136
        %v4138 = vpop.f32.mrb[0].mxu0
        %4139 = vmatprep.mubr.bf16.mxu0 0
        %4140 = vmatmul.mubr.bf16.gmra.mrb[0].mxu0 %v4025
        %v4141 = vpop.f32.mrb[0].mxu0
        %v4142 = vadd.f32 0.0, %v4141
        %v4143 = vpop.f32.mrb[0].mxu0
        %v4144 = vpop.f32.mrb[0].mxu0
        %v4145 = vadd.f32 0.0, %v4144
        %v4146 = vpop.f32.mrb[0].mxu0
        %4147 = vmatprep.mubr.bf16.mxu0 0
        %4148 = vmatmul.mubr.bf16.gmra.mrb[0].mxu0 %v4028
        %v4149 = vpop.f32.mrb[0].mxu0
        %v4150 = vadd.f32 0.0, %v4149
        %v4151 = vpop.f32.mrb[0].mxu0
        %v4152 = vpop.f32.mrb[0].mxu0
        %v4153 = vadd.f32 0.0, %v4152
        %v4154 = vpop.f32.mrb[0].mxu0
        %4155 = vmatprep.mubr.bf16.mxu0 0
        %4156 = vmatmul.mubr.bf16.gmra.mrb[0].mxu0 %v4031
        %v4157 = vpop.f32.mrb[0].mxu0
        %v4158 = vadd.f32 0.0, %v4157
        %v4159 = vpop.f32.mrb[0].mxu0
        %v4160 = vpop.f32.mrb[0].mxu0
        %v4161 = vadd.f32 0.0, %v4160
        %v4162 = vpop.f32.mrb[0].mxu0
        %4163 = vmatprep.mubr.bf16.mxu0 0
        %4164 = vmatmul.mubr.bf16.gmra.mrb[0].mxu0 %v4034
        %v4165 = vpop.f32.mrb[0].mxu0
        %v4166 = vadd.f32 0.0, %v4165
        %v4167 = vpop.f32.mrb[0].mxu0
        %v4168 = vpop.f32.mrb[0].mxu0
        %v4169 = vadd.f32 0.0, %v4168
        %v4170 = vpop.f32.mrb[0].mxu0
        %4171 = vmatprep.mubr.bf16.mxu0 0
        %4172 = vmatmul.mubr.bf16.gmra.mrb[0].mxu0 %v4037
        %v4173 = vpop.f32.mrb[0].mxu0
        %v4174 = vadd.f32 0.0, %v4173
        %v4175 = vpop.f32.mrb[0].mxu0
        %v4176 = vpop.f32.mrb[0].mxu0
        %v4177 = vadd.f32 0.0, %v4176
        %v4178 = vpop.f32.mrb[0].mxu0
        %4179 = vmatprep.mubr.bf16.mxu0 0
        %4180 = vmatmul.mubr.bf16.gmra.mrb[0].mxu0 %v4040
        %v4181 = vpop.f32.mrb[0].mxu0
        %v4182 = vadd.f32 0.0, %v4181
        %v4183 = vpop.f32.mrb[0].mxu0
        %v4184 = vpop.f32.mrb[0].mxu0
        %v4185 = vadd.f32 0.0, %v4184
        %v4186 = vpop.f32.mrb[0].mxu0
        %4187 = vmatprep.mubr.bf16.mxu0 0
        %4188 = vmatmul.mubr.bf16.gmra.mrb[0].mxu0 %v4043
        %v4189 = vpop.f32.mrb[0].mxu0
        %v4190 = vadd.f32 0.0, %v4189
        %v4191 = vpop.f32.mrb[0].mxu0
        %v4192 = vpop.f32.mrb[0].mxu0
        %v4193 = vadd.f32 0.0, %v4192
        %v4194 = vpop.f32.mrb[0].mxu0
        %4195 = vmatprep.mubr.bf16.mxu0 0
        %4196 = vmatmul.mubr.bf16.gmra.mrb[0].mxu0 %v4046
        %v4197 = vpop.f32.mrb[0].mxu0
        %v4198 = vadd.f32 0.0, %v4197
        %v4199 = vpop.f32.mrb[0].mxu0
        %v4200 = vpop.f32.mrb[0].mxu0
        %v4201 = vadd.f32 0.0, %v4200
        %v4202 = vpop.f32.mrb[0].mxu0
        %4203 = vmatprep.mubr.bf16.mxu0 0
        %4204 = vmatmul.mubr.bf16.gmra.mrb[0].mxu0 %v4049
        %v4205 = vpop.f32.mrb[0].mxu0
        %v4206 = vadd.f32 0.0, %v4205
        %v4207 = vpop.f32.mrb[0].mxu0
        %v4208 = vpop.f32.mrb[0].mxu0
        %v4209 = vadd.f32 0.0, %v4208
        %v4210 = vpop.f32.mrb[0].mxu0
        %4211 = vdwg.mxu0
        %v4212 = vadd.f32 %v3841, %v4086
        %v4213 = vadd.f32 %v3842, %v4089
        %v4214 = vadd.f32 %v3843, %v4094
        %v4215 = vadd.f32 %v3844, %v4097
        %v4216 = vadd.f32 %v3845, %v4102
        %v4217 = vadd.f32 %v3846, %v4105
        %v4218 = vadd.f32 %v3847, %v4110
        %v4219 = vadd.f32 %v3848, %v4113
        %v4220 = vadd.f32 %v3849, %v4118
        %v4221 = vadd.f32 %v3850, %v4121
        %v4222 = vadd.f32 %v3851, %v4126
        %v4223 = vadd.f32 %v3852, %v4129
        %v4224 = vadd.f32 %v3853, %v4134
        %v4225 = vadd.f32 %v3854, %v4137
        %v4226 = vadd.f32 %v3855, %v4142
        %v4227 = vadd.f32 %v3856, %v4145
        %v4228 = vadd.f32 %v3857, %v4150
        %v4229 = vadd.f32 %v3858, %v4153
        %v4230 = vadd.f32 %v3859, %v4158
        %v4231 = vadd.f32 %v3860, %v4161
        %v4232 = vadd.f32 %v3861, %v4166
        %v4233 = vadd.f32 %v3862, %v4169
        %v4234 = vadd.f32 %v3863, %v4174
        %v4235 = vadd.f32 %v3864, %v4177
        %v4236 = vadd.f32 %v3865, %v4182
        %v4237 = vadd.f32 %v3866, %v4185
        %v4238 = vadd.f32 %v3867, %v4190
        %v4239 = vadd.f32 %v3868, %v4193
        %v4240 = vadd.f32 %v3869, %v4198
        %v4241 = vadd.f32 %v3870, %v4201
        %v4242 = vadd.f32 %v3871, %v4206
        %v4243 = vadd.f32 %v3872, %v4209
        %v4244 = vld [vmem:[%s3514] sm:$0xf]
        %v4245 = vld [vmem:[%s3514 + $0x4] sm:$0xf]
        %v4246 = vld [vmem:[%s3514 + $0x8] sm:$0x1]
        %v4247 = vld [vmem:[%s3514 + $0xc] sm:$0xf]
        %v4248 = vld [vmem:[%s3514 + $0x10] sm:$0xf]
        %v4249 = vld [vmem:[%s3514 + $0x14] sm:$0x1]
        %v4250 = vld [vmem:[%s3514 + $0x18] sm:$0xf]
        %v4251 = vld [vmem:[%s3514 + $0x1c] sm:$0xf]
        %v4252 = vld [vmem:[%s3514 + $0x20] sm:$0x1]
        %v4253 = vld [vmem:[%s3514 + $0x24] sm:$0xf]
        %v4254 = vld [vmem:[%s3514 + $0x28] sm:$0xf]
        %v4255 = vld [vmem:[%s3514 + $0x2c] sm:$0x1]
        %v4256 = vld [vmem:[%s3514 + $0x30] sm:$0xf]
        %v4257 = vld [vmem:[%s3514 + $0x34] sm:$0xf]
        %v4258 = vld [vmem:[%s3514 + $0x38] sm:$0x1]
        %v4259 = vld [vmem:[%s3514 + $0x3c] sm:$0xf]
        %v4260 = vld [vmem:[%s3514 + $0x40] sm:$0xf]
        %v4261 = vld [vmem:[%s3514 + $0x44] sm:$0x1]
        %v4262 = vld [vmem:[%s3514 + $0x48] sm:$0xf]
        %v4263 = vld [vmem:[%s3514 + $0x4c] sm:$0xf]
        %v4264 = vld [vmem:[%s3514 + $0x50] sm:$0x1]
        %v4265 = vld [vmem:[%s3514 + $0x54] sm:$0xf]
        %v4266 = vld [vmem:[%s3514 + $0x58] sm:$0xf]
        %v4267 = vld [vmem:[%s3514 + $0x5c] sm:$0x1]
        %v4268 = vld [vmem:[%s3514 + $0x60] sm:$0xf]
        %v4269 = vld [vmem:[%s3514 + $0x64] sm:$0xf]
        %v4270 = vld [vmem:[%s3514 + $0x68] sm:$0x1]
        %v4271 = vld [vmem:[%s3514 + $0x6c] sm:$0xf]
        %v4272 = vld [vmem:[%s3514 + $0x70] sm:$0xf]
        %v4273 = vld [vmem:[%s3514 + $0x74] sm:$0x1]
        %v4274 = vld [vmem:[%s3514 + $0x78] sm:$0xf]
        %v4275 = vld [vmem:[%s3514 + $0x7c] sm:$0xf]
        %v4276 = vld [vmem:[%s3514 + $0x80] sm:$0x1]
        %v4277 = vld [vmem:[%s3514 + $0x84] sm:$0xf]
        %v4278 = vld [vmem:[%s3514 + $0x88] sm:$0xf]
        %v4279 = vld [vmem:[%s3514 + $0x8c] sm:$0x1]
        %v4280 = vld [vmem:[%s3514 + $0x90] sm:$0xf]
        %v4281 = vld [vmem:[%s3514 + $0x94] sm:$0xf]
        %v4282 = vld [vmem:[%s3514 + $0x98] sm:$0x1]
        %v4283 = vld [vmem:[%s3514 + $0x9c] sm:$0xf]
        %v4284 = vld [vmem:[%s3514 + $0xa0] sm:$0xf]
        %v4285 = vld [vmem:[%s3514 + $0xa4] sm:$0x1]
        %v4286 = vld [vmem:[%s3514 + $0xa8] sm:$0xf]
        %v4287 = vld [vmem:[%s3514 + $0xac] sm:$0xf]
        %v4288 = vld [vmem:[%s3514 + $0xb0] sm:$0x1]
        %v4289 = vld [vmem:[%s3514 + $0xb4] sm:$0xf]
        %v4290 = vld [vmem:[%s3514 + $0xb8] sm:$0xf]
        %v4291 = vld [vmem:[%s3514 + $0xbc] sm:$0x1]
        %v4293 = vshrl.u32 %v4244, 16
        %v4295 = vrot.slane %v4293, 4
        %v4296 = vshll.u32 %v4244, 16
        %v4298 = vrot.slane %v4296, 5
        %v4299 = vor.u32 %v4295, %v4298
        %v4300 = vrot.slane %v4299, 4
        %v4302 = vshll.u32 %v4245, 16
        %v4304 = vrot.slane %v4302, 5
        %v4305 = vsel %vm1142, %v4300, %v4304
        %v4306 = vshrl.u32 %v4245, 16
        %v4308 = vrot.slane %v4306, 4
        %v4309 = vor.u32 %v4308, %v4304
        %v4310 = vrot.slane %v4309, 4
        %v4312 = vshll.u32 %v4246, 16
        %v4314 = vrot.slane %v4312, 5
        %v4315 = vsel %vm1142, %v4310, %v4314
        %v4317 = vshrl.u32 %v4247, 16
        %v4319 = vrot.slane %v4317, 4
        %v4320 = vshll.u32 %v4247, 16
        %v4322 = vrot.slane %v4320, 5
        %v4323 = vor.u32 %v4319, %v4322
        %v4324 = vrot.slane %v4323, 4
        %v4326 = vshll.u32 %v4248, 16
        %v4328 = vrot.slane %v4326, 5
        %v4329 = vsel %vm1142, %v4324, %v4328
        %v4330 = vshrl.u32 %v4248, 16
        %v4332 = vrot.slane %v4330, 4
        %v4333 = vor.u32 %v4332, %v4328
        %v4334 = vrot.slane %v4333, 4
        %v4336 = vshll.u32 %v4249, 16
        %v4338 = vrot.slane %v4336, 5
        %v4339 = vsel %vm1142, %v4334, %v4338
        %v4341 = vshrl.u32 %v4250, 16
        %v4343 = vrot.slane %v4341, 4
        %v4344 = vshll.u32 %v4250, 16
        %v4346 = vrot.slane %v4344, 5
        %v4347 = vor.u32 %v4343, %v4346
        %v4348 = vrot.slane %v4347, 4
        %v4350 = vshll.u32 %v4251, 16
        %v4352 = vrot.slane %v4350, 5
        %v4353 = vsel %vm1142, %v4348, %v4352
        %v4354 = vshrl.u32 %v4251, 16
        %v4356 = vrot.slane %v4354, 4
        %v4357 = vor.u32 %v4356, %v4352
        %v4358 = vrot.slane %v4357, 4
        %v4360 = vshll.u32 %v4252, 16
        %v4362 = vrot.slane %v4360, 5
        %v4363 = vsel %vm1142, %v4358, %v4362
        %v4365 = vshrl.u32 %v4253, 16
        %v4367 = vrot.slane %v4365, 4
        %v4368 = vshll.u32 %v4253, 16
        %v4370 = vrot.slane %v4368, 5
        %v4371 = vor.u32 %v4367, %v4370
        %v4372 = vrot.slane %v4371, 4
        %v4374 = vshll.u32 %v4254, 16
        %v4376 = vrot.slane %v4374, 5
        %v4377 = vsel %vm1142, %v4372, %v4376
        %v4378 = vshrl.u32 %v4254, 16
        %v4380 = vrot.slane %v4378, 4
        %v4381 = vor.u32 %v4380, %v4376
        %v4382 = vrot.slane %v4381, 4
        %v4384 = vshll.u32 %v4255, 16
        %v4386 = vrot.slane %v4384, 5
        %v4387 = vsel %vm1142, %v4382, %v4386
        %v4389 = vshrl.u32 %v4256, 16
        %v4391 = vrot.slane %v4389, 4
        %v4392 = vshll.u32 %v4256, 16
        %v4394 = vrot.slane %v4392, 5
        %v4395 = vor.u32 %v4391, %v4394
        %v4396 = vrot.slane %v4395, 4
        %v4398 = vshll.u32 %v4257, 16
        %v4400 = vrot.slane %v4398, 5
        %v4401 = vsel %vm1142, %v4396, %v4400
        %v4402 = vshrl.u32 %v4257, 16
        %v4404 = vrot.slane %v4402, 4
        %v4405 = vor.u32 %v4404, %v4400
        %v4406 = vrot.slane %v4405, 4
        %v4408 = vshll.u32 %v4258, 16
        %v4410 = vrot.slane %v4408, 5
        %v4411 = vsel %vm1142, %v4406, %v4410
        %v4413 = vshrl.u32 %v4259, 16
        %v4415 = vrot.slane %v4413, 4
        %v4416 = vshll.u32 %v4259, 16
        %v4418 = vrot.slane %v4416, 5
        %v4419 = vor.u32 %v4415, %v4418
        %v4420 = vrot.slane %v4419, 4
        %v4422 = vshll.u32 %v4260, 16
        %v4424 = vrot.slane %v4422, 5
        %v4425 = vsel %vm1142, %v4420, %v4424
        %v4426 = vshrl.u32 %v4260, 16
        %v4428 = vrot.slane %v4426, 4
        %v4429 = vor.u32 %v4428, %v4424
        %v4430 = vrot.slane %v4429, 4
        %v4432 = vshll.u32 %v4261, 16
        %v4434 = vrot.slane %v4432, 5
        %v4435 = vsel %vm1142, %v4430, %v4434
        %v4437 = vshrl.u32 %v4262, 16
        %v4439 = vrot.slane %v4437, 4
        %v4440 = vshll.u32 %v4262, 16
        %v4442 = vrot.slane %v4440, 5
        %v4443 = vor.u32 %v4439, %v4442
        %v4444 = vrot.slane %v4443, 4
        %v4446 = vshll.u32 %v4263, 16
        %v4448 = vrot.slane %v4446, 5
        %v4449 = vsel %vm1142, %v4444, %v4448
        %v4450 = vshrl.u32 %v4263, 16
        %v4452 = vrot.slane %v4450, 4
        %v4453 = vor.u32 %v4452, %v4448
        %v4454 = vrot.slane %v4453, 4
        %v4456 = vshll.u32 %v4264, 16
        %v4458 = vrot.slane %v4456, 5
        %v4459 = vsel %vm1142, %v4454, %v4458
        %v4461 = vshrl.u32 %v4265, 16
        %v4463 = vrot.slane %v4461, 4
        %v4464 = vshll.u32 %v4265, 16
        %v4466 = vrot.slane %v4464, 5
        %v4467 = vor.u32 %v4463, %v4466
        %v4468 = vrot.slane %v4467, 4
        %v4470 = vshll.u32 %v4266, 16
        %v4472 = vrot.slane %v4470, 5
        %v4473 = vsel %vm1142, %v4468, %v4472
        %v4474 = vshrl.u32 %v4266, 16
        %v4476 = vrot.slane %v4474, 4
        %v4477 = vor.u32 %v4476, %v4472
        %v4478 = vrot.slane %v4477, 4
        %v4480 = vshll.u32 %v4267, 16
        %v4482 = vrot.slane %v4480, 5
        %v4483 = vsel %vm1142, %v4478, %v4482
        %v4485 = vshrl.u32 %v4268, 16
        %v4487 = vrot.slane %v4485, 4
        %v4488 = vshll.u32 %v4268, 16
        %v4490 = vrot.slane %v4488, 5
        %v4491 = vor.u32 %v4487, %v4490
        %v4492 = vrot.slane %v4491, 4
        %v4494 = vshll.u32 %v4269, 16
        %v4496 = vrot.slane %v4494, 5
        %v4497 = vsel %vm1142, %v4492, %v4496
        %v4498 = vshrl.u32 %v4269, 16
        %v4500 = vrot.slane %v4498, 4
        %v4501 = vor.u32 %v4500, %v4496
        %v4502 = vrot.slane %v4501, 4
        %v4504 = vshll.u32 %v4270, 16
        %v4506 = vrot.slane %v4504, 5
        %v4507 = vsel %vm1142, %v4502, %v4506
        %v4509 = vshrl.u32 %v4271, 16
        %v4511 = vrot.slane %v4509, 4
        %v4512 = vshll.u32 %v4271, 16
        %v4514 = vrot.slane %v4512, 5
        %v4515 = vor.u32 %v4511, %v4514
        %v4516 = vrot.slane %v4515, 4
        %v4518 = vshll.u32 %v4272, 16
        %v4520 = vrot.slane %v4518, 5
        %v4521 = vsel %vm1142, %v4516, %v4520
        %v4522 = vshrl.u32 %v4272, 16
        %v4524 = vrot.slane %v4522, 4
        %v4525 = vor.u32 %v4524, %v4520
        %v4526 = vrot.slane %v4525, 4
        %v4528 = vshll.u32 %v4273, 16
        %v4530 = vrot.slane %v4528, 5
        %v4531 = vsel %vm1142, %v4526, %v4530
        %v4533 = vshrl.u32 %v4274, 16
        %v4535 = vrot.slane %v4533, 4
        %v4536 = vshll.u32 %v4274, 16
        %v4538 = vrot.slane %v4536, 5
        %v4539 = vor.u32 %v4535, %v4538
        %v4540 = vrot.slane %v4539, 4
        %v4542 = vshll.u32 %v4275, 16
        %v4544 = vrot.slane %v4542, 5
        %v4545 = vsel %vm1142, %v4540, %v4544
        %v4546 = vshrl.u32 %v4275, 16
        %v4548 = vrot.slane %v4546, 4
        %v4549 = vor.u32 %v4548, %v4544
        %v4550 = vrot.slane %v4549, 4
        %v4552 = vshll.u32 %v4276, 16
        %v4554 = vrot.slane %v4552, 5
        %v4555 = vsel %vm1142, %v4550, %v4554
        %v4557 = vshrl.u32 %v4277, 16
        %v4559 = vrot.slane %v4557, 4
        %v4560 = vshll.u32 %v4277, 16
        %v4562 = vrot.slane %v4560, 5
        %v4563 = vor.u32 %v4559, %v4562
        %v4564 = vrot.slane %v4563, 4
        %v4566 = vshll.u32 %v4278, 16
        %v4568 = vrot.slane %v4566, 5
        %v4569 = vsel %vm1142, %v4564, %v4568
        %v4570 = vshrl.u32 %v4278, 16
        %v4572 = vrot.slane %v4570, 4
        %v4573 = vor.u32 %v4572, %v4568
        %v4574 = vrot.slane %v4573, 4
        %v4576 = vshll.u32 %v4279, 16
        %v4578 = vrot.slane %v4576, 5
        %v4579 = vsel %vm1142, %v4574, %v4578
        %v4581 = vshrl.u32 %v4280, 16
        %v4583 = vrot.slane %v4581, 4
        %v4584 = vshll.u32 %v4280, 16
        %v4586 = vrot.slane %v4584, 5
        %v4587 = vor.u32 %v4583, %v4586
        %v4588 = vrot.slane %v4587, 4
        %v4590 = vshll.u32 %v4281, 16
        %v4592 = vrot.slane %v4590, 5
        %v4593 = vsel %vm1142, %v4588, %v4592
        %v4594 = vshrl.u32 %v4281, 16
        %v4596 = vrot.slane %v4594, 4
        %v4597 = vor.u32 %v4596, %v4592
        %v4598 = vrot.slane %v4597, 4
        %v4600 = vshll.u32 %v4282, 16
        %v4602 = vrot.slane %v4600, 5
        %v4603 = vsel %vm1142, %v4598, %v4602
        %v4605 = vshrl.u32 %v4283, 16
        %v4607 = vrot.slane %v4605, 4
        %v4608 = vshll.u32 %v4283, 16
        %v4610 = vrot.slane %v4608, 5
        %v4611 = vor.u32 %v4607, %v4610
        %v4612 = vrot.slane %v4611, 4
        %v4614 = vshll.u32 %v4284, 16
        %v4616 = vrot.slane %v4614, 5
        %v4617 = vsel %vm1142, %v4612, %v4616
        %v4618 = vshrl.u32 %v4284, 16
        %v4620 = vrot.slane %v4618, 4
        %v4621 = vor.u32 %v4620, %v4616
        %v4622 = vrot.slane %v4621, 4
        %v4624 = vshll.u32 %v4285, 16
        %v4626 = vrot.slane %v4624, 5
        %v4627 = vsel %vm1142, %v4622, %v4626
        %v4629 = vshrl.u32 %v4286, 16
        %v4631 = vrot.slane %v4629, 4
        %v4632 = vshll.u32 %v4286, 16
        %v4634 = vrot.slane %v4632, 5
        %v4635 = vor.u32 %v4631, %v4634
        %v4636 = vrot.slane %v4635, 4
        %v4638 = vshll.u32 %v4287, 16
        %v4640 = vrot.slane %v4638, 5
        %v4641 = vsel %vm1142, %v4636, %v4640
        %v4642 = vshrl.u32 %v4287, 16
        %v4644 = vrot.slane %v4642, 4
        %v4645 = vor.u32 %v4644, %v4640
        %v4646 = vrot.slane %v4645, 4
        %v4648 = vshll.u32 %v4288, 16
        %v4650 = vrot.slane %v4648, 5
        %v4651 = vsel %vm1142, %v4646, %v4650
        %v4653 = vshrl.u32 %v4289, 16
        %v4655 = vrot.slane %v4653, 4
        %v4656 = vshll.u32 %v4289, 16
        %v4658 = vrot.slane %v4656, 5
        %v4659 = vor.u32 %v4655, %v4658
        %v4660 = vrot.slane %v4659, 4
        %v4662 = vshll.u32 %v4290, 16
        %v4664 = vrot.slane %v4662, 5
        %v4665 = vsel %vm1142, %v4660, %v4664
        %v4666 = vshrl.u32 %v4290, 16
        %v4668 = vrot.slane %v4666, 4
        %v4669 = vor.u32 %v4668, %v4664
        %v4670 = vrot.slane %v4669, 4
        %v4672 = vshll.u32 %v4291, 16
        %v4674 = vrot.slane %v4672, 5
        %v4675 = vsel %vm1142, %v4670, %v4674
        %s4676 = scalar_lea.vmem %s2, 8
        %v4677 = vld [vmem:[%s4676] sm:$0x3]
        %v4678 = vunpack.c.l.b16 %v4305
        %v4679 = vunpack.c.l.b16 %v4315
        %v4680 = vunpack.c.l.b16 %v4329
        %v4681 = vunpack.c.l.b16 %v4339
        %v4682 = vunpack.c.l.b16 %v4353
        %v4683 = vunpack.c.l.b16 %v4363
        %v4684 = vunpack.c.l.b16 %v4377
        %v4685 = vunpack.c.l.b16 %v4387
        %v4686 = vunpack.c.l.b16 %v4401
        %v4687 = vunpack.c.l.b16 %v4411
        %v4688 = vunpack.c.l.b16 %v4425
        %v4689 = vunpack.c.l.b16 %v4435
        %v4690 = vunpack.c.l.b16 %v4449
        %v4691 = vunpack.c.l.b16 %v4459
        %v4692 = vunpack.c.l.b16 %v4473
        %v4693 = vunpack.c.l.b16 %v4483
        %v4694 = vunpack.c.l.b16 %v4497
        %v4695 = vunpack.c.l.b16 %v4507
        %v4696 = vunpack.c.l.b16 %v4521
        %v4697 = vunpack.c.l.b16 %v4531
        %v4698 = vunpack.c.l.b16 %v4545
        %v4699 = vunpack.c.l.b16 %v4555
        %v4700 = vunpack.c.l.b16 %v4569
        %v4701 = vunpack.c.l.b16 %v4579
        %v4702 = vunpack.c.l.b16 %v4593
        %v4703 = vunpack.c.l.b16 %v4603
        %v4704 = vunpack.c.l.b16 %v4617
        %v4705 = vunpack.c.l.b16 %v4627
        %v4706 = vunpack.c.l.b16 %v4641
        %v4707 = vunpack.c.l.b16 %v4651
        %v4708 = vunpack.c.l.b16 %v4665
        %v4709 = vunpack.c.l.b16 %v4675
        %v4710 = vpack.c.b16 %v4679, %v4678
        %v4711 = vpack.c.b16 %v4681, %v4680
        %v4712 = vpack.c.b16 %v4683, %v4682
        %v4713 = vpack.c.b16 %v4685, %v4684
        %v4714 = vpack.c.b16 %v4687, %v4686
        %v4715 = vpack.c.b16 %v4689, %v4688
        %v4716 = vpack.c.b16 %v4691, %v4690
        %v4717 = vpack.c.b16 %v4693, %v4692
        %v4718 = vpack.c.b16 %v4695, %v4694
        %v4719 = vpack.c.b16 %v4697, %v4696
        %v4720 = vpack.c.b16 %v4699, %v4698
        %v4721 = vpack.c.b16 %v4701, %v4700
        %v4722 = vpack.c.b16 %v4703, %v4702
        %v4723 = vpack.c.b16 %v4705, %v4704
        %v4724 = vpack.c.b16 %v4707, %v4706
        %v4725 = vpack.c.b16 %v4709, %v4708
        %v4727 = vsel %vm476, %v4710, 0
        %v4730 = vsel %vm476, %v4711, 0
        %v4733 = vsel %vm476, %v4712, 0
        %v4736 = vsel %vm476, %v4713, 0
        %v4739 = vsel %vm476, %v4714, 0
        %v4742 = vsel %vm476, %v4715, 0
        %v4745 = vsel %vm476, %v4716, 0
        %v4748 = vsel %vm476, %v4717, 0
        %v4751 = vsel %vm476, %v4718, 0
        %v4754 = vsel %vm476, %v4719, 0
        %v4757 = vsel %vm476, %v4720, 0
        %v4760 = vsel %vm476, %v4721, 0
        %v4763 = vsel %vm476, %v4722, 0
        %v4766 = vsel %vm476, %v4723, 0
        %v4769 = vsel %vm476, %v4724, 0
        %v4772 = vsel %vm476, %v4725, 0
        %v4775 = vsel %vm525, %v4677, 0
        %4777 = vmatprep.subr.bf16.mxu0 0
        %4778 = vmatpush1.bf16.msra.mxu0 %v4775
        %4779 = vmatprep.subr.bf16.mxu0 0
        %4780 = vmatpush1.bf16.msra.mxu0 0
        %4781 = vmatprep.subr.bf16.mxu0 0
        %4782 = vmatpush1.bf16.msra.mxu0 0
        %4783 = vmatprep.subr.bf16.mxu0 0
        %4784 = vmatpush1.bf16.msra.mxu0 0
        %4785 = vmatprep.subr.bf16.mxu0 0
        %4786 = vmatpush1.bf16.msra.mxu0 0
        %4787 = vmatprep.subr.bf16.mxu0 0
        %4788 = vmatpush1.bf16.msra.mxu0 0
        %4789 = vmatprep.subr.bf16.mxu0 0
        %4790 = vmatpush1.bf16.msra.mxu0 0
        %4791 = vmatprep.subr.bf16.mxu0 0
        %4792 = vmatpush1.bf16.msra.mxu0 0
        %4793 = vmatprep.subr.bf16.mxu0 0
        %4794 = vmatpush1.bf16.msra.mxu0 0
        %4795 = vmatprep.subr.bf16.mxu0 0
        %4796 = vmatpush1.bf16.msra.mxu0 0
        %4797 = vmatprep.subr.bf16.mxu0 0
        %4798 = vmatpush1.bf16.msra.mxu0 0
        %4799 = vmatprep.subr.bf16.mxu0 0
        %4800 = vmatpush1.bf16.msra.mxu0 0
        %4801 = vmatprep.subr.bf16.mxu0 0
        %4802 = vmatpush1.bf16.msra.mxu0 0
        %4803 = vmatprep.subr.bf16.mxu0 0
        %4804 = vmatpush1.bf16.msra.mxu0 0
        %4805 = vmatprep.subr.bf16.mxu0 0
        %4806 = vmatpush1.bf16.msra.mxu0 0
        %4807 = vmatprep.subr.bf16.mxu0 0
        %4808 = vmatpush1.bf16.msra.mxu0 0
        %4809 = vmatprep.mubr.bf16.mxu0 0
        %4810 = vmatmul.mubr.bf16.gmra.mrb[0].mxu0 %v4727
        %v4811 = vpop.f32.mrb[0].mxu0
        %v4812 = vadd.f32 0.0, %v4811
        %v4813 = vpop.f32.mrb[0].mxu0
        %v4814 = vpop.f32.mrb[0].mxu0
        %v4815 = vadd.f32 0.0, %v4814
        %v4816 = vpop.f32.mrb[0].mxu0
        %4817 = vmatprep.mubr.bf16.mxu0 0
        %4818 = vmatmul.mubr.bf16.gmra.mrb[0].mxu0 %v4730
        %v4819 = vpop.f32.mrb[0].mxu0
        %v4820 = vadd.f32 0.0, %v4819
        %v4821 = vpop.f32.mrb[0].mxu0
        %v4822 = vpop.f32.mrb[0].mxu0
        %v4823 = vadd.f32 0.0, %v4822
        %v4824 = vpop.f32.mrb[0].mxu0
        %4825 = vmatprep.mubr.bf16.mxu0 0
        %4826 = vmatmul.mubr.bf16.gmra.mrb[0].mxu0 %v4733
        %v4827 = vpop.f32.mrb[0].mxu0
        %v4828 = vadd.f32 0.0, %v4827
        %v4829 = vpop.f32.mrb[0].mxu0
        %v4830 = vpop.f32.mrb[0].mxu0
        %v4831 = vadd.f32 0.0, %v4830
        %v4832 = vpop.f32.mrb[0].mxu0
        %4833 = vmatprep.mubr.bf16.mxu0 0
        %4834 = vmatmul.mubr.bf16.gmra.mrb[0].mxu0 %v4736
        %v4835 = vpop.f32.mrb[0].mxu0
        %v4836 = vadd.f32 0.0, %v4835
        %v4837 = vpop.f32.mrb[0].mxu0
        %v4838 = vpop.f32.mrb[0].mxu0
        %v4839 = vadd.f32 0.0, %v4838
        %v4840 = vpop.f32.mrb[0].mxu0
        %4841 = vmatprep.mubr.bf16.mxu0 0
        %4842 = vmatmul.mubr.bf16.gmra.mrb[0].mxu0 %v4739
        %v4843 = vpop.f32.mrb[0].mxu0
        %v4844 = vadd.f32 0.0, %v4843
        %v4845 = vpop.f32.mrb[0].mxu0
        %v4846 = vpop.f32.mrb[0].mxu0
        %v4847 = vadd.f32 0.0, %v4846
        %v4848 = vpop.f32.mrb[0].mxu0
        %4849 = vmatprep.mubr.bf16.mxu0 0
        %4850 = vmatmul.mubr.bf16.gmra.mrb[0].mxu0 %v4742
        %v4851 = vpop.f32.mrb[0].mxu0
        %v4852 = vadd.f32 0.0, %v4851
        %v4853 = vpop.f32.mrb[0].mxu0
        %v4854 = vpop.f32.mrb[0].mxu0
        %v4855 = vadd.f32 0.0, %v4854
        %v4856 = vpop.f32.mrb[0].mxu0
        %4857 = vmatprep.mubr.bf16.mxu0 0
        %4858 = vmatmul.mubr.bf16.gmra.mrb[0].mxu0 %v4745
        %v4859 = vpop.f32.mrb[0].mxu0
        %v4860 = vadd.f32 0.0, %v4859
        %v4861 = vpop.f32.mrb[0].mxu0
        %v4862 = vpop.f32.mrb[0].mxu0
        %v4863 = vadd.f32 0.0, %v4862
        %v4864 = vpop.f32.mrb[0].mxu0
        %4865 = vmatprep.mubr.bf16.mxu0 0
        %4866 = vmatmul.mubr.bf16.gmra.mrb[0].mxu0 %v4748
        %v4867 = vpop.f32.mrb[0].mxu0
        %v4868 = vadd.f32 0.0, %v4867
        %v4869 = vpop.f32.mrb[0].mxu0
        %v4870 = vpop.f32.mrb[0].mxu0
        %v4871 = vadd.f32 0.0, %v4870
        %v4872 = vpop.f32.mrb[0].mxu0
        %4873 = vmatprep.mubr.bf16.mxu0 0
        %4874 = vmatmul.mubr.bf16.gmra.mrb[0].mxu0 %v4751
        %v4875 = vpop.f32.mrb[0].mxu0
        %v4876 = vadd.f32 0.0, %v4875
        %v4877 = vpop.f32.mrb[0].mxu0
        %v4878 = vpop.f32.mrb[0].mxu0
        %v4879 = vadd.f32 0.0, %v4878
        %v4880 = vpop.f32.mrb[0].mxu0
        %4881 = vmatprep.mubr.bf16.mxu0 0
        %4882 = vmatmul.mubr.bf16.gmra.mrb[0].mxu0 %v4754
        %v4883 = vpop.f32.mrb[0].mxu0
        %v4884 = vadd.f32 0.0, %v4883
        %v4885 = vpop.f32.mrb[0].mxu0
        %v4886 = vpop.f32.mrb[0].mxu0
        %v4887 = vadd.f32 0.0, %v4886
        %v4888 = vpop.f32.mrb[0].mxu0
        %4889 = vmatprep.mubr.bf16.mxu0 0
        %4890 = vmatmul.mubr.bf16.gmra.mrb[0].mxu0 %v4757
        %v4891 = vpop.f32.mrb[0].mxu0
        %v4892 = vadd.f32 0.0, %v4891
        %v4893 = vpop.f32.mrb[0].mxu0
        %v4894 = vpop.f32.mrb[0].mxu0
        %v4895 = vadd.f32 0.0, %v4894
        %v4896 = vpop.f32.mrb[0].mxu0
        %4897 = vmatprep.mubr.bf16.mxu0 0
        %4898 = vmatmul.mubr.bf16.gmra.mrb[0].mxu0 %v4760
        %v4899 = vpop.f32.mrb[0].mxu0
        %v4900 = vadd.f32 0.0, %v4899
        %v4901 = vpop.f32.mrb[0].mxu0
        %v4902 = vpop.f32.mrb[0].mxu0
        %v4903 = vadd.f32 0.0, %v4902
        %v4904 = vpop.f32.mrb[0].mxu0
        %4905 = vmatprep.mubr.bf16.mxu0 0
        %4906 = vmatmul.mubr.bf16.gmra.mrb[0].mxu0 %v4763
        %v4907 = vpop.f32.mrb[0].mxu0
        %v4908 = vadd.f32 0.0, %v4907
        %v4909 = vpop.f32.mrb[0].mxu0
        %v4910 = vpop.f32.mrb[0].mxu0
        %v4911 = vadd.f32 0.0, %v4910
        %v4912 = vpop.f32.mrb[0].mxu0
        %4913 = vmatprep.mubr.bf16.mxu0 0
        %4914 = vmatmul.mubr.bf16.gmra.mrb[0].mxu0 %v4766
        %v4915 = vpop.f32.mrb[0].mxu0
        %v4916 = vadd.f32 0.0, %v4915
        %v4917 = vpop.f32.mrb[0].mxu0
        %v4918 = vpop.f32.mrb[0].mxu0
        %v4919 = vadd.f32 0.0, %v4918
        %v4920 = vpop.f32.mrb[0].mxu0
        %4921 = vmatprep.mubr.bf16.mxu0 0
        %4922 = vmatmul.mubr.bf16.gmra.mrb[0].mxu0 %v4769
        %v4923 = vpop.f32.mrb[0].mxu0
        %v4924 = vadd.f32 0.0, %v4923
        %v4925 = vpop.f32.mrb[0].mxu0
        %v4926 = vpop.f32.mrb[0].mxu0
        %v4927 = vadd.f32 0.0, %v4926
        %v4928 = vpop.f32.mrb[0].mxu0
        %4929 = vmatprep.mubr.bf16.mxu0 0
        %4930 = vmatmul.mubr.bf16.gmra.mrb[0].mxu0 %v4772
        %v4931 = vpop.f32.mrb[0].mxu0
        %v4932 = vadd.f32 0.0, %v4931
        %v4933 = vpop.f32.mrb[0].mxu0
        %v4934 = vpop.f32.mrb[0].mxu0
        %v4935 = vadd.f32 0.0, %v4934
        %v4936 = vpop.f32.mrb[0].mxu0
        %4937 = vdwg.mxu0
        %v4938 = vadd.f32 %v4212, %v4812
        %v4939 = vadd.f32 %v4213, %v4815
        %v4940 = vadd.f32 %v4214, %v4820
        %v4941 = vadd.f32 %v4215, %v4823
        %v4942 = vadd.f32 %v4216, %v4828
        %v4943 = vadd.f32 %v4217, %v4831
        %v4944 = vadd.f32 %v4218, %v4836
        %v4945 = vadd.f32 %v4219, %v4839
        %v4946 = vadd.f32 %v4220, %v4844
        %v4947 = vadd.f32 %v4221, %v4847
        %v4948 = vadd.f32 %v4222, %v4852
        %v4949 = vadd.f32 %v4223, %v4855
        %v4950 = vadd.f32 %v4224, %v4860
        %v4951 = vadd.f32 %v4225, %v4863
        %v4952 = vadd.f32 %v4226, %v4868
        %v4953 = vadd.f32 %v4227, %v4871
        %v4954 = vadd.f32 %v4228, %v4876
        %v4955 = vadd.f32 %v4229, %v4879
        %v4956 = vadd.f32 %v4230, %v4884
        %v4957 = vadd.f32 %v4231, %v4887
        %v4958 = vadd.f32 %v4232, %v4892
        %v4959 = vadd.f32 %v4233, %v4895
        %v4960 = vadd.f32 %v4234, %v4900
        %v4961 = vadd.f32 %v4235, %v4903
        %v4962 = vadd.f32 %v4236, %v4908
        %v4963 = vadd.f32 %v4237, %v4911
        %v4964 = vadd.f32 %v4238, %v4916
        %v4965 = vadd.f32 %v4239, %v4919
        %v4966 = vadd.f32 %v4240, %v4924
        %v4967 = vadd.f32 %v4241, %v4927
        %v4968 = vadd.f32 %v4242, %v4932
        %v4969 = vadd.f32 %v4243, %v4935
        %v4970 = vld [vmem:[%s3873] sm:$0xf]
        %v4971 = vld [vmem:[%s3873 + $0x4] sm:$0xf]
        %v4972 = vld [vmem:[%s3873 + $0x8] sm:$0x1]
        %v4973 = vld [vmem:[%s3873 + $0xc] sm:$0xf]
        %v4974 = vld [vmem:[%s3873 + $0x10] sm:$0xf]
        %v4975 = vld [vmem:[%s3873 + $0x14] sm:$0x1]
        %v4976 = vld [vmem:[%s3873 + $0x18] sm:$0xf]
        %v4977 = vld [vmem:[%s3873 + $0x1c] sm:$0xf]
        %v4978 = vld [vmem:[%s3873 + $0x20] sm:$0x1]
        %v4979 = vld [vmem:[%s3873 + $0x24] sm:$0xf]
        %v4980 = vld [vmem:[%s3873 + $0x28] sm:$0xf]
        %v4981 = vld [vmem:[%s3873 + $0x2c] sm:$0x1]
        %v4982 = vld [vmem:[%s3873 + $0x30] sm:$0xf]
        %v4983 = vld [vmem:[%s3873 + $0x34] sm:$0xf]
        %v4984 = vld [vmem:[%s3873 + $0x38] sm:$0x1]
        %v4985 = vld [vmem:[%s3873 + $0x3c] sm:$0xf]
        %v4986 = vld [vmem:[%s3873 + $0x40] sm:$0xf]
        %v4987 = vld [vmem:[%s3873 + $0x44] sm:$0x1]
        %v4988 = vld [vmem:[%s3873 + $0x48] sm:$0xf]
        %v4989 = vld [vmem:[%s3873 + $0x4c] sm:$0xf]
        %v4990 = vld [vmem:[%s3873 + $0x50] sm:$0x1]
        %v4991 = vld [vmem:[%s3873 + $0x54] sm:$0xf]
        %v4992 = vld [vmem:[%s3873 + $0x58] sm:$0xf]
        %v4993 = vld [vmem:[%s3873 + $0x5c] sm:$0x1]
        %v4994 = vld [vmem:[%s3873 + $0x60] sm:$0xf]
        %v4995 = vld [vmem:[%s3873 + $0x64] sm:$0xf]
        %v4996 = vld [vmem:[%s3873 + $0x68] sm:$0x1]
        %v4997 = vld [vmem:[%s3873 + $0x6c] sm:$0xf]
        %v4998 = vld [vmem:[%s3873 + $0x70] sm:$0xf]
        %v4999 = vld [vmem:[%s3873 + $0x74] sm:$0x1]
        %v5000 = vld [vmem:[%s3873 + $0x78] sm:$0xf]
        %v5001 = vld [vmem:[%s3873 + $0x7c] sm:$0xf]
        %v5002 = vld [vmem:[%s3873 + $0x80] sm:$0x1]
        %v5003 = vld [vmem:[%s3873 + $0x84] sm:$0xf]
        %v5004 = vld [vmem:[%s3873 + $0x88] sm:$0xf]
        %v5005 = vld [vmem:[%s3873 + $0x8c] sm:$0x1]
        %v5006 = vld [vmem:[%s3873 + $0x90] sm:$0xf]
        %v5007 = vld [vmem:[%s3873 + $0x94] sm:$0xf]
        %v5008 = vld [vmem:[%s3873 + $0x98] sm:$0x1]
        %v5009 = vld [vmem:[%s3873 + $0x9c] sm:$0xf]
        %v5010 = vld [vmem:[%s3873 + $0xa0] sm:$0xf]
        %v5011 = vld [vmem:[%s3873 + $0xa4] sm:$0x1]
        %v5012 = vld [vmem:[%s3873 + $0xa8] sm:$0xf]
        %v5013 = vld [vmem:[%s3873 + $0xac] sm:$0xf]
        %v5014 = vld [vmem:[%s3873 + $0xb0] sm:$0x1]
        %v5015 = vld [vmem:[%s3873 + $0xb4] sm:$0xf]
        %v5016 = vld [vmem:[%s3873 + $0xb8] sm:$0xf]
        %v5017 = vld [vmem:[%s3873 + $0xbc] sm:$0x1]
        %v5019 = vshrl.u32 %v4970, 16
        %v5021 = vrot.slane %v5019, 4
        %v5022 = vshll.u32 %v4970, 16
        %v5024 = vrot.slane %v5022, 5
        %v5025 = vor.u32 %v5021, %v5024
        %v5026 = vrot.slane %v5025, 4
        %v5028 = vshll.u32 %v4971, 16
        %v5030 = vrot.slane %v5028, 5
        %v5031 = vsel %vm1142, %v5026, %v5030
        %v5032 = vshrl.u32 %v4971, 16
        %v5034 = vrot.slane %v5032, 4
        %v5035 = vor.u32 %v5034, %v5030
        %v5036 = vrot.slane %v5035, 4
        %v5038 = vshll.u32 %v4972, 16
        %v5040 = vrot.slane %v5038, 5
        %v5041 = vsel %vm1142, %v5036, %v5040
        %v5043 = vshrl.u32 %v4973, 16
        %v5045 = vrot.slane %v5043, 4
        %v5046 = vshll.u32 %v4973, 16
        %v5048 = vrot.slane %v5046, 5
        %v5049 = vor.u32 %v5045, %v5048
        %v5050 = vrot.slane %v5049, 4
        %v5052 = vshll.u32 %v4974, 16
        %v5054 = vrot.slane %v5052, 5
        %v5055 = vsel %vm1142, %v5050, %v5054
        %v5056 = vshrl.u32 %v4974, 16
        %v5058 = vrot.slane %v5056, 4
        %v5059 = vor.u32 %v5058, %v5054
        %v5060 = vrot.slane %v5059, 4
        %v5062 = vshll.u32 %v4975, 16
        %v5064 = vrot.slane %v5062, 5
        %v5065 = vsel %vm1142, %v5060, %v5064
        %v5067 = vshrl.u32 %v4976, 16
        %v5069 = vrot.slane %v5067, 4
        %v5070 = vshll.u32 %v4976, 16
        %v5072 = vrot.slane %v5070, 5
        %v5073 = vor.u32 %v5069, %v5072
        %v5074 = vrot.slane %v5073, 4
        %v5076 = vshll.u32 %v4977, 16
        %v5078 = vrot.slane %v5076, 5
        %v5079 = vsel %vm1142, %v5074, %v5078
        %v5080 = vshrl.u32 %v4977, 16
        %v5082 = vrot.slane %v5080, 4
        %v5083 = vor.u32 %v5082, %v5078
        %v5084 = vrot.slane %v5083, 4
        %v5086 = vshll.u32 %v4978, 16
        %v5088 = vrot.slane %v5086, 5
        %v5089 = vsel %vm1142, %v5084, %v5088
        %v5091 = vshrl.u32 %v4979, 16
        %v5093 = vrot.slane %v5091, 4
        %v5094 = vshll.u32 %v4979, 16
        %v5096 = vrot.slane %v5094, 5
        %v5097 = vor.u32 %v5093, %v5096
        %v5098 = vrot.slane %v5097, 4
        %v5100 = vshll.u32 %v4980, 16
        %v5102 = vrot.slane %v5100, 5
        %v5103 = vsel %vm1142, %v5098, %v5102
        %v5104 = vshrl.u32 %v4980, 16
        %v5106 = vrot.slane %v5104, 4
        %v5107 = vor.u32 %v5106, %v5102
        %v5108 = vrot.slane %v5107, 4
        %v5110 = vshll.u32 %v4981, 16
        %v5112 = vrot.slane %v5110, 5
        %v5113 = vsel %vm1142, %v5108, %v5112
        %v5115 = vshrl.u32 %v4982, 16
        %v5117 = vrot.slane %v5115, 4
        %v5118 = vshll.u32 %v4982, 16
        %v5120 = vrot.slane %v5118, 5
        %v5121 = vor.u32 %v5117, %v5120
        %v5122 = vrot.slane %v5121, 4
        %v5124 = vshll.u32 %v4983, 16
        %v5126 = vrot.slane %v5124, 5
        %v5127 = vsel %vm1142, %v5122, %v5126
        %v5128 = vshrl.u32 %v4983, 16
        %v5130 = vrot.slane %v5128, 4
        %v5131 = vor.u32 %v5130, %v5126
        %v5132 = vrot.slane %v5131, 4
        %v5134 = vshll.u32 %v4984, 16
        %v5136 = vrot.slane %v5134, 5
        %v5137 = vsel %vm1142, %v5132, %v5136
        %v5139 = vshrl.u32 %v4985, 16
        %v5141 = vrot.slane %v5139, 4
        %v5142 = vshll.u32 %v4985, 16
        %v5144 = vrot.slane %v5142, 5
        %v5145 = vor.u32 %v5141, %v5144
        %v5146 = vrot.slane %v5145, 4
        %v5148 = vshll.u32 %v4986, 16
        %v5150 = vrot.slane %v5148, 5
        %v5151 = vsel %vm1142, %v5146, %v5150
        %v5152 = vshrl.u32 %v4986, 16
        %v5154 = vrot.slane %v5152, 4
        %v5155 = vor.u32 %v5154, %v5150
        %v5156 = vrot.slane %v5155, 4
        %v5158 = vshll.u32 %v4987, 16
        %v5160 = vrot.slane %v5158, 5
        %v5161 = vsel %vm1142, %v5156, %v5160
        %v5163 = vshrl.u32 %v4988, 16
        %v5165 = vrot.slane %v5163, 4
        %v5166 = vshll.u32 %v4988, 16
        %v5168 = vrot.slane %v5166, 5
        %v5169 = vor.u32 %v5165, %v5168
        %v5170 = vrot.slane %v5169, 4
        %v5172 = vshll.u32 %v4989, 16
        %v5174 = vrot.slane %v5172, 5
        %v5175 = vsel %vm1142, %v5170, %v5174
        %v5176 = vshrl.u32 %v4989, 16
        %v5178 = vrot.slane %v5176, 4
        %v5179 = vor.u32 %v5178, %v5174
        %v5180 = vrot.slane %v5179, 4
        %v5182 = vshll.u32 %v4990, 16
        %v5184 = vrot.slane %v5182, 5
        %v5185 = vsel %vm1142, %v5180, %v5184
        %v5187 = vshrl.u32 %v4991, 16
        %v5189 = vrot.slane %v5187, 4
        %v5190 = vshll.u32 %v4991, 16
        %v5192 = vrot.slane %v5190, 5
        %v5193 = vor.u32 %v5189, %v5192
        %v5194 = vrot.slane %v5193, 4
        %v5196 = vshll.u32 %v4992, 16
        %v5198 = vrot.slane %v5196, 5
        %v5199 = vsel %vm1142, %v5194, %v5198
        %v5200 = vshrl.u32 %v4992, 16
        %v5202 = vrot.slane %v5200, 4
        %v5203 = vor.u32 %v5202, %v5198
        %v5204 = vrot.slane %v5203, 4
        %v5206 = vshll.u32 %v4993, 16
        %v5208 = vrot.slane %v5206, 5
        %v5209 = vsel %vm1142, %v5204, %v5208
        %v5211 = vshrl.u32 %v4994, 16
        %v5213 = vrot.slane %v5211, 4
        %v5214 = vshll.u32 %v4994, 16
        %v5216 = vrot.slane %v5214, 5
        %v5217 = vor.u32 %v5213, %v5216
        %v5218 = vrot.slane %v5217, 4
        %v5220 = vshll.u32 %v4995, 16
        %v5222 = vrot.slane %v5220, 5
        %v5223 = vsel %vm1142, %v5218, %v5222
        %v5224 = vshrl.u32 %v4995, 16
        %v5226 = vrot.slane %v5224, 4
        %v5227 = vor.u32 %v5226, %v5222
        %v5228 = vrot.slane %v5227, 4
        %v5230 = vshll.u32 %v4996, 16
        %v5232 = vrot.slane %v5230, 5
        %v5233 = vsel %vm1142, %v5228, %v5232
        %v5235 = vshrl.u32 %v4997, 16
        %v5237 = vrot.slane %v5235, 4
        %v5238 = vshll.u32 %v4997, 16
        %v5240 = vrot.slane %v5238, 5
        %v5241 = vor.u32 %v5237, %v5240
        %v5242 = vrot.slane %v5241, 4
        %v5244 = vshll.u32 %v4998, 16
        %v5246 = vrot.slane %v5244, 5
        %v5247 = vsel %vm1142, %v5242, %v5246
        %v5248 = vshrl.u32 %v4998, 16
        %v5250 = vrot.slane %v5248, 4
        %v5251 = vor.u32 %v5250, %v5246
        %v5252 = vrot.slane %v5251, 4
        %v5254 = vshll.u32 %v4999, 16
        %v5256 = vrot.slane %v5254, 5
        %v5257 = vsel %vm1142, %v5252, %v5256
        %v5259 = vshrl.u32 %v5000, 16
        %v5261 = vrot.slane %v5259, 4
        %v5262 = vshll.u32 %v5000, 16
        %v5264 = vrot.slane %v5262, 5
        %v5265 = vor.u32 %v5261, %v5264
        %v5266 = vrot.slane %v5265, 4
        %v5268 = vshll.u32 %v5001, 16
        %v5270 = vrot.slane %v5268, 5
        %v5271 = vsel %vm1142, %v5266, %v5270
        %v5272 = vshrl.u32 %v5001, 16
        %v5274 = vrot.slane %v5272, 4
        %v5275 = vor.u32 %v5274, %v5270
        %v5276 = vrot.slane %v5275, 4
        %v5278 = vshll.u32 %v5002, 16
        %v5280 = vrot.slane %v5278, 5
        %v5281 = vsel %vm1142, %v5276, %v5280
        %v5283 = vshrl.u32 %v5003, 16
        %v5285 = vrot.slane %v5283, 4
        %v5286 = vshll.u32 %v5003, 16
        %v5288 = vrot.slane %v5286, 5
        %v5289 = vor.u32 %v5285, %v5288
        %v5290 = vrot.slane %v5289, 4
        %v5292 = vshll.u32 %v5004, 16
        %v5294 = vrot.slane %v5292, 5
        %v5295 = vsel %vm1142, %v5290, %v5294
        %v5296 = vshrl.u32 %v5004, 16
        %v5298 = vrot.slane %v5296, 4
        %v5299 = vor.u32 %v5298, %v5294
        %v5300 = vrot.slane %v5299, 4
        %v5302 = vshll.u32 %v5005, 16
        %v5304 = vrot.slane %v5302, 5
        %v5305 = vsel %vm1142, %v5300, %v5304
        %v5307 = vshrl.u32 %v5006, 16
        %v5309 = vrot.slane %v5307, 4
        %v5310 = vshll.u32 %v5006, 16
        %v5312 = vrot.slane %v5310, 5
        %v5313 = vor.u32 %v5309, %v5312
        %v5314 = vrot.slane %v5313, 4
        %v5316 = vshll.u32 %v5007, 16
        %v5318 = vrot.slane %v5316, 5
        %v5319 = vsel %vm1142, %v5314, %v5318
        %v5320 = vshrl.u32 %v5007, 16
        %v5322 = vrot.slane %v5320, 4
        %v5323 = vor.u32 %v5322, %v5318
        %v5324 = vrot.slane %v5323, 4
        %v5326 = vshll.u32 %v5008, 16
        %v5328 = vrot.slane %v5326, 5
        %v5329 = vsel %vm1142, %v5324, %v5328
        %v5331 = vshrl.u32 %v5009, 16
        %v5333 = vrot.slane %v5331, 4
        %v5334 = vshll.u32 %v5009, 16
        %v5336 = vrot.slane %v5334, 5
        %v5337 = vor.u32 %v5333, %v5336
        %v5338 = vrot.slane %v5337, 4
        %v5340 = vshll.u32 %v5010, 16
        %v5342 = vrot.slane %v5340, 5
        %v5343 = vsel %vm1142, %v5338, %v5342
        %v5344 = vshrl.u32 %v5010, 16
        %v5346 = vrot.slane %v5344, 4
        %v5347 = vor.u32 %v5346, %v5342
        %v5348 = vrot.slane %v5347, 4
        %v5350 = vshll.u32 %v5011, 16
        %v5352 = vrot.slane %v5350, 5
        %v5353 = vsel %vm1142, %v5348, %v5352
        %v5355 = vshrl.u32 %v5012, 16
        %v5357 = vrot.slane %v5355, 4
        %v5358 = vshll.u32 %v5012, 16
        %v5360 = vrot.slane %v5358, 5
        %v5361 = vor.u32 %v5357, %v5360
        %v5362 = vrot.slane %v5361, 4
        %v5364 = vshll.u32 %v5013, 16
        %v5366 = vrot.slane %v5364, 5
        %v5367 = vsel %vm1142, %v5362, %v5366
        %v5368 = vshrl.u32 %v5013, 16
        %v5370 = vrot.slane %v5368, 4
        %v5371 = vor.u32 %v5370, %v5366
        %v5372 = vrot.slane %v5371, 4
        %v5374 = vshll.u32 %v5014, 16
        %v5376 = vrot.slane %v5374, 5
        %v5377 = vsel %vm1142, %v5372, %v5376
        %v5379 = vshrl.u32 %v5015, 16
        %v5381 = vrot.slane %v5379, 4
        %v5382 = vshll.u32 %v5015, 16
        %v5384 = vrot.slane %v5382, 5
        %v5385 = vor.u32 %v5381, %v5384
        %v5386 = vrot.slane %v5385, 4
        %v5388 = vshll.u32 %v5016, 16
        %v5390 = vrot.slane %v5388, 5
        %v5391 = vsel %vm1142, %v5386, %v5390
        %v5392 = vshrl.u32 %v5016, 16
        %v5394 = vrot.slane %v5392, 4
        %v5395 = vor.u32 %v5394, %v5390
        %v5396 = vrot.slane %v5395, 4
        %v5398 = vshll.u32 %v5017, 16
        %v5400 = vrot.slane %v5398, 5
        %v5401 = vsel %vm1142, %v5396, %v5400
        %s5402 = scalar_lea.vmem %s3, 64
        %v5403 = vld [vmem:[%s5402] sm:$0xf]
        %v5404 = vld [vmem:[%s5402 + $0x4] sm:$0xf]
        %v5405 = vld [vmem:[%s5402 + $0x8] sm:$0xf]
        %v5406 = vld [vmem:[%s5402 + $0xc] sm:$0xf]
        %v5407 = vunpack.c.l.b16 %v5031
        %v5408 = vunpack.c.l.b16 %v5041
        %v5409 = vunpack.c.l.b16 %v5055
        %v5410 = vunpack.c.l.b16 %v5065
        %v5411 = vunpack.c.l.b16 %v5079
        %v5412 = vunpack.c.l.b16 %v5089
        %v5413 = vunpack.c.l.b16 %v5103
        %v5414 = vunpack.c.l.b16 %v5113
        %v5415 = vunpack.c.l.b16 %v5127
        %v5416 = vunpack.c.l.b16 %v5137
        %v5417 = vunpack.c.l.b16 %v5151
        %v5418 = vunpack.c.l.b16 %v5161
        %v5419 = vunpack.c.l.b16 %v5175
        %v5420 = vunpack.c.l.b16 %v5185
        %v5421 = vunpack.c.l.b16 %v5199
        %v5422 = vunpack.c.l.b16 %v5209
        %v5423 = vunpack.c.l.b16 %v5223
        %v5424 = vunpack.c.l.b16 %v5233
        %v5425 = vunpack.c.l.b16 %v5247
        %v5426 = vunpack.c.l.b16 %v5257
        %v5427 = vunpack.c.l.b16 %v5271
        %v5428 = vunpack.c.l.b16 %v5281
        %v5429 = vunpack.c.l.b16 %v5295
        %v5430 = vunpack.c.l.b16 %v5305
        %v5431 = vunpack.c.l.b16 %v5319
        %v5432 = vunpack.c.l.b16 %v5329
        %v5433 = vunpack.c.l.b16 %v5343
        %v5434 = vunpack.c.l.b16 %v5353
        %v5435 = vunpack.c.l.b16 %v5367
        %v5436 = vunpack.c.l.b16 %v5377
        %v5437 = vunpack.c.l.b16 %v5391
        %v5438 = vunpack.c.l.b16 %v5401
        %v5439 = vpack.c.b16 %v5408, %v5407
        %v5440 = vpack.c.b16 %v5410, %v5409
        %v5441 = vpack.c.b16 %v5412, %v5411
        %v5442 = vpack.c.b16 %v5414, %v5413
        %v5443 = vpack.c.b16 %v5416, %v5415
        %v5444 = vpack.c.b16 %v5418, %v5417
        %v5445 = vpack.c.b16 %v5420, %v5419
        %v5446 = vpack.c.b16 %v5422, %v5421
        %v5447 = vpack.c.b16 %v5424, %v5423
        %v5448 = vpack.c.b16 %v5426, %v5425
        %v5449 = vpack.c.b16 %v5428, %v5427
        %v5450 = vpack.c.b16 %v5430, %v5429
        %v5451 = vpack.c.b16 %v5432, %v5431
        %v5452 = vpack.c.b16 %v5434, %v5433
        %v5453 = vpack.c.b16 %v5436, %v5435
        %v5454 = vpack.c.b16 %v5438, %v5437
        %v5459 = vunpack.c.l.b16 %v5403
        %v5460 = vunpack.c.l.b16 %v5404
        %v5461 = vunpack.c.l.b16 %v5405
        %v5462 = vunpack.c.l.b16 %v5406
        %v5463 = vpack.c.b16 %v5460, %v5459
        %v5464 = vpack.c.b16 %v5462, %v5461
        %v5468 = vsel %vm850, %v5439, 0
        %v5471 = vsel %vm850, %v5440, 0
        %v5474 = vsel %vm850, %v5441, 0
        %v5477 = vsel %vm850, %v5442, 0
        %v5480 = vsel %vm850, %v5443, 0
        %v5483 = vsel %vm850, %v5444, 0
        %v5486 = vsel %vm850, %v5445, 0
        %v5489 = vsel %vm850, %v5446, 0
        %v5492 = vsel %vm850, %v5447, 0
        %v5495 = vsel %vm850, %v5448, 0
        %v5498 = vsel %vm850, %v5449, 0
        %v5501 = vsel %vm850, %v5450, 0
        %v5504 = vsel %vm850, %v5451, 0
        %v5507 = vsel %vm850, %v5452, 0
        %v5510 = vsel %vm850, %v5453, 0
        %v5513 = vsel %vm850, %v5454, 0
        %5515 = vmatprep.subr.bf16.mxu0 0
        %5516 = vmatpush1.bf16.msra.mxu0 %v5463
        %5517 = vmatprep.subr.bf16.mxu0 0
        %5518 = vmatpush1.bf16.msra.mxu0 %v5464
        %5519 = vmatprep.subr.bf16.mxu0 0
        %5520 = vmatpush1.bf16.msra.mxu0 0
        %5521 = vmatprep.subr.bf16.mxu0 0
        %5522 = vmatpush1.bf16.msra.mxu0 0
        %5523 = vmatprep.subr.bf16.mxu0 0
        %5524 = vmatpush1.bf16.msra.mxu0 0
        %5525 = vmatprep.subr.bf16.mxu0 0
        %5526 = vmatpush1.bf16.msra.mxu0 0
        %5527 = vmatprep.subr.bf16.mxu0 0
        %5528 = vmatpush1.bf16.msra.mxu0 0
        %5529 = vmatprep.subr.bf16.mxu0 0
        %5530 = vmatpush1.bf16.msra.mxu0 0
        %5531 = vmatprep.subr.bf16.mxu0 0
        %5532 = vmatpush1.bf16.msra.mxu0 0
        %5533 = vmatprep.subr.bf16.mxu0 0
        %5534 = vmatpush1.bf16.msra.mxu0 0
        %5535 = vmatprep.subr.bf16.mxu0 0
        %5536 = vmatpush1.bf16.msra.mxu0 0
        %5537 = vmatprep.subr.bf16.mxu0 0
        %5538 = vmatpush1.bf16.msra.mxu0 0
        %5539 = vmatprep.subr.bf16.mxu0 0
        %5540 = vmatpush1.bf16.msra.mxu0 0
        %5541 = vmatprep.subr.bf16.mxu0 0
        %5542 = vmatpush1.bf16.msra.mxu0 0
        %5543 = vmatprep.subr.bf16.mxu0 0
        %5544 = vmatpush1.bf16.msra.mxu0 0
        %5545 = vmatprep.subr.bf16.mxu0 0
        %5546 = vmatpush1.bf16.msra.mxu0 0
        %5547 = vmatprep.mubr.bf16.mxu0 0
        %5548 = vmatmul.mubr.bf16.gmra.mrb[0].mxu0 %v5468
        %v5549 = vpop.f32.mrb[0].mxu0
        %v5550 = vadd.f32 0.0, %v5549
        %v5551 = vpop.f32.mrb[0].mxu0
        %v5552 = vpop.f32.mrb[0].mxu0
        %v5553 = vadd.f32 0.0, %v5552
        %v5554 = vpop.f32.mrb[0].mxu0
        %5555 = vmatprep.mubr.bf16.mxu0 0
        %5556 = vmatmul.mubr.bf16.gmra.mrb[0].mxu0 %v5471
        %v5557 = vpop.f32.mrb[0].mxu0
        %v5558 = vadd.f32 0.0, %v5557
        %v5559 = vpop.f32.mrb[0].mxu0
        %v5560 = vpop.f32.mrb[0].mxu0
        %v5561 = vadd.f32 0.0, %v5560
        %v5562 = vpop.f32.mrb[0].mxu0
        %5563 = vmatprep.mubr.bf16.mxu0 0
        %5564 = vmatmul.mubr.bf16.gmra.mrb[0].mxu0 %v5474
        %v5565 = vpop.f32.mrb[0].mxu0
        %v5566 = vadd.f32 0.0, %v5565
        %v5567 = vpop.f32.mrb[0].mxu0
        %v5568 = vpop.f32.mrb[0].mxu0
        %v5569 = vadd.f32 0.0, %v5568
        %v5570 = vpop.f32.mrb[0].mxu0
        %5571 = vmatprep.mubr.bf16.mxu0 0
        %5572 = vmatmul.mubr.bf16.gmra.mrb[0].mxu0 %v5477
        %v5573 = vpop.f32.mrb[0].mxu0
        %v5574 = vadd.f32 0.0, %v5573
        %v5575 = vpop.f32.mrb[0].mxu0
        %v5576 = vpop.f32.mrb[0].mxu0
        %v5577 = vadd.f32 0.0, %v5576
        %v5578 = vpop.f32.mrb[0].mxu0
        %5579 = vmatprep.mubr.bf16.mxu0 0
        %5580 = vmatmul.mubr.bf16.gmra.mrb[0].mxu0 %v5480
        %v5581 = vpop.f32.mrb[0].mxu0
        %v5582 = vadd.f32 0.0, %v5581
        %v5583 = vpop.f32.mrb[0].mxu0
        %v5584 = vpop.f32.mrb[0].mxu0
        %v5585 = vadd.f32 0.0, %v5584
        %v5586 = vpop.f32.mrb[0].mxu0
        %5587 = vmatprep.mubr.bf16.mxu0 0
        %5588 = vmatmul.mubr.bf16.gmra.mrb[0].mxu0 %v5483
        %v5589 = vpop.f32.mrb[0].mxu0
        %v5590 = vadd.f32 0.0, %v5589
        %v5591 = vpop.f32.mrb[0].mxu0
        %v5592 = vpop.f32.mrb[0].mxu0
        %v5593 = vadd.f32 0.0, %v5592
        %v5594 = vpop.f32.mrb[0].mxu0
        %5595 = vmatprep.mubr.bf16.mxu0 0
        %5596 = vmatmul.mubr.bf16.gmra.mrb[0].mxu0 %v5486
        %v5597 = vpop.f32.mrb[0].mxu0
        %v5598 = vadd.f32 0.0, %v5597
        %v5599 = vpop.f32.mrb[0].mxu0
        %v5600 = vpop.f32.mrb[0].mxu0
        %v5601 = vadd.f32 0.0, %v5600
        %v5602 = vpop.f32.mrb[0].mxu0
        %5603 = vmatprep.mubr.bf16.mxu0 0
        %5604 = vmatmul.mubr.bf16.gmra.mrb[0].mxu0 %v5489
        %v5605 = vpop.f32.mrb[0].mxu0
        %v5606 = vadd.f32 0.0, %v5605
        %v5607 = vpop.f32.mrb[0].mxu0
        %v5608 = vpop.f32.mrb[0].mxu0
        %v5609 = vadd.f32 0.0, %v5608
        %v5610 = vpop.f32.mrb[0].mxu0
        %5611 = vmatprep.mubr.bf16.mxu0 0
        %5612 = vmatmul.mubr.bf16.gmra.mrb[0].mxu0 %v5492
        %v5613 = vpop.f32.mrb[0].mxu0
        %v5614 = vadd.f32 0.0, %v5613
        %v5615 = vpop.f32.mrb[0].mxu0
        %v5616 = vpop.f32.mrb[0].mxu0
        %v5617 = vadd.f32 0.0, %v5616
        %v5618 = vpop.f32.mrb[0].mxu0
        %5619 = vmatprep.mubr.bf16.mxu0 0
        %5620 = vmatmul.mubr.bf16.gmra.mrb[0].mxu0 %v5495
        %v5621 = vpop.f32.mrb[0].mxu0
        %v5622 = vadd.f32 0.0, %v5621
        %v5623 = vpop.f32.mrb[0].mxu0
        %v5624 = vpop.f32.mrb[0].mxu0
        %v5625 = vadd.f32 0.0, %v5624
        %v5626 = vpop.f32.mrb[0].mxu0
        %5627 = vmatprep.mubr.bf16.mxu0 0
        %5628 = vmatmul.mubr.bf16.gmra.mrb[0].mxu0 %v5498
        %v5629 = vpop.f32.mrb[0].mxu0
        %v5630 = vadd.f32 0.0, %v5629
        %v5631 = vpop.f32.mrb[0].mxu0
        %v5632 = vpop.f32.mrb[0].mxu0
        %v5633 = vadd.f32 0.0, %v5632
        %v5634 = vpop.f32.mrb[0].mxu0
        %5635 = vmatprep.mubr.bf16.mxu0 0
        %5636 = vmatmul.mubr.bf16.gmra.mrb[0].mxu0 %v5501
        %v5637 = vpop.f32.mrb[0].mxu0
        %v5638 = vadd.f32 0.0, %v5637
        %v5639 = vpop.f32.mrb[0].mxu0
        %v5640 = vpop.f32.mrb[0].mxu0
        %v5641 = vadd.f32 0.0, %v5640
        %v5642 = vpop.f32.mrb[0].mxu0
        %5643 = vmatprep.mubr.bf16.mxu0 0
        %5644 = vmatmul.mubr.bf16.gmra.mrb[0].mxu0 %v5504
        %v5645 = vpop.f32.mrb[0].mxu0
        %v5646 = vadd.f32 0.0, %v5645
        %v5647 = vpop.f32.mrb[0].mxu0
        %v5648 = vpop.f32.mrb[0].mxu0
        %v5649 = vadd.f32 0.0, %v5648
        %v5650 = vpop.f32.mrb[0].mxu0
        %5651 = vmatprep.mubr.bf16.mxu0 0
        %5652 = vmatmul.mubr.bf16.gmra.mrb[0].mxu0 %v5507
        %v5653 = vpop.f32.mrb[0].mxu0
        %v5654 = vadd.f32 0.0, %v5653
        %v5655 = vpop.f32.mrb[0].mxu0
        %v5656 = vpop.f32.mrb[0].mxu0
        %v5657 = vadd.f32 0.0, %v5656
        %v5658 = vpop.f32.mrb[0].mxu0
        %5659 = vmatprep.mubr.bf16.mxu0 0
        %5660 = vmatmul.mubr.bf16.gmra.mrb[0].mxu0 %v5510
        %v5661 = vpop.f32.mrb[0].mxu0
        %v5662 = vadd.f32 0.0, %v5661
        %v5663 = vpop.f32.mrb[0].mxu0
        %v5664 = vpop.f32.mrb[0].mxu0
        %v5665 = vadd.f32 0.0, %v5664
        %v5666 = vpop.f32.mrb[0].mxu0
        %5667 = vmatprep.mubr.bf16.mxu0 0
        %5668 = vmatmul.mubr.bf16.gmra.mrb[0].mxu0 %v5513
        %v5669 = vpop.f32.mrb[0].mxu0
        %v5670 = vadd.f32 0.0, %v5669
        %v5671 = vpop.f32.mrb[0].mxu0
        %v5672 = vpop.f32.mrb[0].mxu0
        %v5673 = vadd.f32 0.0, %v5672
        %v5674 = vpop.f32.mrb[0].mxu0
        %5675 = vdwg.mxu0
        %v5676 = vadd.f32 %v4938, %v5550
        %v5677 = vadd.f32 %v4939, %v5553
        %v5678 = vadd.f32 %v4940, %v5558
        %v5679 = vadd.f32 %v4941, %v5561
        %v5680 = vadd.f32 %v4942, %v5566
        %v5681 = vadd.f32 %v4943, %v5569
        %v5682 = vadd.f32 %v4944, %v5574
        %v5683 = vadd.f32 %v4945, %v5577
        %v5684 = vadd.f32 %v4946, %v5582
        %v5685 = vadd.f32 %v4947, %v5585
        %v5686 = vadd.f32 %v4948, %v5590
        %v5687 = vadd.f32 %v4949, %v5593
        %v5688 = vadd.f32 %v4950, %v5598
        %v5689 = vadd.f32 %v4951, %v5601
        %v5690 = vadd.f32 %v4952, %v5606
        %v5691 = vadd.f32 %v4953, %v5609
        %v5692 = vadd.f32 %v4954, %v5614
        %v5693 = vadd.f32 %v4955, %v5617
        %v5694 = vadd.f32 %v4956, %v5622
        %v5695 = vadd.f32 %v4957, %v5625
        %v5696 = vadd.f32 %v4958, %v5630
        %v5697 = vadd.f32 %v4959, %v5633
        %v5698 = vadd.f32 %v4960, %v5638
        %v5699 = vadd.f32 %v4961, %v5641
        %v5700 = vadd.f32 %v4962, %v5646
        %v5701 = vadd.f32 %v4963, %v5649
        %v5702 = vadd.f32 %v4964, %v5654
        %v5703 = vadd.f32 %v4965, %v5657
        %v5704 = vadd.f32 %v4966, %v5662
        %v5705 = vadd.f32 %v4967, %v5665
        %v5706 = vadd.f32 %v4968, %v5670
        %v5707 = vadd.f32 %v4969, %v5673
        %v5708 = vld [vmem:[%s3514] sm:$0xe]
        %v5709 = vld [vmem:[%s3514 + $0xc] sm:$0xe]
        %v5710 = vld [vmem:[%s3514 + $0x18] sm:$0xe]
        %v5711 = vld [vmem:[%s3514 + $0x24] sm:$0xe]
        %v5712 = vld [vmem:[%s3514 + $0x30] sm:$0xe]
        %v5713 = vld [vmem:[%s3514 + $0x3c] sm:$0xe]
        %v5714 = vld [vmem:[%s3514 + $0x48] sm:$0xe]
        %v5715 = vld [vmem:[%s3514 + $0x54] sm:$0xe]
        %v5716 = vld [vmem:[%s3514 + $0x60] sm:$0xe]
        %v5717 = vld [vmem:[%s3514 + $0x6c] sm:$0xe]
        %v5718 = vld [vmem:[%s3514 + $0x78] sm:$0xe]
        %v5719 = vld [vmem:[%s3514 + $0x84] sm:$0xe]
        %v5720 = vld [vmem:[%s3514 + $0x90] sm:$0xe]
        %v5721 = vld [vmem:[%s3514 + $0x9c] sm:$0xe]
        %v5722 = vld [vmem:[%s3514 + $0xa8] sm:$0xe]
        %v5723 = vld [vmem:[%s3514 + $0xb4] sm:$0xe]
        %v5772 = vrot.slane %v5708, 5
        %v5773 = vrot.slane %v5772, 4
        %v5774 = vrot.slane %v4245, 5
        %v5775 = vsel %vm2625, %v5773, %v5774
        %v5776 = vrot.slane %v5774, 4
        %v5777 = vrot.slane %v4246, 5
        %v5778 = vsel %vm2625, %v5776, %v5777
        %v5779 = vrot.slane %v5709, 5
        %v5780 = vrot.slane %v5779, 4
        %v5781 = vrot.slane %v4248, 5
        %v5782 = vsel %vm2625, %v5780, %v5781
        %v5783 = vrot.slane %v5781, 4
        %v5784 = vrot.slane %v4249, 5
        %v5785 = vsel %vm2625, %v5783, %v5784
        %v5786 = vrot.slane %v5710, 5
        %v5787 = vrot.slane %v5786, 4
        %v5788 = vrot.slane %v4251, 5
        %v5789 = vsel %vm2625, %v5787, %v5788
        %v5790 = vrot.slane %v5788, 4
        %v5791 = vrot.slane %v4252, 5
        %v5792 = vsel %vm2625, %v5790, %v5791
        %v5793 = vrot.slane %v5711, 5
        %v5794 = vrot.slane %v5793, 4
        %v5795 = vrot.slane %v4254, 5
        %v5796 = vsel %vm2625, %v5794, %v5795
        %v5797 = vrot.slane %v5795, 4
        %v5798 = vrot.slane %v4255, 5
        %v5799 = vsel %vm2625, %v5797, %v5798
        %v5800 = vrot.slane %v5712, 5
        %v5801 = vrot.slane %v5800, 4
        %v5802 = vrot.slane %v4257, 5
        %v5803 = vsel %vm2625, %v5801, %v5802
        %v5804 = vrot.slane %v5802, 4
        %v5805 = vrot.slane %v4258, 5
        %v5806 = vsel %vm2625, %v5804, %v5805
        %v5807 = vrot.slane %v5713, 5
        %v5808 = vrot.slane %v5807, 4
        %v5809 = vrot.slane %v4260, 5
        %v5810 = vsel %vm2625, %v5808, %v5809
        %v5811 = vrot.slane %v5809, 4
        %v5812 = vrot.slane %v4261, 5
        %v5813 = vsel %vm2625, %v5811, %v5812
        %v5814 = vrot.slane %v5714, 5
        %v5815 = vrot.slane %v5814, 4
        %v5816 = vrot.slane %v4263, 5
        %v5817 = vsel %vm2625, %v5815, %v5816
        %v5818 = vrot.slane %v5816, 4
        %v5819 = vrot.slane %v4264, 5
        %v5820 = vsel %vm2625, %v5818, %v5819
        %v5821 = vrot.slane %v5715, 5
        %v5822 = vrot.slane %v5821, 4
        %v5823 = vrot.slane %v4266, 5
        %v5824 = vsel %vm2625, %v5822, %v5823
        %v5825 = vrot.slane %v5823, 4
        %v5826 = vrot.slane %v4267, 5
        %v5827 = vsel %vm2625, %v5825, %v5826
        %v5828 = vrot.slane %v5716, 5
        %v5829 = vrot.slane %v5828, 4
        %v5830 = vrot.slane %v4269, 5
        %v5831 = vsel %vm2625, %v5829, %v5830
        %v5832 = vrot.slane %v5830, 4
        %v5833 = vrot.slane %v4270, 5
        %v5834 = vsel %vm2625, %v5832, %v5833
        %v5835 = vrot.slane %v5717, 5
        %v5836 = vrot.slane %v5835, 4
        %v5837 = vrot.slane %v4272, 5
        %v5838 = vsel %vm2625, %v5836, %v5837
        %v5839 = vrot.slane %v5837, 4
        %v5840 = vrot.slane %v4273, 5
        %v5841 = vsel %vm2625, %v5839, %v5840
        %v5842 = vrot.slane %v5718, 5
        %v5843 = vrot.slane %v5842, 4
        %v5844 = vrot.slane %v4275, 5
        %v5845 = vsel %vm2625, %v5843, %v5844
        %v5846 = vrot.slane %v5844, 4
        %v5847 = vrot.slane %v4276, 5
        %v5848 = vsel %vm2625, %v5846, %v5847
        %v5849 = vrot.slane %v5719, 5
        %v5850 = vrot.slane %v5849, 4
        %v5851 = vrot.slane %v4278, 5
        %v5852 = vsel %vm2625, %v5850, %v5851
        %v5853 = vrot.slane %v5851, 4
        %v5854 = vrot.slane %v4279, 5
        %v5855 = vsel %vm2625, %v5853, %v5854
        %v5856 = vrot.slane %v5720, 5
        %v5857 = vrot.slane %v5856, 4
        %v5858 = vrot.slane %v4281, 5
        %v5859 = vsel %vm2625, %v5857, %v5858
        %v5860 = vrot.slane %v5858, 4
        %v5861 = vrot.slane %v4282, 5
        %v5862 = vsel %vm2625, %v5860, %v5861
        %v5863 = vrot.slane %v5721, 5
        %v5864 = vrot.slane %v5863, 4
        %v5865 = vrot.slane %v4284, 5
        %v5866 = vsel %vm2625, %v5864, %v5865
        %v5867 = vrot.slane %v5865, 4
        %v5868 = vrot.slane %v4285, 5
        %v5869 = vsel %vm2625, %v5867, %v5868
        %v5870 = vrot.slane %v5722, 5
        %v5871 = vrot.slane %v5870, 4
        %v5872 = vrot.slane %v4287, 5
        %v5873 = vsel %vm2625, %v5871, %v5872
        %v5874 = vrot.slane %v5872, 4
        %v5875 = vrot.slane %v4288, 5
        %v5876 = vsel %vm2625, %v5874, %v5875
        %v5877 = vrot.slane %v5723, 5
        %v5878 = vrot.slane %v5877, 4
        %v5879 = vrot.slane %v4290, 5
        %v5880 = vsel %vm2625, %v5878, %v5879
        %v5881 = vrot.slane %v5879, 4
        %v5882 = vrot.slane %v4291, 5
        %v5883 = vsel %vm2625, %v5881, %v5882
        %s5884 = scalar_lea.vmem %s2, 10
        %v5885 = vld [vmem:[%s5884] sm:$0x3]
        %v5886 = vunpack.c.l.b16 %v5775
        %v5887 = vunpack.c.l.b16 %v5778
        %v5888 = vunpack.c.l.b16 %v5782
        %v5889 = vunpack.c.l.b16 %v5785
        %v5890 = vunpack.c.l.b16 %v5789
        %v5891 = vunpack.c.l.b16 %v5792
        %v5892 = vunpack.c.l.b16 %v5796
        %v5893 = vunpack.c.l.b16 %v5799
        %v5894 = vunpack.c.l.b16 %v5803
        %v5895 = vunpack.c.l.b16 %v5806
        %v5896 = vunpack.c.l.b16 %v5810
        %v5897 = vunpack.c.l.b16 %v5813
        %v5898 = vunpack.c.l.b16 %v5817
        %v5899 = vunpack.c.l.b16 %v5820
        %v5900 = vunpack.c.l.b16 %v5824
        %v5901 = vunpack.c.l.b16 %v5827
        %v5902 = vunpack.c.l.b16 %v5831
        %v5903 = vunpack.c.l.b16 %v5834
        %v5904 = vunpack.c.l.b16 %v5838
        %v5905 = vunpack.c.l.b16 %v5841
        %v5906 = vunpack.c.l.b16 %v5845
        %v5907 = vunpack.c.l.b16 %v5848
        %v5908 = vunpack.c.l.b16 %v5852
        %v5909 = vunpack.c.l.b16 %v5855
        %v5910 = vunpack.c.l.b16 %v5859
        %v5911 = vunpack.c.l.b16 %v5862
        %v5912 = vunpack.c.l.b16 %v5866
        %v5913 = vunpack.c.l.b16 %v5869
        %v5914 = vunpack.c.l.b16 %v5873
        %v5915 = vunpack.c.l.b16 %v5876
        %v5916 = vunpack.c.l.b16 %v5880
        %v5917 = vunpack.c.l.b16 %v5883
        %v5918 = vpack.c.b16 %v5887, %v5886
        %v5919 = vpack.c.b16 %v5889, %v5888
        %v5920 = vpack.c.b16 %v5891, %v5890
        %v5921 = vpack.c.b16 %v5893, %v5892
        %v5922 = vpack.c.b16 %v5895, %v5894
        %v5923 = vpack.c.b16 %v5897, %v5896
        %v5924 = vpack.c.b16 %v5899, %v5898
        %v5925 = vpack.c.b16 %v5901, %v5900
        %v5926 = vpack.c.b16 %v5903, %v5902
        %v5927 = vpack.c.b16 %v5905, %v5904
        %v5928 = vpack.c.b16 %v5907, %v5906
        %v5929 = vpack.c.b16 %v5909, %v5908
        %v5930 = vpack.c.b16 %v5911, %v5910
        %v5931 = vpack.c.b16 %v5913, %v5912
        %v5932 = vpack.c.b16 %v5915, %v5914
        %v5933 = vpack.c.b16 %v5917, %v5916
        %v5935 = vsel %vm476, %v5918, 0
        %v5938 = vsel %vm476, %v5919, 0
        %v5941 = vsel %vm476, %v5920, 0
        %v5944 = vsel %vm476, %v5921, 0
        %v5947 = vsel %vm476, %v5922, 0
        %v5950 = vsel %vm476, %v5923, 0
        %v5953 = vsel %vm476, %v5924, 0
        %v5956 = vsel %vm476, %v5925, 0
        %v5959 = vsel %vm476, %v5926, 0
        %v5962 = vsel %vm476, %v5927, 0
        %v5965 = vsel %vm476, %v5928, 0
        %v5968 = vsel %vm476, %v5929, 0
        %v5971 = vsel %vm476, %v5930, 0
        %v5974 = vsel %vm476, %v5931, 0
        %v5977 = vsel %vm476, %v5932, 0
        %v5980 = vsel %vm476, %v5933, 0
        %v5983 = vsel %vm525, %v5885, 0
        %5985 = vmatprep.subr.bf16.mxu0 0
        %5986 = vmatpush1.bf16.msra.mxu0 %v5983
        %5987 = vmatprep.subr.bf16.mxu0 0
        %5988 = vmatpush1.bf16.msra.mxu0 0
        %5989 = vmatprep.subr.bf16.mxu0 0
        %5990 = vmatpush1.bf16.msra.mxu0 0
        %5991 = vmatprep.subr.bf16.mxu0 0
        %5992 = vmatpush1.bf16.msra.mxu0 0
        %5993 = vmatprep.subr.bf16.mxu0 0
        %5994 = vmatpush1.bf16.msra.mxu0 0
        %5995 = vmatprep.subr.bf16.mxu0 0
        %5996 = vmatpush1.bf16.msra.mxu0 0
        %5997 = vmatprep.subr.bf16.mxu0 0
        %5998 = vmatpush1.bf16.msra.mxu0 0
        %5999 = vmatprep.subr.bf16.mxu0 0
        %6000 = vmatpush1.bf16.msra.mxu0 0
        %6001 = vmatprep.subr.bf16.mxu0 0
        %6002 = vmatpush1.bf16.msra.mxu0 0
        %6003 = vmatprep.subr.bf16.mxu0 0
        %6004 = vmatpush1.bf16.msra.mxu0 0
        %6005 = vmatprep.subr.bf16.mxu0 0
        %6006 = vmatpush1.bf16.msra.mxu0 0
        %6007 = vmatprep.subr.bf16.mxu0 0
        %6008 = vmatpush1.bf16.msra.mxu0 0
        %6009 = vmatprep.subr.bf16.mxu0 0
        %6010 = vmatpush1.bf16.msra.mxu0 0
        %6011 = vmatprep.subr.bf16.mxu0 0
        %6012 = vmatpush1.bf16.msra.mxu0 0
        %6013 = vmatprep.subr.bf16.mxu0 0
        %6014 = vmatpush1.bf16.msra.mxu0 0
        %6015 = vmatprep.subr.bf16.mxu0 0
        %6016 = vmatpush1.bf16.msra.mxu0 0
        %6017 = vmatprep.mubr.bf16.mxu0 0
        %6018 = vmatmul.mubr.bf16.gmra.mrb[0].mxu0 %v5935
        %v6019 = vpop.f32.mrb[0].mxu0
        %v6020 = vadd.f32 0.0, %v6019
        %v6021 = vpop.f32.mrb[0].mxu0
        %v6022 = vpop.f32.mrb[0].mxu0
        %v6023 = vadd.f32 0.0, %v6022
        %v6024 = vpop.f32.mrb[0].mxu0
        %6025 = vmatprep.mubr.bf16.mxu0 0
        %6026 = vmatmul.mubr.bf16.gmra.mrb[0].mxu0 %v5938
        %v6027 = vpop.f32.mrb[0].mxu0
        %v6028 = vadd.f32 0.0, %v6027
        %v6029 = vpop.f32.mrb[0].mxu0
        %v6030 = vpop.f32.mrb[0].mxu0
        %v6031 = vadd.f32 0.0, %v6030
        %v6032 = vpop.f32.mrb[0].mxu0
        %6033 = vmatprep.mubr.bf16.mxu0 0
        %6034 = vmatmul.mubr.bf16.gmra.mrb[0].mxu0 %v5941
        %v6035 = vpop.f32.mrb[0].mxu0
        %v6036 = vadd.f32 0.0, %v6035
        %v6037 = vpop.f32.mrb[0].mxu0
        %v6038 = vpop.f32.mrb[0].mxu0
        %v6039 = vadd.f32 0.0, %v6038
        %v6040 = vpop.f32.mrb[0].mxu0
        %6041 = vmatprep.mubr.bf16.mxu0 0
        %6042 = vmatmul.mubr.bf16.gmra.mrb[0].mxu0 %v5944
        %v6043 = vpop.f32.mrb[0].mxu0
        %v6044 = vadd.f32 0.0, %v6043
        %v6045 = vpop.f32.mrb[0].mxu0
        %v6046 = vpop.f32.mrb[0].mxu0
        %v6047 = vadd.f32 0.0, %v6046
        %v6048 = vpop.f32.mrb[0].mxu0
        %6049 = vmatprep.mubr.bf16.mxu0 0
        %6050 = vmatmul.mubr.bf16.gmra.mrb[0].mxu0 %v5947
        %v6051 = vpop.f32.mrb[0].mxu0
        %v6052 = vadd.f32 0.0, %v6051
        %v6053 = vpop.f32.mrb[0].mxu0
        %v6054 = vpop.f32.mrb[0].mxu0
        %v6055 = vadd.f32 0.0, %v6054
        %v6056 = vpop.f32.mrb[0].mxu0
        %6057 = vmatprep.mubr.bf16.mxu0 0
        %6058 = vmatmul.mubr.bf16.gmra.mrb[0].mxu0 %v5950
        %v6059 = vpop.f32.mrb[0].mxu0
        %v6060 = vadd.f32 0.0, %v6059
        %v6061 = vpop.f32.mrb[0].mxu0
        %v6062 = vpop.f32.mrb[0].mxu0
        %v6063 = vadd.f32 0.0, %v6062
        %v6064 = vpop.f32.mrb[0].mxu0
        %6065 = vmatprep.mubr.bf16.mxu0 0
        %6066 = vmatmul.mubr.bf16.gmra.mrb[0].mxu0 %v5953
        %v6067 = vpop.f32.mrb[0].mxu0
        %v6068 = vadd.f32 0.0, %v6067
        %v6069 = vpop.f32.mrb[0].mxu0
        %v6070 = vpop.f32.mrb[0].mxu0
        %v6071 = vadd.f32 0.0, %v6070
        %v6072 = vpop.f32.mrb[0].mxu0
        %6073 = vmatprep.mubr.bf16.mxu0 0
        %6074 = vmatmul.mubr.bf16.gmra.mrb[0].mxu0 %v5956
        %v6075 = vpop.f32.mrb[0].mxu0
        %v6076 = vadd.f32 0.0, %v6075
        %v6077 = vpop.f32.mrb[0].mxu0
        %v6078 = vpop.f32.mrb[0].mxu0
        %v6079 = vadd.f32 0.0, %v6078
        %v6080 = vpop.f32.mrb[0].mxu0
        %6081 = vmatprep.mubr.bf16.mxu0 0
        %6082 = vmatmul.mubr.bf16.gmra.mrb[0].mxu0 %v5959
        %v6083 = vpop.f32.mrb[0].mxu0
        %v6084 = vadd.f32 0.0, %v6083
        %v6085 = vpop.f32.mrb[0].mxu0
        %v6086 = vpop.f32.mrb[0].mxu0
        %v6087 = vadd.f32 0.0, %v6086
        %v6088 = vpop.f32.mrb[0].mxu0
        %6089 = vmatprep.mubr.bf16.mxu0 0
        %6090 = vmatmul.mubr.bf16.gmra.mrb[0].mxu0 %v5962
        %v6091 = vpop.f32.mrb[0].mxu0
        %v6092 = vadd.f32 0.0, %v6091
        %v6093 = vpop.f32.mrb[0].mxu0
        %v6094 = vpop.f32.mrb[0].mxu0
        %v6095 = vadd.f32 0.0, %v6094
        %v6096 = vpop.f32.mrb[0].mxu0
        %6097 = vmatprep.mubr.bf16.mxu0 0
        %6098 = vmatmul.mubr.bf16.gmra.mrb[0].mxu0 %v5965
        %v6099 = vpop.f32.mrb[0].mxu0
        %v6100 = vadd.f32 0.0, %v6099
        %v6101 = vpop.f32.mrb[0].mxu0
        %v6102 = vpop.f32.mrb[0].mxu0
        %v6103 = vadd.f32 0.0, %v6102
        %v6104 = vpop.f32.mrb[0].mxu0
        %6105 = vmatprep.mubr.bf16.mxu0 0
        %6106 = vmatmul.mubr.bf16.gmra.mrb[0].mxu0 %v5968
        %v6107 = vpop.f32.mrb[0].mxu0
        %v6108 = vadd.f32 0.0, %v6107
        %v6109 = vpop.f32.mrb[0].mxu0
        %v6110 = vpop.f32.mrb[0].mxu0
        %v6111 = vadd.f32 0.0, %v6110
        %v6112 = vpop.f32.mrb[0].mxu0
        %6113 = vmatprep.mubr.bf16.mxu0 0
        %6114 = vmatmul.mubr.bf16.gmra.mrb[0].mxu0 %v5971
        %v6115 = vpop.f32.mrb[0].mxu0
        %v6116 = vadd.f32 0.0, %v6115
        %v6117 = vpop.f32.mrb[0].mxu0
        %v6118 = vpop.f32.mrb[0].mxu0
        %v6119 = vadd.f32 0.0, %v6118
        %v6120 = vpop.f32.mrb[0].mxu0
        %6121 = vmatprep.mubr.bf16.mxu0 0
        %6122 = vmatmul.mubr.bf16.gmra.mrb[0].mxu0 %v5974
        %v6123 = vpop.f32.mrb[0].mxu0
        %v6124 = vadd.f32 0.0, %v6123
        %v6125 = vpop.f32.mrb[0].mxu0
        %v6126 = vpop.f32.mrb[0].mxu0
        %v6127 = vadd.f32 0.0, %v6126
        %v6128 = vpop.f32.mrb[0].mxu0
        %6129 = vmatprep.mubr.bf16.mxu0 0
        %6130 = vmatmul.mubr.bf16.gmra.mrb[0].mxu0 %v5977
        %v6131 = vpop.f32.mrb[0].mxu0
        %v6132 = vadd.f32 0.0, %v6131
        %v6133 = vpop.f32.mrb[0].mxu0
        %v6134 = vpop.f32.mrb[0].mxu0
        %v6135 = vadd.f32 0.0, %v6134
        %v6136 = vpop.f32.mrb[0].mxu0
        %6137 = vmatprep.mubr.bf16.mxu0 0
        %6138 = vmatmul.mubr.bf16.gmra.mrb[0].mxu0 %v5980
        %v6139 = vpop.f32.mrb[0].mxu0
        %v6140 = vadd.f32 0.0, %v6139
        %v6141 = vpop.f32.mrb[0].mxu0
        %v6142 = vpop.f32.mrb[0].mxu0
        %v6143 = vadd.f32 0.0, %v6142
        %v6144 = vpop.f32.mrb[0].mxu0
        %6145 = vdwg.mxu0
        %v6146 = vadd.f32 %v5676, %v6020
        %v6147 = vadd.f32 %v5677, %v6023
        %v6148 = vadd.f32 %v5678, %v6028
        %v6149 = vadd.f32 %v5679, %v6031
        %v6150 = vadd.f32 %v5680, %v6036
        %v6151 = vadd.f32 %v5681, %v6039
        %v6152 = vadd.f32 %v5682, %v6044
        %v6153 = vadd.f32 %v5683, %v6047
        %v6154 = vadd.f32 %v5684, %v6052
        %v6155 = vadd.f32 %v5685, %v6055
        %v6156 = vadd.f32 %v5686, %v6060
        %v6157 = vadd.f32 %v5687, %v6063
        %v6158 = vadd.f32 %v5688, %v6068
        %v6159 = vadd.f32 %v5689, %v6071
        %v6160 = vadd.f32 %v5690, %v6076
        %v6161 = vadd.f32 %v5691, %v6079
        %v6162 = vadd.f32 %v5692, %v6084
        %v6163 = vadd.f32 %v5693, %v6087
        %v6164 = vadd.f32 %v5694, %v6092
        %v6165 = vadd.f32 %v5695, %v6095
        %v6166 = vadd.f32 %v5696, %v6100
        %v6167 = vadd.f32 %v5697, %v6103
        %v6168 = vadd.f32 %v5698, %v6108
        %v6169 = vadd.f32 %v5699, %v6111
        %v6170 = vadd.f32 %v5700, %v6116
        %v6171 = vadd.f32 %v5701, %v6119
        %v6172 = vadd.f32 %v5702, %v6124
        %v6173 = vadd.f32 %v5703, %v6127
        %v6174 = vadd.f32 %v5704, %v6132
        %v6175 = vadd.f32 %v5705, %v6135
        %v6176 = vadd.f32 %v5706, %v6140
        %v6177 = vadd.f32 %v5707, %v6143
        %v6178 = vld [vmem:[%s3873] sm:$0xe]
        %v6179 = vld [vmem:[%s3873 + $0xc] sm:$0xe]
        %v6180 = vld [vmem:[%s3873 + $0x18] sm:$0xe]
        %v6181 = vld [vmem:[%s3873 + $0x24] sm:$0xe]
        %v6182 = vld [vmem:[%s3873 + $0x30] sm:$0xe]
        %v6183 = vld [vmem:[%s3873 + $0x3c] sm:$0xe]
        %v6184 = vld [vmem:[%s3873 + $0x48] sm:$0xe]
        %v6185 = vld [vmem:[%s3873 + $0x54] sm:$0xe]
        %v6186 = vld [vmem:[%s3873 + $0x60] sm:$0xe]
        %v6187 = vld [vmem:[%s3873 + $0x6c] sm:$0xe]
        %v6188 = vld [vmem:[%s3873 + $0x78] sm:$0xe]
        %v6189 = vld [vmem:[%s3873 + $0x84] sm:$0xe]
        %v6190 = vld [vmem:[%s3873 + $0x90] sm:$0xe]
        %v6191 = vld [vmem:[%s3873 + $0x9c] sm:$0xe]
        %v6192 = vld [vmem:[%s3873 + $0xa8] sm:$0xe]
        %v6193 = vld [vmem:[%s3873 + $0xb4] sm:$0xe]
        %v6242 = vrot.slane %v6178, 5
        %v6243 = vrot.slane %v6242, 4
        %v6244 = vrot.slane %v4971, 5
        %v6245 = vsel %vm2625, %v6243, %v6244
        %v6246 = vrot.slane %v6244, 4
        %v6247 = vrot.slane %v4972, 5
        %v6248 = vsel %vm2625, %v6246, %v6247
        %v6249 = vrot.slane %v6179, 5
        %v6250 = vrot.slane %v6249, 4
        %v6251 = vrot.slane %v4974, 5
        %v6252 = vsel %vm2625, %v6250, %v6251
        %v6253 = vrot.slane %v6251, 4
        %v6254 = vrot.slane %v4975, 5
        %v6255 = vsel %vm2625, %v6253, %v6254
        %v6256 = vrot.slane %v6180, 5
        %v6257 = vrot.slane %v6256, 4
        %v6258 = vrot.slane %v4977, 5
        %v6259 = vsel %vm2625, %v6257, %v6258
        %v6260 = vrot.slane %v6258, 4
        %v6261 = vrot.slane %v4978, 5
        %v6262 = vsel %vm2625, %v6260, %v6261
        %v6263 = vrot.slane %v6181, 5
        %v6264 = vrot.slane %v6263, 4
        %v6265 = vrot.slane %v4980, 5
        %v6266 = vsel %vm2625, %v6264, %v6265
        %v6267 = vrot.slane %v6265, 4
        %v6268 = vrot.slane %v4981, 5
        %v6269 = vsel %vm2625, %v6267, %v6268
        %v6270 = vrot.slane %v6182, 5
        %v6271 = vrot.slane %v6270, 4
        %v6272 = vrot.slane %v4983, 5
        %v6273 = vsel %vm2625, %v6271, %v6272
        %v6274 = vrot.slane %v6272, 4
        %v6275 = vrot.slane %v4984, 5
        %v6276 = vsel %vm2625, %v6274, %v6275
        %v6277 = vrot.slane %v6183, 5
        %v6278 = vrot.slane %v6277, 4
        %v6279 = vrot.slane %v4986, 5
        %v6280 = vsel %vm2625, %v6278, %v6279
        %v6281 = vrot.slane %v6279, 4
        %v6282 = vrot.slane %v4987, 5
        %v6283 = vsel %vm2625, %v6281, %v6282
        %v6284 = vrot.slane %v6184, 5
        %v6285 = vrot.slane %v6284, 4
        %v6286 = vrot.slane %v4989, 5
        %v6287 = vsel %vm2625, %v6285, %v6286
        %v6288 = vrot.slane %v6286, 4
        %v6289 = vrot.slane %v4990, 5
        %v6290 = vsel %vm2625, %v6288, %v6289
        %v6291 = vrot.slane %v6185, 5
        %v6292 = vrot.slane %v6291, 4
        %v6293 = vrot.slane %v4992, 5
        %v6294 = vsel %vm2625, %v6292, %v6293
        %v6295 = vrot.slane %v6293, 4
        %v6296 = vrot.slane %v4993, 5
        %v6297 = vsel %vm2625, %v6295, %v6296
        %v6298 = vrot.slane %v6186, 5
        %v6299 = vrot.slane %v6298, 4
        %v6300 = vrot.slane %v4995, 5
        %v6301 = vsel %vm2625, %v6299, %v6300
        %v6302 = vrot.slane %v6300, 4
        %v6303 = vrot.slane %v4996, 5
        %v6304 = vsel %vm2625, %v6302, %v6303
        %v6305 = vrot.slane %v6187, 5
        %v6306 = vrot.slane %v6305, 4
        %v6307 = vrot.slane %v4998, 5
        %v6308 = vsel %vm2625, %v6306, %v6307
        %v6309 = vrot.slane %v6307, 4
        %v6310 = vrot.slane %v4999, 5
        %v6311 = vsel %vm2625, %v6309, %v6310
        %v6312 = vrot.slane %v6188, 5
        %v6313 = vrot.slane %v6312, 4
        %v6314 = vrot.slane %v5001, 5
        %v6315 = vsel %vm2625, %v6313, %v6314
        %v6316 = vrot.slane %v6314, 4
        %v6317 = vrot.slane %v5002, 5
        %v6318 = vsel %vm2625, %v6316, %v6317
        %v6319 = vrot.slane %v6189, 5
        %v6320 = vrot.slane %v6319, 4
        %v6321 = vrot.slane %v5004, 5
        %v6322 = vsel %vm2625, %v6320, %v6321
        %v6323 = vrot.slane %v6321, 4
        %v6324 = vrot.slane %v5005, 5
        %v6325 = vsel %vm2625, %v6323, %v6324
        %v6326 = vrot.slane %v6190, 5
        %v6327 = vrot.slane %v6326, 4
        %v6328 = vrot.slane %v5007, 5
        %v6329 = vsel %vm2625, %v6327, %v6328
        %v6330 = vrot.slane %v6328, 4
        %v6331 = vrot.slane %v5008, 5
        %v6332 = vsel %vm2625, %v6330, %v6331
        %v6333 = vrot.slane %v6191, 5
        %v6334 = vrot.slane %v6333, 4
        %v6335 = vrot.slane %v5010, 5
        %v6336 = vsel %vm2625, %v6334, %v6335
        %v6337 = vrot.slane %v6335, 4
        %v6338 = vrot.slane %v5011, 5
        %v6339 = vsel %vm2625, %v6337, %v6338
        %v6340 = vrot.slane %v6192, 5
        %v6341 = vrot.slane %v6340, 4
        %v6342 = vrot.slane %v5013, 5
        %v6343 = vsel %vm2625, %v6341, %v6342
        %v6344 = vrot.slane %v6342, 4
        %v6345 = vrot.slane %v5014, 5
        %v6346 = vsel %vm2625, %v6344, %v6345
        %v6347 = vrot.slane %v6193, 5
        %v6348 = vrot.slane %v6347, 4
        %v6349 = vrot.slane %v5016, 5
        %v6350 = vsel %vm2625, %v6348, %v6349
        %v6351 = vrot.slane %v6349, 4
        %v6352 = vrot.slane %v5017, 5
        %v6353 = vsel %vm2625, %v6351, %v6352
        %s6354 = scalar_lea.vmem %s3, 80
        %v6355 = vld [vmem:[%s6354] sm:$0xf]
        %v6356 = vld [vmem:[%s6354 + $0x4] sm:$0xf]
        %v6357 = vld [vmem:[%s6354 + $0x8] sm:$0xf]
        %v6358 = vld [vmem:[%s6354 + $0xc] sm:$0xf]
        %v6359 = vunpack.c.l.b16 %v6245
        %v6360 = vunpack.c.l.b16 %v6248
        %v6361 = vunpack.c.l.b16 %v6252
        %v6362 = vunpack.c.l.b16 %v6255
        %v6363 = vunpack.c.l.b16 %v6259
        %v6364 = vunpack.c.l.b16 %v6262
        %v6365 = vunpack.c.l.b16 %v6266
        %v6366 = vunpack.c.l.b16 %v6269
        %v6367 = vunpack.c.l.b16 %v6273
        %v6368 = vunpack.c.l.b16 %v6276
        %v6369 = vunpack.c.l.b16 %v6280
        %v6370 = vunpack.c.l.b16 %v6283
        %v6371 = vunpack.c.l.b16 %v6287
        %v6372 = vunpack.c.l.b16 %v6290
        %v6373 = vunpack.c.l.b16 %v6294
        %v6374 = vunpack.c.l.b16 %v6297
        %v6375 = vunpack.c.l.b16 %v6301
        %v6376 = vunpack.c.l.b16 %v6304
        %v6377 = vunpack.c.l.b16 %v6308
        %v6378 = vunpack.c.l.b16 %v6311
        %v6379 = vunpack.c.l.b16 %v6315
        %v6380 = vunpack.c.l.b16 %v6318
        %v6381 = vunpack.c.l.b16 %v6322
        %v6382 = vunpack.c.l.b16 %v6325
        %v6383 = vunpack.c.l.b16 %v6329
        %v6384 = vunpack.c.l.b16 %v6332
        %v6385 = vunpack.c.l.b16 %v6336
        %v6386 = vunpack.c.l.b16 %v6339
        %v6387 = vunpack.c.l.b16 %v6343
        %v6388 = vunpack.c.l.b16 %v6346
        %v6389 = vunpack.c.l.b16 %v6350
        %v6390 = vunpack.c.l.b16 %v6353
        %v6391 = vpack.c.b16 %v6360, %v6359
        %v6392 = vpack.c.b16 %v6362, %v6361
        %v6393 = vpack.c.b16 %v6364, %v6363
        %v6394 = vpack.c.b16 %v6366, %v6365
        %v6395 = vpack.c.b16 %v6368, %v6367
        %v6396 = vpack.c.b16 %v6370, %v6369
        %v6397 = vpack.c.b16 %v6372, %v6371
        %v6398 = vpack.c.b16 %v6374, %v6373
        %v6399 = vpack.c.b16 %v6376, %v6375
        %v6400 = vpack.c.b16 %v6378, %v6377
        %v6401 = vpack.c.b16 %v6380, %v6379
        %v6402 = vpack.c.b16 %v6382, %v6381
        %v6403 = vpack.c.b16 %v6384, %v6383
        %v6404 = vpack.c.b16 %v6386, %v6385
        %v6405 = vpack.c.b16 %v6388, %v6387
        %v6406 = vpack.c.b16 %v6390, %v6389
        %v6411 = vunpack.c.l.b16 %v6355
        %v6412 = vunpack.c.l.b16 %v6356
        %v6413 = vunpack.c.l.b16 %v6357
        %v6414 = vunpack.c.l.b16 %v6358
        %v6415 = vpack.c.b16 %v6412, %v6411
        %v6416 = vpack.c.b16 %v6414, %v6413
        %v6420 = vsel %vm850, %v6391, 0
        %v6423 = vsel %vm850, %v6392, 0
        %v6426 = vsel %vm850, %v6393, 0
        %v6429 = vsel %vm850, %v6394, 0
        %v6432 = vsel %vm850, %v6395, 0
        %v6435 = vsel %vm850, %v6396, 0
        %v6438 = vsel %vm850, %v6397, 0
        %v6441 = vsel %vm850, %v6398, 0
        %v6444 = vsel %vm850, %v6399, 0
        %v6447 = vsel %vm850, %v6400, 0
        %v6450 = vsel %vm850, %v6401, 0
        %v6453 = vsel %vm850, %v6402, 0
        %v6456 = vsel %vm850, %v6403, 0
        %v6459 = vsel %vm850, %v6404, 0
        %v6462 = vsel %vm850, %v6405, 0
        %v6465 = vsel %vm850, %v6406, 0
        %6467 = vmatprep.subr.bf16.mxu0 0
        %6468 = vmatpush1.bf16.msra.mxu0 %v6415
        %6469 = vmatprep.subr.bf16.mxu0 0
        %6470 = vmatpush1.bf16.msra.mxu0 %v6416
        %6471 = vmatprep.subr.bf16.mxu0 0
        %6472 = vmatpush1.bf16.msra.mxu0 0
        %6473 = vmatprep.subr.bf16.mxu0 0
        %6474 = vmatpush1.bf16.msra.mxu0 0
        %6475 = vmatprep.subr.bf16.mxu0 0
        %6476 = vmatpush1.bf16.msra.mxu0 0
        %6477 = vmatprep.subr.bf16.mxu0 0
        %6478 = vmatpush1.bf16.msra.mxu0 0
        %6479 = vmatprep.subr.bf16.mxu0 0
        %6480 = vmatpush1.bf16.msra.mxu0 0
        %6481 = vmatprep.subr.bf16.mxu0 0
        %6482 = vmatpush1.bf16.msra.mxu0 0
        %6483 = vmatprep.subr.bf16.mxu0 0
        %6484 = vmatpush1.bf16.msra.mxu0 0
        %6485 = vmatprep.subr.bf16.mxu0 0
        %6486 = vmatpush1.bf16.msra.mxu0 0
        %6487 = vmatprep.subr.bf16.mxu0 0
        %6488 = vmatpush1.bf16.msra.mxu0 0
        %6489 = vmatprep.subr.bf16.mxu0 0
        %6490 = vmatpush1.bf16.msra.mxu0 0
        %6491 = vmatprep.subr.bf16.mxu0 0
        %6492 = vmatpush1.bf16.msra.mxu0 0
        %6493 = vmatprep.subr.bf16.mxu0 0
        %6494 = vmatpush1.bf16.msra.mxu0 0
        %6495 = vmatprep.subr.bf16.mxu0 0
        %6496 = vmatpush1.bf16.msra.mxu0 0
        %6497 = vmatprep.subr.bf16.mxu0 0
        %6498 = vmatpush1.bf16.msra.mxu0 0
        %6499 = vmatprep.mubr.bf16.mxu0 0
        %6500 = vmatmul.mubr.bf16.gmra.mrb[0].mxu0 %v6420
        %v6501 = vpop.f32.mrb[0].mxu0
        %v6502 = vadd.f32 0.0, %v6501
        %v6503 = vpop.f32.mrb[0].mxu0
        %v6504 = vpop.f32.mrb[0].mxu0
        %v6505 = vadd.f32 0.0, %v6504
        %v6506 = vpop.f32.mrb[0].mxu0
        %6507 = vmatprep.mubr.bf16.mxu0 0
        %6508 = vmatmul.mubr.bf16.gmra.mrb[0].mxu0 %v6423
        %v6509 = vpop.f32.mrb[0].mxu0
        %v6510 = vadd.f32 0.0, %v6509
        %v6511 = vpop.f32.mrb[0].mxu0
        %v6512 = vpop.f32.mrb[0].mxu0
        %v6513 = vadd.f32 0.0, %v6512
        %v6514 = vpop.f32.mrb[0].mxu0
        %6515 = vmatprep.mubr.bf16.mxu0 0
        %6516 = vmatmul.mubr.bf16.gmra.mrb[0].mxu0 %v6426
        %v6517 = vpop.f32.mrb[0].mxu0
        %v6518 = vadd.f32 0.0, %v6517
        %v6519 = vpop.f32.mrb[0].mxu0
        %v6520 = vpop.f32.mrb[0].mxu0
        %v6521 = vadd.f32 0.0, %v6520
        %v6522 = vpop.f32.mrb[0].mxu0
        %6523 = vmatprep.mubr.bf16.mxu0 0
        %6524 = vmatmul.mubr.bf16.gmra.mrb[0].mxu0 %v6429
        %v6525 = vpop.f32.mrb[0].mxu0
        %v6526 = vadd.f32 0.0, %v6525
        %v6527 = vpop.f32.mrb[0].mxu0
        %v6528 = vpop.f32.mrb[0].mxu0
        %v6529 = vadd.f32 0.0, %v6528
        %v6530 = vpop.f32.mrb[0].mxu0
        %6531 = vmatprep.mubr.bf16.mxu0 0
        %6532 = vmatmul.mubr.bf16.gmra.mrb[0].mxu0 %v6432
        %v6533 = vpop.f32.mrb[0].mxu0
        %v6534 = vadd.f32 0.0, %v6533
        %v6535 = vpop.f32.mrb[0].mxu0
        %v6536 = vpop.f32.mrb[0].mxu0
        %v6537 = vadd.f32 0.0, %v6536
        %v6538 = vpop.f32.mrb[0].mxu0
        %6539 = vmatprep.mubr.bf16.mxu0 0
        %6540 = vmatmul.mubr.bf16.gmra.mrb[0].mxu0 %v6435
        %v6541 = vpop.f32.mrb[0].mxu0
        %v6542 = vadd.f32 0.0, %v6541
        %v6543 = vpop.f32.mrb[0].mxu0
        %v6544 = vpop.f32.mrb[0].mxu0
        %v6545 = vadd.f32 0.0, %v6544
        %v6546 = vpop.f32.mrb[0].mxu0
        %6547 = vmatprep.mubr.bf16.mxu0 0
        %6548 = vmatmul.mubr.bf16.gmra.mrb[0].mxu0 %v6438
        %v6549 = vpop.f32.mrb[0].mxu0
        %v6550 = vadd.f32 0.0, %v6549
        %v6551 = vpop.f32.mrb[0].mxu0
        %v6552 = vpop.f32.mrb[0].mxu0
        %v6553 = vadd.f32 0.0, %v6552
        %v6554 = vpop.f32.mrb[0].mxu0
        %6555 = vmatprep.mubr.bf16.mxu0 0
        %6556 = vmatmul.mubr.bf16.gmra.mrb[0].mxu0 %v6441
        %v6557 = vpop.f32.mrb[0].mxu0
        %v6558 = vadd.f32 0.0, %v6557
        %v6559 = vpop.f32.mrb[0].mxu0
        %v6560 = vpop.f32.mrb[0].mxu0
        %v6561 = vadd.f32 0.0, %v6560
        %v6562 = vpop.f32.mrb[0].mxu0
        %6563 = vmatprep.mubr.bf16.mxu0 0
        %6564 = vmatmul.mubr.bf16.gmra.mrb[0].mxu0 %v6444
        %v6565 = vpop.f32.mrb[0].mxu0
        %v6566 = vadd.f32 0.0, %v6565
        %v6567 = vpop.f32.mrb[0].mxu0
        %v6568 = vpop.f32.mrb[0].mxu0
        %v6569 = vadd.f32 0.0, %v6568
        %v6570 = vpop.f32.mrb[0].mxu0
        %6571 = vmatprep.mubr.bf16.mxu0 0
        %6572 = vmatmul.mubr.bf16.gmra.mrb[0].mxu0 %v6447
        %v6573 = vpop.f32.mrb[0].mxu0
        %v6574 = vadd.f32 0.0, %v6573
        %v6575 = vpop.f32.mrb[0].mxu0
        %v6576 = vpop.f32.mrb[0].mxu0
        %v6577 = vadd.f32 0.0, %v6576
        %v6578 = vpop.f32.mrb[0].mxu0
        %6579 = vmatprep.mubr.bf16.mxu0 0
        %6580 = vmatmul.mubr.bf16.gmra.mrb[0].mxu0 %v6450
        %v6581 = vpop.f32.mrb[0].mxu0
        %v6582 = vadd.f32 0.0, %v6581
        %v6583 = vpop.f32.mrb[0].mxu0
        %v6584 = vpop.f32.mrb[0].mxu0
        %v6585 = vadd.f32 0.0, %v6584
        %v6586 = vpop.f32.mrb[0].mxu0
        %6587 = vmatprep.mubr.bf16.mxu0 0
        %6588 = vmatmul.mubr.bf16.gmra.mrb[0].mxu0 %v6453
        %v6589 = vpop.f32.mrb[0].mxu0
        %v6590 = vadd.f32 0.0, %v6589
        %v6591 = vpop.f32.mrb[0].mxu0
        %v6592 = vpop.f32.mrb[0].mxu0
        %v6593 = vadd.f32 0.0, %v6592
        %v6594 = vpop.f32.mrb[0].mxu0
        %6595 = vmatprep.mubr.bf16.mxu0 0
        %6596 = vmatmul.mubr.bf16.gmra.mrb[0].mxu0 %v6456
        %v6597 = vpop.f32.mrb[0].mxu0
        %v6598 = vadd.f32 0.0, %v6597
        %v6599 = vpop.f32.mrb[0].mxu0
        %v6600 = vpop.f32.mrb[0].mxu0
        %v6601 = vadd.f32 0.0, %v6600
        %v6602 = vpop.f32.mrb[0].mxu0
        %6603 = vmatprep.mubr.bf16.mxu0 0
        %6604 = vmatmul.mubr.bf16.gmra.mrb[0].mxu0 %v6459
        %v6605 = vpop.f32.mrb[0].mxu0
        %v6606 = vadd.f32 0.0, %v6605
        %v6607 = vpop.f32.mrb[0].mxu0
        %v6608 = vpop.f32.mrb[0].mxu0
        %v6609 = vadd.f32 0.0, %v6608
        %v6610 = vpop.f32.mrb[0].mxu0
        %6611 = vmatprep.mubr.bf16.mxu0 0
        %6612 = vmatmul.mubr.bf16.gmra.mrb[0].mxu0 %v6462
        %v6613 = vpop.f32.mrb[0].mxu0
        %v6614 = vadd.f32 0.0, %v6613
        %v6615 = vpop.f32.mrb[0].mxu0
        %v6616 = vpop.f32.mrb[0].mxu0
        %v6617 = vadd.f32 0.0, %v6616
        %v6618 = vpop.f32.mrb[0].mxu0
        %6619 = vmatprep.mubr.bf16.mxu0 0
        %6620 = vmatmul.mubr.bf16.gmra.mrb[0].mxu0 %v6465
        %v6621 = vpop.f32.mrb[0].mxu0
        %v6622 = vadd.f32 0.0, %v6621
        %v6623 = vpop.f32.mrb[0].mxu0
        %v6624 = vpop.f32.mrb[0].mxu0
        %v6625 = vadd.f32 0.0, %v6624
        %v6626 = vpop.f32.mrb[0].mxu0
        %6627 = vdwg.mxu0
        %v6628 = vadd.f32 %v6146, %v6502
        %v6629 = vadd.f32 %v6147, %v6505
        %v6630 = vadd.f32 %v6148, %v6510
        %v6631 = vadd.f32 %v6149, %v6513
        %v6632 = vadd.f32 %v6150, %v6518
        %v6633 = vadd.f32 %v6151, %v6521
        %v6634 = vadd.f32 %v6152, %v6526
        %v6635 = vadd.f32 %v6153, %v6529
        %v6636 = vadd.f32 %v6154, %v6534
        %v6637 = vadd.f32 %v6155, %v6537
        %v6638 = vadd.f32 %v6156, %v6542
        %v6639 = vadd.f32 %v6157, %v6545
        %v6640 = vadd.f32 %v6158, %v6550
        %v6641 = vadd.f32 %v6159, %v6553
        %v6642 = vadd.f32 %v6160, %v6558
        %v6643 = vadd.f32 %v6161, %v6561
        %v6644 = vadd.f32 %v6162, %v6566
        %v6645 = vadd.f32 %v6163, %v6569
        %v6646 = vadd.f32 %v6164, %v6574
        %v6647 = vadd.f32 %v6165, %v6577
        %v6648 = vadd.f32 %v6166, %v6582
        %v6649 = vadd.f32 %v6167, %v6585
        %v6650 = vadd.f32 %v6168, %v6590
        %v6651 = vadd.f32 %v6169, %v6593
        %v6652 = vadd.f32 %v6170, %v6598
        %v6653 = vadd.f32 %v6171, %v6601
        %v6654 = vadd.f32 %v6172, %v6606
        %v6655 = vadd.f32 %v6173, %v6609
        %v6656 = vadd.f32 %v6174, %v6614
        %v6657 = vadd.f32 %v6175, %v6617
        %v6658 = vadd.f32 %v6176, %v6622
        %v6659 = vadd.f32 %v6177, %v6625
        %s6660 = scalar_lea.vmem %s344, 24
        %v6661 = vld [vmem:[%s6660] sm:$0xf]
        %v6662 = vld [vmem:[%s6660 + $0x4] sm:$0xf]
        %v6663 = vld [vmem:[%s6660 + $0xc] sm:$0xf]
        %v6664 = vld [vmem:[%s6660 + $0x10] sm:$0xf]
        %v6665 = vld [vmem:[%s6660 + $0x18] sm:$0xf]
        %v6666 = vld [vmem:[%s6660 + $0x1c] sm:$0xf]
        %v6667 = vld [vmem:[%s6660 + $0x24] sm:$0xf]
        %v6668 = vld [vmem:[%s6660 + $0x28] sm:$0xf]
        %v6669 = vld [vmem:[%s6660 + $0x30] sm:$0xf]
        %v6670 = vld [vmem:[%s6660 + $0x34] sm:$0xf]
        %v6671 = vld [vmem:[%s6660 + $0x3c] sm:$0xf]
        %v6672 = vld [vmem:[%s6660 + $0x40] sm:$0xf]
        %v6673 = vld [vmem:[%s6660 + $0x48] sm:$0xf]
        %v6674 = vld [vmem:[%s6660 + $0x4c] sm:$0xf]
        %v6675 = vld [vmem:[%s6660 + $0x54] sm:$0xf]
        %v6676 = vld [vmem:[%s6660 + $0x58] sm:$0xf]
        %v6677 = vld [vmem:[%s6660 + $0x60] sm:$0xf]
        %v6678 = vld [vmem:[%s6660 + $0x64] sm:$0xf]
        %v6679 = vld [vmem:[%s6660 + $0x6c] sm:$0xf]
        %v6680 = vld [vmem:[%s6660 + $0x70] sm:$0xf]
        %v6681 = vld [vmem:[%s6660 + $0x78] sm:$0xf]
        %v6682 = vld [vmem:[%s6660 + $0x7c] sm:$0xf]
        %v6683 = vld [vmem:[%s6660 + $0x84] sm:$0xf]
        %v6684 = vld [vmem:[%s6660 + $0x88] sm:$0xf]
        %v6685 = vld [vmem:[%s6660 + $0x90] sm:$0xf]
        %v6686 = vld [vmem:[%s6660 + $0x94] sm:$0xf]
        %v6687 = vld [vmem:[%s6660 + $0x9c] sm:$0xf]
        %v6688 = vld [vmem:[%s6660 + $0xa0] sm:$0xf]
        %v6689 = vld [vmem:[%s6660 + $0xa8] sm:$0xf]
        %v6690 = vld [vmem:[%s6660 + $0xac] sm:$0xf]
        %v6691 = vld [vmem:[%s6660 + $0xb4] sm:$0xf]
        %v6692 = vld [vmem:[%s6660 + $0xb8] sm:$0xf]
        %s6693 = scalar_lea.vmem %s2, 12
        %v6694 = vld [vmem:[%s6693] sm:$0x3]
        %v6727 = vunpack.c.l.b16 %v6661
        %v6728 = vunpack.c.l.b16 %v6662
        %v6729 = vunpack.c.l.b16 %v6663
        %v6730 = vunpack.c.l.b16 %v6664
        %v6731 = vunpack.c.l.b16 %v6665
        %v6732 = vunpack.c.l.b16 %v6666
        %v6733 = vunpack.c.l.b16 %v6667
        %v6734 = vunpack.c.l.b16 %v6668
        %v6735 = vunpack.c.l.b16 %v6669
        %v6736 = vunpack.c.l.b16 %v6670
        %v6737 = vunpack.c.l.b16 %v6671
        %v6738 = vunpack.c.l.b16 %v6672
        %v6739 = vunpack.c.l.b16 %v6673
        %v6740 = vunpack.c.l.b16 %v6674
        %v6741 = vunpack.c.l.b16 %v6675
        %v6742 = vunpack.c.l.b16 %v6676
        %v6743 = vunpack.c.l.b16 %v6677
        %v6744 = vunpack.c.l.b16 %v6678
        %v6745 = vunpack.c.l.b16 %v6679
        %v6746 = vunpack.c.l.b16 %v6680
        %v6747 = vunpack.c.l.b16 %v6681
        %v6748 = vunpack.c.l.b16 %v6682
        %v6749 = vunpack.c.l.b16 %v6683
        %v6750 = vunpack.c.l.b16 %v6684
        %v6751 = vunpack.c.l.b16 %v6685
        %v6752 = vunpack.c.l.b16 %v6686
        %v6753 = vunpack.c.l.b16 %v6687
        %v6754 = vunpack.c.l.b16 %v6688
        %v6755 = vunpack.c.l.b16 %v6689
        %v6756 = vunpack.c.l.b16 %v6690
        %v6757 = vunpack.c.l.b16 %v6691
        %v6758 = vunpack.c.l.b16 %v6692
        %v6759 = vpack.c.b16 %v6728, %v6727
        %v6760 = vpack.c.b16 %v6730, %v6729
        %v6761 = vpack.c.b16 %v6732, %v6731
        %v6762 = vpack.c.b16 %v6734, %v6733
        %v6763 = vpack.c.b16 %v6736, %v6735
        %v6764 = vpack.c.b16 %v6738, %v6737
        %v6765 = vpack.c.b16 %v6740, %v6739
        %v6766 = vpack.c.b16 %v6742, %v6741
        %v6767 = vpack.c.b16 %v6744, %v6743
        %v6768 = vpack.c.b16 %v6746, %v6745
        %v6769 = vpack.c.b16 %v6748, %v6747
        %v6770 = vpack.c.b16 %v6750, %v6749
        %v6771 = vpack.c.b16 %v6752, %v6751
        %v6772 = vpack.c.b16 %v6754, %v6753
        %v6773 = vpack.c.b16 %v6756, %v6755
        %v6774 = vpack.c.b16 %v6758, %v6757
        %v6776 = vsel %vm476, %v6759, 0
        %v6779 = vsel %vm476, %v6760, 0
        %v6782 = vsel %vm476, %v6761, 0
        %v6785 = vsel %vm476, %v6762, 0
        %v6788 = vsel %vm476, %v6763, 0
        %v6791 = vsel %vm476, %v6764, 0
        %v6794 = vsel %vm476, %v6765, 0
        %v6797 = vsel %vm476, %v6766, 0
        %v6800 = vsel %vm476, %v6767, 0
        %v6803 = vsel %vm476, %v6768, 0
        %v6806 = vsel %vm476, %v6769, 0
        %v6809 = vsel %vm476, %v6770, 0
        %v6812 = vsel %vm476, %v6771, 0
        %v6815 = vsel %vm476, %v6772, 0
        %v6818 = vsel %vm476, %v6773, 0
        %v6821 = vsel %vm476, %v6774, 0
        %v6824 = vsel %vm525, %v6694, 0
        %6826 = vmatprep.subr.bf16.mxu0 0
        %6827 = vmatpush1.bf16.msra.mxu0 %v6824
        %6828 = vmatprep.subr.bf16.mxu0 0
        %6829 = vmatpush1.bf16.msra.mxu0 0
        %6830 = vmatprep.subr.bf16.mxu0 0
        %6831 = vmatpush1.bf16.msra.mxu0 0
        %6832 = vmatprep.subr.bf16.mxu0 0
        %6833 = vmatpush1.bf16.msra.mxu0 0
        %6834 = vmatprep.subr.bf16.mxu0 0
        %6835 = vmatpush1.bf16.msra.mxu0 0
        %6836 = vmatprep.subr.bf16.mxu0 0
        %6837 = vmatpush1.bf16.msra.mxu0 0
        %6838 = vmatprep.subr.bf16.mxu0 0
        %6839 = vmatpush1.bf16.msra.mxu0 0
        %6840 = vmatprep.subr.bf16.mxu0 0
        %6841 = vmatpush1.bf16.msra.mxu0 0
        %6842 = vmatprep.subr.bf16.mxu0 0
        %6843 = vmatpush1.bf16.msra.mxu0 0
        %6844 = vmatprep.subr.bf16.mxu0 0
        %6845 = vmatpush1.bf16.msra.mxu0 0
        %6846 = vmatprep.subr.bf16.mxu0 0
        %6847 = vmatpush1.bf16.msra.mxu0 0
        %6848 = vmatprep.subr.bf16.mxu0 0
        %6849 = vmatpush1.bf16.msra.mxu0 0
        %6850 = vmatprep.subr.bf16.mxu0 0
        %6851 = vmatpush1.bf16.msra.mxu0 0
        %6852 = vmatprep.subr.bf16.mxu0 0
        %6853 = vmatpush1.bf16.msra.mxu0 0
        %6854 = vmatprep.subr.bf16.mxu0 0
        %6855 = vmatpush1.bf16.msra.mxu0 0
        %6856 = vmatprep.subr.bf16.mxu0 0
        %6857 = vmatpush1.bf16.msra.mxu0 0
        %6858 = vmatprep.mubr.bf16.mxu0 0
        %6859 = vmatmul.mubr.bf16.gmra.mrb[0].mxu0 %v6776
        %v6860 = vpop.f32.mrb[0].mxu0
        %v6861 = vadd.f32 0.0, %v6860
        %v6862 = vpop.f32.mrb[0].mxu0
        %v6863 = vpop.f32.mrb[0].mxu0
        %v6864 = vadd.f32 0.0, %v6863
        %v6865 = vpop.f32.mrb[0].mxu0
        %6866 = vmatprep.mubr.bf16.mxu0 0
        %6867 = vmatmul.mubr.bf16.gmra.mrb[0].mxu0 %v6779
        %v6868 = vpop.f32.mrb[0].mxu0
        %v6869 = vadd.f32 0.0, %v6868
        %v6870 = vpop.f32.mrb[0].mxu0
        %v6871 = vpop.f32.mrb[0].mxu0
        %v6872 = vadd.f32 0.0, %v6871
        %v6873 = vpop.f32.mrb[0].mxu0
        %6874 = vmatprep.mubr.bf16.mxu0 0
        %6875 = vmatmul.mubr.bf16.gmra.mrb[0].mxu0 %v6782
        %v6876 = vpop.f32.mrb[0].mxu0
        %v6877 = vadd.f32 0.0, %v6876
        %v6878 = vpop.f32.mrb[0].mxu0
        %v6879 = vpop.f32.mrb[0].mxu0
        %v6880 = vadd.f32 0.0, %v6879
        %v6881 = vpop.f32.mrb[0].mxu0
        %6882 = vmatprep.mubr.bf16.mxu0 0
        %6883 = vmatmul.mubr.bf16.gmra.mrb[0].mxu0 %v6785
        %v6884 = vpop.f32.mrb[0].mxu0
        %v6885 = vadd.f32 0.0, %v6884
        %v6886 = vpop.f32.mrb[0].mxu0
        %v6887 = vpop.f32.mrb[0].mxu0
        %v6888 = vadd.f32 0.0, %v6887
        %v6889 = vpop.f32.mrb[0].mxu0
        %6890 = vmatprep.mubr.bf16.mxu0 0
        %6891 = vmatmul.mubr.bf16.gmra.mrb[0].mxu0 %v6788
        %v6892 = vpop.f32.mrb[0].mxu0
        %v6893 = vadd.f32 0.0, %v6892
        %v6894 = vpop.f32.mrb[0].mxu0
        %v6895 = vpop.f32.mrb[0].mxu0
        %v6896 = vadd.f32 0.0, %v6895
        %v6897 = vpop.f32.mrb[0].mxu0
        %6898 = vmatprep.mubr.bf16.mxu0 0
        %6899 = vmatmul.mubr.bf16.gmra.mrb[0].mxu0 %v6791
        %v6900 = vpop.f32.mrb[0].mxu0
        %v6901 = vadd.f32 0.0, %v6900
        %v6902 = vpop.f32.mrb[0].mxu0
        %v6903 = vpop.f32.mrb[0].mxu0
        %v6904 = vadd.f32 0.0, %v6903
        %v6905 = vpop.f32.mrb[0].mxu0
        %6906 = vmatprep.mubr.bf16.mxu0 0
        %6907 = vmatmul.mubr.bf16.gmra.mrb[0].mxu0 %v6794
        %v6908 = vpop.f32.mrb[0].mxu0
        %v6909 = vadd.f32 0.0, %v6908
        %v6910 = vpop.f32.mrb[0].mxu0
        %v6911 = vpop.f32.mrb[0].mxu0
        %v6912 = vadd.f32 0.0, %v6911
        %v6913 = vpop.f32.mrb[0].mxu0
        %6914 = vmatprep.mubr.bf16.mxu0 0
        %6915 = vmatmul.mubr.bf16.gmra.mrb[0].mxu0 %v6797
        %v6916 = vpop.f32.mrb[0].mxu0
        %v6917 = vadd.f32 0.0, %v6916
        %v6918 = vpop.f32.mrb[0].mxu0
        %v6919 = vpop.f32.mrb[0].mxu0
        %v6920 = vadd.f32 0.0, %v6919
        %v6921 = vpop.f32.mrb[0].mxu0
        %6922 = vmatprep.mubr.bf16.mxu0 0
        %6923 = vmatmul.mubr.bf16.gmra.mrb[0].mxu0 %v6800
        %v6924 = vpop.f32.mrb[0].mxu0
        %v6925 = vadd.f32 0.0, %v6924
        %v6926 = vpop.f32.mrb[0].mxu0
        %v6927 = vpop.f32.mrb[0].mxu0
        %v6928 = vadd.f32 0.0, %v6927
        %v6929 = vpop.f32.mrb[0].mxu0
        %6930 = vmatprep.mubr.bf16.mxu0 0
        %6931 = vmatmul.mubr.bf16.gmra.mrb[0].mxu0 %v6803
        %v6932 = vpop.f32.mrb[0].mxu0
        %v6933 = vadd.f32 0.0, %v6932
        %v6934 = vpop.f32.mrb[0].mxu0
        %v6935 = vpop.f32.mrb[0].mxu0
        %v6936 = vadd.f32 0.0, %v6935
        %v6937 = vpop.f32.mrb[0].mxu0
        %6938 = vmatprep.mubr.bf16.mxu0 0
        %6939 = vmatmul.mubr.bf16.gmra.mrb[0].mxu0 %v6806
        %v6940 = vpop.f32.mrb[0].mxu0
        %v6941 = vadd.f32 0.0, %v6940
        %v6942 = vpop.f32.mrb[0].mxu0
        %v6943 = vpop.f32.mrb[0].mxu0
        %v6944 = vadd.f32 0.0, %v6943
        %v6945 = vpop.f32.mrb[0].mxu0
        %6946 = vmatprep.mubr.bf16.mxu0 0
        %6947 = vmatmul.mubr.bf16.gmra.mrb[0].mxu0 %v6809
        %v6948 = vpop.f32.mrb[0].mxu0
        %v6949 = vadd.f32 0.0, %v6948
        %v6950 = vpop.f32.mrb[0].mxu0
        %v6951 = vpop.f32.mrb[0].mxu0
        %v6952 = vadd.f32 0.0, %v6951
        %v6953 = vpop.f32.mrb[0].mxu0
        %6954 = vmatprep.mubr.bf16.mxu0 0
        %6955 = vmatmul.mubr.bf16.gmra.mrb[0].mxu0 %v6812
        %v6956 = vpop.f32.mrb[0].mxu0
        %v6957 = vadd.f32 0.0, %v6956
        %v6958 = vpop.f32.mrb[0].mxu0
        %v6959 = vpop.f32.mrb[0].mxu0
        %v6960 = vadd.f32 0.0, %v6959
        %v6961 = vpop.f32.mrb[0].mxu0
        %6962 = vmatprep.mubr.bf16.mxu0 0
        %6963 = vmatmul.mubr.bf16.gmra.mrb[0].mxu0 %v6815
        %v6964 = vpop.f32.mrb[0].mxu0
        %v6965 = vadd.f32 0.0, %v6964
        %v6966 = vpop.f32.mrb[0].mxu0
        %v6967 = vpop.f32.mrb[0].mxu0
        %v6968 = vadd.f32 0.0, %v6967
        %v6969 = vpop.f32.mrb[0].mxu0
        %6970 = vmatprep.mubr.bf16.mxu0 0
        %6971 = vmatmul.mubr.bf16.gmra.mrb[0].mxu0 %v6818
        %v6972 = vpop.f32.mrb[0].mxu0
        %v6973 = vadd.f32 0.0, %v6972
        %v6974 = vpop.f32.mrb[0].mxu0
        %v6975 = vpop.f32.mrb[0].mxu0
        %v6976 = vadd.f32 0.0, %v6975
        %v6977 = vpop.f32.mrb[0].mxu0
        %6978 = vmatprep.mubr.bf16.mxu0 0
        %6979 = vmatmul.mubr.bf16.gmra.mrb[0].mxu0 %v6821
        %v6980 = vpop.f32.mrb[0].mxu0
        %v6981 = vadd.f32 0.0, %v6980
        %v6982 = vpop.f32.mrb[0].mxu0
        %v6983 = vpop.f32.mrb[0].mxu0
        %v6984 = vadd.f32 0.0, %v6983
        %v6985 = vpop.f32.mrb[0].mxu0
        %6986 = vdwg.mxu0
        %v6987 = vadd.f32 %v6628, %v6861
        %v6988 = vadd.f32 %v6629, %v6864
        %v6989 = vadd.f32 %v6630, %v6869
        %v6990 = vadd.f32 %v6631, %v6872
        %v6991 = vadd.f32 %v6632, %v6877
        %v6992 = vadd.f32 %v6633, %v6880
        %v6993 = vadd.f32 %v6634, %v6885
        %v6994 = vadd.f32 %v6635, %v6888
        %v6995 = vadd.f32 %v6636, %v6893
        %v6996 = vadd.f32 %v6637, %v6896
        %v6997 = vadd.f32 %v6638, %v6901
        %v6998 = vadd.f32 %v6639, %v6904
        %v6999 = vadd.f32 %v6640, %v6909
        %v7000 = vadd.f32 %v6641, %v6912
        %v7001 = vadd.f32 %v6642, %v6917
        %v7002 = vadd.f32 %v6643, %v6920
        %v7003 = vadd.f32 %v6644, %v6925
        %v7004 = vadd.f32 %v6645, %v6928
        %v7005 = vadd.f32 %v6646, %v6933
        %v7006 = vadd.f32 %v6647, %v6936
        %v7007 = vadd.f32 %v6648, %v6941
        %v7008 = vadd.f32 %v6649, %v6944
        %v7009 = vadd.f32 %v6650, %v6949
        %v7010 = vadd.f32 %v6651, %v6952
        %v7011 = vadd.f32 %v6652, %v6957
        %v7012 = vadd.f32 %v6653, %v6960
        %v7013 = vadd.f32 %v6654, %v6965
        %v7014 = vadd.f32 %v6655, %v6968
        %v7015 = vadd.f32 %v6656, %v6973
        %v7016 = vadd.f32 %v6657, %v6976
        %v7017 = vadd.f32 %v6658, %v6981
        %v7018 = vadd.f32 %v6659, %v6984
        %s7019 = scalar_lea.vmem %s349, 24
        %v7020 = vld [vmem:[%s7019] sm:$0xf]
        %v7021 = vld [vmem:[%s7019 + $0x4] sm:$0xf]
        %v7022 = vld [vmem:[%s7019 + $0xc] sm:$0xf]
        %v7023 = vld [vmem:[%s7019 + $0x10] sm:$0xf]
        %v7024 = vld [vmem:[%s7019 + $0x18] sm:$0xf]
        %v7025 = vld [vmem:[%s7019 + $0x1c] sm:$0xf]
        %v7026 = vld [vmem:[%s7019 + $0x24] sm:$0xf]
        %v7027 = vld [vmem:[%s7019 + $0x28] sm:$0xf]
        %v7028 = vld [vmem:[%s7019 + $0x30] sm:$0xf]
        %v7029 = vld [vmem:[%s7019 + $0x34] sm:$0xf]
        %v7030 = vld [vmem:[%s7019 + $0x3c] sm:$0xf]
        %v7031 = vld [vmem:[%s7019 + $0x40] sm:$0xf]
        %v7032 = vld [vmem:[%s7019 + $0x48] sm:$0xf]
        %v7033 = vld [vmem:[%s7019 + $0x4c] sm:$0xf]
        %v7034 = vld [vmem:[%s7019 + $0x54] sm:$0xf]
        %v7035 = vld [vmem:[%s7019 + $0x58] sm:$0xf]
        %v7036 = vld [vmem:[%s7019 + $0x60] sm:$0xf]
        %v7037 = vld [vmem:[%s7019 + $0x64] sm:$0xf]
        %v7038 = vld [vmem:[%s7019 + $0x6c] sm:$0xf]
        %v7039 = vld [vmem:[%s7019 + $0x70] sm:$0xf]
        %v7040 = vld [vmem:[%s7019 + $0x78] sm:$0xf]
        %v7041 = vld [vmem:[%s7019 + $0x7c] sm:$0xf]
        %v7042 = vld [vmem:[%s7019 + $0x84] sm:$0xf]
        %v7043 = vld [vmem:[%s7019 + $0x88] sm:$0xf]
        %v7044 = vld [vmem:[%s7019 + $0x90] sm:$0xf]
        %v7045 = vld [vmem:[%s7019 + $0x94] sm:$0xf]
        %v7046 = vld [vmem:[%s7019 + $0x9c] sm:$0xf]
        %v7047 = vld [vmem:[%s7019 + $0xa0] sm:$0xf]
        %v7048 = vld [vmem:[%s7019 + $0xa8] sm:$0xf]
        %v7049 = vld [vmem:[%s7019 + $0xac] sm:$0xf]
        %v7050 = vld [vmem:[%s7019 + $0xb4] sm:$0xf]
        %v7051 = vld [vmem:[%s7019 + $0xb8] sm:$0xf]
        %s7052 = scalar_lea.vmem %s3, 96
        %v7053 = vld [vmem:[%s7052] sm:$0xf]
        %v7054 = vld [vmem:[%s7052 + $0x4] sm:$0xf]
        %v7055 = vld [vmem:[%s7052 + $0x8] sm:$0xf]
        %v7056 = vld [vmem:[%s7052 + $0xc] sm:$0xf]
        %v7089 = vunpack.c.l.b16 %v7020
        %v7090 = vunpack.c.l.b16 %v7021
        %v7091 = vunpack.c.l.b16 %v7022
        %v7092 = vunpack.c.l.b16 %v7023
        %v7093 = vunpack.c.l.b16 %v7024
        %v7094 = vunpack.c.l.b16 %v7025
        %v7095 = vunpack.c.l.b16 %v7026
        %v7096 = vunpack.c.l.b16 %v7027
        %v7097 = vunpack.c.l.b16 %v7028
        %v7098 = vunpack.c.l.b16 %v7029
        %v7099 = vunpack.c.l.b16 %v7030
        %v7100 = vunpack.c.l.b16 %v7031
        %v7101 = vunpack.c.l.b16 %v7032
        %v7102 = vunpack.c.l.b16 %v7033
        %v7103 = vunpack.c.l.b16 %v7034
        %v7104 = vunpack.c.l.b16 %v7035
        %v7105 = vunpack.c.l.b16 %v7036
        %v7106 = vunpack.c.l.b16 %v7037
        %v7107 = vunpack.c.l.b16 %v7038
        %v7108 = vunpack.c.l.b16 %v7039
        %v7109 = vunpack.c.l.b16 %v7040
        %v7110 = vunpack.c.l.b16 %v7041
        %v7111 = vunpack.c.l.b16 %v7042
        %v7112 = vunpack.c.l.b16 %v7043
        %v7113 = vunpack.c.l.b16 %v7044
        %v7114 = vunpack.c.l.b16 %v7045
        %v7115 = vunpack.c.l.b16 %v7046
        %v7116 = vunpack.c.l.b16 %v7047
        %v7117 = vunpack.c.l.b16 %v7048
        %v7118 = vunpack.c.l.b16 %v7049
        %v7119 = vunpack.c.l.b16 %v7050
        %v7120 = vunpack.c.l.b16 %v7051
        %v7121 = vpack.c.b16 %v7090, %v7089
        %v7122 = vpack.c.b16 %v7092, %v7091
        %v7123 = vpack.c.b16 %v7094, %v7093
        %v7124 = vpack.c.b16 %v7096, %v7095
        %v7125 = vpack.c.b16 %v7098, %v7097
        %v7126 = vpack.c.b16 %v7100, %v7099
        %v7127 = vpack.c.b16 %v7102, %v7101
        %v7128 = vpack.c.b16 %v7104, %v7103
        %v7129 = vpack.c.b16 %v7106, %v7105
        %v7130 = vpack.c.b16 %v7108, %v7107
        %v7131 = vpack.c.b16 %v7110, %v7109
        %v7132 = vpack.c.b16 %v7112, %v7111
        %v7133 = vpack.c.b16 %v7114, %v7113
        %v7134 = vpack.c.b16 %v7116, %v7115
        %v7135 = vpack.c.b16 %v7118, %v7117
        %v7136 = vpack.c.b16 %v7120, %v7119
        %v7141 = vunpack.c.l.b16 %v7053
        %v7142 = vunpack.c.l.b16 %v7054
        %v7143 = vunpack.c.l.b16 %v7055
        %v7144 = vunpack.c.l.b16 %v7056
        %v7145 = vpack.c.b16 %v7142, %v7141
        %v7146 = vpack.c.b16 %v7144, %v7143
        %v7150 = vsel %vm850, %v7121, 0
        %v7153 = vsel %vm850, %v7122, 0
        %v7156 = vsel %vm850, %v7123, 0
        %v7159 = vsel %vm850, %v7124, 0
        %v7162 = vsel %vm850, %v7125, 0
        %v7165 = vsel %vm850, %v7126, 0
        %v7168 = vsel %vm850, %v7127, 0
        %v7171 = vsel %vm850, %v7128, 0
        %v7174 = vsel %vm850, %v7129, 0
        %v7177 = vsel %vm850, %v7130, 0
        %v7180 = vsel %vm850, %v7131, 0
        %v7183 = vsel %vm850, %v7132, 0
        %v7186 = vsel %vm850, %v7133, 0
        %v7189 = vsel %vm850, %v7134, 0
        %v7192 = vsel %vm850, %v7135, 0
        %v7195 = vsel %vm850, %v7136, 0
        %7197 = vmatprep.subr.bf16.mxu0 0
        %7198 = vmatpush1.bf16.msra.mxu0 %v7145
        %7199 = vmatprep.subr.bf16.mxu0 0
        %7200 = vmatpush1.bf16.msra.mxu0 %v7146
        %7201 = vmatprep.subr.bf16.mxu0 0
        %7202 = vmatpush1.bf16.msra.mxu0 0
        %7203 = vmatprep.subr.bf16.mxu0 0
        %7204 = vmatpush1.bf16.msra.mxu0 0
        %7205 = vmatprep.subr.bf16.mxu0 0
        %7206 = vmatpush1.bf16.msra.mxu0 0
        %7207 = vmatprep.subr.bf16.mxu0 0
        %7208 = vmatpush1.bf16.msra.mxu0 0
        %7209 = vmatprep.subr.bf16.mxu0 0
        %7210 = vmatpush1.bf16.msra.mxu0 0
        %7211 = vmatprep.subr.bf16.mxu0 0
        %7212 = vmatpush1.bf16.msra.mxu0 0
        %7213 = vmatprep.subr.bf16.mxu0 0
        %7214 = vmatpush1.bf16.msra.mxu0 0
        %7215 = vmatprep.subr.bf16.mxu0 0
        %7216 = vmatpush1.bf16.msra.mxu0 0
        %7217 = vmatprep.subr.bf16.mxu0 0
        %7218 = vmatpush1.bf16.msra.mxu0 0
        %7219 = vmatprep.subr.bf16.mxu0 0
        %7220 = vmatpush1.bf16.msra.mxu0 0
        %7221 = vmatprep.subr.bf16.mxu0 0
        %7222 = vmatpush1.bf16.msra.mxu0 0
        %7223 = vmatprep.subr.bf16.mxu0 0
        %7224 = vmatpush1.bf16.msra.mxu0 0
        %7225 = vmatprep.subr.bf16.mxu0 0
        %7226 = vmatpush1.bf16.msra.mxu0 0
        %7227 = vmatprep.subr.bf16.mxu0 0
        %7228 = vmatpush1.bf16.msra.mxu0 0
        %7229 = vmatprep.mubr.bf16.mxu0 0
        %7230 = vmatmul.mubr.bf16.gmra.mrb[0].mxu0 %v7150
        %v7231 = vpop.f32.mrb[0].mxu0
        %v7232 = vadd.f32 0.0, %v7231
        %v7233 = vpop.f32.mrb[0].mxu0
        %v7234 = vpop.f32.mrb[0].mxu0
        %v7235 = vadd.f32 0.0, %v7234
        %v7236 = vpop.f32.mrb[0].mxu0
        %7237 = vmatprep.mubr.bf16.mxu0 0
        %7238 = vmatmul.mubr.bf16.gmra.mrb[0].mxu0 %v7153
        %v7239 = vpop.f32.mrb[0].mxu0
        %v7240 = vadd.f32 0.0, %v7239
        %v7241 = vpop.f32.mrb[0].mxu0
        %v7242 = vpop.f32.mrb[0].mxu0
        %v7243 = vadd.f32 0.0, %v7242
        %v7244 = vpop.f32.mrb[0].mxu0
        %7245 = vmatprep.mubr.bf16.mxu0 0
        %7246 = vmatmul.mubr.bf16.gmra.mrb[0].mxu0 %v7156
        %v7247 = vpop.f32.mrb[0].mxu0
        %v7248 = vadd.f32 0.0, %v7247
        %v7249 = vpop.f32.mrb[0].mxu0
        %v7250 = vpop.f32.mrb[0].mxu0
        %v7251 = vadd.f32 0.0, %v7250
        %v7252 = vpop.f32.mrb[0].mxu0
        %7253 = vmatprep.mubr.bf16.mxu0 0
        %7254 = vmatmul.mubr.bf16.gmra.mrb[0].mxu0 %v7159
        %v7255 = vpop.f32.mrb[0].mxu0
        %v7256 = vadd.f32 0.0, %v7255
        %v7257 = vpop.f32.mrb[0].mxu0
        %v7258 = vpop.f32.mrb[0].mxu0
        %v7259 = vadd.f32 0.0, %v7258
        %v7260 = vpop.f32.mrb[0].mxu0
        %7261 = vmatprep.mubr.bf16.mxu0 0
        %7262 = vmatmul.mubr.bf16.gmra.mrb[0].mxu0 %v7162
        %v7263 = vpop.f32.mrb[0].mxu0
        %v7264 = vadd.f32 0.0, %v7263
        %v7265 = vpop.f32.mrb[0].mxu0
        %v7266 = vpop.f32.mrb[0].mxu0
        %v7267 = vadd.f32 0.0, %v7266
        %v7268 = vpop.f32.mrb[0].mxu0
        %7269 = vmatprep.mubr.bf16.mxu0 0
        %7270 = vmatmul.mubr.bf16.gmra.mrb[0].mxu0 %v7165
        %v7271 = vpop.f32.mrb[0].mxu0
        %v7272 = vadd.f32 0.0, %v7271
        %v7273 = vpop.f32.mrb[0].mxu0
        %v7274 = vpop.f32.mrb[0].mxu0
        %v7275 = vadd.f32 0.0, %v7274
        %v7276 = vpop.f32.mrb[0].mxu0
        %7277 = vmatprep.mubr.bf16.mxu0 0
        %7278 = vmatmul.mubr.bf16.gmra.mrb[0].mxu0 %v7168
        %v7279 = vpop.f32.mrb[0].mxu0
        %v7280 = vadd.f32 0.0, %v7279
        %v7281 = vpop.f32.mrb[0].mxu0
        %v7282 = vpop.f32.mrb[0].mxu0
        %v7283 = vadd.f32 0.0, %v7282
        %v7284 = vpop.f32.mrb[0].mxu0
        %7285 = vmatprep.mubr.bf16.mxu0 0
        %7286 = vmatmul.mubr.bf16.gmra.mrb[0].mxu0 %v7171
        %v7287 = vpop.f32.mrb[0].mxu0
        %v7288 = vadd.f32 0.0, %v7287
        %v7289 = vpop.f32.mrb[0].mxu0
        %v7290 = vpop.f32.mrb[0].mxu0
        %v7291 = vadd.f32 0.0, %v7290
        %v7292 = vpop.f32.mrb[0].mxu0
        %7293 = vmatprep.mubr.bf16.mxu0 0
        %7294 = vmatmul.mubr.bf16.gmra.mrb[0].mxu0 %v7174
        %v7295 = vpop.f32.mrb[0].mxu0
        %v7296 = vadd.f32 0.0, %v7295
        %v7297 = vpop.f32.mrb[0].mxu0
        %v7298 = vpop.f32.mrb[0].mxu0
        %v7299 = vadd.f32 0.0, %v7298
        %v7300 = vpop.f32.mrb[0].mxu0
        %7301 = vmatprep.mubr.bf16.mxu0 0
        %7302 = vmatmul.mubr.bf16.gmra.mrb[0].mxu0 %v7177
        %v7303 = vpop.f32.mrb[0].mxu0
        %v7304 = vadd.f32 0.0, %v7303
        %v7305 = vpop.f32.mrb[0].mxu0
        %v7306 = vpop.f32.mrb[0].mxu0
        %v7307 = vadd.f32 0.0, %v7306
        %v7308 = vpop.f32.mrb[0].mxu0
        %7309 = vmatprep.mubr.bf16.mxu0 0
        %7310 = vmatmul.mubr.bf16.gmra.mrb[0].mxu0 %v7180
        %v7311 = vpop.f32.mrb[0].mxu0
        %v7312 = vadd.f32 0.0, %v7311
        %v7313 = vpop.f32.mrb[0].mxu0
        %v7314 = vpop.f32.mrb[0].mxu0
        %v7315 = vadd.f32 0.0, %v7314
        %v7316 = vpop.f32.mrb[0].mxu0
        %7317 = vmatprep.mubr.bf16.mxu0 0
        %7318 = vmatmul.mubr.bf16.gmra.mrb[0].mxu0 %v7183
        %v7319 = vpop.f32.mrb[0].mxu0
        %v7320 = vadd.f32 0.0, %v7319
        %v7321 = vpop.f32.mrb[0].mxu0
        %v7322 = vpop.f32.mrb[0].mxu0
        %v7323 = vadd.f32 0.0, %v7322
        %v7324 = vpop.f32.mrb[0].mxu0
        %7325 = vmatprep.mubr.bf16.mxu0 0
        %7326 = vmatmul.mubr.bf16.gmra.mrb[0].mxu0 %v7186
        %v7327 = vpop.f32.mrb[0].mxu0
        %v7328 = vadd.f32 0.0, %v7327
        %v7329 = vpop.f32.mrb[0].mxu0
        %v7330 = vpop.f32.mrb[0].mxu0
        %v7331 = vadd.f32 0.0, %v7330
        %v7332 = vpop.f32.mrb[0].mxu0
        %7333 = vmatprep.mubr.bf16.mxu0 0
        %7334 = vmatmul.mubr.bf16.gmra.mrb[0].mxu0 %v7189
        %v7335 = vpop.f32.mrb[0].mxu0
        %v7336 = vadd.f32 0.0, %v7335
        %v7337 = vpop.f32.mrb[0].mxu0
        %v7338 = vpop.f32.mrb[0].mxu0
        %v7339 = vadd.f32 0.0, %v7338
        %v7340 = vpop.f32.mrb[0].mxu0
        %7341 = vmatprep.mubr.bf16.mxu0 0
        %7342 = vmatmul.mubr.bf16.gmra.mrb[0].mxu0 %v7192
        %v7343 = vpop.f32.mrb[0].mxu0
        %v7344 = vadd.f32 0.0, %v7343
        %v7345 = vpop.f32.mrb[0].mxu0
        %v7346 = vpop.f32.mrb[0].mxu0
        %v7347 = vadd.f32 0.0, %v7346
        %v7348 = vpop.f32.mrb[0].mxu0
        %7349 = vmatprep.mubr.bf16.mxu0 0
        %7350 = vmatmul.mubr.bf16.gmra.mrb[0].mxu0 %v7195
        %v7351 = vpop.f32.mrb[0].mxu0
        %v7352 = vadd.f32 0.0, %v7351
        %v7353 = vpop.f32.mrb[0].mxu0
        %v7354 = vpop.f32.mrb[0].mxu0
        %v7355 = vadd.f32 0.0, %v7354
        %v7356 = vpop.f32.mrb[0].mxu0
        %7357 = vdwg.mxu0
        %v7358 = vadd.f32 %v6987, %v7232
        %v7359 = vadd.f32 %v6988, %v7235
        %v7360 = vadd.f32 %v6989, %v7240
        %v7361 = vadd.f32 %v6990, %v7243
        %v7362 = vadd.f32 %v6991, %v7248
        %v7363 = vadd.f32 %v6992, %v7251
        %v7364 = vadd.f32 %v6993, %v7256
        %v7365 = vadd.f32 %v6994, %v7259
        %v7366 = vadd.f32 %v6995, %v7264
        %v7367 = vadd.f32 %v6996, %v7267
        %v7368 = vadd.f32 %v6997, %v7272
        %v7369 = vadd.f32 %v6998, %v7275
        %v7370 = vadd.f32 %v6999, %v7280
        %v7371 = vadd.f32 %v7000, %v7283
        %v7372 = vadd.f32 %v7001, %v7288
        %v7373 = vadd.f32 %v7002, %v7291
        %v7374 = vadd.f32 %v7003, %v7296
        %v7375 = vadd.f32 %v7004, %v7299
        %v7376 = vadd.f32 %v7005, %v7304
        %v7377 = vadd.f32 %v7006, %v7307
        %v7378 = vadd.f32 %v7007, %v7312
        %v7379 = vadd.f32 %v7008, %v7315
        %v7380 = vadd.f32 %v7009, %v7320
        %v7381 = vadd.f32 %v7010, %v7323
        %v7382 = vadd.f32 %v7011, %v7328
        %v7383 = vadd.f32 %v7012, %v7331
        %v7384 = vadd.f32 %v7013, %v7336
        %v7385 = vadd.f32 %v7014, %v7339
        %v7386 = vadd.f32 %v7015, %v7344
        %v7387 = vadd.f32 %v7016, %v7347
        %v7388 = vadd.f32 %v7017, %v7352
        %v7389 = vadd.f32 %v7018, %v7355
        %v7390 = vld [vmem:[%s6660] sm:$0xf]
        %v7391 = vld [vmem:[%s6660 + $0x4] sm:$0xf]
        %v7392 = vld [vmem:[%s6660 + $0x8] sm:$0x1]
        %v7393 = vld [vmem:[%s6660 + $0xc] sm:$0xf]
        %v7394 = vld [vmem:[%s6660 + $0x10] sm:$0xf]
        %v7395 = vld [vmem:[%s6660 + $0x14] sm:$0x1]
        %v7396 = vld [vmem:[%s6660 + $0x18] sm:$0xf]
        %v7397 = vld [vmem:[%s6660 + $0x1c] sm:$0xf]
        %v7398 = vld [vmem:[%s6660 + $0x20] sm:$0x1]
        %v7399 = vld [vmem:[%s6660 + $0x24] sm:$0xf]
        %v7400 = vld [vmem:[%s6660 + $0x28] sm:$0xf]
        %v7401 = vld [vmem:[%s6660 + $0x2c] sm:$0x1]
        %v7402 = vld [vmem:[%s6660 + $0x30] sm:$0xf]
        %v7403 = vld [vmem:[%s6660 + $0x34] sm:$0xf]
        %v7404 = vld [vmem:[%s6660 + $0x38] sm:$0x1]
        %v7405 = vld [vmem:[%s6660 + $0x3c] sm:$0xf]
        %v7406 = vld [vmem:[%s6660 + $0x40] sm:$0xf]
        %v7407 = vld [vmem:[%s6660 + $0x44] sm:$0x1]
        %v7408 = vld [vmem:[%s6660 + $0x48] sm:$0xf]
        %v7409 = vld [vmem:[%s6660 + $0x4c] sm:$0xf]
        %v7410 = vld [vmem:[%s6660 + $0x50] sm:$0x1]
        %v7411 = vld [vmem:[%s6660 + $0x54] sm:$0xf]
        %v7412 = vld [vmem:[%s6660 + $0x58] sm:$0xf]
        %v7413 = vld [vmem:[%s6660 + $0x5c] sm:$0x1]
        %v7414 = vld [vmem:[%s6660 + $0x60] sm:$0xf]
        %v7415 = vld [vmem:[%s6660 + $0x64] sm:$0xf]
        %v7416 = vld [vmem:[%s6660 + $0x68] sm:$0x1]
        %v7417 = vld [vmem:[%s6660 + $0x6c] sm:$0xf]
        %v7418 = vld [vmem:[%s6660 + $0x70] sm:$0xf]
        %v7419 = vld [vmem:[%s6660 + $0x74] sm:$0x1]
        %v7420 = vld [vmem:[%s6660 + $0x78] sm:$0xf]
        %v7421 = vld [vmem:[%s6660 + $0x7c] sm:$0xf]
        %v7422 = vld [vmem:[%s6660 + $0x80] sm:$0x1]
        %v7423 = vld [vmem:[%s6660 + $0x84] sm:$0xf]
        %v7424 = vld [vmem:[%s6660 + $0x88] sm:$0xf]
        %v7425 = vld [vmem:[%s6660 + $0x8c] sm:$0x1]
        %v7426 = vld [vmem:[%s6660 + $0x90] sm:$0xf]
        %v7427 = vld [vmem:[%s6660 + $0x94] sm:$0xf]
        %v7428 = vld [vmem:[%s6660 + $0x98] sm:$0x1]
        %v7429 = vld [vmem:[%s6660 + $0x9c] sm:$0xf]
        %v7430 = vld [vmem:[%s6660 + $0xa0] sm:$0xf]
        %v7431 = vld [vmem:[%s6660 + $0xa4] sm:$0x1]
        %v7432 = vld [vmem:[%s6660 + $0xa8] sm:$0xf]
        %v7433 = vld [vmem:[%s6660 + $0xac] sm:$0xf]
        %v7434 = vld [vmem:[%s6660 + $0xb0] sm:$0x1]
        %v7435 = vld [vmem:[%s6660 + $0xb4] sm:$0xf]
        %v7436 = vld [vmem:[%s6660 + $0xb8] sm:$0xf]
        %v7437 = vld [vmem:[%s6660 + $0xbc] sm:$0x1]
        %v7439 = vshrl.u32 %v7390, 16
        %v7441 = vrot.slane %v7439, 4
        %v7442 = vshll.u32 %v7390, 16
        %v7444 = vrot.slane %v7442, 5
        %v7445 = vor.u32 %v7441, %v7444
        %v7446 = vrot.slane %v7445, 4
        %v7448 = vshll.u32 %v7391, 16
        %v7450 = vrot.slane %v7448, 5
        %v7451 = vsel %vm1142, %v7446, %v7450
        %v7452 = vshrl.u32 %v7391, 16
        %v7454 = vrot.slane %v7452, 4
        %v7455 = vor.u32 %v7454, %v7450
        %v7456 = vrot.slane %v7455, 4
        %v7458 = vshll.u32 %v7392, 16
        %v7460 = vrot.slane %v7458, 5
        %v7461 = vsel %vm1142, %v7456, %v7460
        %v7463 = vshrl.u32 %v7393, 16
        %v7465 = vrot.slane %v7463, 4
        %v7466 = vshll.u32 %v7393, 16
        %v7468 = vrot.slane %v7466, 5
        %v7469 = vor.u32 %v7465, %v7468
        %v7470 = vrot.slane %v7469, 4
        %v7472 = vshll.u32 %v7394, 16
        %v7474 = vrot.slane %v7472, 5
        %v7475 = vsel %vm1142, %v7470, %v7474
        %v7476 = vshrl.u32 %v7394, 16
        %v7478 = vrot.slane %v7476, 4
        %v7479 = vor.u32 %v7478, %v7474
        %v7480 = vrot.slane %v7479, 4
        %v7482 = vshll.u32 %v7395, 16
        %v7484 = vrot.slane %v7482, 5
        %v7485 = vsel %vm1142, %v7480, %v7484
        %v7487 = vshrl.u32 %v7396, 16
        %v7489 = vrot.slane %v7487, 4
        %v7490 = vshll.u32 %v7396, 16
        %v7492 = vrot.slane %v7490, 5
        %v7493 = vor.u32 %v7489, %v7492
        %v7494 = vrot.slane %v7493, 4
        %v7496 = vshll.u32 %v7397, 16
        %v7498 = vrot.slane %v7496, 5
        %v7499 = vsel %vm1142, %v7494, %v7498
        %v7500 = vshrl.u32 %v7397, 16
        %v7502 = vrot.slane %v7500, 4
        %v7503 = vor.u32 %v7502, %v7498
        %v7504 = vrot.slane %v7503, 4
        %v7506 = vshll.u32 %v7398, 16
        %v7508 = vrot.slane %v7506, 5
        %v7509 = vsel %vm1142, %v7504, %v7508
        %v7511 = vshrl.u32 %v7399, 16
        %v7513 = vrot.slane %v7511, 4
        %v7514 = vshll.u32 %v7399, 16
        %v7516 = vrot.slane %v7514, 5
        %v7517 = vor.u32 %v7513, %v7516
        %v7518 = vrot.slane %v7517, 4
        %v7520 = vshll.u32 %v7400, 16
        %v7522 = vrot.slane %v7520, 5
        %v7523 = vsel %vm1142, %v7518, %v7522
        %v7524 = vshrl.u32 %v7400, 16
        %v7526 = vrot.slane %v7524, 4
        %v7527 = vor.u32 %v7526, %v7522
        %v7528 = vrot.slane %v7527, 4
        %v7530 = vshll.u32 %v7401, 16
        %v7532 = vrot.slane %v7530, 5
        %v7533 = vsel %vm1142, %v7528, %v7532
        %v7535 = vshrl.u32 %v7402, 16
        %v7537 = vrot.slane %v7535, 4
        %v7538 = vshll.u32 %v7402, 16
        %v7540 = vrot.slane %v7538, 5
        %v7541 = vor.u32 %v7537, %v7540
        %v7542 = vrot.slane %v7541, 4
        %v7544 = vshll.u32 %v7403, 16
        %v7546 = vrot.slane %v7544, 5
        %v7547 = vsel %vm1142, %v7542, %v7546
        %v7548 = vshrl.u32 %v7403, 16
        %v7550 = vrot.slane %v7548, 4
        %v7551 = vor.u32 %v7550, %v7546
        %v7552 = vrot.slane %v7551, 4
        %v7554 = vshll.u32 %v7404, 16
        %v7556 = vrot.slane %v7554, 5
        %v7557 = vsel %vm1142, %v7552, %v7556
        %v7559 = vshrl.u32 %v7405, 16
        %v7561 = vrot.slane %v7559, 4
        %v7562 = vshll.u32 %v7405, 16
        %v7564 = vrot.slane %v7562, 5
        %v7565 = vor.u32 %v7561, %v7564
        %v7566 = vrot.slane %v7565, 4
        %v7568 = vshll.u32 %v7406, 16
        %v7570 = vrot.slane %v7568, 5
        %v7571 = vsel %vm1142, %v7566, %v7570
        %v7572 = vshrl.u32 %v7406, 16
        %v7574 = vrot.slane %v7572, 4
        %v7575 = vor.u32 %v7574, %v7570
        %v7576 = vrot.slane %v7575, 4
        %v7578 = vshll.u32 %v7407, 16
        %v7580 = vrot.slane %v7578, 5
        %v7581 = vsel %vm1142, %v7576, %v7580
        %v7583 = vshrl.u32 %v7408, 16
        %v7585 = vrot.slane %v7583, 4
        %v7586 = vshll.u32 %v7408, 16
        %v7588 = vrot.slane %v7586, 5
        %v7589 = vor.u32 %v7585, %v7588
        %v7590 = vrot.slane %v7589, 4
        %v7592 = vshll.u32 %v7409, 16
        %v7594 = vrot.slane %v7592, 5
        %v7595 = vsel %vm1142, %v7590, %v7594
        %v7596 = vshrl.u32 %v7409, 16
        %v7598 = vrot.slane %v7596, 4
        %v7599 = vor.u32 %v7598, %v7594
        %v7600 = vrot.slane %v7599, 4
        %v7602 = vshll.u32 %v7410, 16
        %v7604 = vrot.slane %v7602, 5
        %v7605 = vsel %vm1142, %v7600, %v7604
        %v7607 = vshrl.u32 %v7411, 16
        %v7609 = vrot.slane %v7607, 4
        %v7610 = vshll.u32 %v7411, 16
        %v7612 = vrot.slane %v7610, 5
        %v7613 = vor.u32 %v7609, %v7612
        %v7614 = vrot.slane %v7613, 4
        %v7616 = vshll.u32 %v7412, 16
        %v7618 = vrot.slane %v7616, 5
        %v7619 = vsel %vm1142, %v7614, %v7618
        %v7620 = vshrl.u32 %v7412, 16
        %v7622 = vrot.slane %v7620, 4
        %v7623 = vor.u32 %v7622, %v7618
        %v7624 = vrot.slane %v7623, 4
        %v7626 = vshll.u32 %v7413, 16
        %v7628 = vrot.slane %v7626, 5
        %v7629 = vsel %vm1142, %v7624, %v7628
        %v7631 = vshrl.u32 %v7414, 16
        %v7633 = vrot.slane %v7631, 4
        %v7634 = vshll.u32 %v7414, 16
        %v7636 = vrot.slane %v7634, 5
        %v7637 = vor.u32 %v7633, %v7636
        %v7638 = vrot.slane %v7637, 4
        %v7640 = vshll.u32 %v7415, 16
        %v7642 = vrot.slane %v7640, 5
        %v7643 = vsel %vm1142, %v7638, %v7642
        %v7644 = vshrl.u32 %v7415, 16
        %v7646 = vrot.slane %v7644, 4
        %v7647 = vor.u32 %v7646, %v7642
        %v7648 = vrot.slane %v7647, 4
        %v7650 = vshll.u32 %v7416, 16
        %v7652 = vrot.slane %v7650, 5
        %v7653 = vsel %vm1142, %v7648, %v7652
        %v7655 = vshrl.u32 %v7417, 16
        %v7657 = vrot.slane %v7655, 4
        %v7658 = vshll.u32 %v7417, 16
        %v7660 = vrot.slane %v7658, 5
        %v7661 = vor.u32 %v7657, %v7660
        %v7662 = vrot.slane %v7661, 4
        %v7664 = vshll.u32 %v7418, 16
        %v7666 = vrot.slane %v7664, 5
        %v7667 = vsel %vm1142, %v7662, %v7666
        %v7668 = vshrl.u32 %v7418, 16
        %v7670 = vrot.slane %v7668, 4
        %v7671 = vor.u32 %v7670, %v7666
        %v7672 = vrot.slane %v7671, 4
        %v7674 = vshll.u32 %v7419, 16
        %v7676 = vrot.slane %v7674, 5
        %v7677 = vsel %vm1142, %v7672, %v7676
        %v7679 = vshrl.u32 %v7420, 16
        %v7681 = vrot.slane %v7679, 4
        %v7682 = vshll.u32 %v7420, 16
        %v7684 = vrot.slane %v7682, 5
        %v7685 = vor.u32 %v7681, %v7684
        %v7686 = vrot.slane %v7685, 4
        %v7688 = vshll.u32 %v7421, 16
        %v7690 = vrot.slane %v7688, 5
        %v7691 = vsel %vm1142, %v7686, %v7690
        %v7692 = vshrl.u32 %v7421, 16
        %v7694 = vrot.slane %v7692, 4
        %v7695 = vor.u32 %v7694, %v7690
        %v7696 = vrot.slane %v7695, 4
        %v7698 = vshll.u32 %v7422, 16
        %v7700 = vrot.slane %v7698, 5
        %v7701 = vsel %vm1142, %v7696, %v7700
        %v7703 = vshrl.u32 %v7423, 16
        %v7705 = vrot.slane %v7703, 4
        %v7706 = vshll.u32 %v7423, 16
        %v7708 = vrot.slane %v7706, 5
        %v7709 = vor.u32 %v7705, %v7708
        %v7710 = vrot.slane %v7709, 4
        %v7712 = vshll.u32 %v7424, 16
        %v7714 = vrot.slane %v7712, 5
        %v7715 = vsel %vm1142, %v7710, %v7714
        %v7716 = vshrl.u32 %v7424, 16
        %v7718 = vrot.slane %v7716, 4
        %v7719 = vor.u32 %v7718, %v7714
        %v7720 = vrot.slane %v7719, 4
        %v7722 = vshll.u32 %v7425, 16
        %v7724 = vrot.slane %v7722, 5
        %v7725 = vsel %vm1142, %v7720, %v7724
        %v7727 = vshrl.u32 %v7426, 16
        %v7729 = vrot.slane %v7727, 4
        %v7730 = vshll.u32 %v7426, 16
        %v7732 = vrot.slane %v7730, 5
        %v7733 = vor.u32 %v7729, %v7732
        %v7734 = vrot.slane %v7733, 4
        %v7736 = vshll.u32 %v7427, 16
        %v7738 = vrot.slane %v7736, 5
        %v7739 = vsel %vm1142, %v7734, %v7738
        %v7740 = vshrl.u32 %v7427, 16
        %v7742 = vrot.slane %v7740, 4
        %v7743 = vor.u32 %v7742, %v7738
        %v7744 = vrot.slane %v7743, 4
        %v7746 = vshll.u32 %v7428, 16
        %v7748 = vrot.slane %v7746, 5
        %v7749 = vsel %vm1142, %v7744, %v7748
        %v7751 = vshrl.u32 %v7429, 16
        %v7753 = vrot.slane %v7751, 4
        %v7754 = vshll.u32 %v7429, 16
        %v7756 = vrot.slane %v7754, 5
        %v7757 = vor.u32 %v7753, %v7756
        %v7758 = vrot.slane %v7757, 4
        %v7760 = vshll.u32 %v7430, 16
        %v7762 = vrot.slane %v7760, 5
        %v7763 = vsel %vm1142, %v7758, %v7762
        %v7764 = vshrl.u32 %v7430, 16
        %v7766 = vrot.slane %v7764, 4
        %v7767 = vor.u32 %v7766, %v7762
        %v7768 = vrot.slane %v7767, 4
        %v7770 = vshll.u32 %v7431, 16
        %v7772 = vrot.slane %v7770, 5
        %v7773 = vsel %vm1142, %v7768, %v7772
        %v7775 = vshrl.u32 %v7432, 16
        %v7777 = vrot.slane %v7775, 4
        %v7778 = vshll.u32 %v7432, 16
        %v7780 = vrot.slane %v7778, 5
        %v7781 = vor.u32 %v7777, %v7780
        %v7782 = vrot.slane %v7781, 4
        %v7784 = vshll.u32 %v7433, 16
        %v7786 = vrot.slane %v7784, 5
        %v7787 = vsel %vm1142, %v7782, %v7786
        %v7788 = vshrl.u32 %v7433, 16
        %v7790 = vrot.slane %v7788, 4
        %v7791 = vor.u32 %v7790, %v7786
        %v7792 = vrot.slane %v7791, 4
        %v7794 = vshll.u32 %v7434, 16
        %v7796 = vrot.slane %v7794, 5
        %v7797 = vsel %vm1142, %v7792, %v7796
        %v7799 = vshrl.u32 %v7435, 16
        %v7801 = vrot.slane %v7799, 4
        %v7802 = vshll.u32 %v7435, 16
        %v7804 = vrot.slane %v7802, 5
        %v7805 = vor.u32 %v7801, %v7804
        %v7806 = vrot.slane %v7805, 4
        %v7808 = vshll.u32 %v7436, 16
        %v7810 = vrot.slane %v7808, 5
        %v7811 = vsel %vm1142, %v7806, %v7810
        %v7812 = vshrl.u32 %v7436, 16
        %v7814 = vrot.slane %v7812, 4
        %v7815 = vor.u32 %v7814, %v7810
        %v7816 = vrot.slane %v7815, 4
        %v7818 = vshll.u32 %v7437, 16
        %v7820 = vrot.slane %v7818, 5
        %v7821 = vsel %vm1142, %v7816, %v7820
        %s7822 = scalar_lea.vmem %s2, 14
        %v7823 = vld [vmem:[%s7822] sm:$0x3]
        %v7824 = vunpack.c.l.b16 %v7451
        %v7825 = vunpack.c.l.b16 %v7461
        %v7826 = vunpack.c.l.b16 %v7475
        %v7827 = vunpack.c.l.b16 %v7485
        %v7828 = vunpack.c.l.b16 %v7499
        %v7829 = vunpack.c.l.b16 %v7509
        %v7830 = vunpack.c.l.b16 %v7523
        %v7831 = vunpack.c.l.b16 %v7533
        %v7832 = vunpack.c.l.b16 %v7547
        %v7833 = vunpack.c.l.b16 %v7557
        %v7834 = vunpack.c.l.b16 %v7571
        %v7835 = vunpack.c.l.b16 %v7581
        %v7836 = vunpack.c.l.b16 %v7595
        %v7837 = vunpack.c.l.b16 %v7605
        %v7838 = vunpack.c.l.b16 %v7619
        %v7839 = vunpack.c.l.b16 %v7629
        %v7840 = vunpack.c.l.b16 %v7643
        %v7841 = vunpack.c.l.b16 %v7653
        %v7842 = vunpack.c.l.b16 %v7667
        %v7843 = vunpack.c.l.b16 %v7677
        %v7844 = vunpack.c.l.b16 %v7691
        %v7845 = vunpack.c.l.b16 %v7701
        %v7846 = vunpack.c.l.b16 %v7715
        %v7847 = vunpack.c.l.b16 %v7725
        %v7848 = vunpack.c.l.b16 %v7739
        %v7849 = vunpack.c.l.b16 %v7749
        %v7850 = vunpack.c.l.b16 %v7763
        %v7851 = vunpack.c.l.b16 %v7773
        %v7852 = vunpack.c.l.b16 %v7787
        %v7853 = vunpack.c.l.b16 %v7797
        %v7854 = vunpack.c.l.b16 %v7811
        %v7855 = vunpack.c.l.b16 %v7821
        %v7856 = vpack.c.b16 %v7825, %v7824
        %v7857 = vpack.c.b16 %v7827, %v7826
        %v7858 = vpack.c.b16 %v7829, %v7828
        %v7859 = vpack.c.b16 %v7831, %v7830
        %v7860 = vpack.c.b16 %v7833, %v7832
        %v7861 = vpack.c.b16 %v7835, %v7834
        %v7862 = vpack.c.b16 %v7837, %v7836
        %v7863 = vpack.c.b16 %v7839, %v7838
        %v7864 = vpack.c.b16 %v7841, %v7840
        %v7865 = vpack.c.b16 %v7843, %v7842
        %v7866 = vpack.c.b16 %v7845, %v7844
        %v7867 = vpack.c.b16 %v7847, %v7846
        %v7868 = vpack.c.b16 %v7849, %v7848
        %v7869 = vpack.c.b16 %v7851, %v7850
        %v7870 = vpack.c.b16 %v7853, %v7852
        %v7871 = vpack.c.b16 %v7855, %v7854
        %v7873 = vsel %vm476, %v7856, 0
        %v7876 = vsel %vm476, %v7857, 0
        %v7879 = vsel %vm476, %v7858, 0
        %v7882 = vsel %vm476, %v7859, 0
        %v7885 = vsel %vm476, %v7860, 0
        %v7888 = vsel %vm476, %v7861, 0
        %v7891 = vsel %vm476, %v7862, 0
        %v7894 = vsel %vm476, %v7863, 0
        %v7897 = vsel %vm476, %v7864, 0
        %v7900 = vsel %vm476, %v7865, 0
        %v7903 = vsel %vm476, %v7866, 0
        %v7906 = vsel %vm476, %v7867, 0
        %v7909 = vsel %vm476, %v7868, 0
        %v7912 = vsel %vm476, %v7869, 0
        %v7915 = vsel %vm476, %v7870, 0
        %v7918 = vsel %vm476, %v7871, 0
        %v7921 = vsel %vm525, %v7823, 0
        %7923 = vmatprep.subr.bf16.mxu0 0
        %7924 = vmatpush1.bf16.msra.mxu0 %v7921
        %7925 = vmatprep.subr.bf16.mxu0 0
        %7926 = vmatpush1.bf16.msra.mxu0 0
        %7927 = vmatprep.subr.bf16.mxu0 0
        %7928 = vmatpush1.bf16.msra.mxu0 0
        %7929 = vmatprep.subr.bf16.mxu0 0
        %7930 = vmatpush1.bf16.msra.mxu0 0
        %7931 = vmatprep.subr.bf16.mxu0 0
        %7932 = vmatpush1.bf16.msra.mxu0 0
        %7933 = vmatprep.subr.bf16.mxu0 0
        %7934 = vmatpush1.bf16.msra.mxu0 0
        %7935 = vmatprep.subr.bf16.mxu0 0
        %7936 = vmatpush1.bf16.msra.mxu0 0
        %7937 = vmatprep.subr.bf16.mxu0 0
        %7938 = vmatpush1.bf16.msra.mxu0 0
        %7939 = vmatprep.subr.bf16.mxu0 0
        %7940 = vmatpush1.bf16.msra.mxu0 0
        %7941 = vmatprep.subr.bf16.mxu0 0
        %7942 = vmatpush1.bf16.msra.mxu0 0
        %7943 = vmatprep.subr.bf16.mxu0 0
        %7944 = vmatpush1.bf16.msra.mxu0 0
        %7945 = vmatprep.subr.bf16.mxu0 0
        %7946 = vmatpush1.bf16.msra.mxu0 0
        %7947 = vmatprep.subr.bf16.mxu0 0
        %7948 = vmatpush1.bf16.msra.mxu0 0
        %7949 = vmatprep.subr.bf16.mxu0 0
        %7950 = vmatpush1.bf16.msra.mxu0 0
        %7951 = vmatprep.subr.bf16.mxu0 0
        %7952 = vmatpush1.bf16.msra.mxu0 0
        %7953 = vmatprep.subr.bf16.mxu0 0
        %7954 = vmatpush1.bf16.msra.mxu0 0
        %7955 = vmatprep.mubr.bf16.mxu0 0
        %7956 = vmatmul.mubr.bf16.gmra.mrb[0].mxu0 %v7873
        %v7957 = vpop.f32.mrb[0].mxu0
        %v7958 = vadd.f32 0.0, %v7957
        %v7959 = vpop.f32.mrb[0].mxu0
        %v7960 = vpop.f32.mrb[0].mxu0
        %v7961 = vadd.f32 0.0, %v7960
        %v7962 = vpop.f32.mrb[0].mxu0
        %7963 = vmatprep.mubr.bf16.mxu0 0
        %7964 = vmatmul.mubr.bf16.gmra.mrb[0].mxu0 %v7876
        %v7965 = vpop.f32.mrb[0].mxu0
        %v7966 = vadd.f32 0.0, %v7965
        %v7967 = vpop.f32.mrb[0].mxu0
        %v7968 = vpop.f32.mrb[0].mxu0
        %v7969 = vadd.f32 0.0, %v7968
        %v7970 = vpop.f32.mrb[0].mxu0
        %7971 = vmatprep.mubr.bf16.mxu0 0
        %7972 = vmatmul.mubr.bf16.gmra.mrb[0].mxu0 %v7879
        %v7973 = vpop.f32.mrb[0].mxu0
        %v7974 = vadd.f32 0.0, %v7973
        %v7975 = vpop.f32.mrb[0].mxu0
        %v7976 = vpop.f32.mrb[0].mxu0
        %v7977 = vadd.f32 0.0, %v7976
        %v7978 = vpop.f32.mrb[0].mxu0
        %7979 = vmatprep.mubr.bf16.mxu0 0
        %7980 = vmatmul.mubr.bf16.gmra.mrb[0].mxu0 %v7882
        %v7981 = vpop.f32.mrb[0].mxu0
        %v7982 = vadd.f32 0.0, %v7981
        %v7983 = vpop.f32.mrb[0].mxu0
        %v7984 = vpop.f32.mrb[0].mxu0
        %v7985 = vadd.f32 0.0, %v7984
        %v7986 = vpop.f32.mrb[0].mxu0
        %7987 = vmatprep.mubr.bf16.mxu0 0
        %7988 = vmatmul.mubr.bf16.gmra.mrb[0].mxu0 %v7885
        %v7989 = vpop.f32.mrb[0].mxu0
        %v7990 = vadd.f32 0.0, %v7989
        %v7991 = vpop.f32.mrb[0].mxu0
        %v7992 = vpop.f32.mrb[0].mxu0
        %v7993 = vadd.f32 0.0, %v7992
        %v7994 = vpop.f32.mrb[0].mxu0
        %7995 = vmatprep.mubr.bf16.mxu0 0
        %7996 = vmatmul.mubr.bf16.gmra.mrb[0].mxu0 %v7888
        %v7997 = vpop.f32.mrb[0].mxu0
        %v7998 = vadd.f32 0.0, %v7997
        %v7999 = vpop.f32.mrb[0].mxu0
        %v8000 = vpop.f32.mrb[0].mxu0
        %v8001 = vadd.f32 0.0, %v8000
        %v8002 = vpop.f32.mrb[0].mxu0
        %8003 = vmatprep.mubr.bf16.mxu0 0
        %8004 = vmatmul.mubr.bf16.gmra.mrb[0].mxu0 %v7891
        %v8005 = vpop.f32.mrb[0].mxu0
        %v8006 = vadd.f32 0.0, %v8005
        %v8007 = vpop.f32.mrb[0].mxu0
        %v8008 = vpop.f32.mrb[0].mxu0
        %v8009 = vadd.f32 0.0, %v8008
        %v8010 = vpop.f32.mrb[0].mxu0
        %8011 = vmatprep.mubr.bf16.mxu0 0
        %8012 = vmatmul.mubr.bf16.gmra.mrb[0].mxu0 %v7894
        %v8013 = vpop.f32.mrb[0].mxu0
        %v8014 = vadd.f32 0.0, %v8013
        %v8015 = vpop.f32.mrb[0].mxu0
        %v8016 = vpop.f32.mrb[0].mxu0
        %v8017 = vadd.f32 0.0, %v8016
        %v8018 = vpop.f32.mrb[0].mxu0
        %8019 = vmatprep.mubr.bf16.mxu0 0
        %8020 = vmatmul.mubr.bf16.gmra.mrb[0].mxu0 %v7897
        %v8021 = vpop.f32.mrb[0].mxu0
        %v8022 = vadd.f32 0.0, %v8021
        %v8023 = vpop.f32.mrb[0].mxu0
        %v8024 = vpop.f32.mrb[0].mxu0
        %v8025 = vadd.f32 0.0, %v8024
        %v8026 = vpop.f32.mrb[0].mxu0
        %8027 = vmatprep.mubr.bf16.mxu0 0
        %8028 = vmatmul.mubr.bf16.gmra.mrb[0].mxu0 %v7900
        %v8029 = vpop.f32.mrb[0].mxu0
        %v8030 = vadd.f32 0.0, %v8029
        %v8031 = vpop.f32.mrb[0].mxu0
        %v8032 = vpop.f32.mrb[0].mxu0
        %v8033 = vadd.f32 0.0, %v8032
        %v8034 = vpop.f32.mrb[0].mxu0
        %8035 = vmatprep.mubr.bf16.mxu0 0
        %8036 = vmatmul.mubr.bf16.gmra.mrb[0].mxu0 %v7903
        %v8037 = vpop.f32.mrb[0].mxu0
        %v8038 = vadd.f32 0.0, %v8037
        %v8039 = vpop.f32.mrb[0].mxu0
        %v8040 = vpop.f32.mrb[0].mxu0
        %v8041 = vadd.f32 0.0, %v8040
        %v8042 = vpop.f32.mrb[0].mxu0
        %8043 = vmatprep.mubr.bf16.mxu0 0
        %8044 = vmatmul.mubr.bf16.gmra.mrb[0].mxu0 %v7906
        %v8045 = vpop.f32.mrb[0].mxu0
        %v8046 = vadd.f32 0.0, %v8045
        %v8047 = vpop.f32.mrb[0].mxu0
        %v8048 = vpop.f32.mrb[0].mxu0
        %v8049 = vadd.f32 0.0, %v8048
        %v8050 = vpop.f32.mrb[0].mxu0
        %8051 = vmatprep.mubr.bf16.mxu0 0
        %8052 = vmatmul.mubr.bf16.gmra.mrb[0].mxu0 %v7909
        %v8053 = vpop.f32.mrb[0].mxu0
        %v8054 = vadd.f32 0.0, %v8053
        %v8055 = vpop.f32.mrb[0].mxu0
        %v8056 = vpop.f32.mrb[0].mxu0
        %v8057 = vadd.f32 0.0, %v8056
        %v8058 = vpop.f32.mrb[0].mxu0
        %8059 = vmatprep.mubr.bf16.mxu0 0
        %8060 = vmatmul.mubr.bf16.gmra.mrb[0].mxu0 %v7912
        %v8061 = vpop.f32.mrb[0].mxu0
        %v8062 = vadd.f32 0.0, %v8061
        %v8063 = vpop.f32.mrb[0].mxu0
        %v8064 = vpop.f32.mrb[0].mxu0
        %v8065 = vadd.f32 0.0, %v8064
        %v8066 = vpop.f32.mrb[0].mxu0
        %8067 = vmatprep.mubr.bf16.mxu0 0
        %8068 = vmatmul.mubr.bf16.gmra.mrb[0].mxu0 %v7915
        %v8069 = vpop.f32.mrb[0].mxu0
        %v8070 = vadd.f32 0.0, %v8069
        %v8071 = vpop.f32.mrb[0].mxu0
        %v8072 = vpop.f32.mrb[0].mxu0
        %v8073 = vadd.f32 0.0, %v8072
        %v8074 = vpop.f32.mrb[0].mxu0
        %8075 = vmatprep.mubr.bf16.mxu0 0
        %8076 = vmatmul.mubr.bf16.gmra.mrb[0].mxu0 %v7918
        %v8077 = vpop.f32.mrb[0].mxu0
        %v8078 = vadd.f32 0.0, %v8077
        %v8079 = vpop.f32.mrb[0].mxu0
        %v8080 = vpop.f32.mrb[0].mxu0
        %v8081 = vadd.f32 0.0, %v8080
        %v8082 = vpop.f32.mrb[0].mxu0
        %8083 = vdwg.mxu0
        %v8084 = vadd.f32 %v7358, %v7958
        %v8085 = vadd.f32 %v7359, %v7961
        %v8086 = vadd.f32 %v7360, %v7966
        %v8087 = vadd.f32 %v7361, %v7969
        %v8088 = vadd.f32 %v7362, %v7974
        %v8089 = vadd.f32 %v7363, %v7977
        %v8090 = vadd.f32 %v7364, %v7982
        %v8091 = vadd.f32 %v7365, %v7985
        %v8092 = vadd.f32 %v7366, %v7990
        %v8093 = vadd.f32 %v7367, %v7993
        %v8094 = vadd.f32 %v7368, %v7998
        %v8095 = vadd.f32 %v7369, %v8001
        %v8096 = vadd.f32 %v7370, %v8006
        %v8097 = vadd.f32 %v7371, %v8009
        %v8098 = vadd.f32 %v7372, %v8014
        %v8099 = vadd.f32 %v7373, %v8017
        %v8100 = vadd.f32 %v7374, %v8022
        %v8101 = vadd.f32 %v7375, %v8025
        %v8102 = vadd.f32 %v7376, %v8030
        %v8103 = vadd.f32 %v7377, %v8033
        %v8104 = vadd.f32 %v7378, %v8038
        %v8105 = vadd.f32 %v7379, %v8041
        %v8106 = vadd.f32 %v7380, %v8046
        %v8107 = vadd.f32 %v7381, %v8049
        %v8108 = vadd.f32 %v7382, %v8054
        %v8109 = vadd.f32 %v7383, %v8057
        %v8110 = vadd.f32 %v7384, %v8062
        %v8111 = vadd.f32 %v7385, %v8065
        %v8112 = vadd.f32 %v7386, %v8070
        %v8113 = vadd.f32 %v7387, %v8073
        %v8114 = vadd.f32 %v7388, %v8078
        %v8115 = vadd.f32 %v7389, %v8081
        %v8116 = vld [vmem:[%s7019] sm:$0xf]
        %v8117 = vld [vmem:[%s7019 + $0x4] sm:$0xf]
        %v8118 = vld [vmem:[%s7019 + $0x8] sm:$0x1]
        %v8119 = vld [vmem:[%s7019 + $0xc] sm:$0xf]
        %v8120 = vld [vmem:[%s7019 + $0x10] sm:$0xf]
        %v8121 = vld [vmem:[%s7019 + $0x14] sm:$0x1]
        %v8122 = vld [vmem:[%s7019 + $0x18] sm:$0xf]
        %v8123 = vld [vmem:[%s7019 + $0x1c] sm:$0xf]
        %v8124 = vld [vmem:[%s7019 + $0x20] sm:$0x1]
        %v8125 = vld [vmem:[%s7019 + $0x24] sm:$0xf]
        %v8126 = vld [vmem:[%s7019 + $0x28] sm:$0xf]
        %v8127 = vld [vmem:[%s7019 + $0x2c] sm:$0x1]
        %v8128 = vld [vmem:[%s7019 + $0x30] sm:$0xf]
        %v8129 = vld [vmem:[%s7019 + $0x34] sm:$0xf]
        %v8130 = vld [vmem:[%s7019 + $0x38] sm:$0x1]
        %v8131 = vld [vmem:[%s7019 + $0x3c] sm:$0xf]
        %v8132 = vld [vmem:[%s7019 + $0x40] sm:$0xf]
        %v8133 = vld [vmem:[%s7019 + $0x44] sm:$0x1]
        %v8134 = vld [vmem:[%s7019 + $0x48] sm:$0xf]
        %v8135 = vld [vmem:[%s7019 + $0x4c] sm:$0xf]
        %v8136 = vld [vmem:[%s7019 + $0x50] sm:$0x1]
        %v8137 = vld [vmem:[%s7019 + $0x54] sm:$0xf]
        %v8138 = vld [vmem:[%s7019 + $0x58] sm:$0xf]
        %v8139 = vld [vmem:[%s7019 + $0x5c] sm:$0x1]
        %v8140 = vld [vmem:[%s7019 + $0x60] sm:$0xf]
        %v8141 = vld [vmem:[%s7019 + $0x64] sm:$0xf]
        %v8142 = vld [vmem:[%s7019 + $0x68] sm:$0x1]
        %v8143 = vld [vmem:[%s7019 + $0x6c] sm:$0xf]
        %v8144 = vld [vmem:[%s7019 + $0x70] sm:$0xf]
        %v8145 = vld [vmem:[%s7019 + $0x74] sm:$0x1]
        %v8146 = vld [vmem:[%s7019 + $0x78] sm:$0xf]
        %v8147 = vld [vmem:[%s7019 + $0x7c] sm:$0xf]
        %v8148 = vld [vmem:[%s7019 + $0x80] sm:$0x1]
        %v8149 = vld [vmem:[%s7019 + $0x84] sm:$0xf]
        %v8150 = vld [vmem:[%s7019 + $0x88] sm:$0xf]
        %v8151 = vld [vmem:[%s7019 + $0x8c] sm:$0x1]
        %v8152 = vld [vmem:[%s7019 + $0x90] sm:$0xf]
        %v8153 = vld [vmem:[%s7019 + $0x94] sm:$0xf]
        %v8154 = vld [vmem:[%s7019 + $0x98] sm:$0x1]
        %v8155 = vld [vmem:[%s7019 + $0x9c] sm:$0xf]
        %v8156 = vld [vmem:[%s7019 + $0xa0] sm:$0xf]
        %v8157 = vld [vmem:[%s7019 + $0xa4] sm:$0x1]
        %v8158 = vld [vmem:[%s7019 + $0xa8] sm:$0xf]
        %v8159 = vld [vmem:[%s7019 + $0xac] sm:$0xf]
        %v8160 = vld [vmem:[%s7019 + $0xb0] sm:$0x1]
        %v8161 = vld [vmem:[%s7019 + $0xb4] sm:$0xf]
        %v8162 = vld [vmem:[%s7019 + $0xb8] sm:$0xf]
        %v8163 = vld [vmem:[%s7019 + $0xbc] sm:$0x1]
        %v8165 = vshrl.u32 %v8116, 16
        %v8167 = vrot.slane %v8165, 4
        %v8168 = vshll.u32 %v8116, 16
        %v8170 = vrot.slane %v8168, 5
        %v8171 = vor.u32 %v8167, %v8170
        %v8172 = vrot.slane %v8171, 4
        %v8174 = vshll.u32 %v8117, 16
        %v8176 = vrot.slane %v8174, 5
        %v8177 = vsel %vm1142, %v8172, %v8176
        %v8178 = vshrl.u32 %v8117, 16
        %v8180 = vrot.slane %v8178, 4
        %v8181 = vor.u32 %v8180, %v8176
        %v8182 = vrot.slane %v8181, 4
        %v8184 = vshll.u32 %v8118, 16
        %v8186 = vrot.slane %v8184, 5
        %v8187 = vsel %vm1142, %v8182, %v8186
        %v8189 = vshrl.u32 %v8119, 16
        %v8191 = vrot.slane %v8189, 4
        %v8192 = vshll.u32 %v8119, 16
        %v8194 = vrot.slane %v8192, 5
        %v8195 = vor.u32 %v8191, %v8194
        %v8196 = vrot.slane %v8195, 4
        %v8198 = vshll.u32 %v8120, 16
        %v8200 = vrot.slane %v8198, 5
        %v8201 = vsel %vm1142, %v8196, %v8200
        %v8202 = vshrl.u32 %v8120, 16
        %v8204 = vrot.slane %v8202, 4
        %v8205 = vor.u32 %v8204, %v8200
        %v8206 = vrot.slane %v8205, 4
        %v8208 = vshll.u32 %v8121, 16
        %v8210 = vrot.slane %v8208, 5
        %v8211 = vsel %vm1142, %v8206, %v8210
        %v8213 = vshrl.u32 %v8122, 16
        %v8215 = vrot.slane %v8213, 4
        %v8216 = vshll.u32 %v8122, 16
        %v8218 = vrot.slane %v8216, 5
        %v8219 = vor.u32 %v8215, %v8218
        %v8220 = vrot.slane %v8219, 4
        %v8222 = vshll.u32 %v8123, 16
        %v8224 = vrot.slane %v8222, 5
        %v8225 = vsel %vm1142, %v8220, %v8224
        %v8226 = vshrl.u32 %v8123, 16
        %v8228 = vrot.slane %v8226, 4
        %v8229 = vor.u32 %v8228, %v8224
        %v8230 = vrot.slane %v8229, 4
        %v8232 = vshll.u32 %v8124, 16
        %v8234 = vrot.slane %v8232, 5
        %v8235 = vsel %vm1142, %v8230, %v8234
        %v8237 = vshrl.u32 %v8125, 16
        %v8239 = vrot.slane %v8237, 4
        %v8240 = vshll.u32 %v8125, 16
        %v8242 = vrot.slane %v8240, 5
        %v8243 = vor.u32 %v8239, %v8242
        %v8244 = vrot.slane %v8243, 4
        %v8246 = vshll.u32 %v8126, 16
        %v8248 = vrot.slane %v8246, 5
        %v8249 = vsel %vm1142, %v8244, %v8248
        %v8250 = vshrl.u32 %v8126, 16
        %v8252 = vrot.slane %v8250, 4
        %v8253 = vor.u32 %v8252, %v8248
        %v8254 = vrot.slane %v8253, 4
        %v8256 = vshll.u32 %v8127, 16
        %v8258 = vrot.slane %v8256, 5
        %v8259 = vsel %vm1142, %v8254, %v8258
        %v8261 = vshrl.u32 %v8128, 16
        %v8263 = vrot.slane %v8261, 4
        %v8264 = vshll.u32 %v8128, 16
        %v8266 = vrot.slane %v8264, 5
        %v8267 = vor.u32 %v8263, %v8266
        %v8268 = vrot.slane %v8267, 4
        %v8270 = vshll.u32 %v8129, 16
        %v8272 = vrot.slane %v8270, 5
        %v8273 = vsel %vm1142, %v8268, %v8272
        %v8274 = vshrl.u32 %v8129, 16
        %v8276 = vrot.slane %v8274, 4
        %v8277 = vor.u32 %v8276, %v8272
        %v8278 = vrot.slane %v8277, 4
        %v8280 = vshll.u32 %v8130, 16
        %v8282 = vrot.slane %v8280, 5
        %v8283 = vsel %vm1142, %v8278, %v8282
        %v8285 = vshrl.u32 %v8131, 16
        %v8287 = vrot.slane %v8285, 4
        %v8288 = vshll.u32 %v8131, 16
        %v8290 = vrot.slane %v8288, 5
        %v8291 = vor.u32 %v8287, %v8290
        %v8292 = vrot.slane %v8291, 4
        %v8294 = vshll.u32 %v8132, 16
        %v8296 = vrot.slane %v8294, 5
        %v8297 = vsel %vm1142, %v8292, %v8296
        %v8298 = vshrl.u32 %v8132, 16
        %v8300 = vrot.slane %v8298, 4
        %v8301 = vor.u32 %v8300, %v8296
        %v8302 = vrot.slane %v8301, 4
        %v8304 = vshll.u32 %v8133, 16
        %v8306 = vrot.slane %v8304, 5
        %v8307 = vsel %vm1142, %v8302, %v8306
        %v8309 = vshrl.u32 %v8134, 16
        %v8311 = vrot.slane %v8309, 4
        %v8312 = vshll.u32 %v8134, 16
        %v8314 = vrot.slane %v8312, 5
        %v8315 = vor.u32 %v8311, %v8314
        %v8316 = vrot.slane %v8315, 4
        %v8318 = vshll.u32 %v8135, 16
        %v8320 = vrot.slane %v8318, 5
        %v8321 = vsel %vm1142, %v8316, %v8320
        %v8322 = vshrl.u32 %v8135, 16
        %v8324 = vrot.slane %v8322, 4
        %v8325 = vor.u32 %v8324, %v8320
        %v8326 = vrot.slane %v8325, 4
        %v8328 = vshll.u32 %v8136, 16
        %v8330 = vrot.slane %v8328, 5
        %v8331 = vsel %vm1142, %v8326, %v8330
        %v8333 = vshrl.u32 %v8137, 16
        %v8335 = vrot.slane %v8333, 4
        %v8336 = vshll.u32 %v8137, 16
        %v8338 = vrot.slane %v8336, 5
        %v8339 = vor.u32 %v8335, %v8338
        %v8340 = vrot.slane %v8339, 4
        %v8342 = vshll.u32 %v8138, 16
        %v8344 = vrot.slane %v8342, 5
        %v8345 = vsel %vm1142, %v8340, %v8344
        %v8346 = vshrl.u32 %v8138, 16
        %v8348 = vrot.slane %v8346, 4
        %v8349 = vor.u32 %v8348, %v8344
        %v8350 = vrot.slane %v8349, 4
        %v8352 = vshll.u32 %v8139, 16
        %v8354 = vrot.slane %v8352, 5
        %v8355 = vsel %vm1142, %v8350, %v8354
        %v8357 = vshrl.u32 %v8140, 16
        %v8359 = vrot.slane %v8357, 4
        %v8360 = vshll.u32 %v8140, 16
        %v8362 = vrot.slane %v8360, 5
        %v8363 = vor.u32 %v8359, %v8362
        %v8364 = vrot.slane %v8363, 4
        %v8366 = vshll.u32 %v8141, 16
        %v8368 = vrot.slane %v8366, 5
        %v8369 = vsel %vm1142, %v8364, %v8368
        %v8370 = vshrl.u32 %v8141, 16
        %v8372 = vrot.slane %v8370, 4
        %v8373 = vor.u32 %v8372, %v8368
        %v8374 = vrot.slane %v8373, 4
        %v8376 = vshll.u32 %v8142, 16
        %v8378 = vrot.slane %v8376, 5
        %v8379 = vsel %vm1142, %v8374, %v8378
        %v8381 = vshrl.u32 %v8143, 16
        %v8383 = vrot.slane %v8381, 4
        %v8384 = vshll.u32 %v8143, 16
        %v8386 = vrot.slane %v8384, 5
        %v8387 = vor.u32 %v8383, %v8386
        %v8388 = vrot.slane %v8387, 4
        %v8390 = vshll.u32 %v8144, 16
        %v8392 = vrot.slane %v8390, 5
        %v8393 = vsel %vm1142, %v8388, %v8392
        %v8394 = vshrl.u32 %v8144, 16
        %v8396 = vrot.slane %v8394, 4
        %v8397 = vor.u32 %v8396, %v8392
        %v8398 = vrot.slane %v8397, 4
        %v8400 = vshll.u32 %v8145, 16
        %v8402 = vrot.slane %v8400, 5
        %v8403 = vsel %vm1142, %v8398, %v8402
        %v8405 = vshrl.u32 %v8146, 16
        %v8407 = vrot.slane %v8405, 4
        %v8408 = vshll.u32 %v8146, 16
        %v8410 = vrot.slane %v8408, 5
        %v8411 = vor.u32 %v8407, %v8410
        %v8412 = vrot.slane %v8411, 4
        %v8414 = vshll.u32 %v8147, 16
        %v8416 = vrot.slane %v8414, 5
        %v8417 = vsel %vm1142, %v8412, %v8416
        %v8418 = vshrl.u32 %v8147, 16
        %v8420 = vrot.slane %v8418, 4
        %v8421 = vor.u32 %v8420, %v8416
        %v8422 = vrot.slane %v8421, 4
        %v8424 = vshll.u32 %v8148, 16
        %v8426 = vrot.slane %v8424, 5
        %v8427 = vsel %vm1142, %v8422, %v8426
        %v8429 = vshrl.u32 %v8149, 16
        %v8431 = vrot.slane %v8429, 4
        %v8432 = vshll.u32 %v8149, 16
        %v8434 = vrot.slane %v8432, 5
        %v8435 = vor.u32 %v8431, %v8434
        %v8436 = vrot.slane %v8435, 4
        %v8438 = vshll.u32 %v8150, 16
        %v8440 = vrot.slane %v8438, 5
        %v8441 = vsel %vm1142, %v8436, %v8440
        %v8442 = vshrl.u32 %v8150, 16
        %v8444 = vrot.slane %v8442, 4
        %v8445 = vor.u32 %v8444, %v8440
        %v8446 = vrot.slane %v8445, 4
        %v8448 = vshll.u32 %v8151, 16
        %v8450 = vrot.slane %v8448, 5
        %v8451 = vsel %vm1142, %v8446, %v8450
        %v8453 = vshrl.u32 %v8152, 16
        %v8455 = vrot.slane %v8453, 4
        %v8456 = vshll.u32 %v8152, 16
        %v8458 = vrot.slane %v8456, 5
        %v8459 = vor.u32 %v8455, %v8458
        %v8460 = vrot.slane %v8459, 4
        %v8462 = vshll.u32 %v8153, 16
        %v8464 = vrot.slane %v8462, 5
        %v8465 = vsel %vm1142, %v8460, %v8464
        %v8466 = vshrl.u32 %v8153, 16
        %v8468 = vrot.slane %v8466, 4
        %v8469 = vor.u32 %v8468, %v8464
        %v8470 = vrot.slane %v8469, 4
        %v8472 = vshll.u32 %v8154, 16
        %v8474 = vrot.slane %v8472, 5
        %v8475 = vsel %vm1142, %v8470, %v8474
        %v8477 = vshrl.u32 %v8155, 16
        %v8479 = vrot.slane %v8477, 4
        %v8480 = vshll.u32 %v8155, 16
        %v8482 = vrot.slane %v8480, 5
        %v8483 = vor.u32 %v8479, %v8482
        %v8484 = vrot.slane %v8483, 4
        %v8486 = vshll.u32 %v8156, 16
        %v8488 = vrot.slane %v8486, 5
        %v8489 = vsel %vm1142, %v8484, %v8488
        %v8490 = vshrl.u32 %v8156, 16
        %v8492 = vrot.slane %v8490, 4
        %v8493 = vor.u32 %v8492, %v8488
        %v8494 = vrot.slane %v8493, 4
        %v8496 = vshll.u32 %v8157, 16
        %v8498 = vrot.slane %v8496, 5
        %v8499 = vsel %vm1142, %v8494, %v8498
        %v8501 = vshrl.u32 %v8158, 16
        %v8503 = vrot.slane %v8501, 4
        %v8504 = vshll.u32 %v8158, 16
        %v8506 = vrot.slane %v8504, 5
        %v8507 = vor.u32 %v8503, %v8506
        %v8508 = vrot.slane %v8507, 4
        %v8510 = vshll.u32 %v8159, 16
        %v8512 = vrot.slane %v8510, 5
        %v8513 = vsel %vm1142, %v8508, %v8512
        %v8514 = vshrl.u32 %v8159, 16
        %v8516 = vrot.slane %v8514, 4
        %v8517 = vor.u32 %v8516, %v8512
        %v8518 = vrot.slane %v8517, 4
        %v8520 = vshll.u32 %v8160, 16
        %v8522 = vrot.slane %v8520, 5
        %v8523 = vsel %vm1142, %v8518, %v8522
        %v8525 = vshrl.u32 %v8161, 16
        %v8527 = vrot.slane %v8525, 4
        %v8528 = vshll.u32 %v8161, 16
        %v8530 = vrot.slane %v8528, 5
        %v8531 = vor.u32 %v8527, %v8530
        %v8532 = vrot.slane %v8531, 4
        %v8534 = vshll.u32 %v8162, 16
        %v8536 = vrot.slane %v8534, 5
        %v8537 = vsel %vm1142, %v8532, %v8536
        %v8538 = vshrl.u32 %v8162, 16
        %v8540 = vrot.slane %v8538, 4
        %v8541 = vor.u32 %v8540, %v8536
        %v8542 = vrot.slane %v8541, 4
        %v8544 = vshll.u32 %v8163, 16
        %v8546 = vrot.slane %v8544, 5
        %v8547 = vsel %vm1142, %v8542, %v8546
        %s8548 = scalar_lea.vmem %s3, 112
        %v8549 = vld [vmem:[%s8548] sm:$0xf]
        %v8550 = vld [vmem:[%s8548 + $0x4] sm:$0xf]
        %v8551 = vld [vmem:[%s8548 + $0x8] sm:$0xf]
        %v8552 = vld [vmem:[%s8548 + $0xc] sm:$0xf]
        %v8553 = vunpack.c.l.b16 %v8177
        %v8554 = vunpack.c.l.b16 %v8187
        %v8555 = vunpack.c.l.b16 %v8201
        %v8556 = vunpack.c.l.b16 %v8211
        %v8557 = vunpack.c.l.b16 %v8225
        %v8558 = vunpack.c.l.b16 %v8235
        %v8559 = vunpack.c.l.b16 %v8249
        %v8560 = vunpack.c.l.b16 %v8259
        %v8561 = vunpack.c.l.b16 %v8273
        %v8562 = vunpack.c.l.b16 %v8283
        %v8563 = vunpack.c.l.b16 %v8297
        %v8564 = vunpack.c.l.b16 %v8307
        %v8565 = vunpack.c.l.b16 %v8321
        %v8566 = vunpack.c.l.b16 %v8331
        %v8567 = vunpack.c.l.b16 %v8345
        %v8568 = vunpack.c.l.b16 %v8355
        %v8569 = vunpack.c.l.b16 %v8369
        %v8570 = vunpack.c.l.b16 %v8379
        %v8571 = vunpack.c.l.b16 %v8393
        %v8572 = vunpack.c.l.b16 %v8403
        %v8573 = vunpack.c.l.b16 %v8417
        %v8574 = vunpack.c.l.b16 %v8427
        %v8575 = vunpack.c.l.b16 %v8441
        %v8576 = vunpack.c.l.b16 %v8451
        %v8577 = vunpack.c.l.b16 %v8465
        %v8578 = vunpack.c.l.b16 %v8475
        %v8579 = vunpack.c.l.b16 %v8489
        %v8580 = vunpack.c.l.b16 %v8499
        %v8581 = vunpack.c.l.b16 %v8513
        %v8582 = vunpack.c.l.b16 %v8523
        %v8583 = vunpack.c.l.b16 %v8537
        %v8584 = vunpack.c.l.b16 %v8547
        %v8585 = vpack.c.b16 %v8554, %v8553
        %v8586 = vpack.c.b16 %v8556, %v8555
        %v8587 = vpack.c.b16 %v8558, %v8557
        %v8588 = vpack.c.b16 %v8560, %v8559
        %v8589 = vpack.c.b16 %v8562, %v8561
        %v8590 = vpack.c.b16 %v8564, %v8563
        %v8591 = vpack.c.b16 %v8566, %v8565
        %v8592 = vpack.c.b16 %v8568, %v8567
        %v8593 = vpack.c.b16 %v8570, %v8569
        %v8594 = vpack.c.b16 %v8572, %v8571
        %v8595 = vpack.c.b16 %v8574, %v8573
        %v8596 = vpack.c.b16 %v8576, %v8575
        %v8597 = vpack.c.b16 %v8578, %v8577
        %v8598 = vpack.c.b16 %v8580, %v8579
        %v8599 = vpack.c.b16 %v8582, %v8581
        %v8600 = vpack.c.b16 %v8584, %v8583
        %v8605 = vunpack.c.l.b16 %v8549
        %v8606 = vunpack.c.l.b16 %v8550
        %v8607 = vunpack.c.l.b16 %v8551
        %v8608 = vunpack.c.l.b16 %v8552
        %v8609 = vpack.c.b16 %v8606, %v8605
        %v8610 = vpack.c.b16 %v8608, %v8607
        %v8614 = vsel %vm850, %v8585, 0
        %v8617 = vsel %vm850, %v8586, 0
        %v8620 = vsel %vm850, %v8587, 0
        %v8623 = vsel %vm850, %v8588, 0
        %v8626 = vsel %vm850, %v8589, 0
        %v8629 = vsel %vm850, %v8590, 0
        %v8632 = vsel %vm850, %v8591, 0
        %v8635 = vsel %vm850, %v8592, 0
        %v8638 = vsel %vm850, %v8593, 0
        %v8641 = vsel %vm850, %v8594, 0
        %v8644 = vsel %vm850, %v8595, 0
        %v8647 = vsel %vm850, %v8596, 0
        %v8650 = vsel %vm850, %v8597, 0
        %v8653 = vsel %vm850, %v8598, 0
        %v8656 = vsel %vm850, %v8599, 0
        %v8659 = vsel %vm850, %v8600, 0
        %8661 = vmatprep.subr.bf16.mxu0 0
        %8662 = vmatpush1.bf16.msra.mxu0 %v8609
        %8663 = vmatprep.subr.bf16.mxu0 0
        %8664 = vmatpush1.bf16.msra.mxu0 %v8610
        %8665 = vmatprep.subr.bf16.mxu0 0
        %8666 = vmatpush1.bf16.msra.mxu0 0
        %8667 = vmatprep.subr.bf16.mxu0 0
        %8668 = vmatpush1.bf16.msra.mxu0 0
        %8669 = vmatprep.subr.bf16.mxu0 0
        %8670 = vmatpush1.bf16.msra.mxu0 0
        %8671 = vmatprep.subr.bf16.mxu0 0
        %8672 = vmatpush1.bf16.msra.mxu0 0
        %8673 = vmatprep.subr.bf16.mxu0 0
        %8674 = vmatpush1.bf16.msra.mxu0 0
        %8675 = vmatprep.subr.bf16.mxu0 0
        %8676 = vmatpush1.bf16.msra.mxu0 0
        %8677 = vmatprep.subr.bf16.mxu0 0
        %8678 = vmatpush1.bf16.msra.mxu0 0
        %8679 = vmatprep.subr.bf16.mxu0 0
        %8680 = vmatpush1.bf16.msra.mxu0 0
        %8681 = vmatprep.subr.bf16.mxu0 0
        %8682 = vmatpush1.bf16.msra.mxu0 0
        %8683 = vmatprep.subr.bf16.mxu0 0
        %8684 = vmatpush1.bf16.msra.mxu0 0
        %8685 = vmatprep.subr.bf16.mxu0 0
        %8686 = vmatpush1.bf16.msra.mxu0 0
        %8687 = vmatprep.subr.bf16.mxu0 0
        %8688 = vmatpush1.bf16.msra.mxu0 0
        %8689 = vmatprep.subr.bf16.mxu0 0
        %8690 = vmatpush1.bf16.msra.mxu0 0
        %8691 = vmatprep.subr.bf16.mxu0 0
        %8692 = vmatpush1.bf16.msra.mxu0 0
        %8693 = vmatprep.mubr.bf16.mxu0 0
        %8694 = vmatmul.mubr.bf16.gmra.mrb[0].mxu0 %v8614
        %v8695 = vpop.f32.mrb[0].mxu0
        %v8696 = vadd.f32 0.0, %v8695
        %v8697 = vpop.f32.mrb[0].mxu0
        %v8698 = vpop.f32.mrb[0].mxu0
        %v8699 = vadd.f32 0.0, %v8698
        %v8700 = vpop.f32.mrb[0].mxu0
        %8701 = vmatprep.mubr.bf16.mxu0 0
        %8702 = vmatmul.mubr.bf16.gmra.mrb[0].mxu0 %v8617
        %v8703 = vpop.f32.mrb[0].mxu0
        %v8704 = vadd.f32 0.0, %v8703
        %v8705 = vpop.f32.mrb[0].mxu0
        %v8706 = vpop.f32.mrb[0].mxu0
        %v8707 = vadd.f32 0.0, %v8706
        %v8708 = vpop.f32.mrb[0].mxu0
        %8709 = vmatprep.mubr.bf16.mxu0 0
        %8710 = vmatmul.mubr.bf16.gmra.mrb[0].mxu0 %v8620
        %v8711 = vpop.f32.mrb[0].mxu0
        %v8712 = vadd.f32 0.0, %v8711
        %v8713 = vpop.f32.mrb[0].mxu0
        %v8714 = vpop.f32.mrb[0].mxu0
        %v8715 = vadd.f32 0.0, %v8714
        %v8716 = vpop.f32.mrb[0].mxu0
        %8717 = vmatprep.mubr.bf16.mxu0 0
        %8718 = vmatmul.mubr.bf16.gmra.mrb[0].mxu0 %v8623
        %v8719 = vpop.f32.mrb[0].mxu0
        %v8720 = vadd.f32 0.0, %v8719
        %v8721 = vpop.f32.mrb[0].mxu0
        %v8722 = vpop.f32.mrb[0].mxu0
        %v8723 = vadd.f32 0.0, %v8722
        %v8724 = vpop.f32.mrb[0].mxu0
        %8725 = vmatprep.mubr.bf16.mxu0 0
        %8726 = vmatmul.mubr.bf16.gmra.mrb[0].mxu0 %v8626
        %v8727 = vpop.f32.mrb[0].mxu0
        %v8728 = vadd.f32 0.0, %v8727
        %v8729 = vpop.f32.mrb[0].mxu0
        %v8730 = vpop.f32.mrb[0].mxu0
        %v8731 = vadd.f32 0.0, %v8730
        %v8732 = vpop.f32.mrb[0].mxu0
        %8733 = vmatprep.mubr.bf16.mxu0 0
        %8734 = vmatmul.mubr.bf16.gmra.mrb[0].mxu0 %v8629
        %v8735 = vpop.f32.mrb[0].mxu0
        %v8736 = vadd.f32 0.0, %v8735
        %v8737 = vpop.f32.mrb[0].mxu0
        %v8738 = vpop.f32.mrb[0].mxu0
        %v8739 = vadd.f32 0.0, %v8738
        %v8740 = vpop.f32.mrb[0].mxu0
        %8741 = vmatprep.mubr.bf16.mxu0 0
        %8742 = vmatmul.mubr.bf16.gmra.mrb[0].mxu0 %v8632
        %v8743 = vpop.f32.mrb[0].mxu0
        %v8744 = vadd.f32 0.0, %v8743
        %v8745 = vpop.f32.mrb[0].mxu0
        %v8746 = vpop.f32.mrb[0].mxu0
        %v8747 = vadd.f32 0.0, %v8746
        %v8748 = vpop.f32.mrb[0].mxu0
        %8749 = vmatprep.mubr.bf16.mxu0 0
        %8750 = vmatmul.mubr.bf16.gmra.mrb[0].mxu0 %v8635
        %v8751 = vpop.f32.mrb[0].mxu0
        %v8752 = vadd.f32 0.0, %v8751
        %v8753 = vpop.f32.mrb[0].mxu0
        %v8754 = vpop.f32.mrb[0].mxu0
        %v8755 = vadd.f32 0.0, %v8754
        %v8756 = vpop.f32.mrb[0].mxu0
        %8757 = vmatprep.mubr.bf16.mxu0 0
        %8758 = vmatmul.mubr.bf16.gmra.mrb[0].mxu0 %v8638
        %v8759 = vpop.f32.mrb[0].mxu0
        %v8760 = vadd.f32 0.0, %v8759
        %v8761 = vpop.f32.mrb[0].mxu0
        %v8762 = vpop.f32.mrb[0].mxu0
        %v8763 = vadd.f32 0.0, %v8762
        %v8764 = vpop.f32.mrb[0].mxu0
        %8765 = vmatprep.mubr.bf16.mxu0 0
        %8766 = vmatmul.mubr.bf16.gmra.mrb[0].mxu0 %v8641
        %v8767 = vpop.f32.mrb[0].mxu0
        %v8768 = vadd.f32 0.0, %v8767
        %v8769 = vpop.f32.mrb[0].mxu0
        %v8770 = vpop.f32.mrb[0].mxu0
        %v8771 = vadd.f32 0.0, %v8770
        %v8772 = vpop.f32.mrb[0].mxu0
        %8773 = vmatprep.mubr.bf16.mxu0 0
        %8774 = vmatmul.mubr.bf16.gmra.mrb[0].mxu0 %v8644
        %v8775 = vpop.f32.mrb[0].mxu0
        %v8776 = vadd.f32 0.0, %v8775
        %v8777 = vpop.f32.mrb[0].mxu0
        %v8778 = vpop.f32.mrb[0].mxu0
        %v8779 = vadd.f32 0.0, %v8778
        %v8780 = vpop.f32.mrb[0].mxu0
        %8781 = vmatprep.mubr.bf16.mxu0 0
        %8782 = vmatmul.mubr.bf16.gmra.mrb[0].mxu0 %v8647
        %v8783 = vpop.f32.mrb[0].mxu0
        %v8784 = vadd.f32 0.0, %v8783
        %v8785 = vpop.f32.mrb[0].mxu0
        %v8786 = vpop.f32.mrb[0].mxu0
        %v8787 = vadd.f32 0.0, %v8786
        %v8788 = vpop.f32.mrb[0].mxu0
        %8789 = vmatprep.mubr.bf16.mxu0 0
        %8790 = vmatmul.mubr.bf16.gmra.mrb[0].mxu0 %v8650
        %v8791 = vpop.f32.mrb[0].mxu0
        %v8792 = vadd.f32 0.0, %v8791
        %v8793 = vpop.f32.mrb[0].mxu0
        %v8794 = vpop.f32.mrb[0].mxu0
        %v8795 = vadd.f32 0.0, %v8794
        %v8796 = vpop.f32.mrb[0].mxu0
        %8797 = vmatprep.mubr.bf16.mxu0 0
        %8798 = vmatmul.mubr.bf16.gmra.mrb[0].mxu0 %v8653
        %v8799 = vpop.f32.mrb[0].mxu0
        %v8800 = vadd.f32 0.0, %v8799
        %v8801 = vpop.f32.mrb[0].mxu0
        %v8802 = vpop.f32.mrb[0].mxu0
        %v8803 = vadd.f32 0.0, %v8802
        %v8804 = vpop.f32.mrb[0].mxu0
        %8805 = vmatprep.mubr.bf16.mxu0 0
        %8806 = vmatmul.mubr.bf16.gmra.mrb[0].mxu0 %v8656
        %v8807 = vpop.f32.mrb[0].mxu0
        %v8808 = vadd.f32 0.0, %v8807
        %v8809 = vpop.f32.mrb[0].mxu0
        %v8810 = vpop.f32.mrb[0].mxu0
        %v8811 = vadd.f32 0.0, %v8810
        %v8812 = vpop.f32.mrb[0].mxu0
        %8813 = vmatprep.mubr.bf16.mxu0 0
        %8814 = vmatmul.mubr.bf16.gmra.mrb[0].mxu0 %v8659
        %v8815 = vpop.f32.mrb[0].mxu0
        %v8816 = vadd.f32 0.0, %v8815
        %v8817 = vpop.f32.mrb[0].mxu0
        %v8818 = vpop.f32.mrb[0].mxu0
        %v8819 = vadd.f32 0.0, %v8818
        %v8820 = vpop.f32.mrb[0].mxu0
        %8821 = vdwg.mxu0
        %v8822 = vadd.f32 %v8084, %v8696
        %v8823 = vadd.f32 %v8085, %v8699
        %v8824 = vadd.f32 %v8086, %v8704
        %v8825 = vadd.f32 %v8087, %v8707
        %v8826 = vadd.f32 %v8088, %v8712
        %v8827 = vadd.f32 %v8089, %v8715
        %v8828 = vadd.f32 %v8090, %v8720
        %v8829 = vadd.f32 %v8091, %v8723
        %v8830 = vadd.f32 %v8092, %v8728
        %v8831 = vadd.f32 %v8093, %v8731
        %v8832 = vadd.f32 %v8094, %v8736
        %v8833 = vadd.f32 %v8095, %v8739
        %v8834 = vadd.f32 %v8096, %v8744
        %v8835 = vadd.f32 %v8097, %v8747
        %v8836 = vadd.f32 %v8098, %v8752
        %v8837 = vadd.f32 %v8099, %v8755
        %v8838 = vadd.f32 %v8100, %v8760
        %v8839 = vadd.f32 %v8101, %v8763
        %v8840 = vadd.f32 %v8102, %v8768
        %v8841 = vadd.f32 %v8103, %v8771
        %v8842 = vadd.f32 %v8104, %v8776
        %v8843 = vadd.f32 %v8105, %v8779
        %v8844 = vadd.f32 %v8106, %v8784
        %v8845 = vadd.f32 %v8107, %v8787
        %v8846 = vadd.f32 %v8108, %v8792
        %v8847 = vadd.f32 %v8109, %v8795
        %v8848 = vadd.f32 %v8110, %v8800
        %v8849 = vadd.f32 %v8111, %v8803
        %v8850 = vadd.f32 %v8112, %v8808
        %v8851 = vadd.f32 %v8113, %v8811
        %v8852 = vadd.f32 %v8114, %v8816
        %v8853 = vadd.f32 %v8115, %v8819
        %v8854 = vld [vmem:[%s6660] sm:$0xe]
        %v8855 = vld [vmem:[%s6660 + $0xc] sm:$0xe]
        %v8856 = vld [vmem:[%s6660 + $0x18] sm:$0xe]
        %v8857 = vld [vmem:[%s6660 + $0x24] sm:$0xe]
        %v8858 = vld [vmem:[%s6660 + $0x30] sm:$0xe]
        %v8859 = vld [vmem:[%s6660 + $0x3c] sm:$0xe]
        %v8860 = vld [vmem:[%s6660 + $0x48] sm:$0xe]
        %v8861 = vld [vmem:[%s6660 + $0x54] sm:$0xe]
        %v8862 = vld [vmem:[%s6660 + $0x60] sm:$0xe]
        %v8863 = vld [vmem:[%s6660 + $0x6c] sm:$0xe]
        %v8864 = vld [vmem:[%s6660 + $0x78] sm:$0xe]
        %v8865 = vld [vmem:[%s6660 + $0x84] sm:$0xe]
        %v8866 = vld [vmem:[%s6660 + $0x90] sm:$0xe]
        %v8867 = vld [vmem:[%s6660 + $0x9c] sm:$0xe]
        %v8868 = vld [vmem:[%s6660 + $0xa8] sm:$0xe]
        %v8869 = vld [vmem:[%s6660 + $0xb4] sm:$0xe]
        %v8918 = vrot.slane %v8854, 5
        %v8919 = vrot.slane %v8918, 4
        %v8920 = vrot.slane %v7391, 5
        %v8921 = vsel %vm2625, %v8919, %v8920
        %v8922 = vrot.slane %v8920, 4
        %v8923 = vrot.slane %v7392, 5
        %v8924 = vsel %vm2625, %v8922, %v8923
        %v8925 = vrot.slane %v8855, 5
        %v8926 = vrot.slane %v8925, 4
        %v8927 = vrot.slane %v7394, 5
        %v8928 = vsel %vm2625, %v8926, %v8927
        %v8929 = vrot.slane %v8927, 4
        %v8930 = vrot.slane %v7395, 5
        %v8931 = vsel %vm2625, %v8929, %v8930
        %v8932 = vrot.slane %v8856, 5
        %v8933 = vrot.slane %v8932, 4
        %v8934 = vrot.slane %v7397, 5
        %v8935 = vsel %vm2625, %v8933, %v8934
        %v8936 = vrot.slane %v8934, 4
        %v8937 = vrot.slane %v7398, 5
        %v8938 = vsel %vm2625, %v8936, %v8937
        %v8939 = vrot.slane %v8857, 5
        %v8940 = vrot.slane %v8939, 4
        %v8941 = vrot.slane %v7400, 5
        %v8942 = vsel %vm2625, %v8940, %v8941
        %v8943 = vrot.slane %v8941, 4
        %v8944 = vrot.slane %v7401, 5
        %v8945 = vsel %vm2625, %v8943, %v8944
        %v8946 = vrot.slane %v8858, 5
        %v8947 = vrot.slane %v8946, 4
        %v8948 = vrot.slane %v7403, 5
        %v8949 = vsel %vm2625, %v8947, %v8948
        %v8950 = vrot.slane %v8948, 4
        %v8951 = vrot.slane %v7404, 5
        %v8952 = vsel %vm2625, %v8950, %v8951
        %v8953 = vrot.slane %v8859, 5
        %v8954 = vrot.slane %v8953, 4
        %v8955 = vrot.slane %v7406, 5
        %v8956 = vsel %vm2625, %v8954, %v8955
        %v8957 = vrot.slane %v8955, 4
        %v8958 = vrot.slane %v7407, 5
        %v8959 = vsel %vm2625, %v8957, %v8958
        %v8960 = vrot.slane %v8860, 5
        %v8961 = vrot.slane %v8960, 4
        %v8962 = vrot.slane %v7409, 5
        %v8963 = vsel %vm2625, %v8961, %v8962
        %v8964 = vrot.slane %v8962, 4
        %v8965 = vrot.slane %v7410, 5
        %v8966 = vsel %vm2625, %v8964, %v8965
        %v8967 = vrot.slane %v8861, 5
        %v8968 = vrot.slane %v8967, 4
        %v8969 = vrot.slane %v7412, 5
        %v8970 = vsel %vm2625, %v8968, %v8969
        %v8971 = vrot.slane %v8969, 4
        %v8972 = vrot.slane %v7413, 5
        %v8973 = vsel %vm2625, %v8971, %v8972
        %v8974 = vrot.slane %v8862, 5
        %v8975 = vrot.slane %v8974, 4
        %v8976 = vrot.slane %v7415, 5
        %v8977 = vsel %vm2625, %v8975, %v8976
        %v8978 = vrot.slane %v8976, 4
        %v8979 = vrot.slane %v7416, 5
        %v8980 = vsel %vm2625, %v8978, %v8979
        %v8981 = vrot.slane %v8863, 5
        %v8982 = vrot.slane %v8981, 4
        %v8983 = vrot.slane %v7418, 5
        %v8984 = vsel %vm2625, %v8982, %v8983
        %v8985 = vrot.slane %v8983, 4
        %v8986 = vrot.slane %v7419, 5
        %v8987 = vsel %vm2625, %v8985, %v8986
        %v8988 = vrot.slane %v8864, 5
        %v8989 = vrot.slane %v8988, 4
        %v8990 = vrot.slane %v7421, 5
        %v8991 = vsel %vm2625, %v8989, %v8990
        %v8992 = vrot.slane %v8990, 4
        %v8993 = vrot.slane %v7422, 5
        %v8994 = vsel %vm2625, %v8992, %v8993
        %v8995 = vrot.slane %v8865, 5
        %v8996 = vrot.slane %v8995, 4
        %v8997 = vrot.slane %v7424, 5
        %v8998 = vsel %vm2625, %v8996, %v8997
        %v8999 = vrot.slane %v8997, 4
        %v9000 = vrot.slane %v7425, 5
        %v9001 = vsel %vm2625, %v8999, %v9000
        %v9002 = vrot.slane %v8866, 5
        %v9003 = vrot.slane %v9002, 4
        %v9004 = vrot.slane %v7427, 5
        %v9005 = vsel %vm2625, %v9003, %v9004
        %v9006 = vrot.slane %v9004, 4
        %v9007 = vrot.slane %v7428, 5
        %v9008 = vsel %vm2625, %v9006, %v9007
        %v9009 = vrot.slane %v8867, 5
        %v9010 = vrot.slane %v9009, 4
        %v9011 = vrot.slane %v7430, 5
        %v9012 = vsel %vm2625, %v9010, %v9011
        %v9013 = vrot.slane %v9011, 4
        %v9014 = vrot.slane %v7431, 5
        %v9015 = vsel %vm2625, %v9013, %v9014
        %v9016 = vrot.slane %v8868, 5
        %v9017 = vrot.slane %v9016, 4
        %v9018 = vrot.slane %v7433, 5
        %v9019 = vsel %vm2625, %v9017, %v9018
        %v9020 = vrot.slane %v9018, 4
        %v9021 = vrot.slane %v7434, 5
        %v9022 = vsel %vm2625, %v9020, %v9021
        %v9023 = vrot.slane %v8869, 5
        %v9024 = vrot.slane %v9023, 4
        %v9025 = vrot.slane %v7436, 5
        %v9026 = vsel %vm2625, %v9024, %v9025
        %v9027 = vrot.slane %v9025, 4
        %v9028 = vrot.slane %v7437, 5
        %v9029 = vsel %vm2625, %v9027, %v9028
        %s9030 = scalar_lea.vmem %s2, 16
        %v9031 = vld [vmem:[%s9030] sm:$0x3]
        %v9032 = vunpack.c.l.b16 %v8921
        %v9033 = vunpack.c.l.b16 %v8924
        %v9034 = vunpack.c.l.b16 %v8928
        %v9035 = vunpack.c.l.b16 %v8931
        %v9036 = vunpack.c.l.b16 %v8935
        %v9037 = vunpack.c.l.b16 %v8938
        %v9038 = vunpack.c.l.b16 %v8942
        %v9039 = vunpack.c.l.b16 %v8945
        %v9040 = vunpack.c.l.b16 %v8949
        %v9041 = vunpack.c.l.b16 %v8952
        %v9042 = vunpack.c.l.b16 %v8956
        %v9043 = vunpack.c.l.b16 %v8959
        %v9044 = vunpack.c.l.b16 %v8963
        %v9045 = vunpack.c.l.b16 %v8966
        %v9046 = vunpack.c.l.b16 %v8970
        %v9047 = vunpack.c.l.b16 %v8973
        %v9048 = vunpack.c.l.b16 %v8977
        %v9049 = vunpack.c.l.b16 %v8980
        %v9050 = vunpack.c.l.b16 %v8984
        %v9051 = vunpack.c.l.b16 %v8987
        %v9052 = vunpack.c.l.b16 %v8991
        %v9053 = vunpack.c.l.b16 %v8994
        %v9054 = vunpack.c.l.b16 %v8998
        %v9055 = vunpack.c.l.b16 %v9001
        %v9056 = vunpack.c.l.b16 %v9005
        %v9057 = vunpack.c.l.b16 %v9008
        %v9058 = vunpack.c.l.b16 %v9012
        %v9059 = vunpack.c.l.b16 %v9015
        %v9060 = vunpack.c.l.b16 %v9019
        %v9061 = vunpack.c.l.b16 %v9022
        %v9062 = vunpack.c.l.b16 %v9026
        %v9063 = vunpack.c.l.b16 %v9029
        %v9064 = vpack.c.b16 %v9033, %v9032
        %v9065 = vpack.c.b16 %v9035, %v9034
        %v9066 = vpack.c.b16 %v9037, %v9036
        %v9067 = vpack.c.b16 %v9039, %v9038
        %v9068 = vpack.c.b16 %v9041, %v9040
        %v9069 = vpack.c.b16 %v9043, %v9042
        %v9070 = vpack.c.b16 %v9045, %v9044
        %v9071 = vpack.c.b16 %v9047, %v9046
        %v9072 = vpack.c.b16 %v9049, %v9048
        %v9073 = vpack.c.b16 %v9051, %v9050
        %v9074 = vpack.c.b16 %v9053, %v9052
        %v9075 = vpack.c.b16 %v9055, %v9054
        %v9076 = vpack.c.b16 %v9057, %v9056
        %v9077 = vpack.c.b16 %v9059, %v9058
        %v9078 = vpack.c.b16 %v9061, %v9060
        %v9079 = vpack.c.b16 %v9063, %v9062
        %v9081 = vsel %vm476, %v9064, 0
        %v9084 = vsel %vm476, %v9065, 0
        %v9087 = vsel %vm476, %v9066, 0
        %v9090 = vsel %vm476, %v9067, 0
        %v9093 = vsel %vm476, %v9068, 0
        %v9096 = vsel %vm476, %v9069, 0
        %v9099 = vsel %vm476, %v9070, 0
        %v9102 = vsel %vm476, %v9071, 0
        %v9105 = vsel %vm476, %v9072, 0
        %v9108 = vsel %vm476, %v9073, 0
        %v9111 = vsel %vm476, %v9074, 0
        %v9114 = vsel %vm476, %v9075, 0
        %v9117 = vsel %vm476, %v9076, 0
        %v9120 = vsel %vm476, %v9077, 0
        %v9123 = vsel %vm476, %v9078, 0
        %v9126 = vsel %vm476, %v9079, 0
        %v9129 = vsel %vm525, %v9031, 0
        %9131 = vmatprep.subr.bf16.mxu0 0
        %9132 = vmatpush1.bf16.msra.mxu0 %v9129
        %9133 = vmatprep.subr.bf16.mxu0 0
        %9134 = vmatpush1.bf16.msra.mxu0 0
        %9135 = vmatprep.subr.bf16.mxu0 0
        %9136 = vmatpush1.bf16.msra.mxu0 0
        %9137 = vmatprep.subr.bf16.mxu0 0
        %9138 = vmatpush1.bf16.msra.mxu0 0
        %9139 = vmatprep.subr.bf16.mxu0 0
        %9140 = vmatpush1.bf16.msra.mxu0 0
        %9141 = vmatprep.subr.bf16.mxu0 0
        %9142 = vmatpush1.bf16.msra.mxu0 0
        %9143 = vmatprep.subr.bf16.mxu0 0
        %9144 = vmatpush1.bf16.msra.mxu0 0
        %9145 = vmatprep.subr.bf16.mxu0 0
        %9146 = vmatpush1.bf16.msra.mxu0 0
        %9147 = vmatprep.subr.bf16.mxu0 0
        %9148 = vmatpush1.bf16.msra.mxu0 0
        %9149 = vmatprep.subr.bf16.mxu0 0
        %9150 = vmatpush1.bf16.msra.mxu0 0
        %9151 = vmatprep.subr.bf16.mxu0 0
        %9152 = vmatpush1.bf16.msra.mxu0 0
        %9153 = vmatprep.subr.bf16.mxu0 0
        %9154 = vmatpush1.bf16.msra.mxu0 0
        %9155 = vmatprep.subr.bf16.mxu0 0
        %9156 = vmatpush1.bf16.msra.mxu0 0
        %9157 = vmatprep.subr.bf16.mxu0 0
        %9158 = vmatpush1.bf16.msra.mxu0 0
        %9159 = vmatprep.subr.bf16.mxu0 0
        %9160 = vmatpush1.bf16.msra.mxu0 0
        %9161 = vmatprep.subr.bf16.mxu0 0
        %9162 = vmatpush1.bf16.msra.mxu0 0
        %9163 = vmatprep.mubr.bf16.mxu0 0
        %9164 = vmatmul.mubr.bf16.gmra.mrb[0].mxu0 %v9081
        %v9165 = vpop.f32.mrb[0].mxu0
        %v9166 = vadd.f32 0.0, %v9165
        %v9167 = vpop.f32.mrb[0].mxu0
        %v9168 = vpop.f32.mrb[0].mxu0
        %v9169 = vadd.f32 0.0, %v9168
        %v9170 = vpop.f32.mrb[0].mxu0
        %9171 = vmatprep.mubr.bf16.mxu0 0
        %9172 = vmatmul.mubr.bf16.gmra.mrb[0].mxu0 %v9084
        %v9173 = vpop.f32.mrb[0].mxu0
        %v9174 = vadd.f32 0.0, %v9173
        %v9175 = vpop.f32.mrb[0].mxu0
        %v9176 = vpop.f32.mrb[0].mxu0
        %v9177 = vadd.f32 0.0, %v9176
        %v9178 = vpop.f32.mrb[0].mxu0
        %9179 = vmatprep.mubr.bf16.mxu0 0
        %9180 = vmatmul.mubr.bf16.gmra.mrb[0].mxu0 %v9087
        %v9181 = vpop.f32.mrb[0].mxu0
        %v9182 = vadd.f32 0.0, %v9181
        %v9183 = vpop.f32.mrb[0].mxu0
        %v9184 = vpop.f32.mrb[0].mxu0
        %v9185 = vadd.f32 0.0, %v9184
        %v9186 = vpop.f32.mrb[0].mxu0
        %9187 = vmatprep.mubr.bf16.mxu0 0
        %9188 = vmatmul.mubr.bf16.gmra.mrb[0].mxu0 %v9090
        %v9189 = vpop.f32.mrb[0].mxu0
        %v9190 = vadd.f32 0.0, %v9189
        %v9191 = vpop.f32.mrb[0].mxu0
        %v9192 = vpop.f32.mrb[0].mxu0
        %v9193 = vadd.f32 0.0, %v9192
        %v9194 = vpop.f32.mrb[0].mxu0
        %9195 = vmatprep.mubr.bf16.mxu0 0
        %9196 = vmatmul.mubr.bf16.gmra.mrb[0].mxu0 %v9093
        %v9197 = vpop.f32.mrb[0].mxu0
        %v9198 = vadd.f32 0.0, %v9197
        %v9199 = vpop.f32.mrb[0].mxu0
        %v9200 = vpop.f32.mrb[0].mxu0
        %v9201 = vadd.f32 0.0, %v9200
        %v9202 = vpop.f32.mrb[0].mxu0
        %9203 = vmatprep.mubr.bf16.mxu0 0
        %9204 = vmatmul.mubr.bf16.gmra.mrb[0].mxu0 %v9096
        %v9205 = vpop.f32.mrb[0].mxu0
        %v9206 = vadd.f32 0.0, %v9205
        %v9207 = vpop.f32.mrb[0].mxu0
        %v9208 = vpop.f32.mrb[0].mxu0
        %v9209 = vadd.f32 0.0, %v9208
        %v9210 = vpop.f32.mrb[0].mxu0
        %9211 = vmatprep.mubr.bf16.mxu0 0
        %9212 = vmatmul.mubr.bf16.gmra.mrb[0].mxu0 %v9099
        %v9213 = vpop.f32.mrb[0].mxu0
        %v9214 = vadd.f32 0.0, %v9213
        %v9215 = vpop.f32.mrb[0].mxu0
        %v9216 = vpop.f32.mrb[0].mxu0
        %v9217 = vadd.f32 0.0, %v9216
        %v9218 = vpop.f32.mrb[0].mxu0
        %9219 = vmatprep.mubr.bf16.mxu0 0
        %9220 = vmatmul.mubr.bf16.gmra.mrb[0].mxu0 %v9102
        %v9221 = vpop.f32.mrb[0].mxu0
        %v9222 = vadd.f32 0.0, %v9221
        %v9223 = vpop.f32.mrb[0].mxu0
        %v9224 = vpop.f32.mrb[0].mxu0
        %v9225 = vadd.f32 0.0, %v9224
        %v9226 = vpop.f32.mrb[0].mxu0
        %9227 = vmatprep.mubr.bf16.mxu0 0
        %9228 = vmatmul.mubr.bf16.gmra.mrb[0].mxu0 %v9105
        %v9229 = vpop.f32.mrb[0].mxu0
        %v9230 = vadd.f32 0.0, %v9229
        %v9231 = vpop.f32.mrb[0].mxu0
        %v9232 = vpop.f32.mrb[0].mxu0
        %v9233 = vadd.f32 0.0, %v9232
        %v9234 = vpop.f32.mrb[0].mxu0
        %9235 = vmatprep.mubr.bf16.mxu0 0
        %9236 = vmatmul.mubr.bf16.gmra.mrb[0].mxu0 %v9108
        %v9237 = vpop.f32.mrb[0].mxu0
        %v9238 = vadd.f32 0.0, %v9237
        %v9239 = vpop.f32.mrb[0].mxu0
        %v9240 = vpop.f32.mrb[0].mxu0
        %v9241 = vadd.f32 0.0, %v9240
        %v9242 = vpop.f32.mrb[0].mxu0
        %9243 = vmatprep.mubr.bf16.mxu0 0
        %9244 = vmatmul.mubr.bf16.gmra.mrb[0].mxu0 %v9111
        %v9245 = vpop.f32.mrb[0].mxu0
        %v9246 = vadd.f32 0.0, %v9245
        %v9247 = vpop.f32.mrb[0].mxu0
        %v9248 = vpop.f32.mrb[0].mxu0
        %v9249 = vadd.f32 0.0, %v9248
        %v9250 = vpop.f32.mrb[0].mxu0
        %9251 = vmatprep.mubr.bf16.mxu0 0
        %9252 = vmatmul.mubr.bf16.gmra.mrb[0].mxu0 %v9114
        %v9253 = vpop.f32.mrb[0].mxu0
        %v9254 = vadd.f32 0.0, %v9253
        %v9255 = vpop.f32.mrb[0].mxu0
        %v9256 = vpop.f32.mrb[0].mxu0
        %v9257 = vadd.f32 0.0, %v9256
        %v9258 = vpop.f32.mrb[0].mxu0
        %9259 = vmatprep.mubr.bf16.mxu0 0
        %9260 = vmatmul.mubr.bf16.gmra.mrb[0].mxu0 %v9117
        %v9261 = vpop.f32.mrb[0].mxu0
        %v9262 = vadd.f32 0.0, %v9261
        %v9263 = vpop.f32.mrb[0].mxu0
        %v9264 = vpop.f32.mrb[0].mxu0
        %v9265 = vadd.f32 0.0, %v9264
        %v9266 = vpop.f32.mrb[0].mxu0
        %9267 = vmatprep.mubr.bf16.mxu0 0
        %9268 = vmatmul.mubr.bf16.gmra.mrb[0].mxu0 %v9120
        %v9269 = vpop.f32.mrb[0].mxu0
        %v9270 = vadd.f32 0.0, %v9269
        %v9271 = vpop.f32.mrb[0].mxu0
        %v9272 = vpop.f32.mrb[0].mxu0
        %v9273 = vadd.f32 0.0, %v9272
        %v9274 = vpop.f32.mrb[0].mxu0
        %9275 = vmatprep.mubr.bf16.mxu0 0
        %9276 = vmatmul.mubr.bf16.gmra.mrb[0].mxu0 %v9123
        %v9277 = vpop.f32.mrb[0].mxu0
        %v9278 = vadd.f32 0.0, %v9277
        %v9279 = vpop.f32.mrb[0].mxu0
        %v9280 = vpop.f32.mrb[0].mxu0
        %v9281 = vadd.f32 0.0, %v9280
        %v9282 = vpop.f32.mrb[0].mxu0
        %9283 = vmatprep.mubr.bf16.mxu0 0
        %9284 = vmatmul.mubr.bf16.gmra.mrb[0].mxu0 %v9126
        %v9285 = vpop.f32.mrb[0].mxu0
        %v9286 = vadd.f32 0.0, %v9285
        %v9287 = vpop.f32.mrb[0].mxu0
        %v9288 = vpop.f32.mrb[0].mxu0
        %v9289 = vadd.f32 0.0, %v9288
        %v9290 = vpop.f32.mrb[0].mxu0
        %9291 = vdwg.mxu0
        %v9292 = vadd.f32 %v8822, %v9166
        %v9293 = vadd.f32 %v8823, %v9169
        %v9294 = vadd.f32 %v8824, %v9174
        %v9295 = vadd.f32 %v8825, %v9177
        %v9296 = vadd.f32 %v8826, %v9182
        %v9297 = vadd.f32 %v8827, %v9185
        %v9298 = vadd.f32 %v8828, %v9190
        %v9299 = vadd.f32 %v8829, %v9193
        %v9300 = vadd.f32 %v8830, %v9198
        %v9301 = vadd.f32 %v8831, %v9201
        %v9302 = vadd.f32 %v8832, %v9206
        %v9303 = vadd.f32 %v8833, %v9209
        %v9304 = vadd.f32 %v8834, %v9214
        %v9305 = vadd.f32 %v8835, %v9217
        %v9306 = vadd.f32 %v8836, %v9222
        %v9307 = vadd.f32 %v8837, %v9225
        %v9308 = vadd.f32 %v8838, %v9230
        %v9309 = vadd.f32 %v8839, %v9233
        %v9310 = vadd.f32 %v8840, %v9238
        %v9311 = vadd.f32 %v8841, %v9241
        %v9312 = vadd.f32 %v8842, %v9246
        %v9313 = vadd.f32 %v8843, %v9249
        %v9314 = vadd.f32 %v8844, %v9254
        %v9315 = vadd.f32 %v8845, %v9257
        %v9316 = vadd.f32 %v8846, %v9262
        %v9317 = vadd.f32 %v8847, %v9265
        %v9318 = vadd.f32 %v8848, %v9270
        %v9319 = vadd.f32 %v8849, %v9273
        %v9320 = vadd.f32 %v8850, %v9278
        %v9321 = vadd.f32 %v8851, %v9281
        %v9322 = vadd.f32 %v8852, %v9286
        %v9323 = vadd.f32 %v8853, %v9289
        %v9324 = vld [vmem:[%s7019] sm:$0xe]
        %v9325 = vld [vmem:[%s7019 + $0xc] sm:$0xe]
        %v9326 = vld [vmem:[%s7019 + $0x18] sm:$0xe]
        %v9327 = vld [vmem:[%s7019 + $0x24] sm:$0xe]
        %v9328 = vld [vmem:[%s7019 + $0x30] sm:$0xe]
        %v9329 = vld [vmem:[%s7019 + $0x3c] sm:$0xe]
        %v9330 = vld [vmem:[%s7019 + $0x48] sm:$0xe]
        %v9331 = vld [vmem:[%s7019 + $0x54] sm:$0xe]
        %v9332 = vld [vmem:[%s7019 + $0x60] sm:$0xe]
        %v9333 = vld [vmem:[%s7019 + $0x6c] sm:$0xe]
        %v9334 = vld [vmem:[%s7019 + $0x78] sm:$0xe]
        %v9335 = vld [vmem:[%s7019 + $0x84] sm:$0xe]
        %v9336 = vld [vmem:[%s7019 + $0x90] sm:$0xe]
        %v9337 = vld [vmem:[%s7019 + $0x9c] sm:$0xe]
        %v9338 = vld [vmem:[%s7019 + $0xa8] sm:$0xe]
        %v9339 = vld [vmem:[%s7019 + $0xb4] sm:$0xe]
        %v9388 = vrot.slane %v9324, 5
        %v9389 = vrot.slane %v9388, 4
        %v9390 = vrot.slane %v8117, 5
        %v9391 = vsel %vm2625, %v9389, %v9390
        %v9392 = vrot.slane %v9390, 4
        %v9393 = vrot.slane %v8118, 5
        %v9394 = vsel %vm2625, %v9392, %v9393
        %v9395 = vrot.slane %v9325, 5
        %v9396 = vrot.slane %v9395, 4
        %v9397 = vrot.slane %v8120, 5
        %v9398 = vsel %vm2625, %v9396, %v9397
        %v9399 = vrot.slane %v9397, 4
        %v9400 = vrot.slane %v8121, 5
        %v9401 = vsel %vm2625, %v9399, %v9400
        %v9402 = vrot.slane %v9326, 5
        %v9403 = vrot.slane %v9402, 4
        %v9404 = vrot.slane %v8123, 5
        %v9405 = vsel %vm2625, %v9403, %v9404
        %v9406 = vrot.slane %v9404, 4
        %v9407 = vrot.slane %v8124, 5
        %v9408 = vsel %vm2625, %v9406, %v9407
        %v9409 = vrot.slane %v9327, 5
        %v9410 = vrot.slane %v9409, 4
        %v9411 = vrot.slane %v8126, 5
        %v9412 = vsel %vm2625, %v9410, %v9411
        %v9413 = vrot.slane %v9411, 4
        %v9414 = vrot.slane %v8127, 5
        %v9415 = vsel %vm2625, %v9413, %v9414
        %v9416 = vrot.slane %v9328, 5
        %v9417 = vrot.slane %v9416, 4
        %v9418 = vrot.slane %v8129, 5
        %v9419 = vsel %vm2625, %v9417, %v9418
        %v9420 = vrot.slane %v9418, 4
        %v9421 = vrot.slane %v8130, 5
        %v9422 = vsel %vm2625, %v9420, %v9421
        %v9423 = vrot.slane %v9329, 5
        %v9424 = vrot.slane %v9423, 4
        %v9425 = vrot.slane %v8132, 5
        %v9426 = vsel %vm2625, %v9424, %v9425
        %v9427 = vrot.slane %v9425, 4
        %v9428 = vrot.slane %v8133, 5
        %v9429 = vsel %vm2625, %v9427, %v9428
        %v9430 = vrot.slane %v9330, 5
        %v9431 = vrot.slane %v9430, 4
        %v9432 = vrot.slane %v8135, 5
        %v9433 = vsel %vm2625, %v9431, %v9432
        %v9434 = vrot.slane %v9432, 4
        %v9435 = vrot.slane %v8136, 5
        %v9436 = vsel %vm2625, %v9434, %v9435
        %v9437 = vrot.slane %v9331, 5
        %v9438 = vrot.slane %v9437, 4
        %v9439 = vrot.slane %v8138, 5
        %v9440 = vsel %vm2625, %v9438, %v9439
        %v9441 = vrot.slane %v9439, 4
        %v9442 = vrot.slane %v8139, 5
        %v9443 = vsel %vm2625, %v9441, %v9442
        %v9444 = vrot.slane %v9332, 5
        %v9445 = vrot.slane %v9444, 4
        %v9446 = vrot.slane %v8141, 5
        %v9447 = vsel %vm2625, %v9445, %v9446
        %v9448 = vrot.slane %v9446, 4
        %v9449 = vrot.slane %v8142, 5
        %v9450 = vsel %vm2625, %v9448, %v9449
        %v9451 = vrot.slane %v9333, 5
        %v9452 = vrot.slane %v9451, 4
        %v9453 = vrot.slane %v8144, 5
        %v9454 = vsel %vm2625, %v9452, %v9453
        %v9455 = vrot.slane %v9453, 4
        %v9456 = vrot.slane %v8145, 5
        %v9457 = vsel %vm2625, %v9455, %v9456
        %v9458 = vrot.slane %v9334, 5
        %v9459 = vrot.slane %v9458, 4
        %v9460 = vrot.slane %v8147, 5
        %v9461 = vsel %vm2625, %v9459, %v9460
        %v9462 = vrot.slane %v9460, 4
        %v9463 = vrot.slane %v8148, 5
        %v9464 = vsel %vm2625, %v9462, %v9463
        %v9465 = vrot.slane %v9335, 5
        %v9466 = vrot.slane %v9465, 4
        %v9467 = vrot.slane %v8150, 5
        %v9468 = vsel %vm2625, %v9466, %v9467
        %v9469 = vrot.slane %v9467, 4
        %v9470 = vrot.slane %v8151, 5
        %v9471 = vsel %vm2625, %v9469, %v9470
        %v9472 = vrot.slane %v9336, 5
        %v9473 = vrot.slane %v9472, 4
        %v9474 = vrot.slane %v8153, 5
        %v9475 = vsel %vm2625, %v9473, %v9474
        %v9476 = vrot.slane %v9474, 4
        %v9477 = vrot.slane %v8154, 5
        %v9478 = vsel %vm2625, %v9476, %v9477
        %v9479 = vrot.slane %v9337, 5
        %v9480 = vrot.slane %v9479, 4
        %v9481 = vrot.slane %v8156, 5
        %v9482 = vsel %vm2625, %v9480, %v9481
        %v9483 = vrot.slane %v9481, 4
        %v9484 = vrot.slane %v8157, 5
        %v9485 = vsel %vm2625, %v9483, %v9484
        %v9486 = vrot.slane %v9338, 5
        %v9487 = vrot.slane %v9486, 4
        %v9488 = vrot.slane %v8159, 5
        %v9489 = vsel %vm2625, %v9487, %v9488
        %v9490 = vrot.slane %v9488, 4
        %v9491 = vrot.slane %v8160, 5
        %v9492 = vsel %vm2625, %v9490, %v9491
        %v9493 = vrot.slane %v9339, 5
        %v9494 = vrot.slane %v9493, 4
        %v9495 = vrot.slane %v8162, 5
        %v9496 = vsel %vm2625, %v9494, %v9495
        %v9497 = vrot.slane %v9495, 4
        %v9498 = vrot.slane %v8163, 5
        %v9499 = vsel %vm2625, %v9497, %v9498
        %s9500 = scalar_lea.vmem %s3, 128
        %v9501 = vld [vmem:[%s9500] sm:$0xf]
        %v9502 = vld [vmem:[%s9500 + $0x4] sm:$0xf]
        %v9503 = vld [vmem:[%s9500 + $0x8] sm:$0xf]
        %v9504 = vld [vmem:[%s9500 + $0xc] sm:$0xf]
        %v9505 = vunpack.c.l.b16 %v9391
        %v9506 = vunpack.c.l.b16 %v9394
        %v9507 = vunpack.c.l.b16 %v9398
        %v9508 = vunpack.c.l.b16 %v9401
        %v9509 = vunpack.c.l.b16 %v9405
        %v9510 = vunpack.c.l.b16 %v9408
        %v9511 = vunpack.c.l.b16 %v9412
        %v9512 = vunpack.c.l.b16 %v9415
        %v9513 = vunpack.c.l.b16 %v9419
        %v9514 = vunpack.c.l.b16 %v9422
        %v9515 = vunpack.c.l.b16 %v9426
        %v9516 = vunpack.c.l.b16 %v9429
        %v9517 = vunpack.c.l.b16 %v9433
        %v9518 = vunpack.c.l.b16 %v9436
        %v9519 = vunpack.c.l.b16 %v9440
        %v9520 = vunpack.c.l.b16 %v9443
        %v9521 = vunpack.c.l.b16 %v9447
        %v9522 = vunpack.c.l.b16 %v9450
        %v9523 = vunpack.c.l.b16 %v9454
        %v9524 = vunpack.c.l.b16 %v9457
        %v9525 = vunpack.c.l.b16 %v9461
        %v9526 = vunpack.c.l.b16 %v9464
        %v9527 = vunpack.c.l.b16 %v9468
        %v9528 = vunpack.c.l.b16 %v9471
        %v9529 = vunpack.c.l.b16 %v9475
        %v9530 = vunpack.c.l.b16 %v9478
        %v9531 = vunpack.c.l.b16 %v9482
        %v9532 = vunpack.c.l.b16 %v9485
        %v9533 = vunpack.c.l.b16 %v9489
        %v9534 = vunpack.c.l.b16 %v9492
        %v9535 = vunpack.c.l.b16 %v9496
        %v9536 = vunpack.c.l.b16 %v9499
        %v9537 = vpack.c.b16 %v9506, %v9505
        %v9538 = vpack.c.b16 %v9508, %v9507
        %v9539 = vpack.c.b16 %v9510, %v9509
        %v9540 = vpack.c.b16 %v9512, %v9511
        %v9541 = vpack.c.b16 %v9514, %v9513
        %v9542 = vpack.c.b16 %v9516, %v9515
        %v9543 = vpack.c.b16 %v9518, %v9517
        %v9544 = vpack.c.b16 %v9520, %v9519
        %v9545 = vpack.c.b16 %v9522, %v9521
        %v9546 = vpack.c.b16 %v9524, %v9523
        %v9547 = vpack.c.b16 %v9526, %v9525
        %v9548 = vpack.c.b16 %v9528, %v9527
        %v9549 = vpack.c.b16 %v9530, %v9529
        %v9550 = vpack.c.b16 %v9532, %v9531
        %v9551 = vpack.c.b16 %v9534, %v9533
        %v9552 = vpack.c.b16 %v9536, %v9535
        %v9557 = vunpack.c.l.b16 %v9501
        %v9558 = vunpack.c.l.b16 %v9502
        %v9559 = vunpack.c.l.b16 %v9503
        %v9560 = vunpack.c.l.b16 %v9504
        %v9561 = vpack.c.b16 %v9558, %v9557
        %v9562 = vpack.c.b16 %v9560, %v9559
        %v9566 = vsel %vm850, %v9537, 0
        %v9569 = vsel %vm850, %v9538, 0
        %v9572 = vsel %vm850, %v9539, 0
        %v9575 = vsel %vm850, %v9540, 0
        %v9578 = vsel %vm850, %v9541, 0
        %v9581 = vsel %vm850, %v9542, 0
        %v9584 = vsel %vm850, %v9543, 0
        %v9587 = vsel %vm850, %v9544, 0
        %v9590 = vsel %vm850, %v9545, 0
        %v9593 = vsel %vm850, %v9546, 0
        %v9596 = vsel %vm850, %v9547, 0
        %v9599 = vsel %vm850, %v9548, 0
        %v9602 = vsel %vm850, %v9549, 0
        %v9605 = vsel %vm850, %v9550, 0
        %v9608 = vsel %vm850, %v9551, 0
        %v9611 = vsel %vm850, %v9552, 0
        %9613 = vmatprep.subr.bf16.mxu0 0
        %9614 = vmatpush1.bf16.msra.mxu0 %v9561
        %9615 = vmatprep.subr.bf16.mxu0 0
        %9616 = vmatpush1.bf16.msra.mxu0 %v9562
        %9617 = vmatprep.subr.bf16.mxu0 0
        %9618 = vmatpush1.bf16.msra.mxu0 0
        %9619 = vmatprep.subr.bf16.mxu0 0
        %9620 = vmatpush1.bf16.msra.mxu0 0
        %9621 = vmatprep.subr.bf16.mxu0 0
        %9622 = vmatpush1.bf16.msra.mxu0 0
        %9623 = vmatprep.subr.bf16.mxu0 0
        %9624 = vmatpush1.bf16.msra.mxu0 0
        %9625 = vmatprep.subr.bf16.mxu0 0
        %9626 = vmatpush1.bf16.msra.mxu0 0
        %9627 = vmatprep.subr.bf16.mxu0 0
        %9628 = vmatpush1.bf16.msra.mxu0 0
        %9629 = vmatprep.subr.bf16.mxu0 0
        %9630 = vmatpush1.bf16.msra.mxu0 0
        %9631 = vmatprep.subr.bf16.mxu0 0
        %9632 = vmatpush1.bf16.msra.mxu0 0
        %9633 = vmatprep.subr.bf16.mxu0 0
        %9634 = vmatpush1.bf16.msra.mxu0 0
        %9635 = vmatprep.subr.bf16.mxu0 0
        %9636 = vmatpush1.bf16.msra.mxu0 0
        %9637 = vmatprep.subr.bf16.mxu0 0
        %9638 = vmatpush1.bf16.msra.mxu0 0
        %9639 = vmatprep.subr.bf16.mxu0 0
        %9640 = vmatpush1.bf16.msra.mxu0 0
        %9641 = vmatprep.subr.bf16.mxu0 0
        %9642 = vmatpush1.bf16.msra.mxu0 0
        %9643 = vmatprep.subr.bf16.mxu0 0
        %9644 = vmatpush1.bf16.msra.mxu0 0
        %9645 = vmatprep.mubr.bf16.mxu0 0
        %9646 = vmatmul.mubr.bf16.gmra.mrb[0].mxu0 %v9566
        %v9647 = vpop.f32.mrb[0].mxu0
        %v9648 = vadd.f32 0.0, %v9647
        %v9649 = vpop.f32.mrb[0].mxu0
        %v9650 = vpop.f32.mrb[0].mxu0
        %v9651 = vadd.f32 0.0, %v9650
        %v9652 = vpop.f32.mrb[0].mxu0
        %9653 = vmatprep.mubr.bf16.mxu0 0
        %9654 = vmatmul.mubr.bf16.gmra.mrb[0].mxu0 %v9569
        %v9655 = vpop.f32.mrb[0].mxu0
        %v9656 = vadd.f32 0.0, %v9655
        %v9657 = vpop.f32.mrb[0].mxu0
        %v9658 = vpop.f32.mrb[0].mxu0
        %v9659 = vadd.f32 0.0, %v9658
        %v9660 = vpop.f32.mrb[0].mxu0
        %9661 = vmatprep.mubr.bf16.mxu0 0
        %9662 = vmatmul.mubr.bf16.gmra.mrb[0].mxu0 %v9572
        %v9663 = vpop.f32.mrb[0].mxu0
        %v9664 = vadd.f32 0.0, %v9663
        %v9665 = vpop.f32.mrb[0].mxu0
        %v9666 = vpop.f32.mrb[0].mxu0
        %v9667 = vadd.f32 0.0, %v9666
        %v9668 = vpop.f32.mrb[0].mxu0
        %9669 = vmatprep.mubr.bf16.mxu0 0
        %9670 = vmatmul.mubr.bf16.gmra.mrb[0].mxu0 %v9575
        %v9671 = vpop.f32.mrb[0].mxu0
        %v9672 = vadd.f32 0.0, %v9671
        %v9673 = vpop.f32.mrb[0].mxu0
        %v9674 = vpop.f32.mrb[0].mxu0
        %v9675 = vadd.f32 0.0, %v9674
        %v9676 = vpop.f32.mrb[0].mxu0
        %9677 = vmatprep.mubr.bf16.mxu0 0
        %9678 = vmatmul.mubr.bf16.gmra.mrb[0].mxu0 %v9578
        %v9679 = vpop.f32.mrb[0].mxu0
        %v9680 = vadd.f32 0.0, %v9679
        %v9681 = vpop.f32.mrb[0].mxu0
        %v9682 = vpop.f32.mrb[0].mxu0
        %v9683 = vadd.f32 0.0, %v9682
        %v9684 = vpop.f32.mrb[0].mxu0
        %9685 = vmatprep.mubr.bf16.mxu0 0
        %9686 = vmatmul.mubr.bf16.gmra.mrb[0].mxu0 %v9581
        %v9687 = vpop.f32.mrb[0].mxu0
        %v9688 = vadd.f32 0.0, %v9687
        %v9689 = vpop.f32.mrb[0].mxu0
        %v9690 = vpop.f32.mrb[0].mxu0
        %v9691 = vadd.f32 0.0, %v9690
        %v9692 = vpop.f32.mrb[0].mxu0
        %9693 = vmatprep.mubr.bf16.mxu0 0
        %9694 = vmatmul.mubr.bf16.gmra.mrb[0].mxu0 %v9584
        %v9695 = vpop.f32.mrb[0].mxu0
        %v9696 = vadd.f32 0.0, %v9695
        %v9697 = vpop.f32.mrb[0].mxu0
        %v9698 = vpop.f32.mrb[0].mxu0
        %v9699 = vadd.f32 0.0, %v9698
        %v9700 = vpop.f32.mrb[0].mxu0
        %9701 = vmatprep.mubr.bf16.mxu0 0
        %9702 = vmatmul.mubr.bf16.gmra.mrb[0].mxu0 %v9587
        %v9703 = vpop.f32.mrb[0].mxu0
        %v9704 = vadd.f32 0.0, %v9703
        %v9705 = vpop.f32.mrb[0].mxu0
        %v9706 = vpop.f32.mrb[0].mxu0
        %v9707 = vadd.f32 0.0, %v9706
        %v9708 = vpop.f32.mrb[0].mxu0
        %9709 = vmatprep.mubr.bf16.mxu0 0
        %9710 = vmatmul.mubr.bf16.gmra.mrb[0].mxu0 %v9590
        %v9711 = vpop.f32.mrb[0].mxu0
        %v9712 = vadd.f32 0.0, %v9711
        %v9713 = vpop.f32.mrb[0].mxu0
        %v9714 = vpop.f32.mrb[0].mxu0
        %v9715 = vadd.f32 0.0, %v9714
        %v9716 = vpop.f32.mrb[0].mxu0
        %9717 = vmatprep.mubr.bf16.mxu0 0
        %9718 = vmatmul.mubr.bf16.gmra.mrb[0].mxu0 %v9593
        %v9719 = vpop.f32.mrb[0].mxu0
        %v9720 = vadd.f32 0.0, %v9719
        %v9721 = vpop.f32.mrb[0].mxu0
        %v9722 = vpop.f32.mrb[0].mxu0
        %v9723 = vadd.f32 0.0, %v9722
        %v9724 = vpop.f32.mrb[0].mxu0
        %9725 = vmatprep.mubr.bf16.mxu0 0
        %9726 = vmatmul.mubr.bf16.gmra.mrb[0].mxu0 %v9596
        %v9727 = vpop.f32.mrb[0].mxu0
        %v9728 = vadd.f32 0.0, %v9727
        %v9729 = vpop.f32.mrb[0].mxu0
        %v9730 = vpop.f32.mrb[0].mxu0
        %v9731 = vadd.f32 0.0, %v9730
        %v9732 = vpop.f32.mrb[0].mxu0
        %9733 = vmatprep.mubr.bf16.mxu0 0
        %9734 = vmatmul.mubr.bf16.gmra.mrb[0].mxu0 %v9599
        %v9735 = vpop.f32.mrb[0].mxu0
        %v9736 = vadd.f32 0.0, %v9735
        %v9737 = vpop.f32.mrb[0].mxu0
        %v9738 = vpop.f32.mrb[0].mxu0
        %v9739 = vadd.f32 0.0, %v9738
        %v9740 = vpop.f32.mrb[0].mxu0
        %9741 = vmatprep.mubr.bf16.mxu0 0
        %9742 = vmatmul.mubr.bf16.gmra.mrb[0].mxu0 %v9602
        %v9743 = vpop.f32.mrb[0].mxu0
        %v9744 = vadd.f32 0.0, %v9743
        %v9745 = vpop.f32.mrb[0].mxu0
        %v9746 = vpop.f32.mrb[0].mxu0
        %v9747 = vadd.f32 0.0, %v9746
        %v9748 = vpop.f32.mrb[0].mxu0
        %9749 = vmatprep.mubr.bf16.mxu0 0
        %9750 = vmatmul.mubr.bf16.gmra.mrb[0].mxu0 %v9605
        %v9751 = vpop.f32.mrb[0].mxu0
        %v9752 = vadd.f32 0.0, %v9751
        %v9753 = vpop.f32.mrb[0].mxu0
        %v9754 = vpop.f32.mrb[0].mxu0
        %v9755 = vadd.f32 0.0, %v9754
        %v9756 = vpop.f32.mrb[0].mxu0
        %9757 = vmatprep.mubr.bf16.mxu0 0
        %9758 = vmatmul.mubr.bf16.gmra.mrb[0].mxu0 %v9608
        %v9759 = vpop.f32.mrb[0].mxu0
        %v9760 = vadd.f32 0.0, %v9759
        %v9761 = vpop.f32.mrb[0].mxu0
        %v9762 = vpop.f32.mrb[0].mxu0
        %v9763 = vadd.f32 0.0, %v9762
        %v9764 = vpop.f32.mrb[0].mxu0
        %9765 = vmatprep.mubr.bf16.mxu0 0
        %9766 = vmatmul.mubr.bf16.gmra.mrb[0].mxu0 %v9611
        %v9767 = vpop.f32.mrb[0].mxu0
        %v9768 = vadd.f32 0.0, %v9767
        %v9769 = vpop.f32.mrb[0].mxu0
        %v9770 = vpop.f32.mrb[0].mxu0
        %v9771 = vadd.f32 0.0, %v9770
        %v9772 = vpop.f32.mrb[0].mxu0
        %9773 = vdwg.mxu0
        %v9774 = vadd.f32 %v9292, %v9648
        %v9775 = vadd.f32 %v9293, %v9651
        %v9776 = vadd.f32 %v9294, %v9656
        %v9777 = vadd.f32 %v9295, %v9659
        %v9778 = vadd.f32 %v9296, %v9664
        %v9779 = vadd.f32 %v9297, %v9667
        %v9780 = vadd.f32 %v9298, %v9672
        %v9781 = vadd.f32 %v9299, %v9675
        %v9782 = vadd.f32 %v9300, %v9680
        %v9783 = vadd.f32 %v9301, %v9683
        %v9784 = vadd.f32 %v9302, %v9688
        %v9785 = vadd.f32 %v9303, %v9691
        %v9786 = vadd.f32 %v9304, %v9696
        %v9787 = vadd.f32 %v9305, %v9699
        %v9788 = vadd.f32 %v9306, %v9704
        %v9789 = vadd.f32 %v9307, %v9707
        %v9790 = vadd.f32 %v9308, %v9712
        %v9791 = vadd.f32 %v9309, %v9715
        %v9792 = vadd.f32 %v9310, %v9720
        %v9793 = vadd.f32 %v9311, %v9723
        %v9794 = vadd.f32 %v9312, %v9728
        %v9795 = vadd.f32 %v9313, %v9731
        %v9796 = vadd.f32 %v9314, %v9736
        %v9797 = vadd.f32 %v9315, %v9739
        %v9798 = vadd.f32 %v9316, %v9744
        %v9799 = vadd.f32 %v9317, %v9747
        %v9800 = vadd.f32 %v9318, %v9752
        %v9801 = vadd.f32 %v9319, %v9755
        %v9802 = vadd.f32 %v9320, %v9760
        %v9803 = vadd.f32 %v9321, %v9763
        %v9804 = vadd.f32 %v9322, %v9768
        %v9805 = vadd.f32 %v9323, %v9771
        %v9806 = vld [vmem:[%s354] sm:$0xff]
        %v9807 = vld [vmem:[%s354 + $0x8] sm:$0xff]
        %v9808 = vld [vmem:[%s354 + $0x10] sm:$0xff]
        %v9809 = vld [vmem:[%s354 + $0x18] sm:$0xff]
        %v9810 = vld [vmem:[%s354 + $0x20] sm:$0xff]
        %v9811 = vld [vmem:[%s354 + $0x28] sm:$0xff]
        %v9812 = vld [vmem:[%s354 + $0x30] sm:$0xff]
        %v9813 = vld [vmem:[%s354 + $0x38] sm:$0xff]
        %v9814 = vld [vmem:[%s354 + $0x40] sm:$0xff]
        %v9815 = vld [vmem:[%s354 + $0x48] sm:$0xff]
        %v9816 = vld [vmem:[%s354 + $0x50] sm:$0xff]
        %v9817 = vld [vmem:[%s354 + $0x58] sm:$0xff]
        %v9818 = vld [vmem:[%s354 + $0x60] sm:$0xff]
        %v9819 = vld [vmem:[%s354 + $0x68] sm:$0xff]
        %v9820 = vld [vmem:[%s354 + $0x70] sm:$0xff]
        %v9821 = vld [vmem:[%s354 + $0x78] sm:$0xff]
        %v9822 = vld [vmem:[%s354 + $0x80] sm:$0xff]
        %v9823 = vld [vmem:[%s354 + $0x88] sm:$0xff]
        %v9824 = vld [vmem:[%s354 + $0x90] sm:$0xff]
        %v9825 = vld [vmem:[%s354 + $0x98] sm:$0xff]
        %v9826 = vld [vmem:[%s354 + $0xa0] sm:$0xff]
        %v9827 = vld [vmem:[%s354 + $0xa8] sm:$0xff]
        %v9828 = vld [vmem:[%s354 + $0xb0] sm:$0xff]
        %v9829 = vld [vmem:[%s354 + $0xb8] sm:$0xff]
        %v9830 = vld [vmem:[%s354 + $0xc0] sm:$0xff]
        %v9831 = vld [vmem:[%s354 + $0xc8] sm:$0xff]
        %v9832 = vld [vmem:[%s354 + $0xd0] sm:$0xff]
        %v9833 = vld [vmem:[%s354 + $0xd8] sm:$0xff]
        %v9834 = vld [vmem:[%s354 + $0xe0] sm:$0xff]
        %v9835 = vld [vmem:[%s354 + $0xe8] sm:$0xff]
        %v9836 = vld [vmem:[%s354 + $0xf0] sm:$0xff]
        %v9837 = vld [vmem:[%s354 + $0xf8] sm:$0xff]
        %v9838 = vld [vmem:[%s6] sm:$0xff]
        %v9839 = vld [vmem:[%s6 + $0x8] sm:$0xff]
        %v9840 = vld [vmem:[%s6 + $0x10] sm:$0xff]
        %v9841 = vld [vmem:[%s6 + $0x18] sm:$0xff]
        %v9842 = vld [vmem:[%s6 + $0x20] sm:$0xff]
        %v9843 = vld [vmem:[%s6 + $0x28] sm:$0xff]
        %v9844 = vld [vmem:[%s6 + $0x30] sm:$0xff]
        %v9845 = vld [vmem:[%s6 + $0x38] sm:$0xff]
        %v9846 = vld [vmem:[%s6 + $0x40] sm:$0xff]
        %v9847 = vld [vmem:[%s6 + $0x48] sm:$0xff]
        %v9848 = vld [vmem:[%s6 + $0x50] sm:$0xff]
        %v9849 = vld [vmem:[%s6 + $0x58] sm:$0xff]
        %v9850 = vld [vmem:[%s6 + $0x60] sm:$0xff]
        %v9851 = vld [vmem:[%s6 + $0x68] sm:$0xff]
        %v9852 = vld [vmem:[%s6 + $0x70] sm:$0xff]
        %v9853 = vld [vmem:[%s6 + $0x78] sm:$0xff]
        %v9854 = vld [vmem:[%s6 + $0x80] sm:$0xff]
        %v9855 = vld [vmem:[%s6 + $0x88] sm:$0xff]
        %v9856 = vld [vmem:[%s6 + $0x90] sm:$0xff]
        %v9857 = vld [vmem:[%s6 + $0x98] sm:$0xff]
        %v9858 = vld [vmem:[%s6 + $0xa0] sm:$0xff]
        %v9859 = vld [vmem:[%s6 + $0xa8] sm:$0xff]
        %v9860 = vld [vmem:[%s6 + $0xb0] sm:$0xff]
        %v9861 = vld [vmem:[%s6 + $0xb8] sm:$0xff]
        %v9862 = vld [vmem:[%s6 + $0xc0] sm:$0xff]
        %v9863 = vld [vmem:[%s6 + $0xc8] sm:$0xff]
        %v9864 = vld [vmem:[%s6 + $0xd0] sm:$0xff]
        %v9865 = vld [vmem:[%s6 + $0xd8] sm:$0xff]
        %v9866 = vld [vmem:[%s6 + $0xe0] sm:$0xff]
        %v9867 = vld [vmem:[%s6 + $0xe8] sm:$0xff]
        %v9868 = vld [vmem:[%s6 + $0xf0] sm:$0xff]
        %v9869 = vld [vmem:[%s6 + $0xf8] sm:$0xff]
        %v9870 = vmul.f32 %v9806, %v9838
        %v9871 = vmul.f32 %v9807, %v9839
        %v9872 = vmul.f32 %v9808, %v9840
        %v9873 = vmul.f32 %v9809, %v9841
        %v9874 = vmul.f32 %v9810, %v9842
        %v9875 = vmul.f32 %v9811, %v9843
        %v9876 = vmul.f32 %v9812, %v9844
        %v9877 = vmul.f32 %v9813, %v9845
        %v9878 = vmul.f32 %v9814, %v9846
        %v9879 = vmul.f32 %v9815, %v9847
        %v9880 = vmul.f32 %v9816, %v9848
        %v9881 = vmul.f32 %v9817, %v9849
        %v9882 = vmul.f32 %v9818, %v9850
        %v9883 = vmul.f32 %v9819, %v9851
        %v9884 = vmul.f32 %v9820, %v9852
        %v9885 = vmul.f32 %v9821, %v9853
        %v9886 = vmul.f32 %v9822, %v9854
        %v9887 = vmul.f32 %v9823, %v9855
        %v9888 = vmul.f32 %v9824, %v9856
        %v9889 = vmul.f32 %v9825, %v9857
        %v9890 = vmul.f32 %v9826, %v9858
        %v9891 = vmul.f32 %v9827, %v9859
        %v9892 = vmul.f32 %v9828, %v9860
        %v9893 = vmul.f32 %v9829, %v9861
        %v9894 = vmul.f32 %v9830, %v9862
        %v9895 = vmul.f32 %v9831, %v9863
        %v9896 = vmul.f32 %v9832, %v9864
        %v9897 = vmul.f32 %v9833, %v9865
        %v9898 = vmul.f32 %v9834, %v9866
        %v9899 = vmul.f32 %v9835, %v9867
        %v9900 = vmul.f32 %v9836, %v9868
        %v9901 = vmul.f32 %v9837, %v9869
        %v9902 = vadd.f32 %v9774, %v9870
        %v9903 = vadd.f32 %v9775, %v9871
        %v9904 = vadd.f32 %v9776, %v9872
        %v9905 = vadd.f32 %v9777, %v9873
        %v9906 = vadd.f32 %v9778, %v9874
        %v9907 = vadd.f32 %v9779, %v9875
        %v9908 = vadd.f32 %v9780, %v9876
        %v9909 = vadd.f32 %v9781, %v9877
        %v9910 = vadd.f32 %v9782, %v9878
        %v9911 = vadd.f32 %v9783, %v9879
        %v9912 = vadd.f32 %v9784, %v9880
        %v9913 = vadd.f32 %v9785, %v9881
        %v9914 = vadd.f32 %v9786, %v9882
        %v9915 = vadd.f32 %v9787, %v9883
        %v9916 = vadd.f32 %v9788, %v9884
        %v9917 = vadd.f32 %v9789, %v9885
        %v9918 = vadd.f32 %v9790, %v9886
        %v9919 = vadd.f32 %v9791, %v9887
        %v9920 = vadd.f32 %v9792, %v9888
        %v9921 = vadd.f32 %v9793, %v9889
        %v9922 = vadd.f32 %v9794, %v9890
        %v9923 = vadd.f32 %v9795, %v9891
        %v9924 = vadd.f32 %v9796, %v9892
        %v9925 = vadd.f32 %v9797, %v9893
        %v9926 = vadd.f32 %v9798, %v9894
        %v9927 = vadd.f32 %v9799, %v9895
        %v9928 = vadd.f32 %v9800, %v9896
        %v9929 = vadd.f32 %v9801, %v9897
        %v9930 = vadd.f32 %v9802, %v9898
        %v9931 = vadd.f32 %v9803, %v9899
        %v9932 = vadd.f32 %v9804, %v9900
        %v9933 = vadd.f32 %v9805, %v9901
        %v9934 = vxor.u32 %v9902, 2147483648
        %v9935 = vxor.u32 %v9903, 2147483648
        %v9936 = vxor.u32 %v9904, 2147483648
        %v9937 = vxor.u32 %v9905, 2147483648
        %v9938 = vxor.u32 %v9906, 2147483648
        %v9939 = vxor.u32 %v9907, 2147483648
        %v9940 = vxor.u32 %v9908, 2147483648
        %v9941 = vxor.u32 %v9909, 2147483648
        %v9942 = vxor.u32 %v9910, 2147483648
        %v9943 = vxor.u32 %v9911, 2147483648
        %v9944 = vxor.u32 %v9912, 2147483648
        %v9945 = vxor.u32 %v9913, 2147483648
        %v9946 = vxor.u32 %v9914, 2147483648
        %v9947 = vxor.u32 %v9915, 2147483648
        %v9948 = vxor.u32 %v9916, 2147483648
        %v9949 = vxor.u32 %v9917, 2147483648
        %v9950 = vxor.u32 %v9918, 2147483648
        %v9951 = vxor.u32 %v9919, 2147483648
        %v9952 = vxor.u32 %v9920, 2147483648
        %v9953 = vxor.u32 %v9921, 2147483648
        %v9954 = vxor.u32 %v9922, 2147483648
        %v9955 = vxor.u32 %v9923, 2147483648
        %v9956 = vxor.u32 %v9924, 2147483648
        %v9957 = vxor.u32 %v9925, 2147483648
        %v9958 = vxor.u32 %v9926, 2147483648
        %v9959 = vxor.u32 %v9927, 2147483648
        %v9960 = vxor.u32 %v9928, 2147483648
        %v9961 = vxor.u32 %v9929, 2147483648
        %v9962 = vxor.u32 %v9930, 2147483648
        %v9963 = vxor.u32 %v9931, 2147483648
        %v9964 = vxor.u32 %v9932, 2147483648
        %v9965 = vxor.u32 %v9933, 2147483648
        %v9966 = vmul.f32 %v9934, 1.442695
        %v9967 = vpow.pop %v9966
        %v9968 = vmul.f32 %v9935, 1.442695
        %v9969 = vpow.pop %v9968
        %v9970 = vmul.f32 %v9936, 1.442695
        %v9971 = vpow.pop %v9970
        %v9972 = vmul.f32 %v9937, 1.442695
        %v9973 = vpow.pop %v9972
        %v9974 = vmul.f32 %v9938, 1.442695
        %v9975 = vpow.pop %v9974
        %v9976 = vmul.f32 %v9939, 1.442695
        %v9977 = vpow.pop %v9976
        %v9978 = vmul.f32 %v9940, 1.442695
        %v9979 = vpow.pop %v9978
        %v9980 = vmul.f32 %v9941, 1.442695
        %v9981 = vpow.pop %v9980
        %v9982 = vmul.f32 %v9942, 1.442695
        %v9983 = vpow.pop %v9982
        %v9984 = vmul.f32 %v9943, 1.442695
        %v9985 = vpow.pop %v9984
        %v9986 = vmul.f32 %v9944, 1.442695
        %v9987 = vpow.pop %v9986
        %v9988 = vmul.f32 %v9945, 1.442695
        %v9989 = vpow.pop %v9988
        %v9990 = vmul.f32 %v9946, 1.442695
        %v9991 = vpow.pop %v9990
        %v9992 = vmul.f32 %v9947, 1.442695
        %v9993 = vpow.pop %v9992
        %v9994 = vmul.f32 %v9948, 1.442695
        %v9995 = vpow.pop %v9994
        %v9996 = vmul.f32 %v9949, 1.442695
        %v9997 = vpow.pop %v9996
        %v9998 = vmul.f32 %v9950, 1.442695
        %v9999 = vpow.pop %v9998
        %v10000 = vmul.f32 %v9951, 1.442695
        %v10001 = vpow.pop %v10000
        %v10002 = vmul.f32 %v9952, 1.442695
        %v10003 = vpow.pop %v10002
        %v10004 = vmul.f32 %v9953, 1.442695
        %v10005 = vpow.pop %v10004
        %v10006 = vmul.f32 %v9954, 1.442695
        %v10007 = vpow.pop %v10006
        %v10008 = vmul.f32 %v9955, 1.442695
        %v10009 = vpow.pop %v10008
        %v10010 = vmul.f32 %v9956, 1.442695
        %v10011 = vpow.pop %v10010
        %v10012 = vmul.f32 %v9957, 1.442695
        %v10013 = vpow.pop %v10012
        %v10014 = vmul.f32 %v9958, 1.442695
        %v10015 = vpow.pop %v10014
        %v10016 = vmul.f32 %v9959, 1.442695
        %v10017 = vpow.pop %v10016
        %v10018 = vmul.f32 %v9960, 1.442695
        %v10019 = vpow.pop %v10018
        %v10020 = vmul.f32 %v9961, 1.442695
        %v10021 = vpow.pop %v10020
        %v10022 = vmul.f32 %v9962, 1.442695
        %v10023 = vpow.pop %v10022
        %v10024 = vmul.f32 %v9963, 1.442695
        %v10025 = vpow.pop %v10024
        %v10026 = vmul.f32 %v9964, 1.442695
        %v10027 = vpow.pop %v10026
        %v10028 = vmul.f32 %v9965, 1.442695
        %v10029 = vpow.pop %v10028
        %v10030 = vadd.f32 %v9967, 1.0
        %v10031 = vadd.f32 %v9969, 1.0
        %v10032 = vadd.f32 %v9971, 1.0
        %v10033 = vadd.f32 %v9973, 1.0
        %v10034 = vadd.f32 %v9975, 1.0
        %v10035 = vadd.f32 %v9977, 1.0
        %v10036 = vadd.f32 %v9979, 1.0
        %v10037 = vadd.f32 %v9981, 1.0
        %v10038 = vadd.f32 %v9983, 1.0
        %v10039 = vadd.f32 %v9985, 1.0
        %v10040 = vadd.f32 %v9987, 1.0
        %v10041 = vadd.f32 %v9989, 1.0
        %v10042 = vadd.f32 %v9991, 1.0
        %v10043 = vadd.f32 %v9993, 1.0
        %v10044 = vadd.f32 %v9995, 1.0
        %v10045 = vadd.f32 %v9997, 1.0
        %v10046 = vadd.f32 %v9999, 1.0
        %v10047 = vadd.f32 %v10001, 1.0
        %v10048 = vadd.f32 %v10003, 1.0
        %v10049 = vadd.f32 %v10005, 1.0
        %v10050 = vadd.f32 %v10007, 1.0
        %v10051 = vadd.f32 %v10009, 1.0
        %v10052 = vadd.f32 %v10011, 1.0
        %v10053 = vadd.f32 %v10013, 1.0
        %v10054 = vadd.f32 %v10015, 1.0
        %v10055 = vadd.f32 %v10017, 1.0
        %v10056 = vadd.f32 %v10019, 1.0
        %v10057 = vadd.f32 %v10021, 1.0
        %v10058 = vadd.f32 %v10023, 1.0
        %v10059 = vadd.f32 %v10025, 1.0
        %v10060 = vadd.f32 %v10027, 1.0
        %v10061 = vadd.f32 %v10029, 1.0
        %v10062 = vrcp.pop %v10030
        %v10063 = vmul.f32 1.0, %v10062
        %v10064 = vrcp.pop %v10031
        %v10065 = vmul.f32 1.0, %v10064
        %v10066 = vrcp.pop %v10032
        %v10067 = vmul.f32 1.0, %v10066
        %v10068 = vrcp.pop %v10033
        %v10069 = vmul.f32 1.0, %v10068
        %v10070 = vrcp.pop %v10034
        %v10071 = vmul.f32 1.0, %v10070
        %v10072 = vrcp.pop %v10035
        %v10073 = vmul.f32 1.0, %v10072
        %v10074 = vrcp.pop %v10036
        %v10075 = vmul.f32 1.0, %v10074
        %v10076 = vrcp.pop %v10037
        %v10077 = vmul.f32 1.0, %v10076
        %v10078 = vrcp.pop %v10038
        %v10079 = vmul.f32 1.0, %v10078
        %v10080 = vrcp.pop %v10039
        %v10081 = vmul.f32 1.0, %v10080
        %v10082 = vrcp.pop %v10040
        %v10083 = vmul.f32 1.0, %v10082
        %v10084 = vrcp.pop %v10041
        %v10085 = vmul.f32 1.0, %v10084
        %v10086 = vrcp.pop %v10042
        %v10087 = vmul.f32 1.0, %v10086
        %v10088 = vrcp.pop %v10043
        %v10089 = vmul.f32 1.0, %v10088
        %v10090 = vrcp.pop %v10044
        %v10091 = vmul.f32 1.0, %v10090
        %v10092 = vrcp.pop %v10045
        %v10093 = vmul.f32 1.0, %v10092
        %v10094 = vrcp.pop %v10046
        %v10095 = vmul.f32 1.0, %v10094
        %v10096 = vrcp.pop %v10047
        %v10097 = vmul.f32 1.0, %v10096
        %v10098 = vrcp.pop %v10048
        %v10099 = vmul.f32 1.0, %v10098
        %v10100 = vrcp.pop %v10049
        %v10101 = vmul.f32 1.0, %v10100
        %v10102 = vrcp.pop %v10050
        %v10103 = vmul.f32 1.0, %v10102
        %v10104 = vrcp.pop %v10051
        %v10105 = vmul.f32 1.0, %v10104
        %v10106 = vrcp.pop %v10052
        %v10107 = vmul.f32 1.0, %v10106
        %v10108 = vrcp.pop %v10053
        %v10109 = vmul.f32 1.0, %v10108
        %v10110 = vrcp.pop %v10054
        %v10111 = vmul.f32 1.0, %v10110
        %v10112 = vrcp.pop %v10055
        %v10113 = vmul.f32 1.0, %v10112
        %v10114 = vrcp.pop %v10056
        %v10115 = vmul.f32 1.0, %v10114
        %v10116 = vrcp.pop %v10057
        %v10117 = vmul.f32 1.0, %v10116
        %v10118 = vrcp.pop %v10058
        %v10119 = vmul.f32 1.0, %v10118
        %v10120 = vrcp.pop %v10059
        %v10121 = vmul.f32 1.0, %v10120
        %v10122 = vrcp.pop %v10060
        %v10123 = vmul.f32 1.0, %v10122
        %v10124 = vrcp.pop %v10061
        %v10125 = vmul.f32 1.0, %v10124
        %10158 = vrot.lane.b32.xlu0 %v9838, 96
        %v10159 = vpop.permute.xlu0 %10158
        %10160 = vrot.lane.b32.xlu0 %v9839, 96
        %v10161 = vpop.permute.xlu0 %10160
        %10162 = vrot.lane.b32.xlu0 %v9840, 96
        %v10163 = vpop.permute.xlu0 %10162
        %10164 = vrot.lane.b32.xlu0 %v9841, 96
        %v10165 = vpop.permute.xlu0 %10164
        %10166 = vrot.lane.b32.xlu0 %v9842, 96
        %v10167 = vpop.permute.xlu0 %10166
        %10168 = vrot.lane.b32.xlu0 %v9843, 96
        %v10169 = vpop.permute.xlu0 %10168
        %10170 = vrot.lane.b32.xlu0 %v9844, 96
        %v10171 = vpop.permute.xlu0 %10170
        %10172 = vrot.lane.b32.xlu0 %v9845, 96
        %v10173 = vpop.permute.xlu0 %10172
        %10174 = vrot.lane.b32.xlu0 %v9846, 96
        %v10175 = vpop.permute.xlu0 %10174
        %10176 = vrot.lane.b32.xlu0 %v9847, 96
        %v10177 = vpop.permute.xlu0 %10176
        %10178 = vrot.lane.b32.xlu0 %v9848, 96
        %v10179 = vpop.permute.xlu0 %10178
        %10180 = vrot.lane.b32.xlu0 %v9849, 96
        %v10181 = vpop.permute.xlu0 %10180
        %10182 = vrot.lane.b32.xlu0 %v9850, 96
        %v10183 = vpop.permute.xlu0 %10182
        %10184 = vrot.lane.b32.xlu0 %v9851, 96
        %v10185 = vpop.permute.xlu0 %10184
        %10186 = vrot.lane.b32.xlu0 %v9852, 96
        %v10187 = vpop.permute.xlu0 %10186
        %10188 = vrot.lane.b32.xlu0 %v9853, 96
        %v10189 = vpop.permute.xlu0 %10188
        %10190 = vrot.lane.b32.xlu0 %v9854, 96
        %v10191 = vpop.permute.xlu0 %10190
        %10192 = vrot.lane.b32.xlu0 %v9855, 96
        %v10193 = vpop.permute.xlu0 %10192
        %10194 = vrot.lane.b32.xlu0 %v9856, 96
        %v10195 = vpop.permute.xlu0 %10194
        %10196 = vrot.lane.b32.xlu0 %v9857, 96
        %v10197 = vpop.permute.xlu0 %10196
        %10198 = vrot.lane.b32.xlu0 %v9858, 96
        %v10199 = vpop.permute.xlu0 %10198
        %10200 = vrot.lane.b32.xlu0 %v9859, 96
        %v10201 = vpop.permute.xlu0 %10200
        %10202 = vrot.lane.b32.xlu0 %v9860, 96
        %v10203 = vpop.permute.xlu0 %10202
        %10204 = vrot.lane.b32.xlu0 %v9861, 96
        %v10205 = vpop.permute.xlu0 %10204
        %10206 = vrot.lane.b32.xlu0 %v9862, 96
        %v10207 = vpop.permute.xlu0 %10206
        %10208 = vrot.lane.b32.xlu0 %v9863, 96
        %v10209 = vpop.permute.xlu0 %10208
        %10210 = vrot.lane.b32.xlu0 %v9864, 96
        %v10211 = vpop.permute.xlu0 %10210
        %10212 = vrot.lane.b32.xlu0 %v9865, 96
        %v10213 = vpop.permute.xlu0 %10212
        %10214 = vrot.lane.b32.xlu0 %v9866, 96
        %v10215 = vpop.permute.xlu0 %10214
        %10216 = vrot.lane.b32.xlu0 %v9867, 96
        %v10217 = vpop.permute.xlu0 %10216
        %10218 = vrot.lane.b32.xlu0 %v9868, 96
        %v10219 = vpop.permute.xlu0 %10218
        %10220 = vrot.lane.b32.xlu0 %v9869, 96
        %v10221 = vpop.permute.xlu0 %10220
        %v10254 = vmul.f32 %v9806, %v10159
        %v10255 = vmul.f32 %v9807, %v10161
        %v10256 = vmul.f32 %v9808, %v10163
        %v10257 = vmul.f32 %v9809, %v10165
        %v10258 = vmul.f32 %v9810, %v10167
        %v10259 = vmul.f32 %v9811, %v10169
        %v10260 = vmul.f32 %v9812, %v10171
        %v10261 = vmul.f32 %v9813, %v10173
        %v10262 = vmul.f32 %v9814, %v10175
        %v10263 = vmul.f32 %v9815, %v10177
        %v10264 = vmul.f32 %v9816, %v10179
        %v10265 = vmul.f32 %v9817, %v10181
        %v10266 = vmul.f32 %v9818, %v10183
        %v10267 = vmul.f32 %v9819, %v10185
        %v10268 = vmul.f32 %v9820, %v10187
        %v10269 = vmul.f32 %v9821, %v10189
        %v10270 = vmul.f32 %v9822, %v10191
        %v10271 = vmul.f32 %v9823, %v10193
        %v10272 = vmul.f32 %v9824, %v10195
        %v10273 = vmul.f32 %v9825, %v10197
        %v10274 = vmul.f32 %v9826, %v10199
        %v10275 = vmul.f32 %v9827, %v10201
        %v10276 = vmul.f32 %v9828, %v10203
        %v10277 = vmul.f32 %v9829, %v10205
        %v10278 = vmul.f32 %v9830, %v10207
        %v10279 = vmul.f32 %v9831, %v10209
        %v10280 = vmul.f32 %v9832, %v10211
        %v10281 = vmul.f32 %v9833, %v10213
        %v10282 = vmul.f32 %v9834, %v10215
        %v10283 = vmul.f32 %v9835, %v10217
        %v10284 = vmul.f32 %v9836, %v10219
        %v10285 = vmul.f32 %v9837, %v10221
        %10318 = vrot.lane.b32.xlu0 %v10254, 32
        %v10319 = vpop.permute.xlu0 %10318
        %10320 = vrot.lane.b32.xlu0 %v10255, 32
        %v10321 = vpop.permute.xlu0 %10320
        %10322 = vrot.lane.b32.xlu0 %v10256, 32
        %v10323 = vpop.permute.xlu0 %10322
        %10324 = vrot.lane.b32.xlu0 %v10257, 32
        %v10325 = vpop.permute.xlu0 %10324
        %10326 = vrot.lane.b32.xlu0 %v10258, 32
        %v10327 = vpop.permute.xlu0 %10326
        %10328 = vrot.lane.b32.xlu0 %v10259, 32
        %v10329 = vpop.permute.xlu0 %10328
        %10330 = vrot.lane.b32.xlu0 %v10260, 32
        %v10331 = vpop.permute.xlu0 %10330
        %10332 = vrot.lane.b32.xlu0 %v10261, 32
        %v10333 = vpop.permute.xlu0 %10332
        %10334 = vrot.lane.b32.xlu0 %v10262, 32
        %v10335 = vpop.permute.xlu0 %10334
        %10336 = vrot.lane.b32.xlu0 %v10263, 32
        %v10337 = vpop.permute.xlu0 %10336
        %10338 = vrot.lane.b32.xlu0 %v10264, 32
        %v10339 = vpop.permute.xlu0 %10338
        %10340 = vrot.lane.b32.xlu0 %v10265, 32
        %v10341 = vpop.permute.xlu0 %10340
        %10342 = vrot.lane.b32.xlu0 %v10266, 32
        %v10343 = vpop.permute.xlu0 %10342
        %10344 = vrot.lane.b32.xlu0 %v10267, 32
        %v10345 = vpop.permute.xlu0 %10344
        %10346 = vrot.lane.b32.xlu0 %v10268, 32
        %v10347 = vpop.permute.xlu0 %10346
        %10348 = vrot.lane.b32.xlu0 %v10269, 32
        %v10349 = vpop.permute.xlu0 %10348
        %10350 = vrot.lane.b32.xlu0 %v10270, 32
        %v10351 = vpop.permute.xlu0 %10350
        %10352 = vrot.lane.b32.xlu0 %v10271, 32
        %v10353 = vpop.permute.xlu0 %10352
        %10354 = vrot.lane.b32.xlu0 %v10272, 32
        %v10355 = vpop.permute.xlu0 %10354
        %10356 = vrot.lane.b32.xlu0 %v10273, 32
        %v10357 = vpop.permute.xlu0 %10356
        %10358 = vrot.lane.b32.xlu0 %v10274, 32
        %v10359 = vpop.permute.xlu0 %10358
        %10360 = vrot.lane.b32.xlu0 %v10275, 32
        %v10361 = vpop.permute.xlu0 %10360
        %10362 = vrot.lane.b32.xlu0 %v10276, 32
        %v10363 = vpop.permute.xlu0 %10362
        %10364 = vrot.lane.b32.xlu0 %v10277, 32
        %v10365 = vpop.permute.xlu0 %10364
        %10366 = vrot.lane.b32.xlu0 %v10278, 32
        %v10367 = vpop.permute.xlu0 %10366
        %10368 = vrot.lane.b32.xlu0 %v10279, 32
        %v10369 = vpop.permute.xlu0 %10368
        %10370 = vrot.lane.b32.xlu0 %v10280, 32
        %v10371 = vpop.permute.xlu0 %10370
        %10372 = vrot.lane.b32.xlu0 %v10281, 32
        %v10373 = vpop.permute.xlu0 %10372
        %10374 = vrot.lane.b32.xlu0 %v10282, 32
        %v10375 = vpop.permute.xlu0 %10374
        %10376 = vrot.lane.b32.xlu0 %v10283, 32
        %v10377 = vpop.permute.xlu0 %10376
        %10378 = vrot.lane.b32.xlu0 %v10284, 32
        %v10379 = vpop.permute.xlu0 %10378
        %10380 = vrot.lane.b32.xlu0 %v10285, 32
        %v10381 = vpop.permute.xlu0 %10380
        %v10414 = vadd.f32 %v9774, %v10319
        %v10415 = vadd.f32 %v9775, %v10321
        %v10416 = vadd.f32 %v9776, %v10323
        %v10417 = vadd.f32 %v9777, %v10325
        %v10418 = vadd.f32 %v9778, %v10327
        %v10419 = vadd.f32 %v9779, %v10329
        %v10420 = vadd.f32 %v9780, %v10331
        %v10421 = vadd.f32 %v9781, %v10333
        %v10422 = vadd.f32 %v9782, %v10335
        %v10423 = vadd.f32 %v9783, %v10337
        %v10424 = vadd.f32 %v9784, %v10339
        %v10425 = vadd.f32 %v9785, %v10341
        %v10426 = vadd.f32 %v9786, %v10343
        %v10427 = vadd.f32 %v9787, %v10345
        %v10428 = vadd.f32 %v9788, %v10347
        %v10429 = vadd.f32 %v9789, %v10349
        %v10430 = vadd.f32 %v9790, %v10351
        %v10431 = vadd.f32 %v9791, %v10353
        %v10432 = vadd.f32 %v9792, %v10355
        %v10433 = vadd.f32 %v9793, %v10357
        %v10434 = vadd.f32 %v9794, %v10359
        %v10435 = vadd.f32 %v9795, %v10361
        %v10436 = vadd.f32 %v9796, %v10363
        %v10437 = vadd.f32 %v9797, %v10365
        %v10438 = vadd.f32 %v9798, %v10367
        %v10439 = vadd.f32 %v9799, %v10369
        %v10440 = vadd.f32 %v9800, %v10371
        %v10441 = vadd.f32 %v9801, %v10373
        %v10442 = vadd.f32 %v9802, %v10375
        %v10443 = vadd.f32 %v9803, %v10377
        %v10444 = vadd.f32 %v9804, %v10379
        %v10445 = vadd.f32 %v9805, %v10381
        %v10446 = vxor.u32 %v10414, 2147483648
        %v10447 = vxor.u32 %v10415, 2147483648
        %v10448 = vxor.u32 %v10416, 2147483648
        %v10449 = vxor.u32 %v10417, 2147483648
        %v10450 = vxor.u32 %v10418, 2147483648
        %v10451 = vxor.u32 %v10419, 2147483648
        %v10452 = vxor.u32 %v10420, 2147483648
        %v10453 = vxor.u32 %v10421, 2147483648
        %v10454 = vxor.u32 %v10422, 2147483648
        %v10455 = vxor.u32 %v10423, 2147483648
        %v10456 = vxor.u32 %v10424, 2147483648
        %v10457 = vxor.u32 %v10425, 2147483648
        %v10458 = vxor.u32 %v10426, 2147483648
        %v10459 = vxor.u32 %v10427, 2147483648
        %v10460 = vxor.u32 %v10428, 2147483648
        %v10461 = vxor.u32 %v10429, 2147483648
        %v10462 = vxor.u32 %v10430, 2147483648
        %v10463 = vxor.u32 %v10431, 2147483648
        %v10464 = vxor.u32 %v10432, 2147483648
        %v10465 = vxor.u32 %v10433, 2147483648
        %v10466 = vxor.u32 %v10434, 2147483648
        %v10467 = vxor.u32 %v10435, 2147483648
        %v10468 = vxor.u32 %v10436, 2147483648
        %v10469 = vxor.u32 %v10437, 2147483648
        %v10470 = vxor.u32 %v10438, 2147483648
        %v10471 = vxor.u32 %v10439, 2147483648
        %v10472 = vxor.u32 %v10440, 2147483648
        %v10473 = vxor.u32 %v10441, 2147483648
        %v10474 = vxor.u32 %v10442, 2147483648
        %v10475 = vxor.u32 %v10443, 2147483648
        %v10476 = vxor.u32 %v10444, 2147483648
        %v10477 = vxor.u32 %v10445, 2147483648
        %v10478 = vmul.f32 %v10446, 1.442695
        %v10479 = vpow.pop %v10478
        %v10480 = vmul.f32 %v10447, 1.442695
        %v10481 = vpow.pop %v10480
        %v10482 = vmul.f32 %v10448, 1.442695
        %v10483 = vpow.pop %v10482
        %v10484 = vmul.f32 %v10449, 1.442695
        %v10485 = vpow.pop %v10484
        %v10486 = vmul.f32 %v10450, 1.442695
        %v10487 = vpow.pop %v10486
        %v10488 = vmul.f32 %v10451, 1.442695
        %v10489 = vpow.pop %v10488
        %v10490 = vmul.f32 %v10452, 1.442695
        %v10491 = vpow.pop %v10490
        %v10492 = vmul.f32 %v10453, 1.442695
        %v10493 = vpow.pop %v10492
        %v10494 = vmul.f32 %v10454, 1.442695
        %v10495 = vpow.pop %v10494
        %v10496 = vmul.f32 %v10455, 1.442695
        %v10497 = vpow.pop %v10496
        %v10498 = vmul.f32 %v10456, 1.442695
        %v10499 = vpow.pop %v10498
        %v10500 = vmul.f32 %v10457, 1.442695
        %v10501 = vpow.pop %v10500
        %v10502 = vmul.f32 %v10458, 1.442695
        %v10503 = vpow.pop %v10502
        %v10504 = vmul.f32 %v10459, 1.442695
        %v10505 = vpow.pop %v10504
        %v10506 = vmul.f32 %v10460, 1.442695
        %v10507 = vpow.pop %v10506
        %v10508 = vmul.f32 %v10461, 1.442695
        %v10509 = vpow.pop %v10508
        %v10510 = vmul.f32 %v10462, 1.442695
        %v10511 = vpow.pop %v10510
        %v10512 = vmul.f32 %v10463, 1.442695
        %v10513 = vpow.pop %v10512
        %v10514 = vmul.f32 %v10464, 1.442695
        %v10515 = vpow.pop %v10514
        %v10516 = vmul.f32 %v10465, 1.442695
        %v10517 = vpow.pop %v10516
        %v10518 = vmul.f32 %v10466, 1.442695
        %v10519 = vpow.pop %v10518
        %v10520 = vmul.f32 %v10467, 1.442695
        %v10521 = vpow.pop %v10520
        %v10522 = vmul.f32 %v10468, 1.442695
        %v10523 = vpow.pop %v10522
        %v10524 = vmul.f32 %v10469, 1.442695
        %v10525 = vpow.pop %v10524
        %v10526 = vmul.f32 %v10470, 1.442695
        %v10527 = vpow.pop %v10526
        %v10528 = vmul.f32 %v10471, 1.442695
        %v10529 = vpow.pop %v10528
        %v10530 = vmul.f32 %v10472, 1.442695
        %v10531 = vpow.pop %v10530
        %v10532 = vmul.f32 %v10473, 1.442695
        %v10533 = vpow.pop %v10532
        %v10534 = vmul.f32 %v10474, 1.442695
        %v10535 = vpow.pop %v10534
        %v10536 = vmul.f32 %v10475, 1.442695
        %v10537 = vpow.pop %v10536
        %v10538 = vmul.f32 %v10476, 1.442695
        %v10539 = vpow.pop %v10538
        %v10540 = vmul.f32 %v10477, 1.442695
        %v10541 = vpow.pop %v10540
        %v10542 = vadd.f32 %v10479, 1.0
        %v10543 = vadd.f32 %v10481, 1.0
        %v10544 = vadd.f32 %v10483, 1.0
        %v10545 = vadd.f32 %v10485, 1.0
        %v10546 = vadd.f32 %v10487, 1.0
        %v10547 = vadd.f32 %v10489, 1.0
        %v10548 = vadd.f32 %v10491, 1.0
        %v10549 = vadd.f32 %v10493, 1.0
        %v10550 = vadd.f32 %v10495, 1.0
        %v10551 = vadd.f32 %v10497, 1.0
        %v10552 = vadd.f32 %v10499, 1.0
        %v10553 = vadd.f32 %v10501, 1.0
        %v10554 = vadd.f32 %v10503, 1.0
        %v10555 = vadd.f32 %v10505, 1.0
        %v10556 = vadd.f32 %v10507, 1.0
        %v10557 = vadd.f32 %v10509, 1.0
        %v10558 = vadd.f32 %v10511, 1.0
        %v10559 = vadd.f32 %v10513, 1.0
        %v10560 = vadd.f32 %v10515, 1.0
        %v10561 = vadd.f32 %v10517, 1.0
        %v10562 = vadd.f32 %v10519, 1.0
        %v10563 = vadd.f32 %v10521, 1.0
        %v10564 = vadd.f32 %v10523, 1.0
        %v10565 = vadd.f32 %v10525, 1.0
        %v10566 = vadd.f32 %v10527, 1.0
        %v10567 = vadd.f32 %v10529, 1.0
        %v10568 = vadd.f32 %v10531, 1.0
        %v10569 = vadd.f32 %v10533, 1.0
        %v10570 = vadd.f32 %v10535, 1.0
        %v10571 = vadd.f32 %v10537, 1.0
        %v10572 = vadd.f32 %v10539, 1.0
        %v10573 = vadd.f32 %v10541, 1.0
        %v10574 = vrcp.pop %v10542
        %v10575 = vmul.f32 1.0, %v10574
        %v10576 = vrcp.pop %v10543
        %v10577 = vmul.f32 1.0, %v10576
        %v10578 = vrcp.pop %v10544
        %v10579 = vmul.f32 1.0, %v10578
        %v10580 = vrcp.pop %v10545
        %v10581 = vmul.f32 1.0, %v10580
        %v10582 = vrcp.pop %v10546
        %v10583 = vmul.f32 1.0, %v10582
        %v10584 = vrcp.pop %v10547
        %v10585 = vmul.f32 1.0, %v10584
        %v10586 = vrcp.pop %v10548
        %v10587 = vmul.f32 1.0, %v10586
        %v10588 = vrcp.pop %v10549
        %v10589 = vmul.f32 1.0, %v10588
        %v10590 = vrcp.pop %v10550
        %v10591 = vmul.f32 1.0, %v10590
        %v10592 = vrcp.pop %v10551
        %v10593 = vmul.f32 1.0, %v10592
        %v10594 = vrcp.pop %v10552
        %v10595 = vmul.f32 1.0, %v10594
        %v10596 = vrcp.pop %v10553
        %v10597 = vmul.f32 1.0, %v10596
        %v10598 = vrcp.pop %v10554
        %v10599 = vmul.f32 1.0, %v10598
        %v10600 = vrcp.pop %v10555
        %v10601 = vmul.f32 1.0, %v10600
        %v10602 = vrcp.pop %v10556
        %v10603 = vmul.f32 1.0, %v10602
        %v10604 = vrcp.pop %v10557
        %v10605 = vmul.f32 1.0, %v10604
        %v10606 = vrcp.pop %v10558
        %v10607 = vmul.f32 1.0, %v10606
        %v10608 = vrcp.pop %v10559
        %v10609 = vmul.f32 1.0, %v10608
        %v10610 = vrcp.pop %v10560
        %v10611 = vmul.f32 1.0, %v10610
        %v10612 = vrcp.pop %v10561
        %v10613 = vmul.f32 1.0, %v10612
        %v10614 = vrcp.pop %v10562
        %v10615 = vmul.f32 1.0, %v10614
        %v10616 = vrcp.pop %v10563
        %v10617 = vmul.f32 1.0, %v10616
        %v10618 = vrcp.pop %v10564
        %v10619 = vmul.f32 1.0, %v10618
        %v10620 = vrcp.pop %v10565
        %v10621 = vmul.f32 1.0, %v10620
        %v10622 = vrcp.pop %v10566
        %v10623 = vmul.f32 1.0, %v10622
        %v10624 = vrcp.pop %v10567
        %v10625 = vmul.f32 1.0, %v10624
        %v10626 = vrcp.pop %v10568
        %v10627 = vmul.f32 1.0, %v10626
        %v10628 = vrcp.pop %v10569
        %v10629 = vmul.f32 1.0, %v10628
        %v10630 = vrcp.pop %v10570
        %v10631 = vmul.f32 1.0, %v10630
        %v10632 = vrcp.pop %v10571
        %v10633 = vmul.f32 1.0, %v10632
        %v10634 = vrcp.pop %v10572
        %v10635 = vmul.f32 1.0, %v10634
        %v10636 = vrcp.pop %v10573
        %v10637 = vmul.f32 1.0, %v10636
        %10670 = vrot.lane.b32.xlu0 %v9806, 32
        %v10671 = vpop.permute.xlu0 %10670
        %10672 = vrot.lane.b32.xlu0 %v9807, 32
        %v10673 = vpop.permute.xlu0 %10672
        %10674 = vrot.lane.b32.xlu0 %v9808, 32
        %v10675 = vpop.permute.xlu0 %10674
        %10676 = vrot.lane.b32.xlu0 %v9809, 32
        %v10677 = vpop.permute.xlu0 %10676
        %10678 = vrot.lane.b32.xlu0 %v9810, 32
        %v10679 = vpop.permute.xlu0 %10678
        %10680 = vrot.lane.b32.xlu0 %v9811, 32
        %v10681 = vpop.permute.xlu0 %10680
        %10682 = vrot.lane.b32.xlu0 %v9812, 32
        %v10683 = vpop.permute.xlu0 %10682
        %10684 = vrot.lane.b32.xlu0 %v9813, 32
        %v10685 = vpop.permute.xlu0 %10684
        %10686 = vrot.lane.b32.xlu0 %v9814, 32
        %v10687 = vpop.permute.xlu0 %10686
        %10688 = vrot.lane.b32.xlu0 %v9815, 32
        %v10689 = vpop.permute.xlu0 %10688
        %10690 = vrot.lane.b32.xlu0 %v9816, 32
        %v10691 = vpop.permute.xlu0 %10690
        %10692 = vrot.lane.b32.xlu0 %v9817, 32
        %v10693 = vpop.permute.xlu0 %10692
        %10694 = vrot.lane.b32.xlu0 %v9818, 32
        %v10695 = vpop.permute.xlu0 %10694
        %10696 = vrot.lane.b32.xlu0 %v9819, 32
        %v10697 = vpop.permute.xlu0 %10696
        %10698 = vrot.lane.b32.xlu0 %v9820, 32
        %v10699 = vpop.permute.xlu0 %10698
        %10700 = vrot.lane.b32.xlu0 %v9821, 32
        %v10701 = vpop.permute.xlu0 %10700
        %10702 = vrot.lane.b32.xlu0 %v9822, 32
        %v10703 = vpop.permute.xlu0 %10702
        %10704 = vrot.lane.b32.xlu0 %v9823, 32
        %v10705 = vpop.permute.xlu0 %10704
        %10706 = vrot.lane.b32.xlu0 %v9824, 32
        %v10707 = vpop.permute.xlu0 %10706
        %10708 = vrot.lane.b32.xlu0 %v9825, 32
        %v10709 = vpop.permute.xlu0 %10708
        %10710 = vrot.lane.b32.xlu0 %v9826, 32
        %v10711 = vpop.permute.xlu0 %10710
        %10712 = vrot.lane.b32.xlu0 %v9827, 32
        %v10713 = vpop.permute.xlu0 %10712
        %10714 = vrot.lane.b32.xlu0 %v9828, 32
        %v10715 = vpop.permute.xlu0 %10714
        %10716 = vrot.lane.b32.xlu0 %v9829, 32
        %v10717 = vpop.permute.xlu0 %10716
        %10718 = vrot.lane.b32.xlu0 %v9830, 32
        %v10719 = vpop.permute.xlu0 %10718
        %10720 = vrot.lane.b32.xlu0 %v9831, 32
        %v10721 = vpop.permute.xlu0 %10720
        %10722 = vrot.lane.b32.xlu0 %v9832, 32
        %v10723 = vpop.permute.xlu0 %10722
        %10724 = vrot.lane.b32.xlu0 %v9833, 32
        %v10725 = vpop.permute.xlu0 %10724
        %10726 = vrot.lane.b32.xlu0 %v9834, 32
        %v10727 = vpop.permute.xlu0 %10726
        %10728 = vrot.lane.b32.xlu0 %v9835, 32
        %v10729 = vpop.permute.xlu0 %10728
        %10730 = vrot.lane.b32.xlu0 %v9836, 32
        %v10731 = vpop.permute.xlu0 %10730
        %10732 = vrot.lane.b32.xlu0 %v9837, 32
        %v10733 = vpop.permute.xlu0 %10732
        %v10766 = vmul.f32 %v10575, %v10671
        %v10767 = vmul.f32 %v10577, %v10673
        %v10768 = vmul.f32 %v10579, %v10675
        %v10769 = vmul.f32 %v10581, %v10677
        %v10770 = vmul.f32 %v10583, %v10679
        %v10771 = vmul.f32 %v10585, %v10681
        %v10772 = vmul.f32 %v10587, %v10683
        %v10773 = vmul.f32 %v10589, %v10685
        %v10774 = vmul.f32 %v10591, %v10687
        %v10775 = vmul.f32 %v10593, %v10689
        %v10776 = vmul.f32 %v10595, %v10691
        %v10777 = vmul.f32 %v10597, %v10693
        %v10778 = vmul.f32 %v10599, %v10695
        %v10779 = vmul.f32 %v10601, %v10697
        %v10780 = vmul.f32 %v10603, %v10699
        %v10781 = vmul.f32 %v10605, %v10701
        %v10782 = vmul.f32 %v10607, %v10703
        %v10783 = vmul.f32 %v10609, %v10705
        %v10784 = vmul.f32 %v10611, %v10707
        %v10785 = vmul.f32 %v10613, %v10709
        %v10786 = vmul.f32 %v10615, %v10711
        %v10787 = vmul.f32 %v10617, %v10713
        %v10788 = vmul.f32 %v10619, %v10715
        %v10789 = vmul.f32 %v10621, %v10717
        %v10790 = vmul.f32 %v10623, %v10719
        %v10791 = vmul.f32 %v10625, %v10721
        %v10792 = vmul.f32 %v10627, %v10723
        %v10793 = vmul.f32 %v10629, %v10725
        %v10794 = vmul.f32 %v10631, %v10727
        %v10795 = vmul.f32 %v10633, %v10729
        %v10796 = vmul.f32 %v10635, %v10731
        %v10797 = vmul.f32 %v10637, %v10733
        %v10798 = vtanh.pop %v9774
        %v10799 = vtanh.pop %v9775
        %v10800 = vtanh.pop %v9776
        %v10801 = vtanh.pop %v9777
        %v10802 = vtanh.pop %v9778
        %v10803 = vtanh.pop %v9779
        %v10804 = vtanh.pop %v9780
        %v10805 = vtanh.pop %v9781
        %v10806 = vtanh.pop %v9782
        %v10807 = vtanh.pop %v9783
        %v10808 = vtanh.pop %v9784
        %v10809 = vtanh.pop %v9785
        %v10810 = vtanh.pop %v9786
        %v10811 = vtanh.pop %v9787
        %v10812 = vtanh.pop %v9788
        %v10813 = vtanh.pop %v9789
        %v10814 = vtanh.pop %v9790
        %v10815 = vtanh.pop %v9791
        %v10816 = vtanh.pop %v9792
        %v10817 = vtanh.pop %v9793
        %v10818 = vtanh.pop %v9794
        %v10819 = vtanh.pop %v9795
        %v10820 = vtanh.pop %v9796
        %v10821 = vtanh.pop %v9797
        %v10822 = vtanh.pop %v9798
        %v10823 = vtanh.pop %v9799
        %v10824 = vtanh.pop %v9800
        %v10825 = vtanh.pop %v9801
        %v10826 = vtanh.pop %v9802
        %v10827 = vtanh.pop %v9803
        %v10828 = vtanh.pop %v9804
        %v10829 = vtanh.pop %v9805
        %10862 = vrot.lane.b32.xlu0 %v10798, 64
        %v10863 = vpop.permute.xlu0 %10862
        %10864 = vrot.lane.b32.xlu0 %v10799, 64
        %v10865 = vpop.permute.xlu0 %10864
        %10866 = vrot.lane.b32.xlu0 %v10800, 64
        %v10867 = vpop.permute.xlu0 %10866
        %10868 = vrot.lane.b32.xlu0 %v10801, 64
        %v10869 = vpop.permute.xlu0 %10868
        %10870 = vrot.lane.b32.xlu0 %v10802, 64
        %v10871 = vpop.permute.xlu0 %10870
        %10872 = vrot.lane.b32.xlu0 %v10803, 64
        %v10873 = vpop.permute.xlu0 %10872
        %10874 = vrot.lane.b32.xlu0 %v10804, 64
        %v10875 = vpop.permute.xlu0 %10874
        %10876 = vrot.lane.b32.xlu0 %v10805, 64
        %v10877 = vpop.permute.xlu0 %10876
        %10878 = vrot.lane.b32.xlu0 %v10806, 64
        %v10879 = vpop.permute.xlu0 %10878
        %10880 = vrot.lane.b32.xlu0 %v10807, 64
        %v10881 = vpop.permute.xlu0 %10880
        %10882 = vrot.lane.b32.xlu0 %v10808, 64
        %v10883 = vpop.permute.xlu0 %10882
        %10884 = vrot.lane.b32.xlu0 %v10809, 64
        %v10885 = vpop.permute.xlu0 %10884
        %10886 = vrot.lane.b32.xlu0 %v10810, 64
        %v10887 = vpop.permute.xlu0 %10886
        %10888 = vrot.lane.b32.xlu0 %v10811, 64
        %v10889 = vpop.permute.xlu0 %10888
        %10890 = vrot.lane.b32.xlu0 %v10812, 64
        %v10891 = vpop.permute.xlu0 %10890
        %10892 = vrot.lane.b32.xlu0 %v10813, 64
        %v10893 = vpop.permute.xlu0 %10892
        %10894 = vrot.lane.b32.xlu0 %v10814, 64
        %v10895 = vpop.permute.xlu0 %10894
        %10896 = vrot.lane.b32.xlu0 %v10815, 64
        %v10897 = vpop.permute.xlu0 %10896
        %10898 = vrot.lane.b32.xlu0 %v10816, 64
        %v10899 = vpop.permute.xlu0 %10898
        %10900 = vrot.lane.b32.xlu0 %v10817, 64
        %v10901 = vpop.permute.xlu0 %10900
        %10902 = vrot.lane.b32.xlu0 %v10818, 64
        %v10903 = vpop.permute.xlu0 %10902
        %10904 = vrot.lane.b32.xlu0 %v10819, 64
        %v10905 = vpop.permute.xlu0 %10904
        %10906 = vrot.lane.b32.xlu0 %v10820, 64
        %v10907 = vpop.permute.xlu0 %10906
        %10908 = vrot.lane.b32.xlu0 %v10821, 64
        %v10909 = vpop.permute.xlu0 %10908
        %10910 = vrot.lane.b32.xlu0 %v10822, 64
        %v10911 = vpop.permute.xlu0 %10910
        %10912 = vrot.lane.b32.xlu0 %v10823, 64
        %v10913 = vpop.permute.xlu0 %10912
        %10914 = vrot.lane.b32.xlu0 %v10824, 64
        %v10915 = vpop.permute.xlu0 %10914
        %10916 = vrot.lane.b32.xlu0 %v10825, 64
        %v10917 = vpop.permute.xlu0 %10916
        %10918 = vrot.lane.b32.xlu0 %v10826, 64
        %v10919 = vpop.permute.xlu0 %10918
        %10920 = vrot.lane.b32.xlu0 %v10827, 64
        %v10921 = vpop.permute.xlu0 %10920
        %10922 = vrot.lane.b32.xlu0 %v10828, 64
        %v10923 = vpop.permute.xlu0 %10922
        %10924 = vrot.lane.b32.xlu0 %v10829, 64
        %v10925 = vpop.permute.xlu0 %10924
        %v10958 = vmul.f32 %v10063, %v10863
        %v10959 = vmul.f32 %v10065, %v10865
        %v10960 = vmul.f32 %v10067, %v10867
        %v10961 = vmul.f32 %v10069, %v10869
        %v10962 = vmul.f32 %v10071, %v10871
        %v10963 = vmul.f32 %v10073, %v10873
        %v10964 = vmul.f32 %v10075, %v10875
        %v10965 = vmul.f32 %v10077, %v10877
        %v10966 = vmul.f32 %v10079, %v10879
        %v10967 = vmul.f32 %v10081, %v10881
        %v10968 = vmul.f32 %v10083, %v10883
        %v10969 = vmul.f32 %v10085, %v10885
        %v10970 = vmul.f32 %v10087, %v10887
        %v10971 = vmul.f32 %v10089, %v10889
        %v10972 = vmul.f32 %v10091, %v10891
        %v10973 = vmul.f32 %v10093, %v10893
        %v10974 = vmul.f32 %v10095, %v10895
        %v10975 = vmul.f32 %v10097, %v10897
        %v10976 = vmul.f32 %v10099, %v10899
        %v10977 = vmul.f32 %v10101, %v10901
        %v10978 = vmul.f32 %v10103, %v10903
        %v10979 = vmul.f32 %v10105, %v10905
        %v10980 = vmul.f32 %v10107, %v10907
        %v10981 = vmul.f32 %v10109, %v10909
        %v10982 = vmul.f32 %v10111, %v10911
        %v10983 = vmul.f32 %v10113, %v10913
        %v10984 = vmul.f32 %v10115, %v10915
        %v10985 = vmul.f32 %v10117, %v10917
        %v10986 = vmul.f32 %v10119, %v10919
        %v10987 = vmul.f32 %v10121, %v10921
        %v10988 = vmul.f32 %v10123, %v10923
        %v10989 = vmul.f32 %v10125, %v10925
        %11022 = vrot.lane.b32.xlu0 %v10958, 32
        %v11023 = vpop.permute.xlu0 %11022
        %11024 = vrot.lane.b32.xlu0 %v10959, 32
        %v11025 = vpop.permute.xlu0 %11024
        %11026 = vrot.lane.b32.xlu0 %v10960, 32
        %v11027 = vpop.permute.xlu0 %11026
        %11028 = vrot.lane.b32.xlu0 %v10961, 32
        %v11029 = vpop.permute.xlu0 %11028
        %11030 = vrot.lane.b32.xlu0 %v10962, 32
        %v11031 = vpop.permute.xlu0 %11030
        %11032 = vrot.lane.b32.xlu0 %v10963, 32
        %v11033 = vpop.permute.xlu0 %11032
        %11034 = vrot.lane.b32.xlu0 %v10964, 32
        %v11035 = vpop.permute.xlu0 %11034
        %11036 = vrot.lane.b32.xlu0 %v10965, 32
        %v11037 = vpop.permute.xlu0 %11036
        %11038 = vrot.lane.b32.xlu0 %v10966, 32
        %v11039 = vpop.permute.xlu0 %11038
        %11040 = vrot.lane.b32.xlu0 %v10967, 32
        %v11041 = vpop.permute.xlu0 %11040
        %11042 = vrot.lane.b32.xlu0 %v10968, 32
        %v11043 = vpop.permute.xlu0 %11042
        %11044 = vrot.lane.b32.xlu0 %v10969, 32
        %v11045 = vpop.permute.xlu0 %11044
        %11046 = vrot.lane.b32.xlu0 %v10970, 32
        %v11047 = vpop.permute.xlu0 %11046
        %11048 = vrot.lane.b32.xlu0 %v10971, 32
        %v11049 = vpop.permute.xlu0 %11048
        %11050 = vrot.lane.b32.xlu0 %v10972, 32
        %v11051 = vpop.permute.xlu0 %11050
        %11052 = vrot.lane.b32.xlu0 %v10973, 32
        %v11053 = vpop.permute.xlu0 %11052
        %11054 = vrot.lane.b32.xlu0 %v10974, 32
        %v11055 = vpop.permute.xlu0 %11054
        %11056 = vrot.lane.b32.xlu0 %v10975, 32
        %v11057 = vpop.permute.xlu0 %11056
        %11058 = vrot.lane.b32.xlu0 %v10976, 32
        %v11059 = vpop.permute.xlu0 %11058
        %11060 = vrot.lane.b32.xlu0 %v10977, 32
        %v11061 = vpop.permute.xlu0 %11060
        %11062 = vrot.lane.b32.xlu0 %v10978, 32
        %v11063 = vpop.permute.xlu0 %11062
        %11064 = vrot.lane.b32.xlu0 %v10979, 32
        %v11065 = vpop.permute.xlu0 %11064
        %11066 = vrot.lane.b32.xlu0 %v10980, 32
        %v11067 = vpop.permute.xlu0 %11066
        %11068 = vrot.lane.b32.xlu0 %v10981, 32
        %v11069 = vpop.permute.xlu0 %11068
        %11070 = vrot.lane.b32.xlu0 %v10982, 32
        %v11071 = vpop.permute.xlu0 %11070
        %11072 = vrot.lane.b32.xlu0 %v10983, 32
        %v11073 = vpop.permute.xlu0 %11072
        %11074 = vrot.lane.b32.xlu0 %v10984, 32
        %v11075 = vpop.permute.xlu0 %11074
        %11076 = vrot.lane.b32.xlu0 %v10985, 32
        %v11077 = vpop.permute.xlu0 %11076
        %11078 = vrot.lane.b32.xlu0 %v10986, 32
        %v11079 = vpop.permute.xlu0 %11078
        %11080 = vrot.lane.b32.xlu0 %v10987, 32
        %v11081 = vpop.permute.xlu0 %11080
        %11082 = vrot.lane.b32.xlu0 %v10988, 32
        %v11083 = vpop.permute.xlu0 %11082
        %11084 = vrot.lane.b32.xlu0 %v10989, 32
        %v11085 = vpop.permute.xlu0 %11084
        %v11118 = vadd.f32 %v10766, %v11023
        %v11119 = vadd.f32 %v10767, %v11025
        %v11120 = vadd.f32 %v10768, %v11027
        %v11121 = vadd.f32 %v10769, %v11029
        %v11122 = vadd.f32 %v10770, %v11031
        %v11123 = vadd.f32 %v10771, %v11033
        %v11124 = vadd.f32 %v10772, %v11035
        %v11125 = vadd.f32 %v10773, %v11037
        %v11126 = vadd.f32 %v10774, %v11039
        %v11127 = vadd.f32 %v10775, %v11041
        %v11128 = vadd.f32 %v10776, %v11043
        %v11129 = vadd.f32 %v10777, %v11045
        %v11130 = vadd.f32 %v10778, %v11047
        %v11131 = vadd.f32 %v10779, %v11049
        %v11132 = vadd.f32 %v10780, %v11051
        %v11133 = vadd.f32 %v10781, %v11053
        %v11134 = vadd.f32 %v10782, %v11055
        %v11135 = vadd.f32 %v10783, %v11057
        %v11136 = vadd.f32 %v10784, %v11059
        %v11137 = vadd.f32 %v10785, %v11061
        %v11138 = vadd.f32 %v10786, %v11063
        %v11139 = vadd.f32 %v10787, %v11065
        %v11140 = vadd.f32 %v10788, %v11067
        %v11141 = vadd.f32 %v10789, %v11069
        %v11142 = vadd.f32 %v10790, %v11071
        %v11143 = vadd.f32 %v10791, %v11073
        %v11144 = vadd.f32 %v10792, %v11075
        %v11145 = vadd.f32 %v10793, %v11077
        %v11146 = vadd.f32 %v10794, %v11079
        %v11147 = vadd.f32 %v10795, %v11081
        %v11148 = vadd.f32 %v10796, %v11083
        %v11149 = vadd.f32 %v10797, %v11085
        %v11150 = vmul.f32 %v11118, %v10159
        %v11151 = vmul.f32 %v11119, %v10161
        %v11152 = vmul.f32 %v11120, %v10163
        %v11153 = vmul.f32 %v11121, %v10165
        %v11154 = vmul.f32 %v11122, %v10167
        %v11155 = vmul.f32 %v11123, %v10169
        %v11156 = vmul.f32 %v11124, %v10171
        %v11157 = vmul.f32 %v11125, %v10173
        %v11158 = vmul.f32 %v11126, %v10175
        %v11159 = vmul.f32 %v11127, %v10177
        %v11160 = vmul.f32 %v11128, %v10179
        %v11161 = vmul.f32 %v11129, %v10181
        %v11162 = vmul.f32 %v11130, %v10183
        %v11163 = vmul.f32 %v11131, %v10185
        %v11164 = vmul.f32 %v11132, %v10187
        %v11165 = vmul.f32 %v11133, %v10189
        %v11166 = vmul.f32 %v11134, %v10191
        %v11167 = vmul.f32 %v11135, %v10193
        %v11168 = vmul.f32 %v11136, %v10195
        %v11169 = vmul.f32 %v11137, %v10197
        %v11170 = vmul.f32 %v11138, %v10199
        %v11171 = vmul.f32 %v11139, %v10201
        %v11172 = vmul.f32 %v11140, %v10203
        %v11173 = vmul.f32 %v11141, %v10205
        %v11174 = vmul.f32 %v11142, %v10207
        %v11175 = vmul.f32 %v11143, %v10209
        %v11176 = vmul.f32 %v11144, %v10211
        %v11177 = vmul.f32 %v11145, %v10213
        %v11178 = vmul.f32 %v11146, %v10215
        %v11179 = vmul.f32 %v11147, %v10217
        %v11180 = vmul.f32 %v11148, %v10219
        %v11181 = vmul.f32 %v11149, %v10221
        %11214 = vrot.lane.b32.xlu0 %v11150, 64
        %v11215 = vpop.permute.xlu0 %11214
        %11216 = vrot.lane.b32.xlu0 %v11151, 64
        %v11217 = vpop.permute.xlu0 %11216
        %11218 = vrot.lane.b32.xlu0 %v11152, 64
        %v11219 = vpop.permute.xlu0 %11218
        %11220 = vrot.lane.b32.xlu0 %v11153, 64
        %v11221 = vpop.permute.xlu0 %11220
        %11222 = vrot.lane.b32.xlu0 %v11154, 64
        %v11223 = vpop.permute.xlu0 %11222
        %11224 = vrot.lane.b32.xlu0 %v11155, 64
        %v11225 = vpop.permute.xlu0 %11224
        %11226 = vrot.lane.b32.xlu0 %v11156, 64
        %v11227 = vpop.permute.xlu0 %11226
        %11228 = vrot.lane.b32.xlu0 %v11157, 64
        %v11229 = vpop.permute.xlu0 %11228
        %11230 = vrot.lane.b32.xlu0 %v11158, 64
        %v11231 = vpop.permute.xlu0 %11230
        %11232 = vrot.lane.b32.xlu0 %v11159, 64
        %v11233 = vpop.permute.xlu0 %11232
        %11234 = vrot.lane.b32.xlu0 %v11160, 64
        %v11235 = vpop.permute.xlu0 %11234
        %11236 = vrot.lane.b32.xlu0 %v11161, 64
        %v11237 = vpop.permute.xlu0 %11236
        %11238 = vrot.lane.b32.xlu0 %v11162, 64
        %v11239 = vpop.permute.xlu0 %11238
        %11240 = vrot.lane.b32.xlu0 %v11163, 64
        %v11241 = vpop.permute.xlu0 %11240
        %11242 = vrot.lane.b32.xlu0 %v11164, 64
        %v11243 = vpop.permute.xlu0 %11242
        %11244 = vrot.lane.b32.xlu0 %v11165, 64
        %v11245 = vpop.permute.xlu0 %11244
        %11246 = vrot.lane.b32.xlu0 %v11166, 64
        %v11247 = vpop.permute.xlu0 %11246
        %11248 = vrot.lane.b32.xlu0 %v11167, 64
        %v11249 = vpop.permute.xlu0 %11248
        %11250 = vrot.lane.b32.xlu0 %v11168, 64
        %v11251 = vpop.permute.xlu0 %11250
        %11252 = vrot.lane.b32.xlu0 %v11169, 64
        %v11253 = vpop.permute.xlu0 %11252
        %11254 = vrot.lane.b32.xlu0 %v11170, 64
        %v11255 = vpop.permute.xlu0 %11254
        %11256 = vrot.lane.b32.xlu0 %v11171, 64
        %v11257 = vpop.permute.xlu0 %11256
        %11258 = vrot.lane.b32.xlu0 %v11172, 64
        %v11259 = vpop.permute.xlu0 %11258
        %11260 = vrot.lane.b32.xlu0 %v11173, 64
        %v11261 = vpop.permute.xlu0 %11260
        %11262 = vrot.lane.b32.xlu0 %v11174, 64
        %v11263 = vpop.permute.xlu0 %11262
        %11264 = vrot.lane.b32.xlu0 %v11175, 64
        %v11265 = vpop.permute.xlu0 %11264
        %11266 = vrot.lane.b32.xlu0 %v11176, 64
        %v11267 = vpop.permute.xlu0 %11266
        %11268 = vrot.lane.b32.xlu0 %v11177, 64
        %v11269 = vpop.permute.xlu0 %11268
        %11270 = vrot.lane.b32.xlu0 %v11178, 64
        %v11271 = vpop.permute.xlu0 %11270
        %11272 = vrot.lane.b32.xlu0 %v11179, 64
        %v11273 = vpop.permute.xlu0 %11272
        %11274 = vrot.lane.b32.xlu0 %v11180, 64
        %v11275 = vpop.permute.xlu0 %11274
        %11276 = vrot.lane.b32.xlu0 %v11181, 64
        %v11277 = vpop.permute.xlu0 %11276
        %v11310 = vadd.f32 %v9774, %v11215
        %v11311 = vadd.f32 %v9775, %v11217
        %v11312 = vadd.f32 %v9776, %v11219
        %v11313 = vadd.f32 %v9777, %v11221
        %v11314 = vadd.f32 %v9778, %v11223
        %v11315 = vadd.f32 %v9779, %v11225
        %v11316 = vadd.f32 %v9780, %v11227
        %v11317 = vadd.f32 %v9781, %v11229
        %v11318 = vadd.f32 %v9782, %v11231
        %v11319 = vadd.f32 %v9783, %v11233
        %v11320 = vadd.f32 %v9784, %v11235
        %v11321 = vadd.f32 %v9785, %v11237
        %v11322 = vadd.f32 %v9786, %v11239
        %v11323 = vadd.f32 %v9787, %v11241
        %v11324 = vadd.f32 %v9788, %v11243
        %v11325 = vadd.f32 %v9789, %v11245
        %v11326 = vadd.f32 %v9790, %v11247
        %v11327 = vadd.f32 %v9791, %v11249
        %v11328 = vadd.f32 %v9792, %v11251
        %v11329 = vadd.f32 %v9793, %v11253
        %v11330 = vadd.f32 %v9794, %v11255
        %v11331 = vadd.f32 %v9795, %v11257
        %v11332 = vadd.f32 %v9796, %v11259
        %v11333 = vadd.f32 %v9797, %v11261
        %v11334 = vadd.f32 %v9798, %v11263
        %v11335 = vadd.f32 %v9799, %v11265
        %v11336 = vadd.f32 %v9800, %v11267
        %v11337 = vadd.f32 %v9801, %v11269
        %v11338 = vadd.f32 %v9802, %v11271
        %v11339 = vadd.f32 %v9803, %v11273
        %v11340 = vadd.f32 %v9804, %v11275
        %v11341 = vadd.f32 %v9805, %v11277
        %v11342 = vxor.u32 %v11310, 2147483648
        %v11343 = vxor.u32 %v11311, 2147483648
        %v11344 = vxor.u32 %v11312, 2147483648
        %v11345 = vxor.u32 %v11313, 2147483648
        %v11346 = vxor.u32 %v11314, 2147483648
        %v11347 = vxor.u32 %v11315, 2147483648
        %v11348 = vxor.u32 %v11316, 2147483648
        %v11349 = vxor.u32 %v11317, 2147483648
        %v11350 = vxor.u32 %v11318, 2147483648
        %v11351 = vxor.u32 %v11319, 2147483648
        %v11352 = vxor.u32 %v11320, 2147483648
        %v11353 = vxor.u32 %v11321, 2147483648
        %v11354 = vxor.u32 %v11322, 2147483648
        %v11355 = vxor.u32 %v11323, 2147483648
        %v11356 = vxor.u32 %v11324, 2147483648
        %v11357 = vxor.u32 %v11325, 2147483648
        %v11358 = vxor.u32 %v11326, 2147483648
        %v11359 = vxor.u32 %v11327, 2147483648
        %v11360 = vxor.u32 %v11328, 2147483648
        %v11361 = vxor.u32 %v11329, 2147483648
        %v11362 = vxor.u32 %v11330, 2147483648
        %v11363 = vxor.u32 %v11331, 2147483648
        %v11364 = vxor.u32 %v11332, 2147483648
        %v11365 = vxor.u32 %v11333, 2147483648
        %v11366 = vxor.u32 %v11334, 2147483648
        %v11367 = vxor.u32 %v11335, 2147483648
        %v11368 = vxor.u32 %v11336, 2147483648
        %v11369 = vxor.u32 %v11337, 2147483648
        %v11370 = vxor.u32 %v11338, 2147483648
        %v11371 = vxor.u32 %v11339, 2147483648
        %v11372 = vxor.u32 %v11340, 2147483648
        %v11373 = vxor.u32 %v11341, 2147483648
        %v11374 = vmul.f32 %v11342, 1.442695
        %v11375 = vpow.pop %v11374
        %v11376 = vmul.f32 %v11343, 1.442695
        %v11377 = vpow.pop %v11376
        %v11378 = vmul.f32 %v11344, 1.442695
        %v11379 = vpow.pop %v11378
        %v11380 = vmul.f32 %v11345, 1.442695
        %v11381 = vpow.pop %v11380
        %v11382 = vmul.f32 %v11346, 1.442695
        %v11383 = vpow.pop %v11382
        %v11384 = vmul.f32 %v11347, 1.442695
        %v11385 = vpow.pop %v11384
        %v11386 = vmul.f32 %v11348, 1.442695
        %v11387 = vpow.pop %v11386
        %v11388 = vmul.f32 %v11349, 1.442695
        %v11389 = vpow.pop %v11388
        %v11390 = vmul.f32 %v11350, 1.442695
        %v11391 = vpow.pop %v11390
        %v11392 = vmul.f32 %v11351, 1.442695
        %v11393 = vpow.pop %v11392
        %v11394 = vmul.f32 %v11352, 1.442695
        %v11395 = vpow.pop %v11394
        %v11396 = vmul.f32 %v11353, 1.442695
        %v11397 = vpow.pop %v11396
        %v11398 = vmul.f32 %v11354, 1.442695
        %v11399 = vpow.pop %v11398
        %v11400 = vmul.f32 %v11355, 1.442695
        %v11401 = vpow.pop %v11400
        %v11402 = vmul.f32 %v11356, 1.442695
        %v11403 = vpow.pop %v11402
        %v11404 = vmul.f32 %v11357, 1.442695
        %v11405 = vpow.pop %v11404
        %v11406 = vmul.f32 %v11358, 1.442695
        %v11407 = vpow.pop %v11406
        %v11408 = vmul.f32 %v11359, 1.442695
        %v11409 = vpow.pop %v11408
        %v11410 = vmul.f32 %v11360, 1.442695
        %v11411 = vpow.pop %v11410
        %v11412 = vmul.f32 %v11361, 1.442695
        %v11413 = vpow.pop %v11412
        %v11414 = vmul.f32 %v11362, 1.442695
        %v11415 = vpow.pop %v11414
        %v11416 = vmul.f32 %v11363, 1.442695
        %v11417 = vpow.pop %v11416
        %v11418 = vmul.f32 %v11364, 1.442695
        %v11419 = vpow.pop %v11418
        %v11420 = vmul.f32 %v11365, 1.442695
        %v11421 = vpow.pop %v11420
        %v11422 = vmul.f32 %v11366, 1.442695
        %v11423 = vpow.pop %v11422
        %v11424 = vmul.f32 %v11367, 1.442695
        %v11425 = vpow.pop %v11424
        %v11426 = vmul.f32 %v11368, 1.442695
        %v11427 = vpow.pop %v11426
        %v11428 = vmul.f32 %v11369, 1.442695
        %v11429 = vpow.pop %v11428
        %v11430 = vmul.f32 %v11370, 1.442695
        %v11431 = vpow.pop %v11430
        %v11432 = vmul.f32 %v11371, 1.442695
        %v11433 = vpow.pop %v11432
        %v11434 = vmul.f32 %v11372, 1.442695
        %v11435 = vpow.pop %v11434
        %v11436 = vmul.f32 %v11373, 1.442695
        %v11437 = vpow.pop %v11436
        %v11438 = vadd.f32 %v11375, 1.0
        %v11439 = vadd.f32 %v11377, 1.0
        %v11440 = vadd.f32 %v11379, 1.0
        %v11441 = vadd.f32 %v11381, 1.0
        %v11442 = vadd.f32 %v11383, 1.0
        %v11443 = vadd.f32 %v11385, 1.0
        %v11444 = vadd.f32 %v11387, 1.0
        %v11445 = vadd.f32 %v11389, 1.0
        %v11446 = vadd.f32 %v11391, 1.0
        %v11447 = vadd.f32 %v11393, 1.0
        %v11448 = vadd.f32 %v11395, 1.0
        %v11449 = vadd.f32 %v11397, 1.0
        %v11450 = vadd.f32 %v11399, 1.0
        %v11451 = vadd.f32 %v11401, 1.0
        %v11452 = vadd.f32 %v11403, 1.0
        %v11453 = vadd.f32 %v11405, 1.0
        %v11454 = vadd.f32 %v11407, 1.0
        %v11455 = vadd.f32 %v11409, 1.0
        %v11456 = vadd.f32 %v11411, 1.0
        %v11457 = vadd.f32 %v11413, 1.0
        %v11458 = vadd.f32 %v11415, 1.0
        %v11459 = vadd.f32 %v11417, 1.0
        %v11460 = vadd.f32 %v11419, 1.0
        %v11461 = vadd.f32 %v11421, 1.0
        %v11462 = vadd.f32 %v11423, 1.0
        %v11463 = vadd.f32 %v11425, 1.0
        %v11464 = vadd.f32 %v11427, 1.0
        %v11465 = vadd.f32 %v11429, 1.0
        %v11466 = vadd.f32 %v11431, 1.0
        %v11467 = vadd.f32 %v11433, 1.0
        %v11468 = vadd.f32 %v11435, 1.0
        %v11469 = vadd.f32 %v11437, 1.0
        %v11470 = vrcp.pop %v11438
        %v11471 = vmul.f32 1.0, %v11470
        %v11472 = vrcp.pop %v11439
        %v11473 = vmul.f32 1.0, %v11472
        %v11474 = vrcp.pop %v11440
        %v11475 = vmul.f32 1.0, %v11474
        %v11476 = vrcp.pop %v11441
        %v11477 = vmul.f32 1.0, %v11476
        %v11478 = vrcp.pop %v11442
        %v11479 = vmul.f32 1.0, %v11478
        %v11480 = vrcp.pop %v11443
        %v11481 = vmul.f32 1.0, %v11480
        %v11482 = vrcp.pop %v11444
        %v11483 = vmul.f32 1.0, %v11482
        %v11484 = vrcp.pop %v11445
        %v11485 = vmul.f32 1.0, %v11484
        %v11486 = vrcp.pop %v11446
        %v11487 = vmul.f32 1.0, %v11486
        %v11488 = vrcp.pop %v11447
        %v11489 = vmul.f32 1.0, %v11488
        %v11490 = vrcp.pop %v11448
        %v11491 = vmul.f32 1.0, %v11490
        %v11492 = vrcp.pop %v11449
        %v11493 = vmul.f32 1.0, %v11492
        %v11494 = vrcp.pop %v11450
        %v11495 = vmul.f32 1.0, %v11494
        %v11496 = vrcp.pop %v11451
        %v11497 = vmul.f32 1.0, %v11496
        %v11498 = vrcp.pop %v11452
        %v11499 = vmul.f32 1.0, %v11498
        %v11500 = vrcp.pop %v11453
        %v11501 = vmul.f32 1.0, %v11500
        %v11502 = vrcp.pop %v11454
        %v11503 = vmul.f32 1.0, %v11502
        %v11504 = vrcp.pop %v11455
        %v11505 = vmul.f32 1.0, %v11504
        %v11506 = vrcp.pop %v11456
        %v11507 = vmul.f32 1.0, %v11506
        %v11508 = vrcp.pop %v11457
        %v11509 = vmul.f32 1.0, %v11508
        %v11510 = vrcp.pop %v11458
        %v11511 = vmul.f32 1.0, %v11510
        %v11512 = vrcp.pop %v11459
        %v11513 = vmul.f32 1.0, %v11512
        %v11514 = vrcp.pop %v11460
        %v11515 = vmul.f32 1.0, %v11514
        %v11516 = vrcp.pop %v11461
        %v11517 = vmul.f32 1.0, %v11516
        %v11518 = vrcp.pop %v11462
        %v11519 = vmul.f32 1.0, %v11518
        %v11520 = vrcp.pop %v11463
        %v11521 = vmul.f32 1.0, %v11520
        %v11522 = vrcp.pop %v11464
        %v11523 = vmul.f32 1.0, %v11522
        %v11524 = vrcp.pop %v11465
        %v11525 = vmul.f32 1.0, %v11524
        %v11526 = vrcp.pop %v11466
        %v11527 = vmul.f32 1.0, %v11526
        %v11528 = vrcp.pop %v11467
        %v11529 = vmul.f32 1.0, %v11528
        %v11530 = vrcp.pop %v11468
        %v11531 = vmul.f32 1.0, %v11530
        %v11532 = vrcp.pop %v11469
        %v11533 = vmul.f32 1.0, %v11532
        %v11534 = vtanh.pop %v11118
        %v11535 = vtanh.pop %v11119
        %v11536 = vtanh.pop %v11120
        %v11537 = vtanh.pop %v11121
        %v11538 = vtanh.pop %v11122
        %v11539 = vtanh.pop %v11123
        %v11540 = vtanh.pop %v11124
        %v11541 = vtanh.pop %v11125
        %v11542 = vtanh.pop %v11126
        %v11543 = vtanh.pop %v11127
        %v11544 = vtanh.pop %v11128
        %v11545 = vtanh.pop %v11129
        %v11546 = vtanh.pop %v11130
        %v11547 = vtanh.pop %v11131
        %v11548 = vtanh.pop %v11132
        %v11549 = vtanh.pop %v11133
        %v11550 = vtanh.pop %v11134
        %v11551 = vtanh.pop %v11135
        %v11552 = vtanh.pop %v11136
        %v11553 = vtanh.pop %v11137
        %v11554 = vtanh.pop %v11138
        %v11555 = vtanh.pop %v11139
        %v11556 = vtanh.pop %v11140
        %v11557 = vtanh.pop %v11141
        %v11558 = vtanh.pop %v11142
        %v11559 = vtanh.pop %v11143
        %v11560 = vtanh.pop %v11144
        %v11561 = vtanh.pop %v11145
        %v11562 = vtanh.pop %v11146
        %v11563 = vtanh.pop %v11147
        %v11564 = vtanh.pop %v11148
        %v11565 = vtanh.pop %v11149
        %11598 = vrot.lane.b32.xlu0 %v11534, 64
        %v11599 = vpop.permute.xlu0 %11598
        %11600 = vrot.lane.b32.xlu0 %v11535, 64
        %v11601 = vpop.permute.xlu0 %11600
        %11602 = vrot.lane.b32.xlu0 %v11536, 64
        %v11603 = vpop.permute.xlu0 %11602
        %11604 = vrot.lane.b32.xlu0 %v11537, 64
        %v11605 = vpop.permute.xlu0 %11604
        %11606 = vrot.lane.b32.xlu0 %v11538, 64
        %v11607 = vpop.permute.xlu0 %11606
        %11608 = vrot.lane.b32.xlu0 %v11539, 64
        %v11609 = vpop.permute.xlu0 %11608
        %11610 = vrot.lane.b32.xlu0 %v11540, 64
        %v11611 = vpop.permute.xlu0 %11610
        %11612 = vrot.lane.b32.xlu0 %v11541, 64
        %v11613 = vpop.permute.xlu0 %11612
        %11614 = vrot.lane.b32.xlu0 %v11542, 64
        %v11615 = vpop.permute.xlu0 %11614
        %11616 = vrot.lane.b32.xlu0 %v11543, 64
        %v11617 = vpop.permute.xlu0 %11616
        %11618 = vrot.lane.b32.xlu0 %v11544, 64
        %v11619 = vpop.permute.xlu0 %11618
        %11620 = vrot.lane.b32.xlu0 %v11545, 64
        %v11621 = vpop.permute.xlu0 %11620
        %11622 = vrot.lane.b32.xlu0 %v11546, 64
        %v11623 = vpop.permute.xlu0 %11622
        %11624 = vrot.lane.b32.xlu0 %v11547, 64
        %v11625 = vpop.permute.xlu0 %11624
        %11626 = vrot.lane.b32.xlu0 %v11548, 64
        %v11627 = vpop.permute.xlu0 %11626
        %11628 = vrot.lane.b32.xlu0 %v11549, 64
        %v11629 = vpop.permute.xlu0 %11628
        %11630 = vrot.lane.b32.xlu0 %v11550, 64
        %v11631 = vpop.permute.xlu0 %11630
        %11632 = vrot.lane.b32.xlu0 %v11551, 64
        %v11633 = vpop.permute.xlu0 %11632
        %11634 = vrot.lane.b32.xlu0 %v11552, 64
        %v11635 = vpop.permute.xlu0 %11634
        %11636 = vrot.lane.b32.xlu0 %v11553, 64
        %v11637 = vpop.permute.xlu0 %11636
        %11638 = vrot.lane.b32.xlu0 %v11554, 64
        %v11639 = vpop.permute.xlu0 %11638
        %11640 = vrot.lane.b32.xlu0 %v11555, 64
        %v11641 = vpop.permute.xlu0 %11640
        %11642 = vrot.lane.b32.xlu0 %v11556, 64
        %v11643 = vpop.permute.xlu0 %11642
        %11644 = vrot.lane.b32.xlu0 %v11557, 64
        %v11645 = vpop.permute.xlu0 %11644
        %11646 = vrot.lane.b32.xlu0 %v11558, 64
        %v11647 = vpop.permute.xlu0 %11646
        %11648 = vrot.lane.b32.xlu0 %v11559, 64
        %v11649 = vpop.permute.xlu0 %11648
        %11650 = vrot.lane.b32.xlu0 %v11560, 64
        %v11651 = vpop.permute.xlu0 %11650
        %11652 = vrot.lane.b32.xlu0 %v11561, 64
        %v11653 = vpop.permute.xlu0 %11652
        %11654 = vrot.lane.b32.xlu0 %v11562, 64
        %v11655 = vpop.permute.xlu0 %11654
        %11656 = vrot.lane.b32.xlu0 %v11563, 64
        %v11657 = vpop.permute.xlu0 %11656
        %11658 = vrot.lane.b32.xlu0 %v11564, 64
        %v11659 = vpop.permute.xlu0 %11658
        %11660 = vrot.lane.b32.xlu0 %v11565, 64
        %v11661 = vpop.permute.xlu0 %11660
        %v11694 = vmul.f32 %v11471, %v11599
        %v11695 = vmul.f32 %v11473, %v11601
        %v11696 = vmul.f32 %v11475, %v11603
        %v11697 = vmul.f32 %v11477, %v11605
        %v11698 = vmul.f32 %v11479, %v11607
        %v11699 = vmul.f32 %v11481, %v11609
        %v11700 = vmul.f32 %v11483, %v11611
        %v11701 = vmul.f32 %v11485, %v11613
        %v11702 = vmul.f32 %v11487, %v11615
        %v11703 = vmul.f32 %v11489, %v11617
        %v11704 = vmul.f32 %v11491, %v11619
        %v11705 = vmul.f32 %v11493, %v11621
        %v11706 = vmul.f32 %v11495, %v11623
        %v11707 = vmul.f32 %v11497, %v11625
        %v11708 = vmul.f32 %v11499, %v11627
        %v11709 = vmul.f32 %v11501, %v11629
        %v11710 = vmul.f32 %v11503, %v11631
        %v11711 = vmul.f32 %v11505, %v11633
        %v11712 = vmul.f32 %v11507, %v11635
        %v11713 = vmul.f32 %v11509, %v11637
        %v11714 = vmul.f32 %v11511, %v11639
        %v11715 = vmul.f32 %v11513, %v11641
        %v11716 = vmul.f32 %v11515, %v11643
        %v11717 = vmul.f32 %v11517, %v11645
        %v11718 = vmul.f32 %v11519, %v11647
        %v11719 = vmul.f32 %v11521, %v11649
        %v11720 = vmul.f32 %v11523, %v11651
        %v11721 = vmul.f32 %v11525, %v11653
        %v11722 = vmul.f32 %v11527, %v11655
        %v11723 = vmul.f32 %v11529, %v11657
        %v11724 = vmul.f32 %v11531, %v11659
        %v11725 = vmul.f32 %v11533, %v11661
        %11758 = vrot.lane.b32.xlu0 %v11694, 32
        %v11759 = vpop.permute.xlu0 %11758
        %11760 = vrot.lane.b32.xlu0 %v11695, 32
        %v11761 = vpop.permute.xlu0 %11760
        %11762 = vrot.lane.b32.xlu0 %v11696, 32
        %v11763 = vpop.permute.xlu0 %11762
        %11764 = vrot.lane.b32.xlu0 %v11697, 32
        %v11765 = vpop.permute.xlu0 %11764
        %11766 = vrot.lane.b32.xlu0 %v11698, 32
        %v11767 = vpop.permute.xlu0 %11766
        %11768 = vrot.lane.b32.xlu0 %v11699, 32
        %v11769 = vpop.permute.xlu0 %11768
        %11770 = vrot.lane.b32.xlu0 %v11700, 32
        %v11771 = vpop.permute.xlu0 %11770
        %11772 = vrot.lane.b32.xlu0 %v11701, 32
        %v11773 = vpop.permute.xlu0 %11772
        %11774 = vrot.lane.b32.xlu0 %v11702, 32
        %v11775 = vpop.permute.xlu0 %11774
        %11776 = vrot.lane.b32.xlu0 %v11703, 32
        %v11777 = vpop.permute.xlu0 %11776
        %11778 = vrot.lane.b32.xlu0 %v11704, 32
        %v11779 = vpop.permute.xlu0 %11778
        %11780 = vrot.lane.b32.xlu0 %v11705, 32
        %v11781 = vpop.permute.xlu0 %11780
        %11782 = vrot.lane.b32.xlu0 %v11706, 32
        %v11783 = vpop.permute.xlu0 %11782
        %11784 = vrot.lane.b32.xlu0 %v11707, 32
        %v11785 = vpop.permute.xlu0 %11784
        %11786 = vrot.lane.b32.xlu0 %v11708, 32
        %v11787 = vpop.permute.xlu0 %11786
        %11788 = vrot.lane.b32.xlu0 %v11709, 32
        %v11789 = vpop.permute.xlu0 %11788
        %11790 = vrot.lane.b32.xlu0 %v11710, 32
        %v11791 = vpop.permute.xlu0 %11790
        %11792 = vrot.lane.b32.xlu0 %v11711, 32
        %v11793 = vpop.permute.xlu0 %11792
        %11794 = vrot.lane.b32.xlu0 %v11712, 32
        %v11795 = vpop.permute.xlu0 %11794
        %11796 = vrot.lane.b32.xlu0 %v11713, 32
        %v11797 = vpop.permute.xlu0 %11796
        %11798 = vrot.lane.b32.xlu0 %v11714, 32
        %v11799 = vpop.permute.xlu0 %11798
        %11800 = vrot.lane.b32.xlu0 %v11715, 32
        %v11801 = vpop.permute.xlu0 %11800
        %11802 = vrot.lane.b32.xlu0 %v11716, 32
        %v11803 = vpop.permute.xlu0 %11802
        %11804 = vrot.lane.b32.xlu0 %v11717, 32
        %v11805 = vpop.permute.xlu0 %11804
        %11806 = vrot.lane.b32.xlu0 %v11718, 32
        %v11807 = vpop.permute.xlu0 %11806
        %11808 = vrot.lane.b32.xlu0 %v11719, 32
        %v11809 = vpop.permute.xlu0 %11808
        %11810 = vrot.lane.b32.xlu0 %v11720, 32
        %v11811 = vpop.permute.xlu0 %11810
        %11812 = vrot.lane.b32.xlu0 %v11721, 32
        %v11813 = vpop.permute.xlu0 %11812
        %11814 = vrot.lane.b32.xlu0 %v11722, 32
        %v11815 = vpop.permute.xlu0 %11814
        %11816 = vrot.lane.b32.xlu0 %v11723, 32
        %v11817 = vpop.permute.xlu0 %11816
        %11818 = vrot.lane.b32.xlu0 %v11724, 32
        %v11819 = vpop.permute.xlu0 %11818
        %11820 = vrot.lane.b32.xlu0 %v11725, 32
        %v11821 = vpop.permute.xlu0 %11820
        %11854 = vst.msk [vmem:[%s332] sm:$0xff] %vm850, %v11759
        %11855 = vst.msk [vmem:[%s332 + $0x8] sm:$0xff] %vm850, %v11761
        %11856 = vst.msk [vmem:[%s332 + $0x10] sm:$0xff] %vm850, %v11763
        %11857 = vst.msk [vmem:[%s332 + $0x18] sm:$0xff] %vm850, %v11765
        %11858 = vst.msk [vmem:[%s332 + $0x20] sm:$0xff] %vm850, %v11767
        %11859 = vst.msk [vmem:[%s332 + $0x28] sm:$0xff] %vm850, %v11769
        %11860 = vst.msk [vmem:[%s332 + $0x30] sm:$0xff] %vm850, %v11771
        %11861 = vst.msk [vmem:[%s332 + $0x38] sm:$0xff] %vm850, %v11773
        %11862 = vst.msk [vmem:[%s332 + $0x40] sm:$0xff] %vm850, %v11775
        %11863 = vst.msk [vmem:[%s332 + $0x48] sm:$0xff] %vm850, %v11777
        %11864 = vst.msk [vmem:[%s332 + $0x50] sm:$0xff] %vm850, %v11779
        %11865 = vst.msk [vmem:[%s332 + $0x58] sm:$0xff] %vm850, %v11781
        %11866 = vst.msk [vmem:[%s332 + $0x60] sm:$0xff] %vm850, %v11783
        %11867 = vst.msk [vmem:[%s332 + $0x68] sm:$0xff] %vm850, %v11785
        %11868 = vst.msk [vmem:[%s332 + $0x70] sm:$0xff] %vm850, %v11787
        %11869 = vst.msk [vmem:[%s332 + $0x78] sm:$0xff] %vm850, %v11789
        %11870 = vst.msk [vmem:[%s332 + $0x80] sm:$0xff] %vm850, %v11791
        %11871 = vst.msk [vmem:[%s332 + $0x88] sm:$0xff] %vm850, %v11793
        %11872 = vst.msk [vmem:[%s332 + $0x90] sm:$0xff] %vm850, %v11795
        %11873 = vst.msk [vmem:[%s332 + $0x98] sm:$0xff] %vm850, %v11797
        %11874 = vst.msk [vmem:[%s332 + $0xa0] sm:$0xff] %vm850, %v11799
        %11875 = vst.msk [vmem:[%s332 + $0xa8] sm:$0xff] %vm850, %v11801
        %11876 = vst.msk [vmem:[%s332 + $0xb0] sm:$0xff] %vm850, %v11803
        %11877 = vst.msk [vmem:[%s332 + $0xb8] sm:$0xff] %vm850, %v11805
        %11878 = vst.msk [vmem:[%s332 + $0xc0] sm:$0xff] %vm850, %v11807
        %11879 = vst.msk [vmem:[%s332 + $0xc8] sm:$0xff] %vm850, %v11809
        %11880 = vst.msk [vmem:[%s332 + $0xd0] sm:$0xff] %vm850, %v11811
        %11881 = vst.msk [vmem:[%s332 + $0xd8] sm:$0xff] %vm850, %v11813
        %11882 = vst.msk [vmem:[%s332 + $0xe0] sm:$0xff] %vm850, %v11815
        %11883 = vst.msk [vmem:[%s332 + $0xe8] sm:$0xff] %vm850, %v11817
        %11884 = vst.msk [vmem:[%s332 + $0xf0] sm:$0xff] %vm850, %v11819
        %11885 = vst.msk [vmem:[%s332 + $0xf8] sm:$0xff] %vm850, %v11821
        %11918 = vrot.lane.b32.xlu0 %v11118, 96
        %v11919 = vpop.permute.xlu0 %11918
        %11920 = vrot.lane.b32.xlu0 %v11119, 96
        %v11921 = vpop.permute.xlu0 %11920
        %11922 = vrot.lane.b32.xlu0 %v11120, 96
        %v11923 = vpop.permute.xlu0 %11922
        %11924 = vrot.lane.b32.xlu0 %v11121, 96
        %v11925 = vpop.permute.xlu0 %11924
        %11926 = vrot.lane.b32.xlu0 %v11122, 96
        %v11927 = vpop.permute.xlu0 %11926
        %11928 = vrot.lane.b32.xlu0 %v11123, 96
        %v11929 = vpop.permute.xlu0 %11928
        %11930 = vrot.lane.b32.xlu0 %v11124, 96
        %v11931 = vpop.permute.xlu0 %11930
        %11932 = vrot.lane.b32.xlu0 %v11125, 96
        %v11933 = vpop.permute.xlu0 %11932
        %11934 = vrot.lane.b32.xlu0 %v11126, 96
        %v11935 = vpop.permute.xlu0 %11934
        %11936 = vrot.lane.b32.xlu0 %v11127, 96
        %v11937 = vpop.permute.xlu0 %11936
        %11938 = vrot.lane.b32.xlu0 %v11128, 96
        %v11939 = vpop.permute.xlu0 %11938
        %11940 = vrot.lane.b32.xlu0 %v11129, 96
        %v11941 = vpop.permute.xlu0 %11940
        %11942 = vrot.lane.b32.xlu0 %v11130, 96
        %v11943 = vpop.permute.xlu0 %11942
        %11944 = vrot.lane.b32.xlu0 %v11131, 96
        %v11945 = vpop.permute.xlu0 %11944
        %11946 = vrot.lane.b32.xlu0 %v11132, 96
        %v11947 = vpop.permute.xlu0 %11946
        %11948 = vrot.lane.b32.xlu0 %v11133, 96
        %v11949 = vpop.permute.xlu0 %11948
        %11950 = vrot.lane.b32.xlu0 %v11134, 96
        %v11951 = vpop.permute.xlu0 %11950
        %11952 = vrot.lane.b32.xlu0 %v11135, 96
        %v11953 = vpop.permute.xlu0 %11952
        %11954 = vrot.lane.b32.xlu0 %v11136, 96
        %v11955 = vpop.permute.xlu0 %11954
        %11956 = vrot.lane.b32.xlu0 %v11137, 96
        %v11957 = vpop.permute.xlu0 %11956
        %11958 = vrot.lane.b32.xlu0 %v11138, 96
        %v11959 = vpop.permute.xlu0 %11958
        %11960 = vrot.lane.b32.xlu0 %v11139, 96
        %v11961 = vpop.permute.xlu0 %11960
        %11962 = vrot.lane.b32.xlu0 %v11140, 96
        %v11963 = vpop.permute.xlu0 %11962
        %11964 = vrot.lane.b32.xlu0 %v11141, 96
        %v11965 = vpop.permute.xlu0 %11964
        %11966 = vrot.lane.b32.xlu0 %v11142, 96
        %v11967 = vpop.permute.xlu0 %11966
        %11968 = vrot.lane.b32.xlu0 %v11143, 96
        %v11969 = vpop.permute.xlu0 %11968
        %11970 = vrot.lane.b32.xlu0 %v11144, 96
        %v11971 = vpop.permute.xlu0 %11970
        %11972 = vrot.lane.b32.xlu0 %v11145, 96
        %v11973 = vpop.permute.xlu0 %11972
        %11974 = vrot.lane.b32.xlu0 %v11146, 96
        %v11975 = vpop.permute.xlu0 %11974
        %11976 = vrot.lane.b32.xlu0 %v11147, 96
        %v11977 = vpop.permute.xlu0 %11976
        %11978 = vrot.lane.b32.xlu0 %v11148, 96
        %v11979 = vpop.permute.xlu0 %11978
        %11980 = vrot.lane.b32.xlu0 %v11149, 96
        %v11981 = vpop.permute.xlu0 %11980
        %12014 = vst.msk [vmem:[%s339] sm:$0xff] %vm850, %v11919
        %12015 = vst.msk [vmem:[%s339 + $0x8] sm:$0xff] %vm850, %v11921
        %12016 = vst.msk [vmem:[%s339 + $0x10] sm:$0xff] %vm850, %v11923
        %12017 = vst.msk [vmem:[%s339 + $0x18] sm:$0xff] %vm850, %v11925
        %12018 = vst.msk [vmem:[%s339 + $0x20] sm:$0xff] %vm850, %v11927
        %12019 = vst.msk [vmem:[%s339 + $0x28] sm:$0xff] %vm850, %v11929
        %12020 = vst.msk [vmem:[%s339 + $0x30] sm:$0xff] %vm850, %v11931
        %12021 = vst.msk [vmem:[%s339 + $0x38] sm:$0xff] %vm850, %v11933
        %12022 = vst.msk [vmem:[%s339 + $0x40] sm:$0xff] %vm850, %v11935
        %12023 = vst.msk [vmem:[%s339 + $0x48] sm:$0xff] %vm850, %v11937
        %12024 = vst.msk [vmem:[%s339 + $0x50] sm:$0xff] %vm850, %v11939
        %12025 = vst.msk [vmem:[%s339 + $0x58] sm:$0xff] %vm850, %v11941
        %12026 = vst.msk [vmem:[%s339 + $0x60] sm:$0xff] %vm850, %v11943
        %12027 = vst.msk [vmem:[%s339 + $0x68] sm:$0xff] %vm850, %v11945
        %12028 = vst.msk [vmem:[%s339 + $0x70] sm:$0xff] %vm850, %v11947
        %12029 = vst.msk [vmem:[%s339 + $0x78] sm:$0xff] %vm850, %v11949
        %12030 = vst.msk [vmem:[%s339 + $0x80] sm:$0xff] %vm850, %v11951
        %12031 = vst.msk [vmem:[%s339 + $0x88] sm:$0xff] %vm850, %v11953
        %12032 = vst.msk [vmem:[%s339 + $0x90] sm:$0xff] %vm850, %v11955
        %12033 = vst.msk [vmem:[%s339 + $0x98] sm:$0xff] %vm850, %v11957
        %12034 = vst.msk [vmem:[%s339 + $0xa0] sm:$0xff] %vm850, %v11959
        %12035 = vst.msk [vmem:[%s339 + $0xa8] sm:$0xff] %vm850, %v11961
        %12036 = vst.msk [vmem:[%s339 + $0xb0] sm:$0xff] %vm850, %v11963
        %12037 = vst.msk [vmem:[%s339 + $0xb8] sm:$0xff] %vm850, %v11965
        %12038 = vst.msk [vmem:[%s339 + $0xc0] sm:$0xff] %vm850, %v11967
        %12039 = vst.msk [vmem:[%s339 + $0xc8] sm:$0xff] %vm850, %v11969
        %12040 = vst.msk [vmem:[%s339 + $0xd0] sm:$0xff] %vm850, %v11971
        %12041 = vst.msk [vmem:[%s339 + $0xd8] sm:$0xff] %vm850, %v11973
        %12042 = vst.msk [vmem:[%s339 + $0xe0] sm:$0xff] %vm850, %v11975
        %12043 = vst.msk [vmem:[%s339 + $0xe8] sm:$0xff] %vm850, %v11977
        %12044 = vst.msk [vmem:[%s339 + $0xf0] sm:$0xff] %vm850, %v11979
        %12045 = vst.msk [vmem:[%s339 + $0xf8] sm:$0xff] %vm850, %v11981
        %s12046 = sand.u32 %s196, 1
        %s12047 = scalar_lea.sflag [#allocation3], %s12046
        %s12048 = sand.u32 %s196, 1
        %s12049 = smul.addr %s12048, 256
        %s12050 = scalar_lea.vmem [#allocation2], %s12049
        %s12051 = sand.u32 %s222, 1
        %s12052 = scalar_lea.sflag [#allocation5], %s12051
        %s12053 = sand.u32 %s222, 1
        %s12054 = smul.addr %s12053, 256
        %s12055 = scalar_lea.vmem [#allocation4], %s12054
        // Predicated region
        $region49: #{conv_lstm_cell_forward.1} parent=47 // pred_check
          %p12056 = pneg %p206
        $region50: #{conv_lstm_cell_forward.1} parent=47 // pred_check_branch
          %12058 = sbr.rel (%p12056) target = $region52
        $region51: #{conv_lstm_cell_forward.1} parent=47 // pred_region
          %s12060 = ssub.s32 4096, 4096
          %12061 = vsyncadd %s12047, %s12060
          %s12062 = smul.addr %s26, 32
          %s12063 = smul.addr %s12062, 128
          %s12064 = scalar_lea.hbm %s7, %s12063
          %s12065 = sshll.u32 %s12050, 4
          %s12066 = int_to_ptr.vmem [resolvable:$true] %s12065
          %12071 = dma.vmem_to_hbm [thread:$0]  %s12066, 4096, %s12064, %s12047, 128, 128, 8
        $region52: #{conv_lstm_cell_forward.1} parent=47 // pred_fallthru
          _
        // Predicated region
        $region53: #{conv_lstm_cell_forward.1} parent=47 // pred_check
          %p12072 = pneg %p232
        $region54: #{conv_lstm_cell_forward.1} parent=47 // pred_check_branch
          %12074 = sbr.rel (%p12072) target = $region56
        $region55: #{conv_lstm_cell_forward.1} parent=47 // pred_region
          %s12076 = ssub.s32 4096, 4096
          %12077 = vsyncadd %s12052, %s12076
          %s12078 = smul.addr %s26, 32
          %s12079 = smul.addr %s12078, 128
          %s12080 = scalar_lea.hbm %s8, %s12079
          %s12081 = sshll.u32 %s12055, 4
          %s12082 = int_to_ptr.vmem [resolvable:$true] %s12081
          %12087 = dma.vmem_to_hbm [thread:$0]  %s12082, 4096, %s12080, %s12052, 128, 128, 8
        $region56: #{conv_lstm_cell_forward.1} parent=47 // pred_fallthru
          _
      $region48: #{conv_lstm_cell_forward.1} parent=5 // pred_fallthru
        _
      %p12088 = scmp.le.s32.totalorder 2, %s21
      // Predicated region
      $region57: #{conv_lstm_cell_forward.1} parent=5 // pred_check
        %p12089 = pneg %p12088
      $region58: #{conv_lstm_cell_forward.1} parent=5 // pred_check_branch
        %12091 = sbr.rel (%p12089) target = $region60
      $region59: #{conv_lstm_cell_forward.1} parent=5 // pred_region
        %s12092 = ssub.s32 %s21, 2
        // Predicated region
        $region61: #{conv_lstm_cell_forward.1} parent=59 // pred_check
          %p12093 = pneg %p212
        $region62: #{conv_lstm_cell_forward.1} parent=59 // pred_check_branch
          %12095 = sbr.rel (%p12093) target = $region64
        $region63: #{conv_lstm_cell_forward.1} parent=59 // pred_region
          %s12096 = sand.u32 %s197, 1
          %s12097 = scalar_lea.sflag [#allocation3], %s12096
          %s12098 = sand.u32 %s197, 1
          %s12099 = smul.addr %s12098, 256
          %s12100 = scalar_lea.vmem [#allocation2], %s12099
          %12101 = dma.done %s12097, 4096
        $region64: #{conv_lstm_cell_forward.1} parent=59 // pred_fallthru
          _
        // Predicated region
        $region65: #{conv_lstm_cell_forward.1} parent=59 // pred_check
          %p12102 = pneg %p238
        $region66: #{conv_lstm_cell_forward.1} parent=59 // pred_check_branch
          %12104 = sbr.rel (%p12102) target = $region68
        $region67: #{conv_lstm_cell_forward.1} parent=59 // pred_region
          %s12105 = sand.u32 %s223, 1
          %s12106 = scalar_lea.sflag [#allocation5], %s12105
          %s12107 = sand.u32 %s223, 1
          %s12108 = smul.addr %s12107, 256
          %s12109 = scalar_lea.vmem [#allocation4], %s12108
          %12110 = dma.done %s12106, 4096
        $region68: #{conv_lstm_cell_forward.1} parent=59 // pred_fallthru
          _
      $region60: #{conv_lstm_cell_forward.1} parent=5 // pred_fallthru
        _
    $region6: #{conv_lstm_cell_forward.1} parent=1 // loop_footer
      %s25 = sadd.s32 1, %s21
    $region7: #{conv_lstm_cell_forward.1} parent=1 // loop_footer_branch
      %20 = sbr.rel target = $region3
    $region8: #{conv_lstm_cell_forward.1} parent=1 // loop_exit
      _
    %12111 = vsyncpa [#allocation3], 1
    %s12112 = scalar_lea.sflag [#allocation3], 1
    %12113 = vsyncpa %s12112, 1
    %12114 = vsyncpa [#allocation5], 1
    %s12115 = scalar_lea.sflag [#allocation5], 1
    %12116 = vsyncpa %s12115, 1

</llo_original>
